<compile_context>
chip_gen: v5e
topology: v5e:2x2
jax: 0.10.0
libtpu: 0.0.40
codegen_flags: <defaults>
</compile_context>

<pallas_src>
import functools
import math

import jax
import jax.numpy as jnp
from jax.experimental import pallas as pl
from jax.experimental.pallas import tpu as pltpu

# Whole-array-in-VMEM block spec (grid-less fused kernels => single-buffered).
WVMEM = pl.BlockSpec(memory_space=pltpu.MemorySpace.VMEM)

# Finite "-inf": keeps all-PAD rows from producing NaN in the softmax.
NEG_INF = -1e30


# ----------------------------------------------------------------------------
# In-kernel helpers (traced inside Pallas kernels)
# ----------------------------------------------------------------------------
def _bf16_dot(a, w):
    """MXU matmul: activations cast to bf16, weights already bf16, f32 accumulate."""
    return jnp.dot(a.astype(jnp.bfloat16), w, preferred_element_type=jnp.float32)


def _ln(x, g, b, eps=1e-5):
    """LayerNorm over the last dim (PyTorch semantics, eps=1e-5), f32 math."""
    mu = jnp.mean(x, axis=-1, keepdims=True)
    var = jnp.mean(jnp.square(x - mu), axis=-1, keepdims=True)
    return (x - mu) * jax.lax.rsqrt(var + eps) * g + b


def _mha_accum(q_all, k_all, v_all, wo, mask_fn, batch, nhead):
    """Multi-head attention over per-batch row blocks of a flattened slab.

    q_all: (B*Lq, E), k_all/v_all: (B*Lk, E) f32; wo: (E, E) bf16.
    mask_fn(b) -> additive mask broadcastable to (Lq, Lk), f32.
    Returns the OUTPUT-PROJECTED context (B*Lq, E) f32 (bias not added):
    head contexts are accumulated through per-head rows of Wo instead of
    being concatenated along lanes.
    """
    rows_q, e = q_all.shape
    lq = rows_q // batch
    lk = k_all.shape[0] // batch
    dh = e // nhead
    scale = 1.0 / math.sqrt(dh)
    out_blocks = []
    for b in range(batch):                      # static loops: small B, H
        qb = q_all[b * lq:(b + 1) * lq, :]
        kb = k_all[b * lk:(b + 1) * lk, :]
        vb = v_all[b * lk:(b + 1) * lk, :]
        m = mask_fn(b)
        acc = None
        for h in range(nhead):
            lo, hi = h * dh, (h + 1) * dh
            s = jax.lax.dot_general(qb[:, lo:hi], kb[:, lo:hi],
                                    (((1,), (1,)), ((), ())),
                                    preferred_element_type=jnp.float32)
            s = s * scale + m
            s = s - jnp.max(s, axis=-1, keepdims=True)
            p = jnp.exp(s)
            # approx reciprocal -> EUP slot; internal softmax normalization
            # does not need an exact divide.
            p = p * pl.reciprocal(jnp.sum(p, axis=-1, keepdims=True), approx=True)
            ctx = jnp.dot(p, vb[:, lo:hi], preferred_element_type=jnp.float32)
            contrib = jnp.dot(ctx.astype(jnp.bfloat16), wo[lo:hi, :],
                              preferred_element_type=jnp.float32)
            acc = contrib if acc is None else acc + contrib
        out_blocks.append(acc)
    return jnp.concatenate(out_blocks, axis=0)   # sublane-dim concat only


# ----------------------------------------------------------------------------
# Fused layer kernels (one pallas_call per transformer layer)
# ----------------------------------------------------------------------------
def _enc_layer_kernel(x_ref, kpm_ref,
                      wqkv_ref, bqkv_ref, wo_ref, bo_ref,
                      w1_ref, b1_ref, w2_ref, b2_ref,
                      ln1g_ref, ln1b_ref, ln2g_ref, ln2b_ref,
                      fng_ref, fnb_ref,
                      o_ref, *, nhead, final_ln):
    """One post-LN encoder layer over the whole flattened (B*Ls, E) slab."""
    x = x_ref[...].astype(jnp.float32)                         # (B*Ls, E)
    batch = kpm_ref.shape[0]
    e = x.shape[1]

    # --- self attention (fused QKV projection, M = B*Ls) ---
    qkv = _bf16_dot(x, wqkv_ref[...]) + bqkv_ref[...]          # (B*Ls, 3E)
    a = _mha_accum(qkv[:, :e], qkv[:, e:2 * e], qkv[:, 2 * e:],
                   wo_ref[...], lambda b: kpm_ref[b], batch, nhead) + bo_ref[...]
    x = _ln(x + a, ln1g_ref[...], ln1b_ref[...])

    # --- feed-forward (relu), M = B*Ls ---
    h = jnp.maximum(_bf16_dot(x, w1_ref[...]) + b1_ref[...], 0.0)
    h = _bf16_dot(h, w2_ref[...]) + b2_ref[...]
    x = _ln(x + h, ln2g_ref[...], ln2b_ref[...])

    if final_ln:   # nn.Transformer encoder-final LayerNorm fused into last layer
        x = _ln(x, fng_ref[...], fnb_ref[...])

    o_ref[...] = x.astype(o_ref.dtype)


def _dec_layer_kernel(y_ref, mem_ref, tkpm_ref, mkpm_ref, causal_ref,
                      swqkv_ref, sbqkv_ref, swo_ref, sbo_ref,
                      cwq_ref, cbq_ref, cwkv_ref, cbkv_ref, cwo_ref, cbo_ref,
                      w1_ref, b1_ref, w2_ref, b2_ref,
                      ln1g_ref, ln1b_ref, ln2g_ref, ln2b_ref,
                      ln3g_ref, ln3b_ref,
                      o_ref, *, nhead):
    """One post-LN decoder layer over the whole flattened (B*Lt, E) slab."""
    y = y_ref[...].astype(jnp.float32)                         # (B*Lt, E)
    mem = mem_ref[...].astype(jnp.float32)                     # (B*Ls, E)
    batch = tkpm_ref.shape[0]
    e = y.shape[1]
    causal = causal_ref[...]                                   # (Lt, Lt)

    # --- masked self attention ---
    qkv = _bf16_dot(y, swqkv_ref[...]) + sbqkv_ref[...]
    a = _mha_accum(qkv[:, :e], qkv[:, e:2 * e], qkv[:, 2 * e:], swo_ref[...],
                   lambda b: causal + tkpm_ref[b], batch, nhead) + sbo_ref[...]
    y = _ln(y + a, ln1g_ref[...], ln1b_ref[...])

    # --- cross attention (separate q / kv projection weights) ---
    q = _bf16_dot(y, cwq_ref[...]) + cbq_ref[...]
    kv = _bf16_dot(mem, cwkv_ref[...]) + cbkv_ref[...]
    a = _mha_accum(q, kv[:, :e], kv[:, e:], cwo_ref[...],
                   lambda b: mkpm_ref[b], batch, nhead) + cbo_ref[...]
    y = _ln(y + a, ln2g_ref[...], ln2b_ref[...])

    # --- feed-forward (relu) ---
    h = jnp.maximum(_bf16_dot(y, w1_ref[...]) + b1_ref[...], 0.0)
    h = _bf16_dot(h, w2_ref[...]) + b2_ref[...]
    y = _ln(y + h, ln3g_ref[...], ln3b_ref[...])

    o_ref[...] = y.astype(o_ref.dtype)


def _fc_softmax_kernel(y_ref, g_ref, b_ref, w_ref, fb_ref, o_ref, *, vocab):
    """Decoder-final LayerNorm + fc + softmax for one row tile, lane-dense."""
    y = _ln(y_ref[...].astype(jnp.float32), g_ref[...], b_ref[...])
    logits = _bf16_dot(y, w_ref[...]) + fb_ref[...]            # (tile_m, Vp)
    col = jax.lax.broadcasted_iota(jnp.int32, logits.shape, 1)
    logits = jnp.where(col < vocab, logits, NEG_INF)           # kill padded cols
    logits = logits - jnp.max(logits, axis=-1, keepdims=True)
    e = jnp.exp(logits)
    # exact divide keeps the row-sum == 1 invariant
    o_ref[...] = e / jnp.sum(e, axis=-1, keepdims=True)


# ----------------------------------------------------------------------------
# pallas_call plumbing
# ----------------------------------------------------------------------------
def _const_spec(shape):
    """Full-array block, same block for every grid step (weights / biases)."""
    n = len(shape)
    return pl.BlockSpec(shape, lambda *_: (0,) * n)


def _vmem_budget(args, activation_bytes):
    """Explicit scoped-VMEM budget: operands + generous intermediate headroom,
    clamped to a range that is safe on v5e/v6e (128 MiB) and v7x (64 MiB)."""
    operand = sum(int(a.size) * a.dtype.itemsize for a in args)
    est = 2 * operand + 8 * int(activation_bytes) + (2 << 20)
    return int(min(max(est, 8 << 20), 48 << 20))


def pallas_norm_fc_softmax(y2, g, b, w, fb, vocab):
    """softmax(LN(y2) @ w + fb)[:, :vocab]; rows tiled on a 'parallel' grid,
    vocab kept lane-dense (padded to a multiple of 128, masked in-kernel)."""
    m, e = y2.shape
    vp = w.shape[1]
    # row tile: multiple of 16 sublanes (bf16 activations), up to 256 (MXU M)
    tile_m = min(256, ((m + 15) // 16) * 16)
    mp = ((m + tile_m - 1) // tile_m) * tile_m
    if mp != m:
        y2 = jnp.pad(y2, ((0, mp - m), (0, 0)))
    args = (y2, g, b, w, fb)
    out = pl.pallas_call(
        functools.partial(_fc_softmax_kernel, vocab=vocab),
        out_shape=jax.ShapeDtypeStruct((mp, vp), jnp.float32),
        grid=(mp // tile_m,),
        in_specs=[pl.BlockSpec((tile_m, e), lambda i: (i, 0)),
                  _const_spec((1, e)), _const_spec((1, e)),
                  _const_spec((e, vp)), _const_spec((1, vp))],
        out_specs=pl.BlockSpec((tile_m, vp), lambda i: (i, 0)),
        compiler_params=pltpu.CompilerParams(
            dimension_semantics=("parallel",),
            vmem_limit_bytes=_vmem_budget(args, tile_m * vp * 4)),
    )(*args)
    # TODO(synk): for very large vocab (e.g. 32k) on v7x (64 MiB VMEM) also
    # tile the vocab axis with a two-pass / online softmax.
    return out[:m, :vocab]


# ----------------------------------------------------------------------------
# Positional encoding (host-side constant)
# ----------------------------------------------------------------------------
def make_positional_encoding(max_len, d_model):
    pos = jnp.arange(max_len, dtype=jnp.float32)[:, None]
    div = jnp.exp(jnp.arange(0, d_model, 2, dtype=jnp.float32)
                  * (-math.log(10000.0) / d_model))
    pe = jnp.zeros((max_len, d_model), jnp.float32)
    pe = pe.at[:, 0::2].set(jnp.sin(pos * div))
    pe = pe.at[:, 1::2].set(jnp.cos(pos * div))
    return pe  # (max_len, d_model)


# ----------------------------------------------------------------------------
# Model
# ----------------------------------------------------------------------------
class TransformerMTPallas:
    def __init__(self, src_vocab_size, tgt_vocab_size, d_model, nhead,
                 num_encoder_layers, num_decoder_layers, dim_feedforward,
                 max_seq_length, pos_dropout, trans_dropout, key):
        self.d_model = d_model
        self.nhead = nhead
        self.tgt_vocab_size = tgt_vocab_size
        # TODO(synk): pos_dropout / trans_dropout are identity (eval / inference).
        self.pe = make_positional_encoding(max_seq_length, d_model)

        cnt = [0]

        def nxt():
            cnt[0] += 1
            return jax.random.fold_in(key, cnt[0])

        def wf32(shape, scale=0.1):
            return scale * jax.random.normal(nxt(), shape, jnp.float32)

        def wbf16(shape, scale=0.1):
            return wf32(shape, scale).astype(jnp.bfloat16)

        def zeros(shape):
            return jnp.zeros(shape, jnp.float32)

        def ones(shape):
            return jnp.ones(shape, jnp.float32)

        E, Fd = d_model, dim_feedforward
        self.embed_src = wf32((src_vocab_size, E), 1.0)
        self.embed_tgt = wf32((tgt_vocab_size, E), 1.0)

        def mha_self():
            # Pre-transposed, pre-concatenated QKV: y = x @ wqkv + bqkv.
            return dict(wqkv=wbf16((E, 3 * E)), bqkv=zeros((1, 3 * E)),
                        wo=wbf16((E, E)), bo=zeros((1, E)))

        def mha_cross():
            # q-proj and kv-proj kept as separate arrays (no in-kernel slicing
            # of a loaded (E,3E) weight).
            return dict(wq=wbf16((E, E)), bq=zeros((1, E)),
                        wkv=wbf16((E, 2 * E)), bkv=zeros((1, 2 * E)),
                        wo=wbf16((E, E)), bo=zeros((1, E)))

        def ffn_ln(n_ln):
            d = dict(w1=wbf16((E, Fd)), b1=zeros((1, Fd)),
                     w2=wbf16((Fd, E)), b2=zeros((1, E)))
            for i in range(1, n_ln + 1):
                d[f"ln{i}g"] = ones((1, E))
                d[f"ln{i}b"] = zeros((1, E))
            return d

        self.enc_layers = []
        for _ in range(num_encoder_layers):
            p = dict(mha_self())
            p.update(ffn_ln(2))
            self.enc_layers.append(p)

        self.dec_layers = []
        for _ in range(num_decoder_layers):
            p = {"self": mha_self(), "cross": mha_cross()}
            p.update(ffn_ln(3))
            self.dec_layers.append(p)

        # nn.Transformer final encoder / decoder LayerNorms
        self.enc_norm_g, self.enc_norm_b = ones((1, E)), zeros((1, E))
        self.dec_norm_g, self.dec_norm_b = ones((1, E)), zeros((1, E))

        # Final fc: vocab padded to a multiple of 128 for lane-dense stores.
        Vp = ((tgt_vocab_size + 127) // 128) * 128
        fcw = wf32((E, tgt_vocab_size))
        self.fc_w = jnp.pad(fcw, ((0, 0), (0, Vp - tgt_vocab_size))).astype(jnp.bfloat16)
        self.fc_b = zeros((1, Vp))

    # --- fused encoder layer: one grid-less pallas_call over the (B*Ls,E) slab
    def _encoder_layer(self, x2, kpm_add, p, final_ln):
        args = (x2, kpm_add,
                p["wqkv"], p["bqkv"], p["wo"], p["bo"],
                p["w1"], p["b1"], p["w2"], p["b2"],
                p["ln1g"], p["ln1b"], p["ln2g"], p["ln2b"],
                self.enc_norm_g, self.enc_norm_b)
        act = x2.shape[0] * max(3 * self.d_model, p["w1"].shape[1]) * 4
        return pl.pallas_call(
            functools.partial(_enc_layer_kernel, nhead=self.nhead,
                              final_ln=final_ln),
            out_shape=jax.ShapeDtypeStruct(x2.shape, jnp.bfloat16),
            in_specs=[WVMEM] * len(args),
            out_specs=WVMEM,
            compiler_params=pltpu.CompilerParams(
                vmem_limit_bytes=_vmem_budget(args, act)),
        )(*args)

    # --- fused decoder layer: one grid-less pallas_call over the (B*Lt,E) slab
    def _decoder_layer(self, y2, mem2, tkpm_add, mkpm_add, causal, p):
        args = (y2, mem2, tkpm_add, mkpm_add, causal,
                p["self"]["wqkv"], p["self"]["bqkv"],
                p["self"]["wo"], p["self"]["bo"],
                p["cross"]["wq"], p["cross"]["bq"],
                p["cross"]["wkv"], p["cross"]["bkv"],
                p["cross"]["wo"], p["cross"]["bo"],
                p["w1"], p["b1"], p["w2"], p["b2"],
                p["ln1g"], p["ln1b"], p["ln2g"], p["ln2b"],
                p["ln3g"], p["ln3b"])
        act = (y2.shape[0] + mem2.shape[0]) * max(3 * self.d_model,
                                                  p["w1"].shape[1]) * 4
        return pl.pallas_call(
            functools.partial(_dec_layer_kernel, nhead=self.nhead),
            out_shape=jax.ShapeDtypeStruct(y2.shape, jnp.bfloat16),
            in_specs=[WVMEM] * len(args),
            out_specs=WVMEM,
            compiler_params=pltpu.CompilerParams(
                vmem_limit_bytes=_vmem_budget(args, act)),
        )(*args)

    # --- forward (PyTorch TransformerMT.forward semantics, eval mode) ---
    def __call__(self, src, tgt, src_key_padding_mask, tgt_key_padding_mask,
                 memory_key_padding_mask, tgt_mask):
        # Masks arrive as (seq, batch); transpose to (batch, seq) — same as the
        # PyTorch module's forward.
        if src_key_padding_mask is not None:
            src_key_padding_mask = src_key_padding_mask.T
        if tgt_key_padding_mask is not None:
            tgt_key_padding_mask = tgt_key_padding_mask.T
        if memory_key_padding_mask is not None:
            memory_key_padding_mask = memory_key_padding_mask.T

        E = self.d_model
        Ls, B = src.shape
        Lt, _ = tgt.shape
        V = self.tgt_vocab_size

        # Tiny additive masks (B, 1, Lk); the (B*H, Lq, Lk) mask is never built.
        def kpm_add(kpm, L):
            if kpm is None:
                return jnp.zeros((B, 1, L), jnp.float32)
            return jnp.where(kpm, NEG_INF, 0.0).astype(jnp.float32)[:, None, :]

        src_add = kpm_add(src_key_padding_mask, Ls)
        tgt_add = kpm_add(tgt_key_padding_mask, Lt)
        mem_add = kpm_add(memory_key_padding_mask, Ls)
        if tgt_mask is None:
            causal = jnp.zeros((Lt, Lt), jnp.float32)
        else:
            # clamp -inf to a finite value: avoids NaN on fully-masked rows
            causal = jnp.maximum(tgt_mask.astype(jnp.float32), NEG_INF)

        # Embedding + positional encoding (XLA gather; tiny), then batch-first
        # and batch flattened into the matmul M dimension; bf16 inter-layer.
        s = jnp.take(self.embed_src, src, axis=0) * math.sqrt(E) + self.pe[:Ls][:, None, :]
        t = jnp.take(self.embed_tgt, tgt, axis=0) * math.sqrt(E) + self.pe[:Lt][:, None, :]
        x2 = jnp.transpose(s, (1, 0, 2)).reshape(B * Ls, E).astype(jnp.bfloat16)
        y2 = jnp.transpose(t, (1, 0, 2)).reshape(B * Lt, E).astype(jnp.bfloat16)

        n_enc = len(self.enc_layers)
        for i, p in enumerate(self.enc_layers):
            x2 = self._encoder_layer(x2, src_add, p, final_ln=(i == n_enc - 1))
        memory2 = x2   # encoder-final LayerNorm already fused into last layer

        for p in self.dec_layers:
            y2 = self._decoder_layer(y2, memory2, tgt_add, mem_add, causal, p)

        # decoder-final LayerNorm + fc + softmax (fused, lane-dense output)
        probs = pallas_norm_fc_softmax(y2, self.dec_norm_g, self.dec_norm_b,
                                       self.fc_w, self.fc_b, V)   # (B*Lt, V)
        return probs.reshape(B, Lt, V).transpose(1, 0, 2)          # (Lt, B, V)


# ----------------------------------------------------------------------------
if __name__ == "__main__":
    src_vocab_size, tgt_vocab_size = 37, 41
    d_model, nhead = 32, 4
    num_encoder_layers = num_decoder_layers = 2
    dim_feedforward = 64
    max_seq_length = 64
    B, Ls, Lt = 2, 8, 8

    key = jax.random.PRNGKey(0)
    k_param, k_src, k_tgt = jax.random.split(key, 3)

    model = TransformerMTPallas(src_vocab_size, tgt_vocab_size, d_model, nhead,
                                num_encoder_layers, num_decoder_layers,
                                dim_feedforward, max_seq_length,
                                pos_dropout=0.1, trans_dropout=0.1, key=k_param)

    src = jax.random.randint(k_src, (Ls, B), 0, src_vocab_size, dtype=jnp.int32)
    tgt = jax.random.randint(k_tgt, (Lt, B), 0, tgt_vocab_size, dtype=jnp.int32)

    # key-padding masks as (seq, batch) bools (True = PAD token)
    src_lens = jnp.array([Ls, Ls - 2])
    tgt_lens = jnp.array([Lt - 1, Lt])
    src_kpm = jnp.arange(Ls)[:, None] >= src_lens[None, :]   # (Ls, B)
    tgt_kpm = jnp.arange(Lt)[:, None] >= tgt_lens[None, :]   # (Lt, B)
    mem_kpm = src_kpm

    # causal mask, PyTorch generate_square_subsequent_mask semantics
    tgt_mask = jnp.where(jnp.triu(jnp.ones((Lt, Lt)), k=1) == 1,
                         jnp.float32(-jnp.inf), jnp.float32(0.0))

    fwd = jax.jit(model.__call__)
    out = fwd(src, tgt, src_kpm, tgt_kpm, mem_kpm, tgt_mask)
    out = jax.block_until_ready(out)

    assert out.shape == (Lt, B, tgt_vocab_size)
    assert bool(jnp.all(jnp.isfinite(out)))
    assert bool(jnp.allclose(jnp.sum(out, axis=2), 1.0, atol=1e-4))
    print("KERNEL_OK")
</pallas_src>

<mosaic_0001>
module attributes {stable_mosaic.version = 11 : i64} {
  func.func @_enc_layer_kernel(%arg0: memref<16x32xbf16, #tpu.memory_space<vmem>>, %arg1: memref<2x1x8xf32, #tpu.memory_space<vmem>>, %arg2: memref<32x96xbf16, #tpu.memory_space<vmem>>, %arg3: memref<1x96xf32, #tpu.memory_space<vmem>>, %arg4: memref<32x32xbf16, #tpu.memory_space<vmem>>, %arg5: memref<1x32xf32, #tpu.memory_space<vmem>>, %arg6: memref<32x64xbf16, #tpu.memory_space<vmem>>, %arg7: memref<1x64xf32, #tpu.memory_space<vmem>>, %arg8: memref<64x32xbf16, #tpu.memory_space<vmem>>, %arg9: memref<1x32xf32, #tpu.memory_space<vmem>>, %arg10: memref<1x32xf32, #tpu.memory_space<vmem>>, %arg11: memref<1x32xf32, #tpu.memory_space<vmem>>, %arg12: memref<1x32xf32, #tpu.memory_space<vmem>>, %arg13: memref<1x32xf32, #tpu.memory_space<vmem>>, %arg14: memref<1x32xf32, #tpu.memory_space<vmem>>, %arg15: memref<1x32xf32, #tpu.memory_space<vmem>>, %arg16: memref<16x32xbf16, #tpu.memory_space<vmem>>) attributes {dimension_semantics = [], scalar_prefetch = 0 : i64, scratch_operands = 0 : i64, tpu.core_type = #tpu.core_type<tc>} {
    %c0 = arith.constant 0 : index
    %c0_0 = arith.constant 0 : index
    %0 = vector.load %arg0[%c0, %c0_0] : memref<16x32xbf16, #tpu.memory_space<vmem>>, vector<16x32xbf16>
    %1 = arith.extf %0 : vector<16x32xbf16> to vector<16x32xf32>
    %c0_1 = arith.constant 0 : index
    %c0_2 = arith.constant 0 : index
    %2 = vector.load %arg2[%c0_1, %c0_2] : memref<32x96xbf16, #tpu.memory_space<vmem>>, vector<32x96xbf16>
    %3 = arith.truncf %1 : vector<16x32xf32> to vector<16x32xbf16>
    %cst = arith.constant dense<0.000000e+00> : vector<16x96xf32>
    %4 = tpu.matmul %3, %2, %cst {dimension_numbers = #tpu.dot_dimension_numbers<[1], [0], [0], [1], [0, 0, 1, 1], [], []>} : vector<16x32xbf16>, vector<32x96xbf16>, vector<16x96xf32> -> vector<16x96xf32>
    %c0_3 = arith.constant 0 : index
    %c0_4 = arith.constant 0 : index
    %5 = vector.load %arg3[%c0_3, %c0_4] : memref<1x96xf32, #tpu.memory_space<vmem>>, vector<1x96xf32>
    %6 = vector.broadcast %5 : vector<1x96xf32> to vector<16x96xf32>
    %7 = arith.addf %4, %6 : vector<16x96xf32>
    %8 = vector.extract_strided_slice %7 {offsets = [0, 0], sizes = [16, 32], strides = [1, 1]} : vector<16x96xf32> to vector<16x32xf32>
    %9 = vector.extract_strided_slice %7 {offsets = [0, 32], sizes = [16, 32], strides = [1, 1]} : vector<16x96xf32> to vector<16x32xf32>
    %10 = vector.extract_strided_slice %7 {offsets = [0, 64], sizes = [16, 32], strides = [1, 1]} : vector<16x96xf32> to vector<16x32xf32>
    %c0_5 = arith.constant 0 : index
    %c0_6 = arith.constant 0 : index
    %11 = vector.load %arg4[%c0_5, %c0_6] : memref<32x32xbf16, #tpu.memory_space<vmem>>, vector<32x32xbf16>
    %12 = vector.extract_strided_slice %8 {offsets = [0, 0], sizes = [8, 32], strides = [1, 1]} : vector<16x32xf32> to vector<8x32xf32>
    %13 = vector.extract_strided_slice %9 {offsets = [0, 0], sizes = [8, 32], strides = [1, 1]} : vector<16x32xf32> to vector<8x32xf32>
    %14 = vector.extract_strided_slice %10 {offsets = [0, 0], sizes = [8, 32], strides = [1, 1]} : vector<16x32xf32> to vector<8x32xf32>
    %c0_7 = arith.constant 0 : index
    %c0_8 = arith.constant 0 : index
    %c0_9 = arith.constant 0 : index
    %15 = vector.load %arg1[%c0_7, %c0_8, %c0_9] : memref<2x1x8xf32, #tpu.memory_space<vmem>>, vector<1x1x8xf32>
    %16 = vector.shape_cast %15 : vector<1x1x8xf32> to vector<1x8xf32>
    %17 = vector.extract_strided_slice %12 {offsets = [0, 0], sizes = [8, 8], strides = [1, 1]} : vector<8x32xf32> to vector<8x8xf32>
    %18 = vector.extract_strided_slice %13 {offsets = [0, 0], sizes = [8, 8], strides = [1, 1]} : vector<8x32xf32> to vector<8x8xf32>
    %cst_10 = arith.constant dense<0.000000e+00> : vector<8x8xf32>
    %19 = tpu.matmul %17, %18, %cst_10 {dimension_numbers = #tpu.dot_dimension_numbers<[1], [1], [0], [0], [0, 0, 1, 0], [], []>} : vector<8x8xf32>, vector<8x8xf32>, vector<8x8xf32> -> vector<8x8xf32>
    %cst_11 = arith.constant 0.353553385 : f32
    %20 = vector.broadcast %cst_11 : f32 to vector<8x8xf32>
    %21 = arith.mulf %19, %20 : vector<8x8xf32>
    %22 = vector.broadcast %16 : vector<1x8xf32> to vector<8x8xf32>
    %23 = arith.addf %21, %22 : vector<8x8xf32>
    %cst_12 = arith.constant dense<0xFF800000> : vector<8xf32>
    %24 = vector.multi_reduction <maximumf>, %23, %cst_12 [1] : vector<8x8xf32> to vector<8xf32>
    %25 = vector.shape_cast %24 : vector<8xf32> to vector<8x1xf32>
    %26 = vector.broadcast %25 : vector<8x1xf32> to vector<8x8xf32>
    %27 = arith.subf %23, %26 : vector<8x8xf32>
    %28 = math.exp %27 : vector<8x8xf32>
    %cst_13 = arith.constant dense<0.000000e+00> : vector<8xf32>
    %29 = vector.multi_reduction <add>, %28, %cst_13 [1] : vector<8x8xf32> to vector<8xf32>
    %30 = vector.shape_cast %29 : vector<8xf32> to vector<8x1xf32>
    %31 = tpu.reciprocal %30 {approx = true} : vector<8x1xf32> -> vector<8x1xf32>
    %32 = vector.broadcast %31 : vector<8x1xf32> to vector<8x8xf32>
    %33 = arith.mulf %28, %32 : vector<8x8xf32>
    %34 = vector.extract_strided_slice %14 {offsets = [0, 0], sizes = [8, 8], strides = [1, 1]} : vector<8x32xf32> to vector<8x8xf32>
    %cst_14 = arith.constant dense<0.000000e+00> : vector<8x8xf32>
    %35 = tpu.matmul %33, %34, %cst_14 {dimension_numbers = #tpu.dot_dimension_numbers<[1], [0], [0], [1], [0, 0, 1, 1], [], []>} : vector<8x8xf32>, vector<8x8xf32>, vector<8x8xf32> -> vector<8x8xf32>
    %36 = arith.truncf %35 : vector<8x8xf32> to vector<8x8xbf16>
    %37 = vector.extract_strided_slice %11 {offsets = [0, 0], sizes = [8, 32], strides = [1, 1]} : vector<32x32xbf16> to vector<8x32xbf16>
    %cst_15 = arith.constant dense<0.000000e+00> : vector<8x32xf32>
    %38 = tpu.matmul %36, %37, %cst_15 {dimension_numbers = #tpu.dot_dimension_numbers<[1], [0], [0], [1], [0, 0, 1, 1], [], []>} : vector<8x8xbf16>, vector<8x32xbf16>, vector<8x32xf32> -> vector<8x32xf32>
    %39 = vector.extract_strided_slice %12 {offsets = [0, 8], sizes = [8, 8], strides = [1, 1]} : vector<8x32xf32> to vector<8x8xf32>
    %40 = vector.extract_strided_slice %13 {offsets = [0, 8], sizes = [8, 8], strides = [1, 1]} : vector<8x32xf32> to vector<8x8xf32>
    %cst_16 = arith.constant dense<0.000000e+00> : vector<8x8xf32>
    %41 = tpu.matmul %39, %40, %cst_16 {dimension_numbers = #tpu.dot_dimension_numbers<[1], [1], [0], [0], [0, 0, 1, 0], [], []>} : vector<8x8xf32>, vector<8x8xf32>, vector<8x8xf32> -> vector<8x8xf32>
    %cst_17 = arith.constant 0.353553385 : f32
    %42 = vector.broadcast %cst_17 : f32 to vector<8x8xf32>
    %43 = arith.mulf %41, %42 : vector<8x8xf32>
    %44 = vector.broadcast %16 : vector<1x8xf32> to vector<8x8xf32>
    %45 = arith.addf %43, %44 : vector<8x8xf32>
    %cst_18 = arith.constant dense<0xFF800000> : vector<8xf32>
    %46 = vector.multi_reduction <maximumf>, %45, %cst_18 [1] : vector<8x8xf32> to vector<8xf32>
    %47 = vector.shape_cast %46 : vector<8xf32> to vector<8x1xf32>
    %48 = vector.broadcast %47 : vector<8x1xf32> to vector<8x8xf32>
    %49 = arith.subf %45, %48 : vector<8x8xf32>
    %50 = math.exp %49 : vector<8x8xf32>
    %cst_19 = arith.constant dense<0.000000e+00> : vector<8xf32>
    %51 = vector.multi_reduction <add>, %50, %cst_19 [1] : vector<8x8xf32> to vector<8xf32>
    %52 = vector.shape_cast %51 : vector<8xf32> to vector<8x1xf32>
    %53 = tpu.reciprocal %52 {approx = true} : vector<8x1xf32> -> vector<8x1xf32>
    %54 = vector.broadcast %53 : vector<8x1xf32> to vector<8x8xf32>
    %55 = arith.mulf %50, %54 : vector<8x8xf32>
    %56 = vector.extract_strided_slice %14 {offsets = [0, 8], sizes = [8, 8], strides = [1, 1]} : vector<8x32xf32> to vector<8x8xf32>
    %cst_20 = arith.constant dense<0.000000e+00> : vector<8x8xf32>
    %57 = tpu.matmul %55, %56, %cst_20 {dimension_numbers = #tpu.dot_dimension_numbers<[1], [0], [0], [1], [0, 0, 1, 1], [], []>} : vector<8x8xf32>, vector<8x8xf32>, vector<8x8xf32> -> vector<8x8xf32>
    %58 = arith.truncf %57 : vector<8x8xf32> to vector<8x8xbf16>
    %59 = vector.extract_strided_slice %11 {offsets = [8, 0], sizes = [8, 32], strides = [1, 1]} : vector<32x32xbf16> to vector<8x32xbf16>
    %cst_21 = arith.constant dense<0.000000e+00> : vector<8x32xf32>
    %60 = tpu.matmul %58, %59, %cst_21 {dimension_numbers = #tpu.dot_dimension_numbers<[1], [0], [0], [1], [0, 0, 1, 1], [], []>} : vector<8x8xbf16>, vector<8x32xbf16>, vector<8x32xf32> -> vector<8x32xf32>
    %61 = arith.addf %38, %60 : vector<8x32xf32>
    %62 = vector.extract_strided_slice %12 {offsets = [0, 16], sizes = [8, 8], strides = [1, 1]} : vector<8x32xf32> to vector<8x8xf32>
    %63 = vector.extract_strided_slice %13 {offsets = [0, 16], sizes = [8, 8], strides = [1, 1]} : vector<8x32xf32> to vector<8x8xf32>
    %cst_22 = arith.constant dense<0.000000e+00> : vector<8x8xf32>
    %64 = tpu.matmul %62, %63, %cst_22 {dimension_numbers = #tpu.dot_dimension_numbers<[1], [1], [0], [0], [0, 0, 1, 0], [], []>} : vector<8x8xf32>, vector<8x8xf32>, vector<8x8xf32> -> vector<8x8xf32>
    %cst_23 = arith.constant 0.353553385 : f32
    %65 = vector.broadcast %cst_23 : f32 to vector<8x8xf32>
    %66 = arith.mulf %64, %65 : vector<8x8xf32>
    %67 = vector.broadcast %16 : vector<1x8xf32> to vector<8x8xf32>
    %68 = arith.addf %66, %67 : vector<8x8xf32>
    %cst_24 = arith.constant dense<0xFF800000> : vector<8xf32>
    %69 = vector.multi_reduction <maximumf>, %68, %cst_24 [1] : vector<8x8xf32> to vector<8xf32>
    %70 = vector.shape_cast %69 : vector<8xf32> to vector<8x1xf32>
    %71 = vector.broadcast %70 : vector<8x1xf32> to vector<8x8xf32>
    %72 = arith.subf %68, %71 : vector<8x8xf32>
    %73 = math.exp %72 : vector<8x8xf32>
    %cst_25 = arith.constant dense<0.000000e+00> : vector<8xf32>
    %74 = vector.multi_reduction <add>, %73, %cst_25 [1] : vector<8x8xf32> to vector<8xf32>
    %75 = vector.shape_cast %74 : vector<8xf32> to vector<8x1xf32>
    %76 = tpu.reciprocal %75 {approx = true} : vector<8x1xf32> -> vector<8x1xf32>
    %77 = vector.broadcast %76 : vector<8x1xf32> to vector<8x8xf32>
    %78 = arith.mulf %73, %77 : vector<8x8xf32>
    %79 = vector.extract_strided_slice %14 {offsets = [0, 16], sizes = [8, 8], strides = [1, 1]} : vector<8x32xf32> to vector<8x8xf32>
    %cst_26 = arith.constant dense<0.000000e+00> : vector<8x8xf32>
    %80 = tpu.matmul %78, %79, %cst_26 {dimension_numbers = #tpu.dot_dimension_numbers<[1], [0], [0], [1], [0, 0, 1, 1], [], []>} : vector<8x8xf32>, vector<8x8xf32>, vector<8x8xf32> -> vector<8x8xf32>
    %81 = arith.truncf %80 : vector<8x8xf32> to vector<8x8xbf16>
    %82 = vector.extract_strided_slice %11 {offsets = [16, 0], sizes = [8, 32], strides = [1, 1]} : vector<32x32xbf16> to vector<8x32xbf16>
    %cst_27 = arith.constant dense<0.000000e+00> : vector<8x32xf32>
    %83 = tpu.matmul %81, %82, %cst_27 {dimension_numbers = #tpu.dot_dimension_numbers<[1], [0], [0], [1], [0, 0, 1, 1], [], []>} : vector<8x8xbf16>, vector<8x32xbf16>, vector<8x32xf32> -> vector<8x32xf32>
    %84 = arith.addf %61, %83 : vector<8x32xf32>
    %85 = vector.extract_strided_slice %12 {offsets = [0, 24], sizes = [8, 8], strides = [1, 1]} : vector<8x32xf32> to vector<8x8xf32>
    %86 = vector.extract_strided_slice %13 {offsets = [0, 24], sizes = [8, 8], strides = [1, 1]} : vector<8x32xf32> to vector<8x8xf32>
    %cst_28 = arith.constant dense<0.000000e+00> : vector<8x8xf32>
    %87 = tpu.matmul %85, %86, %cst_28 {dimension_numbers = #tpu.dot_dimension_numbers<[1], [1], [0], [0], [0, 0, 1, 0], [], []>} : vector<8x8xf32>, vector<8x8xf32>, vector<8x8xf32> -> vector<8x8xf32>
    %cst_29 = arith.constant 0.353553385 : f32
    %88 = vector.broadcast %cst_29 : f32 to vector<8x8xf32>
    %89 = arith.mulf %87, %88 : vector<8x8xf32>
    %90 = vector.broadcast %16 : vector<1x8xf32> to vector<8x8xf32>
    %91 = arith.addf %89, %90 : vector<8x8xf32>
    %cst_30 = arith.constant dense<0xFF800000> : vector<8xf32>
    %92 = vector.multi_reduction <maximumf>, %91, %cst_30 [1] : vector<8x8xf32> to vector<8xf32>
    %93 = vector.shape_cast %92 : vector<8xf32> to vector<8x1xf32>
    %94 = vector.broadcast %93 : vector<8x1xf32> to vector<8x8xf32>
    %95 = arith.subf %91, %94 : vector<8x8xf32>
    %96 = math.exp %95 : vector<8x8xf32>
    %cst_31 = arith.constant dense<0.000000e+00> : vector<8xf32>
    %97 = vector.multi_reduction <add>, %96, %cst_31 [1] : vector<8x8xf32> to vector<8xf32>
    %98 = vector.shape_cast %97 : vector<8xf32> to vector<8x1xf32>
    %99 = tpu.reciprocal %98 {approx = true} : vector<8x1xf32> -> vector<8x1xf32>
    %100 = vector.broadcast %99 : vector<8x1xf32> to vector<8x8xf32>
    %101 = arith.mulf %96, %100 : vector<8x8xf32>
    %102 = vector.extract_strided_slice %14 {offsets = [0, 24], sizes = [8, 8], strides = [1, 1]} : vector<8x32xf32> to vector<8x8xf32>
    %cst_32 = arith.constant dense<0.000000e+00> : vector<8x8xf32>
    %103 = tpu.matmul %101, %102, %cst_32 {dimension_numbers = #tpu.dot_dimension_numbers<[1], [0], [0], [1], [0, 0, 1, 1], [], []>} : vector<8x8xf32>, vector<8x8xf32>, vector<8x8xf32> -> vector<8x8xf32>
    %104 = arith.truncf %103 : vector<8x8xf32> to vector<8x8xbf16>
    %105 = vector.extract_strided_slice %11 {offsets = [24, 0], sizes = [8, 32], strides = [1, 1]} : vector<32x32xbf16> to vector<8x32xbf16>
    %cst_33 = arith.constant dense<0.000000e+00> : vector<8x32xf32>
    %106 = tpu.matmul %104, %105, %cst_33 {dimension_numbers = #tpu.dot_dimension_numbers<[1], [0], [0], [1], [0, 0, 1, 1], [], []>} : vector<8x8xbf16>, vector<8x32xbf16>, vector<8x32xf32> -> vector<8x32xf32>
    %107 = arith.addf %84, %106 : vector<8x32xf32>
    %108 = vector.extract_strided_slice %8 {offsets = [8, 0], sizes = [8, 32], strides = [1, 1]} : vector<16x32xf32> to vector<8x32xf32>
    %109 = vector.extract_strided_slice %9 {offsets = [8, 0], sizes = [8, 32], strides = [1, 1]} : vector<16x32xf32> to vector<8x32xf32>
    %110 = vector.extract_strided_slice %10 {offsets = [8, 0], sizes = [8, 32], strides = [1, 1]} : vector<16x32xf32> to vector<8x32xf32>
    %c1 = arith.constant 1 : index
    %c0_34 = arith.constant 0 : index
    %c0_35 = arith.constant 0 : index
    %111 = vector.load %arg1[%c1, %c0_34, %c0_35] : memref<2x1x8xf32, #tpu.memory_space<vmem>>, vector<1x1x8xf32>
    %112 = vector.shape_cast %111 : vector<1x1x8xf32> to vector<1x8xf32>
    %113 = vector.extract_strided_slice %108 {offsets = [0, 0], sizes = [8, 8], strides = [1, 1]} : vector<8x32xf32> to vector<8x8xf32>
    %114 = vector.extract_strided_slice %109 {offsets = [0, 0], sizes = [8, 8], strides = [1, 1]} : vector<8x32xf32> to vector<8x8xf32>
    %cst_36 = arith.constant dense<0.000000e+00> : vector<8x8xf32>
    %115 = tpu.matmul %113, %114, %cst_36 {dimension_numbers = #tpu.dot_dimension_numbers<[1], [1], [0], [0], [0, 0, 1, 0], [], []>} : vector<8x8xf32>, vector<8x8xf32>, vector<8x8xf32> -> vector<8x8xf32>
    %cst_37 = arith.constant 0.353553385 : f32
    %116 = vector.broadcast %cst_37 : f32 to vector<8x8xf32>
    %117 = arith.mulf %115, %116 : vector<8x8xf32>
    %118 = vector.broadcast %112 : vector<1x8xf32> to vector<8x8xf32>
    %119 = arith.addf %117, %118 : vector<8x8xf32>
    %cst_38 = arith.constant dense<0xFF800000> : vector<8xf32>
    %120 = vector.multi_reduction <maximumf>, %119, %cst_38 [1] : vector<8x8xf32> to vector<8xf32>
    %121 = vector.shape_cast %120 : vector<8xf32> to vector<8x1xf32>
    %122 = vector.broadcast %121 : vector<8x1xf32> to vector<8x8xf32>
    %123 = arith.subf %119, %122 : vector<8x8xf32>
    %124 = math.exp %123 : vector<8x8xf32>
    %cst_39 = arith.constant dense<0.000000e+00> : vector<8xf32>
    %125 = vector.multi_reduction <add>, %124, %cst_39 [1] : vector<8x8xf32> to vector<8xf32>
    %126 = vector.shape_cast %125 : vector<8xf32> to vector<8x1xf32>
    %127 = tpu.reciprocal %126 {approx = true} : vector<8x1xf32> -> vector<8x1xf32>
    %128 = vector.broadcast %127 : vector<8x1xf32> to vector<8x8xf32>
    %129 = arith.mulf %124, %128 : vector<8x8xf32>
    %130 = vector.extract_strided_slice %110 {offsets = [0, 0], sizes = [8, 8], strides = [1, 1]} : vector<8x32xf32> to vector<8x8xf32>
    %cst_40 = arith.constant dense<0.000000e+00> : vector<8x8xf32>
    %131 = tpu.matmul %129, %130, %cst_40 {dimension_numbers = #tpu.dot_dimension_numbers<[1], [0], [0], [1], [0, 0, 1, 1], [], []>} : vector<8x8xf32>, vector<8x8xf32>, vector<8x8xf32> -> vector<8x8xf32>
    %132 = arith.truncf %131 : vector<8x8xf32> to vector<8x8xbf16>
    %133 = vector.extract_strided_slice %11 {offsets = [0, 0], sizes = [8, 32], strides = [1, 1]} : vector<32x32xbf16> to vector<8x32xbf16>
    %cst_41 = arith.constant dense<0.000000e+00> : vector<8x32xf32>
    %134 = tpu.matmul %132, %133, %cst_41 {dimension_numbers = #tpu.dot_dimension_numbers<[1], [0], [0], [1], [0, 0, 1, 1], [], []>} : vector<8x8xbf16>, vector<8x32xbf16>, vector<8x32xf32> -> vector<8x32xf32>
    %135 = vector.extract_strided_slice %108 {offsets = [0, 8], sizes = [8, 8], strides = [1, 1]} : vector<8x32xf32> to vector<8x8xf32>
    %136 = vector.extract_strided_slice %109 {offsets = [0, 8], sizes = [8, 8], strides = [1, 1]} : vector<8x32xf32> to vector<8x8xf32>
    %cst_42 = arith.constant dense<0.000000e+00> : vector<8x8xf32>
    %137 = tpu.matmul %135, %136, %cst_42 {dimension_numbers = #tpu.dot_dimension_numbers<[1], [1], [0], [0], [0, 0, 1, 0], [], []>} : vector<8x8xf32>, vector<8x8xf32>, vector<8x8xf32> -> vector<8x8xf32>
    %cst_43 = arith.constant 0.353553385 : f32
    %138 = vector.broadcast %cst_43 : f32 to vector<8x8xf32>
    %139 = arith.mulf %137, %138 : vector<8x8xf32>
    %140 = vector.broadcast %112 : vector<1x8xf32> to vector<8x8xf32>
    %141 = arith.addf %139, %140 : vector<8x8xf32>
    %cst_44 = arith.constant dense<0xFF800000> : vector<8xf32>
    %142 = vector.multi_reduction <maximumf>, %141, %cst_44 [1] : vector<8x8xf32> to vector<8xf32>
    %143 = vector.shape_cast %142 : vector<8xf32> to vector<8x1xf32>
    %144 = vector.broadcast %143 : vector<8x1xf32> to vector<8x8xf32>
    %145 = arith.subf %141, %144 : vector<8x8xf32>
    %146 = math.exp %145 : vector<8x8xf32>
    %cst_45 = arith.constant dense<0.000000e+00> : vector<8xf32>
    %147 = vector.multi_reduction <add>, %146, %cst_45 [1] : vector<8x8xf32> to vector<8xf32>
    %148 = vector.shape_cast %147 : vector<8xf32> to vector<8x1xf32>
    %149 = tpu.reciprocal %148 {approx = true} : vector<8x1xf32> -> vector<8x1xf32>
    %150 = vector.broadcast %149 : vector<8x1xf32> to vector<8x8xf32>
    %151 = arith.mulf %146, %150 : vector<8x8xf32>
    %152 = vector.extract_strided_slice %110 {offsets = [0, 8], sizes = [8, 8], strides = [1, 1]} : vector<8x32xf32> to vector<8x8xf32>
    %cst_46 = arith.constant dense<0.000000e+00> : vector<8x8xf32>
    %153 = tpu.matmul %151, %152, %cst_46 {dimension_numbers = #tpu.dot_dimension_numbers<[1], [0], [0], [1], [0, 0, 1, 1], [], []>} : vector<8x8xf32>, vector<8x8xf32>, vector<8x8xf32> -> vector<8x8xf32>
    %154 = arith.truncf %153 : vector<8x8xf32> to vector<8x8xbf16>
    %155 = vector.extract_strided_slice %11 {offsets = [8, 0], sizes = [8, 32], strides = [1, 1]} : vector<32x32xbf16> to vector<8x32xbf16>
    %cst_47 = arith.constant dense<0.000000e+00> : vector<8x32xf32>
    %156 = tpu.matmul %154, %155, %cst_47 {dimension_numbers = #tpu.dot_dimension_numbers<[1], [0], [0], [1], [0, 0, 1, 1], [], []>} : vector<8x8xbf16>, vector<8x32xbf16>, vector<8x32xf32> -> vector<8x32xf32>
    %157 = arith.addf %134, %156 : vector<8x32xf32>
    %158 = vector.extract_strided_slice %108 {offsets = [0, 16], sizes = [8, 8], strides = [1, 1]} : vector<8x32xf32> to vector<8x8xf32>
    %159 = vector.extract_strided_slice %109 {offsets = [0, 16], sizes = [8, 8], strides = [1, 1]} : vector<8x32xf32> to vector<8x8xf32>
    %cst_48 = arith.constant dense<0.000000e+00> : vector<8x8xf32>
    %160 = tpu.matmul %158, %159, %cst_48 {dimension_numbers = #tpu.dot_dimension_numbers<[1], [1], [0], [0], [0, 0, 1, 0], [], []>} : vector<8x8xf32>, vector<8x8xf32>, vector<8x8xf32> -> vector<8x8xf32>
    %cst_49 = arith.constant 0.353553385 : f32
    %161 = vector.broadcast %cst_49 : f32 to vector<8x8xf32>
    %162 = arith.mulf %160, %161 : vector<8x8xf32>
    %163 = vector.broadcast %112 : vector<1x8xf32> to vector<8x8xf32>
    %164 = arith.addf %162, %163 : vector<8x8xf32>
    %cst_50 = arith.constant dense<0xFF800000> : vector<8xf32>
    %165 = vector.multi_reduction <maximumf>, %164, %cst_50 [1] : vector<8x8xf32> to vector<8xf32>
    %166 = vector.shape_cast %165 : vector<8xf32> to vector<8x1xf32>
    %167 = vector.broadcast %166 : vector<8x1xf32> to vector<8x8xf32>
    %168 = arith.subf %164, %167 : vector<8x8xf32>
    %169 = math.exp %168 : vector<8x8xf32>
    %cst_51 = arith.constant dense<0.000000e+00> : vector<8xf32>
    %170 = vector.multi_reduction <add>, %169, %cst_51 [1] : vector<8x8xf32> to vector<8xf32>
    %171 = vector.shape_cast %170 : vector<8xf32> to vector<8x1xf32>
    %172 = tpu.reciprocal %171 {approx = true} : vector<8x1xf32> -> vector<8x1xf32>
    %173 = vector.broadcast %172 : vector<8x1xf32> to vector<8x8xf32>
    %174 = arith.mulf %169, %173 : vector<8x8xf32>
    %175 = vector.extract_strided_slice %110 {offsets = [0, 16], sizes = [8, 8], strides = [1, 1]} : vector<8x32xf32> to vector<8x8xf32>
    %cst_52 = arith.constant dense<0.000000e+00> : vector<8x8xf32>
    %176 = tpu.matmul %174, %175, %cst_52 {dimension_numbers = #tpu.dot_dimension_numbers<[1], [0], [0], [1], [0, 0, 1, 1], [], []>} : vector<8x8xf32>, vector<8x8xf32>, vector<8x8xf32> -> vector<8x8xf32>
    %177 = arith.truncf %176 : vector<8x8xf32> to vector<8x8xbf16>
    %178 = vector.extract_strided_slice %11 {offsets = [16, 0], sizes = [8, 32], strides = [1, 1]} : vector<32x32xbf16> to vector<8x32xbf16>
    %cst_53 = arith.constant dense<0.000000e+00> : vector<8x32xf32>
    %179 = tpu.matmul %177, %178, %cst_53 {dimension_numbers = #tpu.dot_dimension_numbers<[1], [0], [0], [1], [0, 0, 1, 1], [], []>} : vector<8x8xbf16>, vector<8x32xbf16>, vector<8x32xf32> -> vector<8x32xf32>
    %180 = arith.addf %157, %179 : vector<8x32xf32>
    %181 = vector.extract_strided_slice %108 {offsets = [0, 24], sizes = [8, 8], strides = [1, 1]} : vector<8x32xf32> to vector<8x8xf32>
    %182 = vector.extract_strided_slice %109 {offsets = [0, 24], sizes = [8, 8], strides = [1, 1]} : vector<8x32xf32> to vector<8x8xf32>
    %cst_54 = arith.constant dense<0.000000e+00> : vector<8x8xf32>
    %183 = tpu.matmul %181, %182, %cst_54 {dimension_numbers = #tpu.dot_dimension_numbers<[1], [1], [0], [0], [0, 0, 1, 0], [], []>} : vector<8x8xf32>, vector<8x8xf32>, vector<8x8xf32> -> vector<8x8xf32>
    %cst_55 = arith.constant 0.353553385 : f32
    %184 = vector.broadcast %cst_55 : f32 to vector<8x8xf32>
    %185 = arith.mulf %183, %184 : vector<8x8xf32>
    %186 = vector.broadcast %112 : vector<1x8xf32> to vector<8x8xf32>
    %187 = arith.addf %185, %186 : vector<8x8xf32>
    %cst_56 = arith.constant dense<0xFF800000> : vector<8xf32>
    %188 = vector.multi_reduction <maximumf>, %187, %cst_56 [1] : vector<8x8xf32> to vector<8xf32>
    %189 = vector.shape_cast %188 : vector<8xf32> to vector<8x1xf32>
    %190 = vector.broadcast %189 : vector<8x1xf32> to vector<8x8xf32>
    %191 = arith.subf %187, %190 : vector<8x8xf32>
    %192 = math.exp %191 : vector<8x8xf32>
    %cst_57 = arith.constant dense<0.000000e+00> : vector<8xf32>
    %193 = vector.multi_reduction <add>, %192, %cst_57 [1] : vector<8x8xf32> to vector<8xf32>
    %194 = vector.shape_cast %193 : vector<8xf32> to vector<8x1xf32>
    %195 = tpu.reciprocal %194 {approx = true} : vector<8x1xf32> -> vector<8x1xf32>
    %196 = vector.broadcast %195 : vector<8x1xf32> to vector<8x8xf32>
    %197 = arith.mulf %192, %196 : vector<8x8xf32>
    %198 = vector.extract_strided_slice %110 {offsets = [0, 24], sizes = [8, 8], strides = [1, 1]} : vector<8x32xf32> to vector<8x8xf32>
    %cst_58 = arith.constant dense<0.000000e+00> : vector<8x8xf32>
    %199 = tpu.matmul %197, %198, %cst_58 {dimension_numbers = #tpu.dot_dimension_numbers<[1], [0], [0], [1], [0, 0, 1, 1], [], []>} : vector<8x8xf32>, vector<8x8xf32>, vector<8x8xf32> -> vector<8x8xf32>
    %200 = arith.truncf %199 : vector<8x8xf32> to vector<8x8xbf16>
    %201 = vector.extract_strided_slice %11 {offsets = [24, 0], sizes = [8, 32], strides = [1, 1]} : vector<32x32xbf16> to vector<8x32xbf16>
    %cst_59 = arith.constant dense<0.000000e+00> : vector<8x32xf32>
    %202 = tpu.matmul %200, %201, %cst_59 {dimension_numbers = #tpu.dot_dimension_numbers<[1], [0], [0], [1], [0, 0, 1, 1], [], []>} : vector<8x8xbf16>, vector<8x32xbf16>, vector<8x32xf32> -> vector<8x32xf32>
    %203 = arith.addf %180, %202 : vector<8x32xf32>
    %204 = tpu.concatenate %107, %203 in 0 : vector<8x32xf32>, vector<8x32xf32> -> vector<16x32xf32>
    %c0_60 = arith.constant 0 : index
    %c0_61 = arith.constant 0 : index
    %205 = vector.load %arg5[%c0_60, %c0_61] : memref<1x32xf32, #tpu.memory_space<vmem>>, vector<1x32xf32>
    %206 = vector.broadcast %205 : vector<1x32xf32> to vector<16x32xf32>
    %207 = arith.addf %204, %206 : vector<16x32xf32>
    %208 = arith.addf %1, %207 : vector<16x32xf32>
    %c0_62 = arith.constant 0 : index
    %c0_63 = arith.constant 0 : index
    %209 = vector.load %arg10[%c0_62, %c0_63] : memref<1x32xf32, #tpu.memory_space<vmem>>, vector<1x32xf32>
    %c0_64 = arith.constant 0 : index
    %c0_65 = arith.constant 0 : index
    %210 = vector.load %arg11[%c0_64, %c0_65] : memref<1x32xf32, #tpu.memory_space<vmem>>, vector<1x32xf32>
    %cst_66 = arith.constant dense<0.000000e+00> : vector<16xf32>
    %211 = vector.multi_reduction <add>, %208, %cst_66 [1] : vector<16x32xf32> to vector<16xf32>
    %212 = vector.shape_cast %211 : vector<16xf32> to vector<16x1xf32>
    %cst_67 = arith.constant 3.200000e+01 : f32
    %213 = vector.broadcast %cst_67 : f32 to vector<16x1xf32>
    %214 = arith.divf %212, %213 : vector<16x1xf32>
    %215 = vector.broadcast %214 : vector<16x1xf32> to vector<16x32xf32>
    %216 = arith.subf %208, %215 : vector<16x32xf32>
    %217 = arith.mulf %216, %216 : vector<16x32xf32>
    %cst_68 = arith.constant dense<0.000000e+00> : vector<16xf32>
    %218 = vector.multi_reduction <add>, %217, %cst_68 [1] : vector<16x32xf32> to vector<16xf32>
    %219 = vector.shape_cast %218 : vector<16xf32> to vector<16x1xf32>
    %cst_69 = arith.constant 3.200000e+01 : f32
    %220 = vector.broadcast %cst_69 : f32 to vector<16x1xf32>
    %221 = arith.divf %219, %220 : vector<16x1xf32>
    %222 = vector.broadcast %214 : vector<16x1xf32> to vector<16x32xf32>
    %223 = arith.subf %208, %222 : vector<16x32xf32>
    %cst_70 = arith.constant 9.99999974E-6 : f32
    %224 = vector.broadcast %cst_70 : f32 to vector<16x1xf32>
    %225 = arith.addf %221, %224 : vector<16x1xf32>
    %226 = math.rsqrt %225 : vector<16x1xf32>
    %227 = vector.broadcast %226 : vector<16x1xf32> to vector<16x32xf32>
    %228 = arith.mulf %223, %227 : vector<16x32xf32>
    %229 = vector.broadcast %209 : vector<1x32xf32> to vector<16x32xf32>
    %230 = arith.mulf %228, %229 : vector<16x32xf32>
    %231 = vector.broadcast %210 : vector<1x32xf32> to vector<16x32xf32>
    %232 = arith.addf %230, %231 : vector<16x32xf32>
    %c0_71 = arith.constant 0 : index
    %c0_72 = arith.constant 0 : index
    %233 = vector.load %arg6[%c0_71, %c0_72] : memref<32x64xbf16, #tpu.memory_space<vmem>>, vector<32x64xbf16>
    %234 = arith.truncf %232 : vector<16x32xf32> to vector<16x32xbf16>
    %cst_73 = arith.constant dense<0.000000e+00> : vector<16x64xf32>
    %235 = tpu.matmul %234, %233, %cst_73 {dimension_numbers = #tpu.dot_dimension_numbers<[1], [0], [0], [1], [0, 0, 1, 1], [], []>} : vector<16x32xbf16>, vector<32x64xbf16>, vector<16x64xf32> -> vector<16x64xf32>
    %c0_74 = arith.constant 0 : index
    %c0_75 = arith.constant 0 : index
    %236 = vector.load %arg7[%c0_74, %c0_75] : memref<1x64xf32, #tpu.memory_space<vmem>>, vector<1x64xf32>
    %237 = vector.broadcast %236 : vector<1x64xf32> to vector<16x64xf32>
    %238 = arith.addf %235, %237 : vector<16x64xf32>
    %cst_76 = arith.constant 0.000000e+00 : f32
    %239 = vector.broadcast %cst_76 : f32 to vector<16x64xf32>
    %240 = arith.maximumf %238, %239 : vector<16x64xf32>
    %c0_77 = arith.constant 0 : index
    %c0_78 = arith.constant 0 : index
    %241 = vector.load %arg8[%c0_77, %c0_78] : memref<64x32xbf16, #tpu.memory_space<vmem>>, vector<64x32xbf16>
    %242 = arith.truncf %240 : vector<16x64xf32> to vector<16x64xbf16>
    %cst_79 = arith.constant dense<0.000000e+00> : vector<16x32xf32>
    %243 = tpu.matmul %242, %241, %cst_79 {dimension_numbers = #tpu.dot_dimension_numbers<[1], [0], [0], [1], [0, 0, 1, 1], [], []>} : vector<16x64xbf16>, vector<64x32xbf16>, vector<16x32xf32> -> vector<16x32xf32>
    %c0_80 = arith.constant 0 : index
    %c0_81 = arith.constant 0 : index
    %244 = vector.load %arg9[%c0_80, %c0_81] : memref<1x32xf32, #tpu.memory_space<vmem>>, vector<1x32xf32>
    %245 = vector.broadcast %244 : vector<1x32xf32> to vector<16x32xf32>
    %246 = arith.addf %243, %245 : vector<16x32xf32>
    %247 = arith.addf %232, %246 : vector<16x32xf32>
    %c0_82 = arith.constant 0 : index
    %c0_83 = arith.constant 0 : index
    %248 = vector.load %arg12[%c0_82, %c0_83] : memref<1x32xf32, #tpu.memory_space<vmem>>, vector<1x32xf32>
    %c0_84 = arith.constant 0 : index
    %c0_85 = arith.constant 0 : index
    %249 = vector.load %arg13[%c0_84, %c0_85] : memref<1x32xf32, #tpu.memory_space<vmem>>, vector<1x32xf32>
    %cst_86 = arith.constant dense<0.000000e+00> : vector<16xf32>
    %250 = vector.multi_reduction <add>, %247, %cst_86 [1] : vector<16x32xf32> to vector<16xf32>
    %251 = vector.shape_cast %250 : vector<16xf32> to vector<16x1xf32>
    %cst_87 = arith.constant 3.200000e+01 : f32
    %252 = vector.broadcast %cst_87 : f32 to vector<16x1xf32>
    %253 = arith.divf %251, %252 : vector<16x1xf32>
    %254 = vector.broadcast %253 : vector<16x1xf32> to vector<16x32xf32>
    %255 = arith.subf %247, %254 : vector<16x32xf32>
    %256 = arith.mulf %255, %255 : vector<16x32xf32>
    %cst_88 = arith.constant dense<0.000000e+00> : vector<16xf32>
    %257 = vector.multi_reduction <add>, %256, %cst_88 [1] : vector<16x32xf32> to vector<16xf32>
    %258 = vector.shape_cast %257 : vector<16xf32> to vector<16x1xf32>
    %cst_89 = arith.constant 3.200000e+01 : f32
    %259 = vector.broadcast %cst_89 : f32 to vector<16x1xf32>
    %260 = arith.divf %258, %259 : vector<16x1xf32>
    %261 = vector.broadcast %253 : vector<16x1xf32> to vector<16x32xf32>
    %262 = arith.subf %247, %261 : vector<16x32xf32>
    %cst_90 = arith.constant 9.99999974E-6 : f32
    %263 = vector.broadcast %cst_90 : f32 to vector<16x1xf32>
    %264 = arith.addf %260, %263 : vector<16x1xf32>
    %265 = math.rsqrt %264 : vector<16x1xf32>
    %266 = vector.broadcast %265 : vector<16x1xf32> to vector<16x32xf32>
    %267 = arith.mulf %262, %266 : vector<16x32xf32>
    %268 = vector.broadcast %248 : vector<1x32xf32> to vector<16x32xf32>
    %269 = arith.mulf %267, %268 : vector<16x32xf32>
    %270 = vector.broadcast %249 : vector<1x32xf32> to vector<16x32xf32>
    %271 = arith.addf %269, %270 : vector<16x32xf32>
    %272 = arith.truncf %271 : vector<16x32xf32> to vector<16x32xbf16>
    %c0_91 = arith.constant 0 : index
    %c0_92 = arith.constant 0 : index
    %273 = vector.load %arg16[%c0_91, %c0_92] : memref<16x32xbf16, #tpu.memory_space<vmem>>, vector<16x32xbf16>
    tpu.vector_store %arg16[%c0_91, %c0_92], %272 {strides = array<i32>} : memref<16x32xbf16, #tpu.memory_space<vmem>>, vector<16x32xbf16>,
    return
  }
}

module attributes {stable_mosaic.version = 11 : i64} {
  func.func @_enc_layer_kernel(%arg0: memref<16x32xbf16, #tpu.memory_space<vmem>>, %arg1: memref<2x1x8xf32, #tpu.memory_space<vmem>>, %arg2: memref<32x96xbf16, #tpu.memory_space<vmem>>, %arg3: memref<1x96xf32, #tpu.memory_space<vmem>>, %arg4: memref<32x32xbf16, #tpu.memory_space<vmem>>, %arg5: memref<1x32xf32, #tpu.memory_space<vmem>>, %arg6: memref<32x64xbf16, #tpu.memory_space<vmem>>, %arg7: memref<1x64xf32, #tpu.memory_space<vmem>>, %arg8: memref<64x32xbf16, #tpu.memory_space<vmem>>, %arg9: memref<1x32xf32, #tpu.memory_space<vmem>>, %arg10: memref<1x32xf32, #tpu.memory_space<vmem>>, %arg11: memref<1x32xf32, #tpu.memory_space<vmem>>, %arg12: memref<1x32xf32, #tpu.memory_space<vmem>>, %arg13: memref<1x32xf32, #tpu.memory_space<vmem>>, %arg14: memref<1x32xf32, #tpu.memory_space<vmem>>, %arg15: memref<1x32xf32, #tpu.memory_space<vmem>>, %arg16: memref<16x32xbf16, #tpu.memory_space<vmem>>) attributes {dimension_semantics = [], scalar_prefetch = 0 : i64, scratch_operands = 0 : i64, tpu.core_type = #tpu.core_type<tc>} {
    %c0 = arith.constant 0 : index
    %c0_0 = arith.constant 0 : index
    %0 = vector.load %arg0[%c0, %c0_0] : memref<16x32xbf16, #tpu.memory_space<vmem>>, vector<16x32xbf16>
    %1 = arith.extf %0 : vector<16x32xbf16> to vector<16x32xf32>
    %c0_1 = arith.constant 0 : index
    %c0_2 = arith.constant 0 : index
    %2 = vector.load %arg2[%c0_1, %c0_2] : memref<32x96xbf16, #tpu.memory_space<vmem>>, vector<32x96xbf16>
    %3 = arith.truncf %1 : vector<16x32xf32> to vector<16x32xbf16>
    %cst = arith.constant dense<0.000000e+00> : vector<16x96xf32>
    %4 = tpu.matmul %3, %2, %cst {dimension_numbers = #tpu.dot_dimension_numbers<[1], [0], [0], [1], [0, 0, 1, 1], [], []>} : vector<16x32xbf16>, vector<32x96xbf16>, vector<16x96xf32> -> vector<16x96xf32>
    %c0_3 = arith.constant 0 : index
    %c0_4 = arith.constant 0 : index
    %5 = vector.load %arg3[%c0_3, %c0_4] : memref<1x96xf32, #tpu.memory_space<vmem>>, vector<1x96xf32>
    %6 = vector.broadcast %5 : vector<1x96xf32> to vector<16x96xf32>
    %7 = arith.addf %4, %6 : vector<16x96xf32>
    %8 = vector.extract_strided_slice %7 {offsets = [0, 0], sizes = [16, 32], strides = [1, 1]} : vector<16x96xf32> to vector<16x32xf32>
    %9 = vector.extract_strided_slice %7 {offsets = [0, 32], sizes = [16, 32], strides = [1, 1]} : vector<16x96xf32> to vector<16x32xf32>
    %10 = vector.extract_strided_slice %7 {offsets = [0, 64], sizes = [16, 32], strides = [1, 1]} : vector<16x96xf32> to vector<16x32xf32>
    %c0_5 = arith.constant 0 : index
    %c0_6 = arith.constant 0 : index
    %11 = vector.load %arg4[%c0_5, %c0_6] : memref<32x32xbf16, #tpu.memory_space<vmem>>, vector<32x32xbf16>
    %12 = vector.extract_strided_slice %8 {offsets = [0, 0], sizes = [8, 32], strides = [1, 1]} : vector<16x32xf32> to vector<8x32xf32>
    %13 = vector.extract_strided_slice %9 {offsets = [0, 0], sizes = [8, 32], strides = [1, 1]} : vector<16x32xf32> to vector<8x32xf32>
    %14 = vector.extract_strided_slice %10 {offsets = [0, 0], sizes = [8, 32], strides = [1, 1]} : vector<16x32xf32> to vector<8x32xf32>
    %c0_7 = arith.constant 0 : index
    %c0_8 = arith.constant 0 : index
    %c0_9 = arith.constant 0 : index
    %15 = vector.load %arg1[%c0_7, %c0_8, %c0_9] : memref<2x1x8xf32, #tpu.memory_space<vmem>>, vector<1x1x8xf32>
    %16 = vector.shape_cast %15 : vector<1x1x8xf32> to vector<1x8xf32>
    %17 = vector.extract_strided_slice %12 {offsets = [0, 0], sizes = [8, 8], strides = [1, 1]} : vector<8x32xf32> to vector<8x8xf32>
    %18 = vector.extract_strided_slice %13 {offsets = [0, 0], sizes = [8, 8], strides = [1, 1]} : vector<8x32xf32> to vector<8x8xf32>
    %cst_10 = arith.constant dense<0.000000e+00> : vector<8x8xf32>
    %19 = tpu.matmul %17, %18, %cst_10 {dimension_numbers = #tpu.dot_dimension_numbers<[1], [1], [0], [0], [0, 0, 1, 0], [], []>} : vector<8x8xf32>, vector<8x8xf32>, vector<8x8xf32> -> vector<8x8xf32>
    %cst_11 = arith.constant 0.353553385 : f32
    %20 = vector.broadcast %cst_11 : f32 to vector<8x8xf32>
    %21 = arith.mulf %19, %20 : vector<8x8xf32>
    %22 = vector.broadcast %16 : vector<1x8xf32> to vector<8x8xf32>
    %23 = arith.addf %21, %22 : vector<8x8xf32>
    %cst_12 = arith.constant dense<0xFF800000> : vector<8xf32>
    %24 = vector.multi_reduction <maximumf>, %23, %cst_12 [1] : vector<8x8xf32> to vector<8xf32>
    %25 = vector.shape_cast %24 : vector<8xf32> to vector<8x1xf32>
    %26 = vector.broadcast %25 : vector<8x1xf32> to vector<8x8xf32>
    %27 = arith.subf %23, %26 : vector<8x8xf32>
    %28 = math.exp %27 : vector<8x8xf32>
    %cst_13 = arith.constant dense<0.000000e+00> : vector<8xf32>
    %29 = vector.multi_reduction <add>, %28, %cst_13 [1] : vector<8x8xf32> to vector<8xf32>
    %30 = vector.shape_cast %29 : vector<8xf32> to vector<8x1xf32>
    %31 = tpu.reciprocal %30 {approx = true} : vector<8x1xf32> -> vector<8x1xf32>
    %32 = vector.broadcast %31 : vector<8x1xf32> to vector<8x8xf32>
    %33 = arith.mulf %28, %32 : vector<8x8xf32>
    %34 = vector.extract_strided_slice %14 {offsets = [0, 0], sizes = [8, 8], strides = [1, 1]} : vector<8x32xf32> to vector<8x8xf32>
    %cst_14 = arith.constant dense<0.000000e+00> : vector<8x8xf32>
    %35 = tpu.matmul %33, %34, %cst_14 {dimension_numbers = #tpu.dot_dimension_numbers<[1], [0], [0], [1], [0, 0, 1, 1], [], []>} : vector<8x8xf32>, vector<8x8xf32>, vector<8x8xf32> -> vector<8x8xf32>
    %36 = arith.truncf %35 : vector<8x8xf32> to vector<8x8xbf16>
    %37 = vector.extract_strided_slice %11 {offsets = [0, 0], sizes = [8, 32], strides = [1, 1]} : vector<32x32xbf16> to vector<8x32xbf16>
    %cst_15 = arith.constant dense<0.000000e+00> : vector<8x32xf32>
    %38 = tpu.matmul %36, %37, %cst_15 {dimension_numbers = #tpu.dot_dimension_numbers<[1], [0], [0], [1], [0, 0, 1, 1], [], []>} : vector<8x8xbf16>, vector<8x32xbf16>, vector<8x32xf32> -> vector<8x32xf32>
    %39 = vector.extract_strided_slice %12 {offsets = [0, 8], sizes = [8, 8], strides = [1, 1]} : vector<8x32xf32> to vector<8x8xf32>
    %40 = vector.extract_strided_slice %13 {offsets = [0, 8], sizes = [8, 8], strides = [1, 1]} : vector<8x32xf32> to vector<8x8xf32>
    %cst_16 = arith.constant dense<0.000000e+00> : vector<8x8xf32>
    %41 = tpu.matmul %39, %40, %cst_16 {dimension_numbers = #tpu.dot_dimension_numbers<[1], [1], [0], [0], [0, 0, 1, 0], [], []>} : vector<8x8xf32>, vector<8x8xf32>, vector<8x8xf32> -> vector<8x8xf32>
    %cst_17 = arith.constant 0.353553385 : f32
    %42 = vector.broadcast %cst_17 : f32 to vector<8x8xf32>
    %43 = arith.mulf %41, %42 : vector<8x8xf32>
    %44 = vector.broadcast %16 : vector<1x8xf32> to vector<8x8xf32>
    %45 = arith.addf %43, %44 : vector<8x8xf32>
    %cst_18 = arith.constant dense<0xFF800000> : vector<8xf32>
    %46 = vector.multi_reduction <maximumf>, %45, %cst_18 [1] : vector<8x8xf32> to vector<8xf32>
    %47 = vector.shape_cast %46 : vector<8xf32> to vector<8x1xf32>
    %48 = vector.broadcast %47 : vector<8x1xf32> to vector<8x8xf32>
    %49 = arith.subf %45, %48 : vector<8x8xf32>
    %50 = math.exp %49 : vector<8x8xf32>
    %cst_19 = arith.constant dense<0.000000e+00> : vector<8xf32>
    %51 = vector.multi_reduction <add>, %50, %cst_19 [1] : vector<8x8xf32> to vector<8xf32>
    %52 = vector.shape_cast %51 : vector<8xf32> to vector<8x1xf32>
    %53 = tpu.reciprocal %52 {approx = true} : vector<8x1xf32> -> vector<8x1xf32>
    %54 = vector.broadcast %53 : vector<8x1xf32> to vector<8x8xf32>
    %55 = arith.mulf %50, %54 : vector<8x8xf32>
    %56 = vector.extract_strided_slice %14 {offsets = [0, 8], sizes = [8, 8], strides = [1, 1]} : vector<8x32xf32> to vector<8x8xf32>
    %cst_20 = arith.constant dense<0.000000e+00> : vector<8x8xf32>
    %57 = tpu.matmul %55, %56, %cst_20 {dimension_numbers = #tpu.dot_dimension_numbers<[1], [0], [0], [1], [0, 0, 1, 1], [], []>} : vector<8x8xf32>, vector<8x8xf32>, vector<8x8xf32> -> vector<8x8xf32>
    %58 = arith.truncf %57 : vector<8x8xf32> to vector<8x8xbf16>
    %59 = vector.extract_strided_slice %11 {offsets = [8, 0], sizes = [8, 32], strides = [1, 1]} : vector<32x32xbf16> to vector<8x32xbf16>
    %cst_21 = arith.constant dense<0.000000e+00> : vector<8x32xf32>
    %60 = tpu.matmul %58, %59, %cst_21 {dimension_numbers = #tpu.dot_dimension_numbers<[1], [0], [0], [1], [0, 0, 1, 1], [], []>} : vector<8x8xbf16>, vector<8x32xbf16>, vector<8x32xf32> -> vector<8x32xf32>
    %61 = arith.addf %38, %60 : vector<8x32xf32>
    %62 = vector.extract_strided_slice %12 {offsets = [0, 16], sizes = [8, 8], strides = [1, 1]} : vector<8x32xf32> to vector<8x8xf32>
    %63 = vector.extract_strided_slice %13 {offsets = [0, 16], sizes = [8, 8], strides = [1, 1]} : vector<8x32xf32> to vector<8x8xf32>
    %cst_22 = arith.constant dense<0.000000e+00> : vector<8x8xf32>
    %64 = tpu.matmul %62, %63, %cst_22 {dimension_numbers = #tpu.dot_dimension_numbers<[1], [1], [0], [0], [0, 0, 1, 0], [], []>} : vector<8x8xf32>, vector<8x8xf32>, vector<8x8xf32> -> vector<8x8xf32>
    %cst_23 = arith.constant 0.353553385 : f32
    %65 = vector.broadcast %cst_23 : f32 to vector<8x8xf32>
    %66 = arith.mulf %64, %65 : vector<8x8xf32>
    %67 = vector.broadcast %16 : vector<1x8xf32> to vector<8x8xf32>
    %68 = arith.addf %66, %67 : vector<8x8xf32>
    %cst_24 = arith.constant dense<0xFF800000> : vector<8xf32>
    %69 = vector.multi_reduction <maximumf>, %68, %cst_24 [1] : vector<8x8xf32> to vector<8xf32>
    %70 = vector.shape_cast %69 : vector<8xf32> to vector<8x1xf32>
    %71 = vector.broadcast %70 : vector<8x1xf32> to vector<8x8xf32>
    %72 = arith.subf %68, %71 : vector<8x8xf32>
    %73 = math.exp %72 : vector<8x8xf32>
    %cst_25 = arith.constant dense<0.000000e+00> : vector<8xf32>
    %74 = vector.multi_reduction <add>, %73, %cst_25 [1] : vector<8x8xf32> to vector<8xf32>
    %75 = vector.shape_cast %74 : vector<8xf32> to vector<8x1xf32>
    %76 = tpu.reciprocal %75 {approx = true} : vector<8x1xf32> -> vector<8x1xf32>
    %77 = vector.broadcast %76 : vector<8x1xf32> to vector<8x8xf32>
    %78 = arith.mulf %73, %77 : vector<8x8xf32>
    %79 = vector.extract_strided_slice %14 {offsets = [0, 16], sizes = [8, 8], strides = [1, 1]} : vector<8x32xf32> to vector<8x8xf32>
    %cst_26 = arith.constant dense<0.000000e+00> : vector<8x8xf32>
    %80 = tpu.matmul %78, %79, %cst_26 {dimension_numbers = #tpu.dot_dimension_numbers<[1], [0], [0], [1], [0, 0, 1, 1], [], []>} : vector<8x8xf32>, vector<8x8xf32>, vector<8x8xf32> -> vector<8x8xf32>
    %81 = arith.truncf %80 : vector<8x8xf32> to vector<8x8xbf16>
    %82 = vector.extract_strided_slice %11 {offsets = [16, 0], sizes = [8, 32], strides = [1, 1]} : vector<32x32xbf16> to vector<8x32xbf16>
    %cst_27 = arith.constant dense<0.000000e+00> : vector<8x32xf32>
    %83 = tpu.matmul %81, %82, %cst_27 {dimension_numbers = #tpu.dot_dimension_numbers<[1], [0], [0], [1], [0, 0, 1, 1], [], []>} : vector<8x8xbf16>, vector<8x32xbf16>, vector<8x32xf32> -> vector<8x32xf32>
    %84 = arith.addf %61, %83 : vector<8x32xf32>
    %85 = vector.extract_strided_slice %12 {offsets = [0, 24], sizes = [8, 8], strides = [1, 1]} : vector<8x32xf32> to vector<8x8xf32>
    %86 = vector.extract_strided_slice %13 {offsets = [0, 24], sizes = [8, 8], strides = [1, 1]} : vector<8x32xf32> to vector<8x8xf32>
    %cst_28 = arith.constant dense<0.000000e+00> : vector<8x8xf32>
    %87 = tpu.matmul %85, %86, %cst_28 {dimension_numbers = #tpu.dot_dimension_numbers<[1], [1], [0], [0], [0, 0, 1, 0], [], []>} : vector<8x8xf32>, vector<8x8xf32>, vector<8x8xf32> -> vector<8x8xf32>
    %cst_29 = arith.constant 0.353553385 : f32
    %88 = vector.broadcast %cst_29 : f32 to vector<8x8xf32>
    %89 = arith.mulf %87, %88 : vector<8x8xf32>
    %90 = vector.broadcast %16 : vector<1x8xf32> to vector<8x8xf32>
    %91 = arith.addf %89, %90 : vector<8x8xf32>
    %cst_30 = arith.constant dense<0xFF800000> : vector<8xf32>
    %92 = vector.multi_reduction <maximumf>, %91, %cst_30 [1] : vector<8x8xf32> to vector<8xf32>
    %93 = vector.shape_cast %92 : vector<8xf32> to vector<8x1xf32>
    %94 = vector.broadcast %93 : vector<8x1xf32> to vector<8x8xf32>
    %95 = arith.subf %91, %94 : vector<8x8xf32>
    %96 = math.exp %95 : vector<8x8xf32>
    %cst_31 = arith.constant dense<0.000000e+00> : vector<8xf32>
    %97 = vector.multi_reduction <add>, %96, %cst_31 [1] : vector<8x8xf32> to vector<8xf32>
    %98 = vector.shape_cast %97 : vector<8xf32> to vector<8x1xf32>
    %99 = tpu.reciprocal %98 {approx = true} : vector<8x1xf32> -> vector<8x1xf32>
    %100 = vector.broadcast %99 : vector<8x1xf32> to vector<8x8xf32>
    %101 = arith.mulf %96, %100 : vector<8x8xf32>
    %102 = vector.extract_strided_slice %14 {offsets = [0, 24], sizes = [8, 8], strides = [1, 1]} : vector<8x32xf32> to vector<8x8xf32>
    %cst_32 = arith.constant dense<0.000000e+00> : vector<8x8xf32>
    %103 = tpu.matmul %101, %102, %cst_32 {dimension_numbers = #tpu.dot_dimension_numbers<[1], [0], [0], [1], [0, 0, 1, 1], [], []>} : vector<8x8xf32>, vector<8x8xf32>, vector<8x8xf32> -> vector<8x8xf32>
    %104 = arith.truncf %103 : vector<8x8xf32> to vector<8x8xbf16>
    %105 = vector.extract_strided_slice %11 {offsets = [24, 0], sizes = [8, 32], strides = [1, 1]} : vector<32x32xbf16> to vector<8x32xbf16>
    %cst_33 = arith.constant dense<0.000000e+00> : vector<8x32xf32>
    %106 = tpu.matmul %104, %105, %cst_33 {dimension_numbers = #tpu.dot_dimension_numbers<[1], [0], [0], [1], [0, 0, 1, 1], [], []>} : vector<8x8xbf16>, vector<8x32xbf16>, vector<8x32xf32> -> vector<8x32xf32>
    %107 = arith.addf %84, %106 : vector<8x32xf32>
    %108 = vector.extract_strided_slice %8 {offsets = [8, 0], sizes = [8, 32], strides = [1, 1]} : vector<16x32xf32> to vector<8x32xf32>
    %109 = vector.extract_strided_slice %9 {offsets = [8, 0], sizes = [8, 32], strides = [1, 1]} : vector<16x32xf32> to vector<8x32xf32>
    %110 = vector.extract_strided_slice %10 {offsets = [8, 0], sizes = [8, 32], strides = [1, 1]} : vector<16x32xf32> to vector<8x32xf32>
    %c1 = arith.constant 1 : index
    %c0_34 = arith.constant 0 : index
    %c0_35 = arith.constant 0 : index
    %111 = vector.load %arg1[%c1, %c0_34, %c0_35] : memref<2x1x8xf32, #tpu.memory_space<vmem>>, vector<1x1x8xf32>
    %112 = vector.shape_cast %111 : vector<1x1x8xf32> to vector<1x8xf32>
    %113 = vector.extract_strided_slice %108 {offsets = [0, 0], sizes = [8, 8], strides = [1, 1]} : vector<8x32xf32> to vector<8x8xf32>
    %114 = vector.extract_strided_slice %109 {offsets = [0, 0], sizes = [8, 8], strides = [1, 1]} : vector<8x32xf32> to vector<8x8xf32>
    %cst_36 = arith.constant dense<0.000000e+00> : vector<8x8xf32>
    %115 = tpu.matmul %113, %114, %cst_36 {dimension_numbers = #tpu.dot_dimension_numbers<[1], [1], [0], [0], [0, 0, 1, 0], [], []>} : vector<8x8xf32>, vector<8x8xf32>, vector<8x8xf32> -> vector<8x8xf32>
    %cst_37 = arith.constant 0.353553385 : f32
    %116 = vector.broadcast %cst_37 : f32 to vector<8x8xf32>
    %117 = arith.mulf %115, %116 : vector<8x8xf32>
    %118 = vector.broadcast %112 : vector<1x8xf32> to vector<8x8xf32>
    %119 = arith.addf %117, %118 : vector<8x8xf32>
    %cst_38 = arith.constant dense<0xFF800000> : vector<8xf32>
    %120 = vector.multi_reduction <maximumf>, %119, %cst_38 [1] : vector<8x8xf32> to vector<8xf32>
    %121 = vector.shape_cast %120 : vector<8xf32> to vector<8x1xf32>
    %122 = vector.broadcast %121 : vector<8x1xf32> to vector<8x8xf32>
    %123 = arith.subf %119, %122 : vector<8x8xf32>
    %124 = math.exp %123 : vector<8x8xf32>
    %cst_39 = arith.constant dense<0.000000e+00> : vector<8xf32>
    %125 = vector.multi_reduction <add>, %124, %cst_39 [1] : vector<8x8xf32> to vector<8xf32>
    %126 = vector.shape_cast %125 : vector<8xf32> to vector<8x1xf32>
    %127 = tpu.reciprocal %126 {approx = true} : vector<8x1xf32> -> vector<8x1xf32>
    %128 = vector.broadcast %127 : vector<8x1xf32> to vector<8x8xf32>
    %129 = arith.mulf %124, %128 : vector<8x8xf32>
    %130 = vector.extract_strided_slice %110 {offsets = [0, 0], sizes = [8, 8], strides = [1, 1]} : vector<8x32xf32> to vector<8x8xf32>
    %cst_40 = arith.constant dense<0.000000e+00> : vector<8x8xf32>
    %131 = tpu.matmul %129, %130, %cst_40 {dimension_numbers = #tpu.dot_dimension_numbers<[1], [0], [0], [1], [0, 0, 1, 1], [], []>} : vector<8x8xf32>, vector<8x8xf32>, vector<8x8xf32> -> vector<8x8xf32>
    %132 = arith.truncf %131 : vector<8x8xf32> to vector<8x8xbf16>
    %133 = vector.extract_strided_slice %11 {offsets = [0, 0], sizes = [8, 32], strides = [1, 1]} : vector<32x32xbf16> to vector<8x32xbf16>
    %cst_41 = arith.constant dense<0.000000e+00> : vector<8x32xf32>
    %134 = tpu.matmul %132, %133, %cst_41 {dimension_numbers = #tpu.dot_dimension_numbers<[1], [0], [0], [1], [0, 0, 1, 1], [], []>} : vector<8x8xbf16>, vector<8x32xbf16>, vector<8x32xf32> -> vector<8x32xf32>
    %135 = vector.extract_strided_slice %108 {offsets = [0, 8], sizes = [8, 8], strides = [1, 1]} : vector<8x32xf32> to vector<8x8xf32>
    %136 = vector.extract_strided_slice %109 {offsets = [0, 8], sizes = [8, 8], strides = [1, 1]} : vector<8x32xf32> to vector<8x8xf32>
    %cst_42 = arith.constant dense<0.000000e+00> : vector<8x8xf32>
    %137 = tpu.matmul %135, %136, %cst_42 {dimension_numbers = #tpu.dot_dimension_numbers<[1], [1], [0], [0], [0, 0, 1, 0], [], []>} : vector<8x8xf32>, vector<8x8xf32>, vector<8x8xf32> -> vector<8x8xf32>
    %cst_43 = arith.constant 0.353553385 : f32
    %138 = vector.broadcast %cst_43 : f32 to vector<8x8xf32>
    %139 = arith.mulf %137, %138 : vector<8x8xf32>
    %140 = vector.broadcast %112 : vector<1x8xf32> to vector<8x8xf32>
    %141 = arith.addf %139, %140 : vector<8x8xf32>
    %cst_44 = arith.constant dense<0xFF800000> : vector<8xf32>
    %142 = vector.multi_reduction <maximumf>, %141, %cst_44 [1] : vector<8x8xf32> to vector<8xf32>
    %143 = vector.shape_cast %142 : vector<8xf32> to vector<8x1xf32>
    %144 = vector.broadcast %143 : vector<8x1xf32> to vector<8x8xf32>
    %145 = arith.subf %141, %144 : vector<8x8xf32>
    %146 = math.exp %145 : vector<8x8xf32>
    %cst_45 = arith.constant dense<0.000000e+00> : vector<8xf32>
    %147 = vector.multi_reduction <add>, %146, %cst_45 [1] : vector<8x8xf32> to vector<8xf32>
    %148 = vector.shape_cast %147 : vector<8xf32> to vector<8x1xf32>
    %149 = tpu.reciprocal %148 {approx = true} : vector<8x1xf32> -> vector<8x1xf32>
    %150 = vector.broadcast %149 : vector<8x1xf32> to vector<8x8xf32>
    %151 = arith.mulf %146, %150 : vector<8x8xf32>
    %152 = vector.extract_strided_slice %110 {offsets = [0, 8], sizes = [8, 8], strides = [1, 1]} : vector<8x32xf32> to vector<8x8xf32>
    %cst_46 = arith.constant dense<0.000000e+00> : vector<8x8xf32>
    %153 = tpu.matmul %151, %152, %cst_46 {dimension_numbers = #tpu.dot_dimension_numbers<[1], [0], [0], [1], [0, 0, 1, 1], [], []>} : vector<8x8xf32>, vector<8x8xf32>, vector<8x8xf32> -> vector<8x8xf32>
    %154 = arith.truncf %153 : vector<8x8xf32> to vector<8x8xbf16>
    %155 = vector.extract_strided_slice %11 {offsets = [8, 0], sizes = [8, 32], strides = [1, 1]} : vector<32x32xbf16> to vector<8x32xbf16>
    %cst_47 = arith.constant dense<0.000000e+00> : vector<8x32xf32>
    %156 = tpu.matmul %154, %155, %cst_47 {dimension_numbers = #tpu.dot_dimension_numbers<[1], [0], [0], [1], [0, 0, 1, 1], [], []>} : vector<8x8xbf16>, vector<8x32xbf16>, vector<8x32xf32> -> vector<8x32xf32>
    %157 = arith.addf %134, %156 : vector<8x32xf32>
    %158 = vector.extract_strided_slice %108 {offsets = [0, 16], sizes = [8, 8], strides = [1, 1]} : vector<8x32xf32> to vector<8x8xf32>
    %159 = vector.extract_strided_slice %109 {offsets = [0, 16], sizes = [8, 8], strides = [1, 1]} : vector<8x32xf32> to vector<8x8xf32>
    %cst_48 = arith.constant dense<0.000000e+00> : vector<8x8xf32>
    %160 = tpu.matmul %158, %159, %cst_48 {dimension_numbers = #tpu.dot_dimension_numbers<[1], [1], [0], [0], [0, 0, 1, 0], [], []>} : vector<8x8xf32>, vector<8x8xf32>, vector<8x8xf32> -> vector<8x8xf32>
    %cst_49 = arith.constant 0.353553385 : f32
    %161 = vector.broadcast %cst_49 : f32 to vector<8x8xf32>
    %162 = arith.mulf %160, %161 : vector<8x8xf32>
    %163 = vector.broadcast %112 : vector<1x8xf32> to vector<8x8xf32>
    %164 = arith.addf %162, %163 : vector<8x8xf32>
    %cst_50 = arith.constant dense<0xFF800000> : vector<8xf32>
    %165 = vector.multi_reduction <maximumf>, %164, %cst_50 [1] : vector<8x8xf32> to vector<8xf32>
    %166 = vector.shape_cast %165 : vector<8xf32> to vector<8x1xf32>
    %167 = vector.broadcast %166 : vector<8x1xf32> to vector<8x8xf32>
    %168 = arith.subf %164, %167 : vector<8x8xf32>
    %169 = math.exp %168 : vector<8x8xf32>
    %cst_51 = arith.constant dense<0.000000e+00> : vector<8xf32>
    %170 = vector.multi_reduction <add>, %169, %cst_51 [1] : vector<8x8xf32> to vector<8xf32>
    %171 = vector.shape_cast %170 : vector<8xf32> to vector<8x1xf32>
    %172 = tpu.reciprocal %171 {approx = true} : vector<8x1xf32> -> vector<8x1xf32>
    %173 = vector.broadcast %172 : vector<8x1xf32> to vector<8x8xf32>
    %174 = arith.mulf %169, %173 : vector<8x8xf32>
    %175 = vector.extract_strided_slice %110 {offsets = [0, 16], sizes = [8, 8], strides = [1, 1]} : vector<8x32xf32> to vector<8x8xf32>
    %cst_52 = arith.constant dense<0.000000e+00> : vector<8x8xf32>
    %176 = tpu.matmul %174, %175, %cst_52 {dimension_numbers = #tpu.dot_dimension_numbers<[1], [0], [0], [1], [0, 0, 1, 1], [], []>} : vector<8x8xf32>, vector<8x8xf32>, vector<8x8xf32> -> vector<8x8xf32>
    %177 = arith.truncf %176 : vector<8x8xf32> to vector<8x8xbf16>
    %178 = vector.extract_strided_slice %11 {offsets = [16, 0], sizes = [8, 32], strides = [1, 1]} : vector<32x32xbf16> to vector<8x32xbf16>
    %cst_53 = arith.constant dense<0.000000e+00> : vector<8x32xf32>
    %179 = tpu.matmul %177, %178, %cst_53 {dimension_numbers = #tpu.dot_dimension_numbers<[1], [0], [0], [1], [0, 0, 1, 1], [], []>} : vector<8x8xbf16>, vector<8x32xbf16>, vector<8x32xf32> -> vector<8x32xf32>
    %180 = arith.addf %157, %179 : vector<8x32xf32>
    %181 = vector.extract_strided_slice %108 {offsets = [0, 24], sizes = [8, 8], strides = [1, 1]} : vector<8x32xf32> to vector<8x8xf32>
    %182 = vector.extract_strided_slice %109 {offsets = [0, 24], sizes = [8, 8], strides = [1, 1]} : vector<8x32xf32> to vector<8x8xf32>
    %cst_54 = arith.constant dense<0.000000e+00> : vector<8x8xf32>
    %183 = tpu.matmul %181, %182, %cst_54 {dimension_numbers = #tpu.dot_dimension_numbers<[1], [1], [0], [0], [0, 0, 1, 0], [], []>} : vector<8x8xf32>, vector<8x8xf32>, vector<8x8xf32> -> vector<8x8xf32>
    %cst_55 = arith.constant 0.353553385 : f32
    %184 = vector.broadcast %cst_55 : f32 to vector<8x8xf32>
    %185 = arith.mulf %183, %184 : vector<8x8xf32>
    %186 = vector.broadcast %112 : vector<1x8xf32> to vector<8x8xf32>
    %187 = arith.addf %185, %186 : vector<8x8xf32>
    %cst_56 = arith.constant dense<0xFF800000> : vector<8xf32>
    %188 = vector.multi_reduction <maximumf>, %187, %cst_56 [1] : vector<8x8xf32> to vector<8xf32>
    %189 = vector.shape_cast %188 : vector<8xf32> to vector<8x1xf32>
    %190 = vector.broadcast %189 : vector<8x1xf32> to vector<8x8xf32>
    %191 = arith.subf %187, %190 : vector<8x8xf32>
    %192 = math.exp %191 : vector<8x8xf32>
    %cst_57 = arith.constant dense<0.000000e+00> : vector<8xf32>
    %193 = vector.multi_reduction <add>, %192, %cst_57 [1] : vector<8x8xf32> to vector<8xf32>
    %194 = vector.shape_cast %193 : vector<8xf32> to vector<8x1xf32>
    %195 = tpu.reciprocal %194 {approx = true} : vector<8x1xf32> -> vector<8x1xf32>
    %196 = vector.broadcast %195 : vector<8x1xf32> to vector<8x8xf32>
    %197 = arith.mulf %192, %196 : vector<8x8xf32>
    %198 = vector.extract_strided_slice %110 {offsets = [0, 24], sizes = [8, 8], strides = [1, 1]} : vector<8x32xf32> to vector<8x8xf32>
    %cst_58 = arith.constant dense<0.000000e+00> : vector<8x8xf32>
    %199 = tpu.matmul %197, %198, %cst_58 {dimension_numbers = #tpu.dot_dimension_numbers<[1], [0], [0], [1], [0, 0, 1, 1], [], []>} : vector<8x8xf32>, vector<8x8xf32>, vector<8x8xf32> -> vector<8x8xf32>
    %200 = arith.truncf %199 : vector<8x8xf32> to vector<8x8xbf16>
    %201 = vector.extract_strided_slice %11 {offsets = [24, 0], sizes = [8, 32], strides = [1, 1]} : vector<32x32xbf16> to vector<8x32xbf16>
    %cst_59 = arith.constant dense<0.000000e+00> : vector<8x32xf32>
    %202 = tpu.matmul %200, %201, %cst_59 {dimension_numbers = #tpu.dot_dimension_numbers<[1], [0], [0], [1], [0, 0, 1, 1], [], []>} : vector<8x8xbf16>, vector<8x32xbf16>, vector<8x32xf32> -> vector<8x32xf32>
    %203 = arith.addf %180, %202 : vector<8x32xf32>
    %204 = tpu.concatenate %107, %203 in 0 : vector<8x32xf32>, vector<8x32xf32> -> vector<16x32xf32>
    %c0_60 = arith.constant 0 : index
    %c0_61 = arith.constant 0 : index
    %205 = vector.load %arg5[%c0_60, %c0_61] : memref<1x32xf32, #tpu.memory_space<vmem>>, vector<1x32xf32>
    %206 = vector.broadcast %205 : vector<1x32xf32> to vector<16x32xf32>
    %207 = arith.addf %204, %206 : vector<16x32xf32>
    %208 = arith.addf %1, %207 : vector<16x32xf32>
    %c0_62 = arith.constant 0 : index
    %c0_63 = arith.constant 0 : index
    %209 = vector.load %arg10[%c0_62, %c0_63] : memref<1x32xf32, #tpu.memory_space<vmem>>, vector<1x32xf32>
    %c0_64 = arith.constant 0 : index
    %c0_65 = arith.constant 0 : index
    %210 = vector.load %arg11[%c0_64, %c0_65] : memref<1x32xf32, #tpu.memory_space<vmem>>, vector<1x32xf32>
    %cst_66 = arith.constant dense<0.000000e+00> : vector<16xf32>
    %211 = vector.multi_reduction <add>, %208, %cst_66 [1] : vector<16x32xf32> to vector<16xf32>
    %212 = vector.shape_cast %211 : vector<16xf32> to vector<16x1xf32>
    %cst_67 = arith.constant 3.200000e+01 : f32
    %213 = vector.broadcast %cst_67 : f32 to vector<16x1xf32>
    %214 = arith.divf %212, %213 : vector<16x1xf32>
    %215 = vector.broadcast %214 : vector<16x1xf32> to vector<16x32xf32>
    %216 = arith.subf %208, %215 : vector<16x32xf32>
    %217 = arith.mulf %216, %216 : vector<16x32xf32>
    %cst_68 = arith.constant dense<0.000000e+00> : vector<16xf32>
    %218 = vector.multi_reduction <add>, %217, %cst_68 [1] : vector<16x32xf32> to vector<16xf32>
    %219 = vector.shape_cast %218 : vector<16xf32> to vector<16x1xf32>
    %cst_69 = arith.constant 3.200000e+01 : f32
    %220 = vector.broadcast %cst_69 : f32 to vector<16x1xf32>
    %221 = arith.divf %219, %220 : vector<16x1xf32>
    %222 = vector.broadcast %214 : vector<16x1xf32> to vector<16x32xf32>
    %223 = arith.subf %208, %222 : vector<16x32xf32>
    %cst_70 = arith.constant 9.99999974E-6 : f32
    %224 = vector.broadcast %cst_70 : f32 to vector<16x1xf32>
    %225 = arith.addf %221, %224 : vector<16x1xf32>
    %226 = math.rsqrt %225 : vector<16x1xf32>
    %227 = vector.broadcast %226 : vector<16x1xf32> to vector<16x32xf32>
    %228 = arith.mulf %223, %227 : vector<16x32xf32>
    %229 = vector.broadcast %209 : vector<1x32xf32> to vector<16x32xf32>
    %230 = arith.mulf %228, %229 : vector<16x32xf32>
    %231 = vector.broadcast %210 : vector<1x32xf32> to vector<16x32xf32>
    %232 = arith.addf %230, %231 : vector<16x32xf32>
    %c0_71 = arith.constant 0 : index
    %c0_72 = arith.constant 0 : index
    %233 = vector.load %arg6[%c0_71, %c0_72] : memref<32x64xbf16, #tpu.memory_space<vmem>>, vector<32x64xbf16>
    %234 = arith.truncf %232 : vector<16x32xf32> to vector<16x32xbf16>
    %cst_73 = arith.constant dense<0.000000e+00> : vector<16x64xf32>
    %235 = tpu.matmul %234, %233, %cst_73 {dimension_numbers = #tpu.dot_dimension_numbers<[1], [0], [0], [1], [0, 0, 1, 1], [], []>} : vector<16x32xbf16>, vector<32x64xbf16>, vector<16x64xf32> -> vector<16x64xf32>
    %c0_74 = arith.constant 0 : index
    %c0_75 = arith.constant 0 : index
    %236 = vector.load %arg7[%c0_74, %c0_75] : memref<1x64xf32, #tpu.memory_space<vmem>>, vector<1x64xf32>
    %237 = vector.broadcast %236 : vector<1x64xf32> to vector<16x64xf32>
    %238 = arith.addf %235, %237 : vector<16x64xf32>
    %cst_76 = arith.constant 0.000000e+00 : f32
    %239 = vector.broadcast %cst_76 : f32 to vector<16x64xf32>
    %240 = arith.maximumf %238, %239 : vector<16x64xf32>
    %c0_77 = arith.constant 0 : index
    %c0_78 = arith.constant 0 : index
    %241 = vector.load %arg8[%c0_77, %c0_78] : memref<64x32xbf16, #tpu.memory_space<vmem>>, vector<64x32xbf16>
    %242 = arith.truncf %240 : vector<16x64xf32> to vector<16x64xbf16>
    %cst_79 = arith.constant dense<0.000000e+00> : vector<16x32xf32>
    %243 = tpu.matmul %242, %241, %cst_79 {dimension_numbers = #tpu.dot_dimension_numbers<[1], [0], [0], [1], [0, 0, 1, 1], [], []>} : vector<16x64xbf16>, vector<64x32xbf16>, vector<16x32xf32> -> vector<16x32xf32>
    %c0_80 = arith.constant 0 : index
    %c0_81 = arith.constant 0 : index
    %244 = vector.load %arg9[%c0_80, %c0_81] : memref<1x32xf32, #tpu.memory_space<vmem>>, vector<1x32xf32>
    %245 = vector.broadcast %244 : vector<1x32xf32> to vector<16x32xf32>
    %246 = arith.addf %243, %245 : vector<16x32xf32>
    %247 = arith.addf %232, %246 : vector<16x32xf32>
    %c0_82 = arith.constant 0 : index
    %c0_83 = arith.constant 0 : index
    %248 = vector.load %arg12[%c0_82, %c0_83] : memref<1x32xf32, #tpu.memory_space<vmem>>, vector<1x32xf32>
    %c0_84 = arith.constant 0 : index
    %c0_85 = arith.constant 0 : index
    %249 = vector.load %arg13[%c0_84, %c0_85] : memref<1x32xf32, #tpu.memory_space<vmem>>, vector<1x32xf32>
    %cst_86 = arith.constant dense<0.000000e+00> : vector<16xf32>
    %250 = vector.multi_reduction <add>, %247, %cst_86 [1] : vector<16x32xf32> to vector<16xf32>
    %251 = vector.shape_cast %250 : vector<16xf32> to vector<16x1xf32>
    %cst_87 = arith.constant 3.200000e+01 : f32
    %252 = vector.broadcast %cst_87 : f32 to vector<16x1xf32>
    %253 = arith.divf %251, %252 : vector<16x1xf32>
    %254 = vector.broadcast %253 : vector<16x1xf32> to vector<16x32xf32>
    %255 = arith.subf %247, %254 : vector<16x32xf32>
    %256 = arith.mulf %255, %255 : vector<16x32xf32>
    %cst_88 = arith.constant dense<0.000000e+00> : vector<16xf32>
    %257 = vector.multi_reduction <add>, %256, %cst_88 [1] : vector<16x32xf32> to vector<16xf32>
    %258 = vector.shape_cast %257 : vector<16xf32> to vector<16x1xf32>
    %cst_89 = arith.constant 3.200000e+01 : f32
    %259 = vector.broadcast %cst_89 : f32 to vector<16x1xf32>
    %260 = arith.divf %258, %259 : vector<16x1xf32>
    %261 = vector.broadcast %253 : vector<16x1xf32> to vector<16x32xf32>
    %262 = arith.subf %247, %261 : vector<16x32xf32>
    %cst_90 = arith.constant 9.99999974E-6 : f32
    %263 = vector.broadcast %cst_90 : f32 to vector<16x1xf32>
    %264 = arith.addf %260, %263 : vector<16x1xf32>
    %265 = math.rsqrt %264 : vector<16x1xf32>
    %266 = vector.broadcast %265 : vector<16x1xf32> to vector<16x32xf32>
    %267 = arith.mulf %262, %266 : vector<16x32xf32>
    %268 = vector.broadcast %248 : vector<1x32xf32> to vector<16x32xf32>
    %269 = arith.mulf %267, %268 : vector<16x32xf32>
    %270 = vector.broadcast %249 : vector<1x32xf32> to vector<16x32xf32>
    %271 = arith.addf %269, %270 : vector<16x32xf32>
    %c0_91 = arith.constant 0 : index
    %c0_92 = arith.constant 0 : index
    %272 = vector.load %arg14[%c0_91, %c0_92] : memref<1x32xf32, #tpu.memory_space<vmem>>, vector<1x32xf32>
    %c0_93 = arith.constant 0 : index
    %c0_94 = arith.constant 0 : index
    %273 = vector.load %arg15[%c0_93, %c0_94] : memref<1x32xf32, #tpu.memory_space<vmem>>, vector<1x32xf32>
    %cst_95 = arith.constant dense<0.000000e+00> : vector<16xf32>
    %274 = vector.multi_reduction <add>, %271, %cst_95 [1] : vector<16x32xf32> to vector<16xf32>
    %275 = vector.shape_cast %274 : vector<16xf32> to vector<16x1xf32>
    %cst_96 = arith.constant 3.200000e+01 : f32
    %276 = vector.broadcast %cst_96 : f32 to vector<16x1xf32>
    %277 = arith.divf %275, %276 : vector<16x1xf32>
    %278 = vector.broadcast %277 : vector<16x1xf32> to vector<16x32xf32>
    %279 = arith.subf %271, %278 : vector<16x32xf32>
    %280 = arith.mulf %279, %279 : vector<16x32xf32>
    %cst_97 = arith.constant dense<0.000000e+00> : vector<16xf32>
    %281 = vector.multi_reduction <add>, %280, %cst_97 [1] : vector<16x32xf32> to vector<16xf32>
    %282 = vector.shape_cast %281 : vector<16xf32> to vector<16x1xf32>
    %cst_98 = arith.constant 3.200000e+01 : f32
    %283 = vector.broadcast %cst_98 : f32 to vector<16x1xf32>
    %284 = arith.divf %282, %283 : vector<16x1xf32>
    %285 = vector.broadcast %277 : vector<16x1xf32> to vector<16x32xf32>
    %286 = arith.subf %271, %285 : vector<16x32xf32>
    %cst_99 = arith.constant 9.99999974E-6 : f32
    %287 = vector.broadcast %cst_99 : f32 to vector<16x1xf32>
    %288 = arith.addf %284, %287 : vector<16x1xf32>
    %289 = math.rsqrt %288 : vector<16x1xf32>
    %290 = vector.broadcast %289 : vector<16x1xf32> to vector<16x32xf32>
    %291 = arith.mulf %286, %290 : vector<16x32xf32>
    %292 = vector.broadcast %272 : vector<1x32xf32> to vector<16x32xf32>
    %293 = arith.mulf %291, %292 : vector<16x32xf32>
    %294 = vector.broadcast %273 : vector<1x32xf32> to vector<16x32xf32>
    %295 = arith.addf %293, %294 : vector<16x32xf32>
    %296 = arith.truncf %295 : vector<16x32xf32> to vector<16x32xbf16>
    %c0_100 = arith.constant 0 : index
    %c0_101 = arith.constant 0 : index
    %297 = vector.load %arg16[%c0_100, %c0_101] : memref<16x32xbf16, #tpu.memory_space<vmem>>, vector<16x32xbf16>
    tpu.vector_store %arg16[%c0_100, %c0_101], %296 {strides = array<i32>} : memref<16x32xbf16, #tpu.memory_space<vmem>>, vector<16x32xbf16>,
    return
  }
}

module attributes {stable_mosaic.version = 11 : i64} {
  func.func @_fc_softmax_kernel(%arg0: i32, %arg1: memref<16x32xbf16, #tpu.memory_space<vmem>>, %arg2: memref<1x32xf32, #tpu.memory_space<vmem>>, %arg3: memref<1x32xf32, #tpu.memory_space<vmem>>, %arg4: memref<32x128xbf16, #tpu.memory_space<vmem>>, %arg5: memref<1x128xf32, #tpu.memory_space<vmem>>, %arg6: memref<16x128xf32, #tpu.memory_space<vmem>>) attributes {dimension_semantics = [#tpu.dimension_semantics<parallel>], iteration_bounds = array<i64: 1>, scalar_prefetch = 0 : i64, scratch_operands = 0 : i64, tpu.core_type = #tpu.core_type<tc>, window_params = [{transform_indices = @transform_0, window_bounds = array<i64: 16, 32>}, {pipeline_mode = #tpu.pipeline_mode<synchronous>, transform_indices = @transform_1, window_bounds = array<i64: 1, 32>}, {pipeline_mode = #tpu.pipeline_mode<synchronous>, transform_indices = @transform_2, window_bounds = array<i64: 1, 32>}, {pipeline_mode = #tpu.pipeline_mode<synchronous>, transform_indices = @transform_3, window_bounds = array<i64: 32, 128>}, {pipeline_mode = #tpu.pipeline_mode<synchronous>, transform_indices = @transform_4, window_bounds = array<i64: 1, 128>}, {transform_indices = @transform_5, window_bounds = array<i64: 16, 128>}]} {
    %c0 = arith.constant 0 : index
    %c0_0 = arith.constant 0 : index
    %0 = vector.load %arg1[%c0, %c0_0] : memref<16x32xbf16, #tpu.memory_space<vmem>>, vector<16x32xbf16>
    %1 = arith.extf %0 : vector<16x32xbf16> to vector<16x32xf32>
    %c0_1 = arith.constant 0 : index
    %c0_2 = arith.constant 0 : index
    %2 = vector.load %arg2[%c0_1, %c0_2] : memref<1x32xf32, #tpu.memory_space<vmem>>, vector<1x32xf32>
    %c0_3 = arith.constant 0 : index
    %c0_4 = arith.constant 0 : index
    %3 = vector.load %arg3[%c0_3, %c0_4] : memref<1x32xf32, #tpu.memory_space<vmem>>, vector<1x32xf32>
    %cst = arith.constant dense<0.000000e+00> : vector<16xf32>
    %4 = vector.multi_reduction <add>, %1, %cst [1] : vector<16x32xf32> to vector<16xf32>
    %5 = vector.shape_cast %4 : vector<16xf32> to vector<16x1xf32>
    %cst_5 = arith.constant 3.200000e+01 : f32
    %6 = vector.broadcast %cst_5 : f32 to vector<16x1xf32>
    %7 = arith.divf %5, %6 : vector<16x1xf32>
    %8 = vector.broadcast %7 : vector<16x1xf32> to vector<16x32xf32>
    %9 = arith.subf %1, %8 : vector<16x32xf32>
    %10 = arith.mulf %9, %9 : vector<16x32xf32>
    %cst_6 = arith.constant dense<0.000000e+00> : vector<16xf32>
    %11 = vector.multi_reduction <add>, %10, %cst_6 [1] : vector<16x32xf32> to vector<16xf32>
    %12 = vector.shape_cast %11 : vector<16xf32> to vector<16x1xf32>
    %cst_7 = arith.constant 3.200000e+01 : f32
    %13 = vector.broadcast %cst_7 : f32 to vector<16x1xf32>
    %14 = arith.divf %12, %13 : vector<16x1xf32>
    %15 = vector.broadcast %7 : vector<16x1xf32> to vector<16x32xf32>
    %16 = arith.subf %1, %15 : vector<16x32xf32>
    %cst_8 = arith.constant 9.99999974E-6 : f32
    %17 = vector.broadcast %cst_8 : f32 to vector<16x1xf32>
    %18 = arith.addf %14, %17 : vector<16x1xf32>
    %19 = math.rsqrt %18 : vector<16x1xf32>
    %20 = vector.broadcast %19 : vector<16x1xf32> to vector<16x32xf32>
    %21 = arith.mulf %16, %20 : vector<16x32xf32>
    %22 = vector.broadcast %2 : vector<1x32xf32> to vector<16x32xf32>
    %23 = arith.mulf %21, %22 : vector<16x32xf32>
    %24 = vector.broadcast %3 : vector<1x32xf32> to vector<16x32xf32>
    %25 = arith.addf %23, %24 : vector<16x32xf32>
    %c0_9 = arith.constant 0 : index
    %c0_10 = arith.constant 0 : index
    %26 = vector.load %arg4[%c0_9, %c0_10] : memref<32x128xbf16, #tpu.memory_space<vmem>>, vector<32x128xbf16>
    %27 = arith.truncf %25 : vector<16x32xf32> to vector<16x32xbf16>
    %cst_11 = arith.constant dense<0.000000e+00> : vector<16x128xf32>
    %28 = tpu.matmul %27, %26, %cst_11 {dimension_numbers = #tpu.dot_dimension_numbers<[1], [0], [0], [1], [0, 0, 1, 1], [], []>} : vector<16x32xbf16>, vector<32x128xbf16>, vector<16x128xf32> -> vector<16x128xf32>
    %c0_12 = arith.constant 0 : index
    %c0_13 = arith.constant 0 : index
    %29 = vector.load %arg5[%c0_12, %c0_13] : memref<1x128xf32, #tpu.memory_space<vmem>>, vector<1x128xf32>
    %30 = vector.broadcast %29 : vector<1x128xf32> to vector<16x128xf32>
    %31 = arith.addf %28, %30 : vector<16x128xf32>
    %32 = tpu.iota {dimensions = array<i32: 1>} : vector<16x128xi32>
    %c41_i32 = arith.constant 41 : i32
    %33 = vector.broadcast %c41_i32 : i32 to vector<16x128xi32>
    %34 = arith.cmpi slt, %32, %33 : vector<16x128xi32>
    %cst_14 = arith.constant -1.000000e+30 : f32
    %35 = vector.broadcast %cst_14 : f32 to vector<16x128xf32>
    %36 = arith.select %34, %31, %35 : vector<16x128xi1>, vector<16x128xf32>
    %cst_15 = arith.constant dense<0xFF800000> : vector<16xf32>
    %37 = vector.multi_reduction <maximumf>, %36, %cst_15 [1] : vector<16x128xf32> to vector<16xf32>
    %38 = vector.shape_cast %37 : vector<16xf32> to vector<16x1xf32>
    %39 = vector.broadcast %38 : vector<16x1xf32> to vector<16x128xf32>
    %40 = arith.subf %36, %39 : vector<16x128xf32>
    %41 = math.exp %40 : vector<16x128xf32>
    %cst_16 = arith.constant dense<0.000000e+00> : vector<16xf32>
    %42 = vector.multi_reduction <add>, %41, %cst_16 [1] : vector<16x128xf32> to vector<16xf32>
    %43 = vector.shape_cast %42 : vector<16xf32> to vector<16x1xf32>
    %44 = vector.broadcast %43 : vector<16x1xf32> to vector<16x128xf32>
    %45 = arith.divf %41, %44 : vector<16x128xf32>
    %c0_17 = arith.constant 0 : index
    %c0_18 = arith.constant 0 : index
    %46 = vector.load %arg6[%c0_17, %c0_18] : memref<16x128xf32, #tpu.memory_space<vmem>>, vector<16x128xf32>
    tpu.vector_store %arg6[%c0_17, %c0_18], %45 {strides = array<i32>} : memref<16x128xf32, #tpu.memory_space<vmem>>, vector<16x128xf32>,
    return
  }
  func.func @transform_0(%arg0: i32) -> (i32, i32) {
    %c0_i32 = arith.constant 0 : i32
    %c0_i32_0 = arith.constant 0 : i32
    return %arg0, %c0_i32 : i32, i32
  }
  func.func @transform_1(%arg0: i32) -> (i32, i32) {
    %c0_i32 = arith.constant 0 : i32
    %c0_i32_0 = arith.constant 0 : i32
    %c0_i32_1 = arith.constant 0 : i32
    return %c0_i32, %c0_i32_0 : i32, i32
  }
  func.func @transform_2(%arg0: i32) -> (i32, i32) {
    %c0_i32 = arith.constant 0 : i32
    %c0_i32_0 = arith.constant 0 : i32
    %c0_i32_1 = arith.constant 0 : i32
    return %c0_i32, %c0_i32_0 : i32, i32
  }
  func.func @transform_3(%arg0: i32) -> (i32, i32) {
    %c0_i32 = arith.constant 0 : i32
    %c0_i32_0 = arith.constant 0 : i32
    %c0_i32_1 = arith.constant 0 : i32
    return %c0_i32, %c0_i32_0 : i32, i32
  }
  func.func @transform_4(%arg0: i32) -> (i32, i32) {
    %c0_i32 = arith.constant 0 : i32
    %c0_i32_0 = arith.constant 0 : i32
    %c0_i32_1 = arith.constant 0 : i32
    return %c0_i32, %c0_i32_0 : i32, i32
  }
  func.func @transform_5(%arg0: i32) -> (i32, i32) {
    %c0_i32 = arith.constant 0 : i32
    %c0_i32_0 = arith.constant 0 : i32
    return %arg0, %c0_i32 : i32, i32
  }
}

module attributes {stable_mosaic.version = 11 : i64} {
  func.func @_dec_layer_kernel(%arg0: memref<16x32xbf16, #tpu.memory_space<vmem>>, %arg1: memref<16x32xbf16, #tpu.memory_space<vmem>>, %arg2: memref<2x1x8xf32, #tpu.memory_space<vmem>>, %arg3: memref<2x1x8xf32, #tpu.memory_space<vmem>>, %arg4: memref<8x8xf32, #tpu.memory_space<vmem>>, %arg5: memref<32x96xbf16, #tpu.memory_space<vmem>>, %arg6: memref<1x96xf32, #tpu.memory_space<vmem>>, %arg7: memref<32x32xbf16, #tpu.memory_space<vmem>>, %arg8: memref<1x32xf32, #tpu.memory_space<vmem>>, %arg9: memref<32x32xbf16, #tpu.memory_space<vmem>>, %arg10: memref<1x32xf32, #tpu.memory_space<vmem>>, %arg11: memref<32x64xbf16, #tpu.memory_space<vmem>>, %arg12: memref<1x64xf32, #tpu.memory_space<vmem>>, %arg13: memref<32x32xbf16, #tpu.memory_space<vmem>>, %arg14: memref<1x32xf32, #tpu.memory_space<vmem>>, %arg15: memref<32x64xbf16, #tpu.memory_space<vmem>>, %arg16: memref<1x64xf32, #tpu.memory_space<vmem>>, %arg17: memref<64x32xbf16, #tpu.memory_space<vmem>>, %arg18: memref<1x32xf32, #tpu.memory_space<vmem>>, %arg19: memref<1x32xf32, #tpu.memory_space<vmem>>, %arg20: memref<1x32xf32, #tpu.memory_space<vmem>>, %arg21: memref<1x32xf32, #tpu.memory_space<vmem>>, %arg22: memref<1x32xf32, #tpu.memory_space<vmem>>, %arg23: memref<1x32xf32, #tpu.memory_space<vmem>>, %arg24: memref<1x32xf32, #tpu.memory_space<vmem>>, %arg25: memref<16x32xbf16, #tpu.memory_space<vmem>>) attributes {dimension_semantics = [], scalar_prefetch = 0 : i64, scratch_operands = 0 : i64, tpu.core_type = #tpu.core_type<tc>} {
    %c0 = arith.constant 0 : index
    %c0_0 = arith.constant 0 : index
    %0 = vector.load %arg0[%c0, %c0_0] : memref<16x32xbf16, #tpu.memory_space<vmem>>, vector<16x32xbf16>
    %1 = arith.extf %0 : vector<16x32xbf16> to vector<16x32xf32>
    %c0_1 = arith.constant 0 : index
    %c0_2 = arith.constant 0 : index
    %2 = vector.load %arg1[%c0_1, %c0_2] : memref<16x32xbf16, #tpu.memory_space<vmem>>, vector<16x32xbf16>
    %3 = arith.extf %2 : vector<16x32xbf16> to vector<16x32xf32>
    %c0_3 = arith.constant 0 : index
    %c0_4 = arith.constant 0 : index
    %4 = vector.load %arg4[%c0_3, %c0_4] : memref<8x8xf32, #tpu.memory_space<vmem>>, vector<8x8xf32>
    %c0_5 = arith.constant 0 : index
    %c0_6 = arith.constant 0 : index
    %5 = vector.load %arg5[%c0_5, %c0_6] : memref<32x96xbf16, #tpu.memory_space<vmem>>, vector<32x96xbf16>
    %6 = arith.truncf %1 : vector<16x32xf32> to vector<16x32xbf16>
    %cst = arith.constant dense<0.000000e+00> : vector<16x96xf32>
    %7 = tpu.matmul %6, %5, %cst {dimension_numbers = #tpu.dot_dimension_numbers<[1], [0], [0], [1], [0, 0, 1, 1], [], []>} : vector<16x32xbf16>, vector<32x96xbf16>, vector<16x96xf32> -> vector<16x96xf32>
    %c0_7 = arith.constant 0 : index
    %c0_8 = arith.constant 0 : index
    %8 = vector.load %arg6[%c0_7, %c0_8] : memref<1x96xf32, #tpu.memory_space<vmem>>, vector<1x96xf32>
    %9 = vector.broadcast %8 : vector<1x96xf32> to vector<16x96xf32>
    %10 = arith.addf %7, %9 : vector<16x96xf32>
    %11 = vector.extract_strided_slice %10 {offsets = [0, 0], sizes = [16, 32], strides = [1, 1]} : vector<16x96xf32> to vector<16x32xf32>
    %12 = vector.extract_strided_slice %10 {offsets = [0, 32], sizes = [16, 32], strides = [1, 1]} : vector<16x96xf32> to vector<16x32xf32>
    %13 = vector.extract_strided_slice %10 {offsets = [0, 64], sizes = [16, 32], strides = [1, 1]} : vector<16x96xf32> to vector<16x32xf32>
    %c0_9 = arith.constant 0 : index
    %c0_10 = arith.constant 0 : index
    %14 = vector.load %arg7[%c0_9, %c0_10] : memref<32x32xbf16, #tpu.memory_space<vmem>>, vector<32x32xbf16>
    %15 = vector.extract_strided_slice %11 {offsets = [0, 0], sizes = [8, 32], strides = [1, 1]} : vector<16x32xf32> to vector<8x32xf32>
    %16 = vector.extract_strided_slice %12 {offsets = [0, 0], sizes = [8, 32], strides = [1, 1]} : vector<16x32xf32> to vector<8x32xf32>
    %17 = vector.extract_strided_slice %13 {offsets = [0, 0], sizes = [8, 32], strides = [1, 1]} : vector<16x32xf32> to vector<8x32xf32>
    %c0_11 = arith.constant 0 : index
    %c0_12 = arith.constant 0 : index
    %c0_13 = arith.constant 0 : index
    %18 = vector.load %arg2[%c0_11, %c0_12, %c0_13] : memref<2x1x8xf32, #tpu.memory_space<vmem>>, vector<1x1x8xf32>
    %19 = vector.shape_cast %18 : vector<1x1x8xf32> to vector<1x8xf32>
    %20 = vector.broadcast %19 : vector<1x8xf32> to vector<8x8xf32>
    %21 = arith.addf %4, %20 : vector<8x8xf32>
    %22 = vector.extract_strided_slice %15 {offsets = [0, 0], sizes = [8, 8], strides = [1, 1]} : vector<8x32xf32> to vector<8x8xf32>
    %23 = vector.extract_strided_slice %16 {offsets = [0, 0], sizes = [8, 8], strides = [1, 1]} : vector<8x32xf32> to vector<8x8xf32>
    %cst_14 = arith.constant dense<0.000000e+00> : vector<8x8xf32>
    %24 = tpu.matmul %22, %23, %cst_14 {dimension_numbers = #tpu.dot_dimension_numbers<[1], [1], [0], [0], [0, 0, 1, 0], [], []>} : vector<8x8xf32>, vector<8x8xf32>, vector<8x8xf32> -> vector<8x8xf32>
    %cst_15 = arith.constant 0.353553385 : f32
    %25 = vector.broadcast %cst_15 : f32 to vector<8x8xf32>
    %26 = arith.mulf %24, %25 : vector<8x8xf32>
    %27 = arith.addf %26, %21 : vector<8x8xf32>
    %cst_16 = arith.constant dense<0xFF800000> : vector<8xf32>
    %28 = vector.multi_reduction <maximumf>, %27, %cst_16 [1] : vector<8x8xf32> to vector<8xf32>
    %29 = vector.shape_cast %28 : vector<8xf32> to vector<8x1xf32>
    %30 = vector.broadcast %29 : vector<8x1xf32> to vector<8x8xf32>
    %31 = arith.subf %27, %30 : vector<8x8xf32>
    %32 = math.exp %31 : vector<8x8xf32>
    %cst_17 = arith.constant dense<0.000000e+00> : vector<8xf32>
    %33 = vector.multi_reduction <add>, %32, %cst_17 [1] : vector<8x8xf32> to vector<8xf32>
    %34 = vector.shape_cast %33 : vector<8xf32> to vector<8x1xf32>
    %35 = tpu.reciprocal %34 {approx = true} : vector<8x1xf32> -> vector<8x1xf32>
    %36 = vector.broadcast %35 : vector<8x1xf32> to vector<8x8xf32>
    %37 = arith.mulf %32, %36 : vector<8x8xf32>
    %38 = vector.extract_strided_slice %17 {offsets = [0, 0], sizes = [8, 8], strides = [1, 1]} : vector<8x32xf32> to vector<8x8xf32>
    %cst_18 = arith.constant dense<0.000000e+00> : vector<8x8xf32>
    %39 = tpu.matmul %37, %38, %cst_18 {dimension_numbers = #tpu.dot_dimension_numbers<[1], [0], [0], [1], [0, 0, 1, 1], [], []>} : vector<8x8xf32>, vector<8x8xf32>, vector<8x8xf32> -> vector<8x8xf32>
    %40 = arith.truncf %39 : vector<8x8xf32> to vector<8x8xbf16>
    %41 = vector.extract_strided_slice %14 {offsets = [0, 0], sizes = [8, 32], strides = [1, 1]} : vector<32x32xbf16> to vector<8x32xbf16>
    %cst_19 = arith.constant dense<0.000000e+00> : vector<8x32xf32>
    %42 = tpu.matmul %40, %41, %cst_19 {dimension_numbers = #tpu.dot_dimension_numbers<[1], [0], [0], [1], [0, 0, 1, 1], [], []>} : vector<8x8xbf16>, vector<8x32xbf16>, vector<8x32xf32> -> vector<8x32xf32>
    %43 = vector.extract_strided_slice %15 {offsets = [0, 8], sizes = [8, 8], strides = [1, 1]} : vector<8x32xf32> to vector<8x8xf32>
    %44 = vector.extract_strided_slice %16 {offsets = [0, 8], sizes = [8, 8], strides = [1, 1]} : vector<8x32xf32> to vector<8x8xf32>
    %cst_20 = arith.constant dense<0.000000e+00> : vector<8x8xf32>
    %45 = tpu.matmul %43, %44, %cst_20 {dimension_numbers = #tpu.dot_dimension_numbers<[1], [1], [0], [0], [0, 0, 1, 0], [], []>} : vector<8x8xf32>, vector<8x8xf32>, vector<8x8xf32> -> vector<8x8xf32>
    %cst_21 = arith.constant 0.353553385 : f32
    %46 = vector.broadcast %cst_21 : f32 to vector<8x8xf32>
    %47 = arith.mulf %45, %46 : vector<8x8xf32>
    %48 = arith.addf %47, %21 : vector<8x8xf32>
    %cst_22 = arith.constant dense<0xFF800000> : vector<8xf32>
    %49 = vector.multi_reduction <maximumf>, %48, %cst_22 [1] : vector<8x8xf32> to vector<8xf32>
    %50 = vector.shape_cast %49 : vector<8xf32> to vector<8x1xf32>
    %51 = vector.broadcast %50 : vector<8x1xf32> to vector<8x8xf32>
    %52 = arith.subf %48, %51 : vector<8x8xf32>
    %53 = math.exp %52 : vector<8x8xf32>
    %cst_23 = arith.constant dense<0.000000e+00> : vector<8xf32>
    %54 = vector.multi_reduction <add>, %53, %cst_23 [1] : vector<8x8xf32> to vector<8xf32>
    %55 = vector.shape_cast %54 : vector<8xf32> to vector<8x1xf32>
    %56 = tpu.reciprocal %55 {approx = true} : vector<8x1xf32> -> vector<8x1xf32>
    %57 = vector.broadcast %56 : vector<8x1xf32> to vector<8x8xf32>
    %58 = arith.mulf %53, %57 : vector<8x8xf32>
    %59 = vector.extract_strided_slice %17 {offsets = [0, 8], sizes = [8, 8], strides = [1, 1]} : vector<8x32xf32> to vector<8x8xf32>
    %cst_24 = arith.constant dense<0.000000e+00> : vector<8x8xf32>
    %60 = tpu.matmul %58, %59, %cst_24 {dimension_numbers = #tpu.dot_dimension_numbers<[1], [0], [0], [1], [0, 0, 1, 1], [], []>} : vector<8x8xf32>, vector<8x8xf32>, vector<8x8xf32> -> vector<8x8xf32>
    %61 = arith.truncf %60 : vector<8x8xf32> to vector<8x8xbf16>
    %62 = vector.extract_strided_slice %14 {offsets = [8, 0], sizes = [8, 32], strides = [1, 1]} : vector<32x32xbf16> to vector<8x32xbf16>
    %cst_25 = arith.constant dense<0.000000e+00> : vector<8x32xf32>
    %63 = tpu.matmul %61, %62, %cst_25 {dimension_numbers = #tpu.dot_dimension_numbers<[1], [0], [0], [1], [0, 0, 1, 1], [], []>} : vector<8x8xbf16>, vector<8x32xbf16>, vector<8x32xf32> -> vector<8x32xf32>
    %64 = arith.addf %42, %63 : vector<8x32xf32>
    %65 = vector.extract_strided_slice %15 {offsets = [0, 16], sizes = [8, 8], strides = [1, 1]} : vector<8x32xf32> to vector<8x8xf32>
    %66 = vector.extract_strided_slice %16 {offsets = [0, 16], sizes = [8, 8], strides = [1, 1]} : vector<8x32xf32> to vector<8x8xf32>
    %cst_26 = arith.constant dense<0.000000e+00> : vector<8x8xf32>
    %67 = tpu.matmul %65, %66, %cst_26 {dimension_numbers = #tpu.dot_dimension_numbers<[1], [1], [0], [0], [0, 0, 1, 0], [], []>} : vector<8x8xf32>, vector<8x8xf32>, vector<8x8xf32> -> vector<8x8xf32>
    %cst_27 = arith.constant 0.353553385 : f32
    %68 = vector.broadcast %cst_27 : f32 to vector<8x8xf32>
    %69 = arith.mulf %67, %68 : vector<8x8xf32>
    %70 = arith.addf %69, %21 : vector<8x8xf32>
    %cst_28 = arith.constant dense<0xFF800000> : vector<8xf32>
    %71 = vector.multi_reduction <maximumf>, %70, %cst_28 [1] : vector<8x8xf32> to vector<8xf32>
    %72 = vector.shape_cast %71 : vector<8xf32> to vector<8x1xf32>
    %73 = vector.broadcast %72 : vector<8x1xf32> to vector<8x8xf32>
    %74 = arith.subf %70, %73 : vector<8x8xf32>
    %75 = math.exp %74 : vector<8x8xf32>
    %cst_29 = arith.constant dense<0.000000e+00> : vector<8xf32>
    %76 = vector.multi_reduction <add>, %75, %cst_29 [1] : vector<8x8xf32> to vector<8xf32>
    %77 = vector.shape_cast %76 : vector<8xf32> to vector<8x1xf32>
    %78 = tpu.reciprocal %77 {approx = true} : vector<8x1xf32> -> vector<8x1xf32>
    %79 = vector.broadcast %78 : vector<8x1xf32> to vector<8x8xf32>
    %80 = arith.mulf %75, %79 : vector<8x8xf32>
    %81 = vector.extract_strided_slice %17 {offsets = [0, 16], sizes = [8, 8], strides = [1, 1]} : vector<8x32xf32> to vector<8x8xf32>
    %cst_30 = arith.constant dense<0.000000e+00> : vector<8x8xf32>
    %82 = tpu.matmul %80, %81, %cst_30 {dimension_numbers = #tpu.dot_dimension_numbers<[1], [0], [0], [1], [0, 0, 1, 1], [], []>} : vector<8x8xf32>, vector<8x8xf32>, vector<8x8xf32> -> vector<8x8xf32>
    %83 = arith.truncf %82 : vector<8x8xf32> to vector<8x8xbf16>
    %84 = vector.extract_strided_slice %14 {offsets = [16, 0], sizes = [8, 32], strides = [1, 1]} : vector<32x32xbf16> to vector<8x32xbf16>
    %cst_31 = arith.constant dense<0.000000e+00> : vector<8x32xf32>
    %85 = tpu.matmul %83, %84, %cst_31 {dimension_numbers = #tpu.dot_dimension_numbers<[1], [0], [0], [1], [0, 0, 1, 1], [], []>} : vector<8x8xbf16>, vector<8x32xbf16>, vector<8x32xf32> -> vector<8x32xf32>
    %86 = arith.addf %64, %85 : vector<8x32xf32>
    %87 = vector.extract_strided_slice %15 {offsets = [0, 24], sizes = [8, 8], strides = [1, 1]} : vector<8x32xf32> to vector<8x8xf32>
    %88 = vector.extract_strided_slice %16 {offsets = [0, 24], sizes = [8, 8], strides = [1, 1]} : vector<8x32xf32> to vector<8x8xf32>
    %cst_32 = arith.constant dense<0.000000e+00> : vector<8x8xf32>
    %89 = tpu.matmul %87, %88, %cst_32 {dimension_numbers = #tpu.dot_dimension_numbers<[1], [1], [0], [0], [0, 0, 1, 0], [], []>} : vector<8x8xf32>, vector<8x8xf32>, vector<8x8xf32> -> vector<8x8xf32>
    %cst_33 = arith.constant 0.353553385 : f32
    %90 = vector.broadcast %cst_33 : f32 to vector<8x8xf32>
    %91 = arith.mulf %89, %90 : vector<8x8xf32>
    %92 = arith.addf %91, %21 : vector<8x8xf32>
    %cst_34 = arith.constant dense<0xFF800000> : vector<8xf32>
    %93 = vector.multi_reduction <maximumf>, %92, %cst_34 [1] : vector<8x8xf32> to vector<8xf32>
    %94 = vector.shape_cast %93 : vector<8xf32> to vector<8x1xf32>
    %95 = vector.broadcast %94 : vector<8x1xf32> to vector<8x8xf32>
    %96 = arith.subf %92, %95 : vector<8x8xf32>
    %97 = math.exp %96 : vector<8x8xf32>
    %cst_35 = arith.constant dense<0.000000e+00> : vector<8xf32>
    %98 = vector.multi_reduction <add>, %97, %cst_35 [1] : vector<8x8xf32> to vector<8xf32>
    %99 = vector.shape_cast %98 : vector<8xf32> to vector<8x1xf32>
    %100 = tpu.reciprocal %99 {approx = true} : vector<8x1xf32> -> vector<8x1xf32>
    %101 = vector.broadcast %100 : vector<8x1xf32> to vector<8x8xf32>
    %102 = arith.mulf %97, %101 : vector<8x8xf32>
    %103 = vector.extract_strided_slice %17 {offsets = [0, 24], sizes = [8, 8], strides = [1, 1]} : vector<8x32xf32> to vector<8x8xf32>
    %cst_36 = arith.constant dense<0.000000e+00> : vector<8x8xf32>
    %104 = tpu.matmul %102, %103, %cst_36 {dimension_numbers = #tpu.dot_dimension_numbers<[1], [0], [0], [1], [0, 0, 1, 1], [], []>} : vector<8x8xf32>, vector<8x8xf32>, vector<8x8xf32> -> vector<8x8xf32>
    %105 = arith.truncf %104 : vector<8x8xf32> to vector<8x8xbf16>
    %106 = vector.extract_strided_slice %14 {offsets = [24, 0], sizes = [8, 32], strides = [1, 1]} : vector<32x32xbf16> to vector<8x32xbf16>
    %cst_37 = arith.constant dense<0.000000e+00> : vector<8x32xf32>
    %107 = tpu.matmul %105, %106, %cst_37 {dimension_numbers = #tpu.dot_dimension_numbers<[1], [0], [0], [1], [0, 0, 1, 1], [], []>} : vector<8x8xbf16>, vector<8x32xbf16>, vector<8x32xf32> -> vector<8x32xf32>
    %108 = arith.addf %86, %107 : vector<8x32xf32>
    %109 = vector.extract_strided_slice %11 {offsets = [8, 0], sizes = [8, 32], strides = [1, 1]} : vector<16x32xf32> to vector<8x32xf32>
    %110 = vector.extract_strided_slice %12 {offsets = [8, 0], sizes = [8, 32], strides = [1, 1]} : vector<16x32xf32> to vector<8x32xf32>
    %111 = vector.extract_strided_slice %13 {offsets = [8, 0], sizes = [8, 32], strides = [1, 1]} : vector<16x32xf32> to vector<8x32xf32>
    %c1 = arith.constant 1 : index
    %c0_38 = arith.constant 0 : index
    %c0_39 = arith.constant 0 : index
    %112 = vector.load %arg2[%c1, %c0_38, %c0_39] : memref<2x1x8xf32, #tpu.memory_space<vmem>>, vector<1x1x8xf32>
    %113 = vector.shape_cast %112 : vector<1x1x8xf32> to vector<1x8xf32>
    %114 = vector.broadcast %113 : vector<1x8xf32> to vector<8x8xf32>
    %115 = arith.addf %4, %114 : vector<8x8xf32>
    %116 = vector.extract_strided_slice %109 {offsets = [0, 0], sizes = [8, 8], strides = [1, 1]} : vector<8x32xf32> to vector<8x8xf32>
    %117 = vector.extract_strided_slice %110 {offsets = [0, 0], sizes = [8, 8], strides = [1, 1]} : vector<8x32xf32> to vector<8x8xf32>
    %cst_40 = arith.constant dense<0.000000e+00> : vector<8x8xf32>
    %118 = tpu.matmul %116, %117, %cst_40 {dimension_numbers = #tpu.dot_dimension_numbers<[1], [1], [0], [0], [0, 0, 1, 0], [], []>} : vector<8x8xf32>, vector<8x8xf32>, vector<8x8xf32> -> vector<8x8xf32>
    %cst_41 = arith.constant 0.353553385 : f32
    %119 = vector.broadcast %cst_41 : f32 to vector<8x8xf32>
    %120 = arith.mulf %118, %119 : vector<8x8xf32>
    %121 = arith.addf %120, %115 : vector<8x8xf32>
    %cst_42 = arith.constant dense<0xFF800000> : vector<8xf32>
    %122 = vector.multi_reduction <maximumf>, %121, %cst_42 [1] : vector<8x8xf32> to vector<8xf32>
    %123 = vector.shape_cast %122 : vector<8xf32> to vector<8x1xf32>
    %124 = vector.broadcast %123 : vector<8x1xf32> to vector<8x8xf32>
    %125 = arith.subf %121, %124 : vector<8x8xf32>
    %126 = math.exp %125 : vector<8x8xf32>
    %cst_43 = arith.constant dense<0.000000e+00> : vector<8xf32>
    %127 = vector.multi_reduction <add>, %126, %cst_43 [1] : vector<8x8xf32> to vector<8xf32>
    %128 = vector.shape_cast %127 : vector<8xf32> to vector<8x1xf32>
    %129 = tpu.reciprocal %128 {approx = true} : vector<8x1xf32> -> vector<8x1xf32>
    %130 = vector.broadcast %129 : vector<8x1xf32> to vector<8x8xf32>
    %131 = arith.mulf %126, %130 : vector<8x8xf32>
    %132 = vector.extract_strided_slice %111 {offsets = [0, 0], sizes = [8, 8], strides = [1, 1]} : vector<8x32xf32> to vector<8x8xf32>
    %cst_44 = arith.constant dense<0.000000e+00> : vector<8x8xf32>
    %133 = tpu.matmul %131, %132, %cst_44 {dimension_numbers = #tpu.dot_dimension_numbers<[1], [0], [0], [1], [0, 0, 1, 1], [], []>} : vector<8x8xf32>, vector<8x8xf32>, vector<8x8xf32> -> vector<8x8xf32>
    %134 = arith.truncf %133 : vector<8x8xf32> to vector<8x8xbf16>
    %135 = vector.extract_strided_slice %14 {offsets = [0, 0], sizes = [8, 32], strides = [1, 1]} : vector<32x32xbf16> to vector<8x32xbf16>
    %cst_45 = arith.constant dense<0.000000e+00> : vector<8x32xf32>
    %136 = tpu.matmul %134, %135, %cst_45 {dimension_numbers = #tpu.dot_dimension_numbers<[1], [0], [0], [1], [0, 0, 1, 1], [], []>} : vector<8x8xbf16>, vector<8x32xbf16>, vector<8x32xf32> -> vector<8x32xf32>
    %137 = vector.extract_strided_slice %109 {offsets = [0, 8], sizes = [8, 8], strides = [1, 1]} : vector<8x32xf32> to vector<8x8xf32>
    %138 = vector.extract_strided_slice %110 {offsets = [0, 8], sizes = [8, 8], strides = [1, 1]} : vector<8x32xf32> to vector<8x8xf32>
    %cst_46 = arith.constant dense<0.000000e+00> : vector<8x8xf32>
    %139 = tpu.matmul %137, %138, %cst_46 {dimension_numbers = #tpu.dot_dimension_numbers<[1], [1], [0], [0], [0, 0, 1, 0], [], []>} : vector<8x8xf32>, vector<8x8xf32>, vector<8x8xf32> -> vector<8x8xf32>
    %cst_47 = arith.constant 0.353553385 : f32
    %140 = vector.broadcast %cst_47 : f32 to vector<8x8xf32>
    %141 = arith.mulf %139, %140 : vector<8x8xf32>
    %142 = arith.addf %141, %115 : vector<8x8xf32>
    %cst_48 = arith.constant dense<0xFF800000> : vector<8xf32>
    %143 = vector.multi_reduction <maximumf>, %142, %cst_48 [1] : vector<8x8xf32> to vector<8xf32>
    %144 = vector.shape_cast %143 : vector<8xf32> to vector<8x1xf32>
    %145 = vector.broadcast %144 : vector<8x1xf32> to vector<8x8xf32>
    %146 = arith.subf %142, %145 : vector<8x8xf32>
    %147 = math.exp %146 : vector<8x8xf32>
    %cst_49 = arith.constant dense<0.000000e+00> : vector<8xf32>
    %148 = vector.multi_reduction <add>, %147, %cst_49 [1] : vector<8x8xf32> to vector<8xf32>
    %149 = vector.shape_cast %148 : vector<8xf32> to vector<8x1xf32>
    %150 = tpu.reciprocal %149 {approx = true} : vector<8x1xf32> -> vector<8x1xf32>
    %151 = vector.broadcast %150 : vector<8x1xf32> to vector<8x8xf32>
    %152 = arith.mulf %147, %151 : vector<8x8xf32>
    %153 = vector.extract_strided_slice %111 {offsets = [0, 8], sizes = [8, 8], strides = [1, 1]} : vector<8x32xf32> to vector<8x8xf32>
    %cst_50 = arith.constant dense<0.000000e+00> : vector<8x8xf32>
    %154 = tpu.matmul %152, %153, %cst_50 {dimension_numbers = #tpu.dot_dimension_numbers<[1], [0], [0], [1], [0, 0, 1, 1], [], []>} : vector<8x8xf32>, vector<8x8xf32>, vector<8x8xf32> -> vector<8x8xf32>
    %155 = arith.truncf %154 : vector<8x8xf32> to vector<8x8xbf16>
    %156 = vector.extract_strided_slice %14 {offsets = [8, 0], sizes = [8, 32], strides = [1, 1]} : vector<32x32xbf16> to vector<8x32xbf16>
    %cst_51 = arith.constant dense<0.000000e+00> : vector<8x32xf32>
    %157 = tpu.matmul %155, %156, %cst_51 {dimension_numbers = #tpu.dot_dimension_numbers<[1], [0], [0], [1], [0, 0, 1, 1], [], []>} : vector<8x8xbf16>, vector<8x32xbf16>, vector<8x32xf32> -> vector<8x32xf32>
    %158 = arith.addf %136, %157 : vector<8x32xf32>
    %159 = vector.extract_strided_slice %109 {offsets = [0, 16], sizes = [8, 8], strides = [1, 1]} : vector<8x32xf32> to vector<8x8xf32>
    %160 = vector.extract_strided_slice %110 {offsets = [0, 16], sizes = [8, 8], strides = [1, 1]} : vector<8x32xf32> to vector<8x8xf32>
    %cst_52 = arith.constant dense<0.000000e+00> : vector<8x8xf32>
    %161 = tpu.matmul %159, %160, %cst_52 {dimension_numbers = #tpu.dot_dimension_numbers<[1], [1], [0], [0], [0, 0, 1, 0], [], []>} : vector<8x8xf32>, vector<8x8xf32>, vector<8x8xf32> -> vector<8x8xf32>
    %cst_53 = arith.constant 0.353553385 : f32
    %162 = vector.broadcast %cst_53 : f32 to vector<8x8xf32>
    %163 = arith.mulf %161, %162 : vector<8x8xf32>
    %164 = arith.addf %163, %115 : vector<8x8xf32>
    %cst_54 = arith.constant dense<0xFF800000> : vector<8xf32>
    %165 = vector.multi_reduction <maximumf>, %164, %cst_54 [1] : vector<8x8xf32> to vector<8xf32>
    %166 = vector.shape_cast %165 : vector<8xf32> to vector<8x1xf32>
    %167 = vector.broadcast %166 : vector<8x1xf32> to vector<8x8xf32>
    %168 = arith.subf %164, %167 : vector<8x8xf32>
    %169 = math.exp %168 : vector<8x8xf32>
    %cst_55 = arith.constant dense<0.000000e+00> : vector<8xf32>
    %170 = vector.multi_reduction <add>, %169, %cst_55 [1] : vector<8x8xf32> to vector<8xf32>
    %171 = vector.shape_cast %170 : vector<8xf32> to vector<8x1xf32>
    %172 = tpu.reciprocal %171 {approx = true} : vector<8x1xf32> -> vector<8x1xf32>
    %173 = vector.broadcast %172 : vector<8x1xf32> to vector<8x8xf32>
    %174 = arith.mulf %169, %173 : vector<8x8xf32>
    %175 = vector.extract_strided_slice %111 {offsets = [0, 16], sizes = [8, 8], strides = [1, 1]} : vector<8x32xf32> to vector<8x8xf32>
    %cst_56 = arith.constant dense<0.000000e+00> : vector<8x8xf32>
    %176 = tpu.matmul %174, %175, %cst_56 {dimension_numbers = #tpu.dot_dimension_numbers<[1], [0], [0], [1], [0, 0, 1, 1], [], []>} : vector<8x8xf32>, vector<8x8xf32>, vector<8x8xf32> -> vector<8x8xf32>
    %177 = arith.truncf %176 : vector<8x8xf32> to vector<8x8xbf16>
    %178 = vector.extract_strided_slice %14 {offsets = [16, 0], sizes = [8, 32], strides = [1, 1]} : vector<32x32xbf16> to vector<8x32xbf16>
    %cst_57 = arith.constant dense<0.000000e+00> : vector<8x32xf32>
    %179 = tpu.matmul %177, %178, %cst_57 {dimension_numbers = #tpu.dot_dimension_numbers<[1], [0], [0], [1], [0, 0, 1, 1], [], []>} : vector<8x8xbf16>, vector<8x32xbf16>, vector<8x32xf32> -> vector<8x32xf32>
    %180 = arith.addf %158, %179 : vector<8x32xf32>
    %181 = vector.extract_strided_slice %109 {offsets = [0, 24], sizes = [8, 8], strides = [1, 1]} : vector<8x32xf32> to vector<8x8xf32>
    %182 = vector.extract_strided_slice %110 {offsets = [0, 24], sizes = [8, 8], strides = [1, 1]} : vector<8x32xf32> to vector<8x8xf32>
    %cst_58 = arith.constant dense<0.000000e+00> : vector<8x8xf32>
    %183 = tpu.matmul %181, %182, %cst_58 {dimension_numbers = #tpu.dot_dimension_numbers<[1], [1], [0], [0], [0, 0, 1, 0], [], []>} : vector<8x8xf32>, vector<8x8xf32>, vector<8x8xf32> -> vector<8x8xf32>
    %cst_59 = arith.constant 0.353553385 : f32
    %184 = vector.broadcast %cst_59 : f32 to vector<8x8xf32>
    %185 = arith.mulf %183, %184 : vector<8x8xf32>
    %186 = arith.addf %185, %115 : vector<8x8xf32>
    %cst_60 = arith.constant dense<0xFF800000> : vector<8xf32>
    %187 = vector.multi_reduction <maximumf>, %186, %cst_60 [1] : vector<8x8xf32> to vector<8xf32>
    %188 = vector.shape_cast %187 : vector<8xf32> to vector<8x1xf32>
    %189 = vector.broadcast %188 : vector<8x1xf32> to vector<8x8xf32>
    %190 = arith.subf %186, %189 : vector<8x8xf32>
    %191 = math.exp %190 : vector<8x8xf32>
    %cst_61 = arith.constant dense<0.000000e+00> : vector<8xf32>
    %192 = vector.multi_reduction <add>, %191, %cst_61 [1] : vector<8x8xf32> to vector<8xf32>
    %193 = vector.shape_cast %192 : vector<8xf32> to vector<8x1xf32>
    %194 = tpu.reciprocal %193 {approx = true} : vector<8x1xf32> -> vector<8x1xf32>
    %195 = vector.broadcast %194 : vector<8x1xf32> to vector<8x8xf32>
    %196 = arith.mulf %191, %195 : vector<8x8xf32>
    %197 = vector.extract_strided_slice %111 {offsets = [0, 24], sizes = [8, 8], strides = [1, 1]} : vector<8x32xf32> to vector<8x8xf32>
    %cst_62 = arith.constant dense<0.000000e+00> : vector<8x8xf32>
    %198 = tpu.matmul %196, %197, %cst_62 {dimension_numbers = #tpu.dot_dimension_numbers<[1], [0], [0], [1], [0, 0, 1, 1], [], []>} : vector<8x8xf32>, vector<8x8xf32>, vector<8x8xf32> -> vector<8x8xf32>
    %199 = arith.truncf %198 : vector<8x8xf32> to vector<8x8xbf16>
    %200 = vector.extract_strided_slice %14 {offsets = [24, 0], sizes = [8, 32], strides = [1, 1]} : vector<32x32xbf16> to vector<8x32xbf16>
    %cst_63 = arith.constant dense<0.000000e+00> : vector<8x32xf32>
    %201 = tpu.matmul %199, %200, %cst_63 {dimension_numbers = #tpu.dot_dimension_numbers<[1], [0], [0], [1], [0, 0, 1, 1], [], []>} : vector<8x8xbf16>, vector<8x32xbf16>, vector<8x32xf32> -> vector<8x32xf32>
    %202 = arith.addf %180, %201 : vector<8x32xf32>
    %203 = tpu.concatenate %108, %202 in 0 : vector<8x32xf32>, vector<8x32xf32> -> vector<16x32xf32>
    %c0_64 = arith.constant 0 : index
    %c0_65 = arith.constant 0 : index
    %204 = vector.load %arg8[%c0_64, %c0_65] : memref<1x32xf32, #tpu.memory_space<vmem>>, vector<1x32xf32>
    %205 = vector.broadcast %204 : vector<1x32xf32> to vector<16x32xf32>
    %206 = arith.addf %203, %205 : vector<16x32xf32>
    %207 = arith.addf %1, %206 : vector<16x32xf32>
    %c0_66 = arith.constant 0 : index
    %c0_67 = arith.constant 0 : index
    %208 = vector.load %arg19[%c0_66, %c0_67] : memref<1x32xf32, #tpu.memory_space<vmem>>, vector<1x32xf32>
    %c0_68 = arith.constant 0 : index
    %c0_69 = arith.constant 0 : index
    %209 = vector.load %arg20[%c0_68, %c0_69] : memref<1x32xf32, #tpu.memory_space<vmem>>, vector<1x32xf32>
    %cst_70 = arith.constant dense<0.000000e+00> : vector<16xf32>
    %210 = vector.multi_reduction <add>, %207, %cst_70 [1] : vector<16x32xf32> to vector<16xf32>
    %211 = vector.shape_cast %210 : vector<16xf32> to vector<16x1xf32>
    %cst_71 = arith.constant 3.200000e+01 : f32
    %212 = vector.broadcast %cst_71 : f32 to vector<16x1xf32>
    %213 = arith.divf %211, %212 : vector<16x1xf32>
    %214 = vector.broadcast %213 : vector<16x1xf32> to vector<16x32xf32>
    %215 = arith.subf %207, %214 : vector<16x32xf32>
    %216 = arith.mulf %215, %215 : vector<16x32xf32>
    %cst_72 = arith.constant dense<0.000000e+00> : vector<16xf32>
    %217 = vector.multi_reduction <add>, %216, %cst_72 [1] : vector<16x32xf32> to vector<16xf32>
    %218 = vector.shape_cast %217 : vector<16xf32> to vector<16x1xf32>
    %cst_73 = arith.constant 3.200000e+01 : f32
    %219 = vector.broadcast %cst_73 : f32 to vector<16x1xf32>
    %220 = arith.divf %218, %219 : vector<16x1xf32>
    %221 = vector.broadcast %213 : vector<16x1xf32> to vector<16x32xf32>
    %222 = arith.subf %207, %221 : vector<16x32xf32>
    %cst_74 = arith.constant 9.99999974E-6 : f32
    %223 = vector.broadcast %cst_74 : f32 to vector<16x1xf32>
    %224 = arith.addf %220, %223 : vector<16x1xf32>
    %225 = math.rsqrt %224 : vector<16x1xf32>
    %226 = vector.broadcast %225 : vector<16x1xf32> to vector<16x32xf32>
    %227 = arith.mulf %222, %226 : vector<16x32xf32>
    %228 = vector.broadcast %208 : vector<1x32xf32> to vector<16x32xf32>
    %229 = arith.mulf %227, %228 : vector<16x32xf32>
    %230 = vector.broadcast %209 : vector<1x32xf32> to vector<16x32xf32>
    %231 = arith.addf %229, %230 : vector<16x32xf32>
    %c0_75 = arith.constant 0 : index
    %c0_76 = arith.constant 0 : index
    %232 = vector.load %arg9[%c0_75, %c0_76] : memref<32x32xbf16, #tpu.memory_space<vmem>>, vector<32x32xbf16>
    %233 = arith.truncf %231 : vector<16x32xf32> to vector<16x32xbf16>
    %cst_77 = arith.constant dense<0.000000e+00> : vector<16x32xf32>
    %234 = tpu.matmul %233, %232, %cst_77 {dimension_numbers = #tpu.dot_dimension_numbers<[1], [0], [0], [1], [0, 0, 1, 1], [], []>} : vector<16x32xbf16>, vector<32x32xbf16>, vector<16x32xf32> -> vector<16x32xf32>
    %c0_78 = arith.constant 0 : index
    %c0_79 = arith.constant 0 : index
    %235 = vector.load %arg10[%c0_78, %c0_79] : memref<1x32xf32, #tpu.memory_space<vmem>>, vector<1x32xf32>
    %236 = vector.broadcast %235 : vector<1x32xf32> to vector<16x32xf32>
    %237 = arith.addf %234, %236 : vector<16x32xf32>
    %c0_80 = arith.constant 0 : index
    %c0_81 = arith.constant 0 : index
    %238 = vector.load %arg11[%c0_80, %c0_81] : memref<32x64xbf16, #tpu.memory_space<vmem>>, vector<32x64xbf16>
    %239 = arith.truncf %3 : vector<16x32xf32> to vector<16x32xbf16>
    %cst_82 = arith.constant dense<0.000000e+00> : vector<16x64xf32>
    %240 = tpu.matmul %239, %238, %cst_82 {dimension_numbers = #tpu.dot_dimension_numbers<[1], [0], [0], [1], [0, 0, 1, 1], [], []>} : vector<16x32xbf16>, vector<32x64xbf16>, vector<16x64xf32> -> vector<16x64xf32>
    %c0_83 = arith.constant 0 : index
    %c0_84 = arith.constant 0 : index
    %241 = vector.load %arg12[%c0_83, %c0_84] : memref<1x64xf32, #tpu.memory_space<vmem>>, vector<1x64xf32>
    %242 = vector.broadcast %241 : vector<1x64xf32> to vector<16x64xf32>
    %243 = arith.addf %240, %242 : vector<16x64xf32>
    %244 = vector.extract_strided_slice %243 {offsets = [0, 0], sizes = [16, 32], strides = [1, 1]} : vector<16x64xf32> to vector<16x32xf32>
    %245 = vector.extract_strided_slice %243 {offsets = [0, 32], sizes = [16, 32], strides = [1, 1]} : vector<16x64xf32> to vector<16x32xf32>
    %c0_85 = arith.constant 0 : index
    %c0_86 = arith.constant 0 : index
    %246 = vector.load %arg13[%c0_85, %c0_86] : memref<32x32xbf16, #tpu.memory_space<vmem>>, vector<32x32xbf16>
    %247 = vector.extract_strided_slice %237 {offsets = [0, 0], sizes = [8, 32], strides = [1, 1]} : vector<16x32xf32> to vector<8x32xf32>
    %248 = vector.extract_strided_slice %244 {offsets = [0, 0], sizes = [8, 32], strides = [1, 1]} : vector<16x32xf32> to vector<8x32xf32>
    %249 = vector.extract_strided_slice %245 {offsets = [0, 0], sizes = [8, 32], strides = [1, 1]} : vector<16x32xf32> to vector<8x32xf32>
    %c0_87 = arith.constant 0 : index
    %c0_88 = arith.constant 0 : index
    %c0_89 = arith.constant 0 : index
    %250 = vector.load %arg3[%c0_87, %c0_88, %c0_89] : memref<2x1x8xf32, #tpu.memory_space<vmem>>, vector<1x1x8xf32>
    %251 = vector.shape_cast %250 : vector<1x1x8xf32> to vector<1x8xf32>
    %252 = vector.extract_strided_slice %247 {offsets = [0, 0], sizes = [8, 8], strides = [1, 1]} : vector<8x32xf32> to vector<8x8xf32>
    %253 = vector.extract_strided_slice %248 {offsets = [0, 0], sizes = [8, 8], strides = [1, 1]} : vector<8x32xf32> to vector<8x8xf32>
    %cst_90 = arith.constant dense<0.000000e+00> : vector<8x8xf32>
    %254 = tpu.matmul %252, %253, %cst_90 {dimension_numbers = #tpu.dot_dimension_numbers<[1], [1], [0], [0], [0, 0, 1, 0], [], []>} : vector<8x8xf32>, vector<8x8xf32>, vector<8x8xf32> -> vector<8x8xf32>
    %cst_91 = arith.constant 0.353553385 : f32
    %255 = vector.broadcast %cst_91 : f32 to vector<8x8xf32>
    %256 = arith.mulf %254, %255 : vector<8x8xf32>
    %257 = vector.broadcast %251 : vector<1x8xf32> to vector<8x8xf32>
    %258 = arith.addf %256, %257 : vector<8x8xf32>
    %cst_92 = arith.constant dense<0xFF800000> : vector<8xf32>
    %259 = vector.multi_reduction <maximumf>, %258, %cst_92 [1] : vector<8x8xf32> to vector<8xf32>
    %260 = vector.shape_cast %259 : vector<8xf32> to vector<8x1xf32>
    %261 = vector.broadcast %260 : vector<8x1xf32> to vector<8x8xf32>
    %262 = arith.subf %258, %261 : vector<8x8xf32>
    %263 = math.exp %262 : vector<8x8xf32>
    %cst_93 = arith.constant dense<0.000000e+00> : vector<8xf32>
    %264 = vector.multi_reduction <add>, %263, %cst_93 [1] : vector<8x8xf32> to vector<8xf32>
    %265 = vector.shape_cast %264 : vector<8xf32> to vector<8x1xf32>
    %266 = tpu.reciprocal %265 {approx = true} : vector<8x1xf32> -> vector<8x1xf32>
    %267 = vector.broadcast %266 : vector<8x1xf32> to vector<8x8xf32>
    %268 = arith.mulf %263, %267 : vector<8x8xf32>
    %269 = vector.extract_strided_slice %249 {offsets = [0, 0], sizes = [8, 8], strides = [1, 1]} : vector<8x32xf32> to vector<8x8xf32>
    %cst_94 = arith.constant dense<0.000000e+00> : vector<8x8xf32>
    %270 = tpu.matmul %268, %269, %cst_94 {dimension_numbers = #tpu.dot_dimension_numbers<[1], [0], [0], [1], [0, 0, 1, 1], [], []>} : vector<8x8xf32>, vector<8x8xf32>, vector<8x8xf32> -> vector<8x8xf32>
    %271 = arith.truncf %270 : vector<8x8xf32> to vector<8x8xbf16>
    %272 = vector.extract_strided_slice %246 {offsets = [0, 0], sizes = [8, 32], strides = [1, 1]} : vector<32x32xbf16> to vector<8x32xbf16>
    %cst_95 = arith.constant dense<0.000000e+00> : vector<8x32xf32>
    %273 = tpu.matmul %271, %272, %cst_95 {dimension_numbers = #tpu.dot_dimension_numbers<[1], [0], [0], [1], [0, 0, 1, 1], [], []>} : vector<8x8xbf16>, vector<8x32xbf16>, vector<8x32xf32> -> vector<8x32xf32>
    %274 = vector.extract_strided_slice %247 {offsets = [0, 8], sizes = [8, 8], strides = [1, 1]} : vector<8x32xf32> to vector<8x8xf32>
    %275 = vector.extract_strided_slice %248 {offsets = [0, 8], sizes = [8, 8], strides = [1, 1]} : vector<8x32xf32> to vector<8x8xf32>
    %cst_96 = arith.constant dense<0.000000e+00> : vector<8x8xf32>
    %276 = tpu.matmul %274, %275, %cst_96 {dimension_numbers = #tpu.dot_dimension_numbers<[1], [1], [0], [0], [0, 0, 1, 0], [], []>} : vector<8x8xf32>, vector<8x8xf32>, vector<8x8xf32> -> vector<8x8xf32>
    %cst_97 = arith.constant 0.353553385 : f32
    %277 = vector.broadcast %cst_97 : f32 to vector<8x8xf32>
    %278 = arith.mulf %276, %277 : vector<8x8xf32>
    %279 = vector.broadcast %251 : vector<1x8xf32> to vector<8x8xf32>
    %280 = arith.addf %278, %279 : vector<8x8xf32>
    %cst_98 = arith.constant dense<0xFF800000> : vector<8xf32>
    %281 = vector.multi_reduction <maximumf>, %280, %cst_98 [1] : vector<8x8xf32> to vector<8xf32>
    %282 = vector.shape_cast %281 : vector<8xf32> to vector<8x1xf32>
    %283 = vector.broadcast %282 : vector<8x1xf32> to vector<8x8xf32>
    %284 = arith.subf %280, %283 : vector<8x8xf32>
    %285 = math.exp %284 : vector<8x8xf32>
    %cst_99 = arith.constant dense<0.000000e+00> : vector<8xf32>
    %286 = vector.multi_reduction <add>, %285, %cst_99 [1] : vector<8x8xf32> to vector<8xf32>
    %287 = vector.shape_cast %286 : vector<8xf32> to vector<8x1xf32>
    %288 = tpu.reciprocal %287 {approx = true} : vector<8x1xf32> -> vector<8x1xf32>
    %289 = vector.broadcast %288 : vector<8x1xf32> to vector<8x8xf32>
    %290 = arith.mulf %285, %289 : vector<8x8xf32>
    %291 = vector.extract_strided_slice %249 {offsets = [0, 8], sizes = [8, 8], strides = [1, 1]} : vector<8x32xf32> to vector<8x8xf32>
    %cst_100 = arith.constant dense<0.000000e+00> : vector<8x8xf32>
    %292 = tpu.matmul %290, %291, %cst_100 {dimension_numbers = #tpu.dot_dimension_numbers<[1], [0], [0], [1], [0, 0, 1, 1], [], []>} : vector<8x8xf32>, vector<8x8xf32>, vector<8x8xf32> -> vector<8x8xf32>
    %293 = arith.truncf %292 : vector<8x8xf32> to vector<8x8xbf16>
    %294 = vector.extract_strided_slice %246 {offsets = [8, 0], sizes = [8, 32], strides = [1, 1]} : vector<32x32xbf16> to vector<8x32xbf16>
    %cst_101 = arith.constant dense<0.000000e+00> : vector<8x32xf32>
    %295 = tpu.matmul %293, %294, %cst_101 {dimension_numbers = #tpu.dot_dimension_numbers<[1], [0], [0], [1], [0, 0, 1, 1], [], []>} : vector<8x8xbf16>, vector<8x32xbf16>, vector<8x32xf32> -> vector<8x32xf32>
    %296 = arith.addf %273, %295 : vector<8x32xf32>
    %297 = vector.extract_strided_slice %247 {offsets = [0, 16], sizes = [8, 8], strides = [1, 1]} : vector<8x32xf32> to vector<8x8xf32>
    %298 = vector.extract_strided_slice %248 {offsets = [0, 16], sizes = [8, 8], strides = [1, 1]} : vector<8x32xf32> to vector<8x8xf32>
    %cst_102 = arith.constant dense<0.000000e+00> : vector<8x8xf32>
    %299 = tpu.matmul %297, %298, %cst_102 {dimension_numbers = #tpu.dot_dimension_numbers<[1], [1], [0], [0], [0, 0, 1, 0], [], []>} : vector<8x8xf32>, vector<8x8xf32>, vector<8x8xf32> -> vector<8x8xf32>
    %cst_103 = arith.constant 0.353553385 : f32
    %300 = vector.broadcast %cst_103 : f32 to vector<8x8xf32>
    %301 = arith.mulf %299, %300 : vector<8x8xf32>
    %302 = vector.broadcast %251 : vector<1x8xf32> to vector<8x8xf32>
    %303 = arith.addf %301, %302 : vector<8x8xf32>
    %cst_104 = arith.constant dense<0xFF800000> : vector<8xf32>
    %304 = vector.multi_reduction <maximumf>, %303, %cst_104 [1] : vector<8x8xf32> to vector<8xf32>
    %305 = vector.shape_cast %304 : vector<8xf32> to vector<8x1xf32>
    %306 = vector.broadcast %305 : vector<8x1xf32> to vector<8x8xf32>
    %307 = arith.subf %303, %306 : vector<8x8xf32>
    %308 = math.exp %307 : vector<8x8xf32>
    %cst_105 = arith.constant dense<0.000000e+00> : vector<8xf32>
    %309 = vector.multi_reduction <add>, %308, %cst_105 [1] : vector<8x8xf32> to vector<8xf32>
    %310 = vector.shape_cast %309 : vector<8xf32> to vector<8x1xf32>
    %311 = tpu.reciprocal %310 {approx = true} : vector<8x1xf32> -> vector<8x1xf32>
    %312 = vector.broadcast %311 : vector<8x1xf32> to vector<8x8xf32>
    %313 = arith.mulf %308, %312 : vector<8x8xf32>
    %314 = vector.extract_strided_slice %249 {offsets = [0, 16], sizes = [8, 8], strides = [1, 1]} : vector<8x32xf32> to vector<8x8xf32>
    %cst_106 = arith.constant dense<0.000000e+00> : vector<8x8xf32>
    %315 = tpu.matmul %313, %314, %cst_106 {dimension_numbers = #tpu.dot_dimension_numbers<[1], [0], [0], [1], [0, 0, 1, 1], [], []>} : vector<8x8xf32>, vector<8x8xf32>, vector<8x8xf32> -> vector<8x8xf32>
    %316 = arith.truncf %315 : vector<8x8xf32> to vector<8x8xbf16>
    %317 = vector.extract_strided_slice %246 {offsets = [16, 0], sizes = [8, 32], strides = [1, 1]} : vector<32x32xbf16> to vector<8x32xbf16>
    %cst_107 = arith.constant dense<0.000000e+00> : vector<8x32xf32>
    %318 = tpu.matmul %316, %317, %cst_107 {dimension_numbers = #tpu.dot_dimension_numbers<[1], [0], [0], [1], [0, 0, 1, 1], [], []>} : vector<8x8xbf16>, vector<8x32xbf16>, vector<8x32xf32> -> vector<8x32xf32>
    %319 = arith.addf %296, %318 : vector<8x32xf32>
    %320 = vector.extract_strided_slice %247 {offsets = [0, 24], sizes = [8, 8], strides = [1, 1]} : vector<8x32xf32> to vector<8x8xf32>
    %321 = vector.extract_strided_slice %248 {offsets = [0, 24], sizes = [8, 8], strides = [1, 1]} : vector<8x32xf32> to vector<8x8xf32>
    %cst_108 = arith.constant dense<0.000000e+00> : vector<8x8xf32>
    %322 = tpu.matmul %320, %321, %cst_108 {dimension_numbers = #tpu.dot_dimension_numbers<[1], [1], [0], [0], [0, 0, 1, 0], [], []>} : vector<8x8xf32>, vector<8x8xf32>, vector<8x8xf32> -> vector<8x8xf32>
    %cst_109 = arith.constant 0.353553385 : f32
    %323 = vector.broadcast %cst_109 : f32 to vector<8x8xf32>
    %324 = arith.mulf %322, %323 : vector<8x8xf32>
    %325 = vector.broadcast %251 : vector<1x8xf32> to vector<8x8xf32>
    %326 = arith.addf %324, %325 : vector<8x8xf32>
    %cst_110 = arith.constant dense<0xFF800000> : vector<8xf32>
    %327 = vector.multi_reduction <maximumf>, %326, %cst_110 [1] : vector<8x8xf32> to vector<8xf32>
    %328 = vector.shape_cast %327 : vector<8xf32> to vector<8x1xf32>
    %329 = vector.broadcast %328 : vector<8x1xf32> to vector<8x8xf32>
    %330 = arith.subf %326, %329 : vector<8x8xf32>
    %331 = math.exp %330 : vector<8x8xf32>
    %cst_111 = arith.constant dense<0.000000e+00> : vector<8xf32>
    %332 = vector.multi_reduction <add>, %331, %cst_111 [1] : vector<8x8xf32> to vector<8xf32>
    %333 = vector.shape_cast %332 : vector<8xf32> to vector<8x1xf32>
    %334 = tpu.reciprocal %333 {approx = true} : vector<8x1xf32> -> vector<8x1xf32>
    %335 = vector.broadcast %334 : vector<8x1xf32> to vector<8x8xf32>
    %336 = arith.mulf %331, %335 : vector<8x8xf32>
    %337 = vector.extract_strided_slice %249 {offsets = [0, 24], sizes = [8, 8], strides = [1, 1]} : vector<8x32xf32> to vector<8x8xf32>
    %cst_112 = arith.constant dense<0.000000e+00> : vector<8x8xf32>
    %338 = tpu.matmul %336, %337, %cst_112 {dimension_numbers = #tpu.dot_dimension_numbers<[1], [0], [0], [1], [0, 0, 1, 1], [], []>} : vector<8x8xf32>, vector<8x8xf32>, vector<8x8xf32> -> vector<8x8xf32>
    %339 = arith.truncf %338 : vector<8x8xf32> to vector<8x8xbf16>
    %340 = vector.extract_strided_slice %246 {offsets = [24, 0], sizes = [8, 32], strides = [1, 1]} : vector<32x32xbf16> to vector<8x32xbf16>
    %cst_113 = arith.constant dense<0.000000e+00> : vector<8x32xf32>
    %341 = tpu.matmul %339, %340, %cst_113 {dimension_numbers = #tpu.dot_dimension_numbers<[1], [0], [0], [1], [0, 0, 1, 1], [], []>} : vector<8x8xbf16>, vector<8x32xbf16>, vector<8x32xf32> -> vector<8x32xf32>
    %342 = arith.addf %319, %341 : vector<8x32xf32>
    %343 = vector.extract_strided_slice %237 {offsets = [8, 0], sizes = [8, 32], strides = [1, 1]} : vector<16x32xf32> to vector<8x32xf32>
    %344 = vector.extract_strided_slice %244 {offsets = [8, 0], sizes = [8, 32], strides = [1, 1]} : vector<16x32xf32> to vector<8x32xf32>
    %345 = vector.extract_strided_slice %245 {offsets = [8, 0], sizes = [8, 32], strides = [1, 1]} : vector<16x32xf32> to vector<8x32xf32>
    %c1_114 = arith.constant 1 : index
    %c0_115 = arith.constant 0 : index
    %c0_116 = arith.constant 0 : index
    %346 = vector.load %arg3[%c1_114, %c0_115, %c0_116] : memref<2x1x8xf32, #tpu.memory_space<vmem>>, vector<1x1x8xf32>
    %347 = vector.shape_cast %346 : vector<1x1x8xf32> to vector<1x8xf32>
    %348 = vector.extract_strided_slice %343 {offsets = [0, 0], sizes = [8, 8], strides = [1, 1]} : vector<8x32xf32> to vector<8x8xf32>
    %349 = vector.extract_strided_slice %344 {offsets = [0, 0], sizes = [8, 8], strides = [1, 1]} : vector<8x32xf32> to vector<8x8xf32>
    %cst_117 = arith.constant dense<0.000000e+00> : vector<8x8xf32>
    %350 = tpu.matmul %348, %349, %cst_117 {dimension_numbers = #tpu.dot_dimension_numbers<[1], [1], [0], [0], [0, 0, 1, 0], [], []>} : vector<8x8xf32>, vector<8x8xf32>, vector<8x8xf32> -> vector<8x8xf32>
    %cst_118 = arith.constant 0.353553385 : f32
    %351 = vector.broadcast %cst_118 : f32 to vector<8x8xf32>
    %352 = arith.mulf %350, %351 : vector<8x8xf32>
    %353 = vector.broadcast %347 : vector<1x8xf32> to vector<8x8xf32>
    %354 = arith.addf %352, %353 : vector<8x8xf32>
    %cst_119 = arith.constant dense<0xFF800000> : vector<8xf32>
    %355 = vector.multi_reduction <maximumf>, %354, %cst_119 [1] : vector<8x8xf32> to vector<8xf32>
    %356 = vector.shape_cast %355 : vector<8xf32> to vector<8x1xf32>
    %357 = vector.broadcast %356 : vector<8x1xf32> to vector<8x8xf32>
    %358 = arith.subf %354, %357 : vector<8x8xf32>
    %359 = math.exp %358 : vector<8x8xf32>
    %cst_120 = arith.constant dense<0.000000e+00> : vector<8xf32>
    %360 = vector.multi_reduction <add>, %359, %cst_120 [1] : vector<8x8xf32> to vector<8xf32>
    %361 = vector.shape_cast %360 : vector<8xf32> to vector<8x1xf32>
    %362 = tpu.reciprocal %361 {approx = true} : vector<8x1xf32> -> vector<8x1xf32>
    %363 = vector.broadcast %362 : vector<8x1xf32> to vector<8x8xf32>
    %364 = arith.mulf %359, %363 : vector<8x8xf32>
    %365 = vector.extract_strided_slice %345 {offsets = [0, 0], sizes = [8, 8], strides = [1, 1]} : vector<8x32xf32> to vector<8x8xf32>
    %cst_121 = arith.constant dense<0.000000e+00> : vector<8x8xf32>
    %366 = tpu.matmul %364, %365, %cst_121 {dimension_numbers = #tpu.dot_dimension_numbers<[1], [0], [0], [1], [0, 0, 1, 1], [], []>} : vector<8x8xf32>, vector<8x8xf32>, vector<8x8xf32> -> vector<8x8xf32>
    %367 = arith.truncf %366 : vector<8x8xf32> to vector<8x8xbf16>
    %368 = vector.extract_strided_slice %246 {offsets = [0, 0], sizes = [8, 32], strides = [1, 1]} : vector<32x32xbf16> to vector<8x32xbf16>
    %cst_122 = arith.constant dense<0.000000e+00> : vector<8x32xf32>
    %369 = tpu.matmul %367, %368, %cst_122 {dimension_numbers = #tpu.dot_dimension_numbers<[1], [0], [0], [1], [0, 0, 1, 1], [], []>} : vector<8x8xbf16>, vector<8x32xbf16>, vector<8x32xf32> -> vector<8x32xf32>
    %370 = vector.extract_strided_slice %343 {offsets = [0, 8], sizes = [8, 8], strides = [1, 1]} : vector<8x32xf32> to vector<8x8xf32>
    %371 = vector.extract_strided_slice %344 {offsets = [0, 8], sizes = [8, 8], strides = [1, 1]} : vector<8x32xf32> to vector<8x8xf32>
    %cst_123 = arith.constant dense<0.000000e+00> : vector<8x8xf32>
    %372 = tpu.matmul %370, %371, %cst_123 {dimension_numbers = #tpu.dot_dimension_numbers<[1], [1], [0], [0], [0, 0, 1, 0], [], []>} : vector<8x8xf32>, vector<8x8xf32>, vector<8x8xf32> -> vector<8x8xf32>
    %cst_124 = arith.constant 0.353553385 : f32
    %373 = vector.broadcast %cst_124 : f32 to vector<8x8xf32>
    %374 = arith.mulf %372, %373 : vector<8x8xf32>
    %375 = vector.broadcast %347 : vector<1x8xf32> to vector<8x8xf32>
    %376 = arith.addf %374, %375 : vector<8x8xf32>
    %cst_125 = arith.constant dense<0xFF800000> : vector<8xf32>
    %377 = vector.multi_reduction <maximumf>, %376, %cst_125 [1] : vector<8x8xf32> to vector<8xf32>
    %378 = vector.shape_cast %377 : vector<8xf32> to vector<8x1xf32>
    %379 = vector.broadcast %378 : vector<8x1xf32> to vector<8x8xf32>
    %380 = arith.subf %376, %379 : vector<8x8xf32>
    %381 = math.exp %380 : vector<8x8xf32>
    %cst_126 = arith.constant dense<0.000000e+00> : vector<8xf32>
    %382 = vector.multi_reduction <add>, %381, %cst_126 [1] : vector<8x8xf32> to vector<8xf32>
    %383 = vector.shape_cast %382 : vector<8xf32> to vector<8x1xf32>
    %384 = tpu.reciprocal %383 {approx = true} : vector<8x1xf32> -> vector<8x1xf32>
    %385 = vector.broadcast %384 : vector<8x1xf32> to vector<8x8xf32>
    %386 = arith.mulf %381, %385 : vector<8x8xf32>
    %387 = vector.extract_strided_slice %345 {offsets = [0, 8], sizes = [8, 8], strides = [1, 1]} : vector<8x32xf32> to vector<8x8xf32>
    %cst_127 = arith.constant dense<0.000000e+00> : vector<8x8xf32>
    %388 = tpu.matmul %386, %387, %cst_127 {dimension_numbers = #tpu.dot_dimension_numbers<[1], [0], [0], [1], [0, 0, 1, 1], [], []>} : vector<8x8xf32>, vector<8x8xf32>, vector<8x8xf32> -> vector<8x8xf32>
    %389 = arith.truncf %388 : vector<8x8xf32> to vector<8x8xbf16>
    %390 = vector.extract_strided_slice %246 {offsets = [8, 0], sizes = [8, 32], strides = [1, 1]} : vector<32x32xbf16> to vector<8x32xbf16>
    %cst_128 = arith.constant dense<0.000000e+00> : vector<8x32xf32>
    %391 = tpu.matmul %389, %390, %cst_128 {dimension_numbers = #tpu.dot_dimension_numbers<[1], [0], [0], [1], [0, 0, 1, 1], [], []>} : vector<8x8xbf16>, vector<8x32xbf16>, vector<8x32xf32> -> vector<8x32xf32>
    %392 = arith.addf %369, %391 : vector<8x32xf32>
    %393 = vector.extract_strided_slice %343 {offsets = [0, 16], sizes = [8, 8], strides = [1, 1]} : vector<8x32xf32> to vector<8x8xf32>
    %394 = vector.extract_strided_slice %344 {offsets = [0, 16], sizes = [8, 8], strides = [1, 1]} : vector<8x32xf32> to vector<8x8xf32>
    %cst_129 = arith.constant dense<0.000000e+00> : vector<8x8xf32>
    %395 = tpu.matmul %393, %394, %cst_129 {dimension_numbers = #tpu.dot_dimension_numbers<[1], [1], [0], [0], [0, 0, 1, 0], [], []>} : vector<8x8xf32>, vector<8x8xf32>, vector<8x8xf32> -> vector<8x8xf32>
    %cst_130 = arith.constant 0.353553385 : f32
    %396 = vector.broadcast %cst_130 : f32 to vector<8x8xf32>
    %397 = arith.mulf %395, %396 : vector<8x8xf32>
    %398 = vector.broadcast %347 : vector<1x8xf32> to vector<8x8xf32>
    %399 = arith.addf %397, %398 : vector<8x8xf32>
    %cst_131 = arith.constant dense<0xFF800000> : vector<8xf32>
    %400 = vector.multi_reduction <maximumf>, %399, %cst_131 [1] : vector<8x8xf32> to vector<8xf32>
    %401 = vector.shape_cast %400 : vector<8xf32> to vector<8x1xf32>
    %402 = vector.broadcast %401 : vector<8x1xf32> to vector<8x8xf32>
    %403 = arith.subf %399, %402 : vector<8x8xf32>
    %404 = math.exp %403 : vector<8x8xf32>
    %cst_132 = arith.constant dense<0.000000e+00> : vector<8xf32>
    %405 = vector.multi_reduction <add>, %404, %cst_132 [1] : vector<8x8xf32> to vector<8xf32>
    %406 = vector.shape_cast %405 : vector<8xf32> to vector<8x1xf32>
    %407 = tpu.reciprocal %406 {approx = true} : vector<8x1xf32> -> vector<8x1xf32>
    %408 = vector.broadcast %407 : vector<8x1xf32> to vector<8x8xf32>
    %409 = arith.mulf %404, %408 : vector<8x8xf32>
    %410 = vector.extract_strided_slice %345 {offsets = [0, 16], sizes = [8, 8], strides = [1, 1]} : vector<8x32xf32> to vector<8x8xf32>
    %cst_133 = arith.constant dense<0.000000e+00> : vector<8x8xf32>
    %411 = tpu.matmul %409, %410, %cst_133 {dimension_numbers = #tpu.dot_dimension_numbers<[1], [0], [0], [1], [0, 0, 1, 1], [], []>} : vector<8x8xf32>, vector<8x8xf32>, vector<8x8xf32> -> vector<8x8xf32>
    %412 = arith.truncf %411 : vector<8x8xf32> to vector<8x8xbf16>
    %413 = vector.extract_strided_slice %246 {offsets = [16, 0], sizes = [8, 32], strides = [1, 1]} : vector<32x32xbf16> to vector<8x32xbf16>
    %cst_134 = arith.constant dense<0.000000e+00> : vector<8x32xf32>
    %414 = tpu.matmul %412, %413, %cst_134 {dimension_numbers = #tpu.dot_dimension_numbers<[1], [0], [0], [1], [0, 0, 1, 1], [], []>} : vector<8x8xbf16>, vector<8x32xbf16>, vector<8x32xf32> -> vector<8x32xf32>
    %415 = arith.addf %392, %414 : vector<8x32xf32>
    %416 = vector.extract_strided_slice %343 {offsets = [0, 24], sizes = [8, 8], strides = [1, 1]} : vector<8x32xf32> to vector<8x8xf32>
    %417 = vector.extract_strided_slice %344 {offsets = [0, 24], sizes = [8, 8], strides = [1, 1]} : vector<8x32xf32> to vector<8x8xf32>
    %cst_135 = arith.constant dense<0.000000e+00> : vector<8x8xf32>
    %418 = tpu.matmul %416, %417, %cst_135 {dimension_numbers = #tpu.dot_dimension_numbers<[1], [1], [0], [0], [0, 0, 1, 0], [], []>} : vector<8x8xf32>, vector<8x8xf32>, vector<8x8xf32> -> vector<8x8xf32>
    %cst_136 = arith.constant 0.353553385 : f32
    %419 = vector.broadcast %cst_136 : f32 to vector<8x8xf32>
    %420 = arith.mulf %418, %419 : vector<8x8xf32>
    %421 = vector.broadcast %347 : vector<1x8xf32> to vector<8x8xf32>
    %422 = arith.addf %420, %421 : vector<8x8xf32>
    %cst_137 = arith.constant dense<0xFF800000> : vector<8xf32>
    %423 = vector.multi_reduction <maximumf>, %422, %cst_137 [1] : vector<8x8xf32> to vector<8xf32>
    %424 = vector.shape_cast %423 : vector<8xf32> to vector<8x1xf32>
    %425 = vector.broadcast %424 : vector<8x1xf32> to vector<8x8xf32>
    %426 = arith.subf %422, %425 : vector<8x8xf32>
    %427 = math.exp %426 : vector<8x8xf32>
    %cst_138 = arith.constant dense<0.000000e+00> : vector<8xf32>
    %428 = vector.multi_reduction <add>, %427, %cst_138 [1] : vector<8x8xf32> to vector<8xf32>
    %429 = vector.shape_cast %428 : vector<8xf32> to vector<8x1xf32>
    %430 = tpu.reciprocal %429 {approx = true} : vector<8x1xf32> -> vector<8x1xf32>
    %431 = vector.broadcast %430 : vector<8x1xf32> to vector<8x8xf32>
    %432 = arith.mulf %427, %431 : vector<8x8xf32>
    %433 = vector.extract_strided_slice %345 {offsets = [0, 24], sizes = [8, 8], strides = [1, 1]} : vector<8x32xf32> to vector<8x8xf32>
    %cst_139 = arith.constant dense<0.000000e+00> : vector<8x8xf32>
    %434 = tpu.matmul %432, %433, %cst_139 {dimension_numbers = #tpu.dot_dimension_numbers<[1], [0], [0], [1], [0, 0, 1, 1], [], []>} : vector<8x8xf32>, vector<8x8xf32>, vector<8x8xf32> -> vector<8x8xf32>
    %435 = arith.truncf %434 : vector<8x8xf32> to vector<8x8xbf16>
    %436 = vector.extract_strided_slice %246 {offsets = [24, 0], sizes = [8, 32], strides = [1, 1]} : vector<32x32xbf16> to vector<8x32xbf16>
    %cst_140 = arith.constant dense<0.000000e+00> : vector<8x32xf32>
    %437 = tpu.matmul %435, %436, %cst_140 {dimension_numbers = #tpu.dot_dimension_numbers<[1], [0], [0], [1], [0, 0, 1, 1], [], []>} : vector<8x8xbf16>, vector<8x32xbf16>, vector<8x32xf32> -> vector<8x32xf32>
    %438 = arith.addf %415, %437 : vector<8x32xf32>
    %439 = tpu.concatenate %342, %438 in 0 : vector<8x32xf32>, vector<8x32xf32> -> vector<16x32xf32>
    %c0_141 = arith.constant 0 : index
    %c0_142 = arith.constant 0 : index
    %440 = vector.load %arg14[%c0_141, %c0_142] : memref<1x32xf32, #tpu.memory_space<vmem>>, vector<1x32xf32>
    %441 = vector.broadcast %440 : vector<1x32xf32> to vector<16x32xf32>
    %442 = arith.addf %439, %441 : vector<16x32xf32>
    %443 = arith.addf %231, %442 : vector<16x32xf32>
    %c0_143 = arith.constant 0 : index
    %c0_144 = arith.constant 0 : index
    %444 = vector.load %arg21[%c0_143, %c0_144] : memref<1x32xf32, #tpu.memory_space<vmem>>, vector<1x32xf32>
    %c0_145 = arith.constant 0 : index
    %c0_146 = arith.constant 0 : index
    %445 = vector.load %arg22[%c0_145, %c0_146] : memref<1x32xf32, #tpu.memory_space<vmem>>, vector<1x32xf32>
    %cst_147 = arith.constant dense<0.000000e+00> : vector<16xf32>
    %446 = vector.multi_reduction <add>, %443, %cst_147 [1] : vector<16x32xf32> to vector<16xf32>
    %447 = vector.shape_cast %446 : vector<16xf32> to vector<16x1xf32>
    %cst_148 = arith.constant 3.200000e+01 : f32
    %448 = vector.broadcast %cst_148 : f32 to vector<16x1xf32>
    %449 = arith.divf %447, %448 : vector<16x1xf32>
    %450 = vector.broadcast %449 : vector<16x1xf32> to vector<16x32xf32>
    %451 = arith.subf %443, %450 : vector<16x32xf32>
    %452 = arith.mulf %451, %451 : vector<16x32xf32>
    %cst_149 = arith.constant dense<0.000000e+00> : vector<16xf32>
    %453 = vector.multi_reduction <add>, %452, %cst_149 [1] : vector<16x32xf32> to vector<16xf32>
    %454 = vector.shape_cast %453 : vector<16xf32> to vector<16x1xf32>
    %cst_150 = arith.constant 3.200000e+01 : f32
    %455 = vector.broadcast %cst_150 : f32 to vector<16x1xf32>
    %456 = arith.divf %454, %455 : vector<16x1xf32>
    %457 = vector.broadcast %449 : vector<16x1xf32> to vector<16x32xf32>
    %458 = arith.subf %443, %457 : vector<16x32xf32>
    %cst_151 = arith.constant 9.99999974E-6 : f32
    %459 = vector.broadcast %cst_151 : f32 to vector<16x1xf32>
    %460 = arith.addf %456, %459 : vector<16x1xf32>
    %461 = math.rsqrt %460 : vector<16x1xf32>
    %462 = vector.broadcast %461 : vector<16x1xf32> to vector<16x32xf32>
    %463 = arith.mulf %458, %462 : vector<16x32xf32>
    %464 = vector.broadcast %444 : vector<1x32xf32> to vector<16x32xf32>
    %465 = arith.mulf %463, %464 : vector<16x32xf32>
    %466 = vector.broadcast %445 : vector<1x32xf32> to vector<16x32xf32>
    %467 = arith.addf %465, %466 : vector<16x32xf32>
    %c0_152 = arith.constant 0 : index
    %c0_153 = arith.constant 0 : index
    %468 = vector.load %arg15[%c0_152, %c0_153] : memref<32x64xbf16, #tpu.memory_space<vmem>>, vector<32x64xbf16>
    %469 = arith.truncf %467 : vector<16x32xf32> to vector<16x32xbf16>
    %cst_154 = arith.constant dense<0.000000e+00> : vector<16x64xf32>
    %470 = tpu.matmul %469, %468, %cst_154 {dimension_numbers = #tpu.dot_dimension_numbers<[1], [0], [0], [1], [0, 0, 1, 1], [], []>} : vector<16x32xbf16>, vector<32x64xbf16>, vector<16x64xf32> -> vector<16x64xf32>
    %c0_155 = arith.constant 0 : index
    %c0_156 = arith.constant 0 : index
    %471 = vector.load %arg16[%c0_155, %c0_156] : memref<1x64xf32, #tpu.memory_space<vmem>>, vector<1x64xf32>
    %472 = vector.broadcast %471 : vector<1x64xf32> to vector<16x64xf32>
    %473 = arith.addf %470, %472 : vector<16x64xf32>
    %cst_157 = arith.constant 0.000000e+00 : f32
    %474 = vector.broadcast %cst_157 : f32 to vector<16x64xf32>
    %475 = arith.maximumf %473, %474 : vector<16x64xf32>
    %c0_158 = arith.constant 0 : index
    %c0_159 = arith.constant 0 : index
    %476 = vector.load %arg17[%c0_158, %c0_159] : memref<64x32xbf16, #tpu.memory_space<vmem>>, vector<64x32xbf16>
    %477 = arith.truncf %475 : vector<16x64xf32> to vector<16x64xbf16>
    %cst_160 = arith.constant dense<0.000000e+00> : vector<16x32xf32>
    %478 = tpu.matmul %477, %476, %cst_160 {dimension_numbers = #tpu.dot_dimension_numbers<[1], [0], [0], [1], [0, 0, 1, 1], [], []>} : vector<16x64xbf16>, vector<64x32xbf16>, vector<16x32xf32> -> vector<16x32xf32>
    %c0_161 = arith.constant 0 : index
    %c0_162 = arith.constant 0 : index
    %479 = vector.load %arg18[%c0_161, %c0_162] : memref<1x32xf32, #tpu.memory_space<vmem>>, vector<1x32xf32>
    %480 = vector.broadcast %479 : vector<1x32xf32> to vector<16x32xf32>
    %481 = arith.addf %478, %480 : vector<16x32xf32>
    %482 = arith.addf %467, %481 : vector<16x32xf32>
    %c0_163 = arith.constant 0 : index
    %c0_164 = arith.constant 0 : index
    %483 = vector.load %arg23[%c0_163, %c0_164] : memref<1x32xf32, #tpu.memory_space<vmem>>, vector<1x32xf32>
    %c0_165 = arith.constant 0 : index
    %c0_166 = arith.constant 0 : index
    %484 = vector.load %arg24[%c0_165, %c0_166] : memref<1x32xf32, #tpu.memory_space<vmem>>, vector<1x32xf32>
    %cst_167 = arith.constant dense<0.000000e+00> : vector<16xf32>
    %485 = vector.multi_reduction <add>, %482, %cst_167 [1] : vector<16x32xf32> to vector<16xf32>
    %486 = vector.shape_cast %485 : vector<16xf32> to vector<16x1xf32>
    %cst_168 = arith.constant 3.200000e+01 : f32
    %487 = vector.broadcast %cst_168 : f32 to vector<16x1xf32>
    %488 = arith.divf %486, %487 : vector<16x1xf32>
    %489 = vector.broadcast %488 : vector<16x1xf32> to vector<16x32xf32>
    %490 = arith.subf %482, %489 : vector<16x32xf32>
    %491 = arith.mulf %490, %490 : vector<16x32xf32>
    %cst_169 = arith.constant dense<0.000000e+00> : vector<16xf32>
    %492 = vector.multi_reduction <add>, %491, %cst_169 [1] : vector<16x32xf32> to vector<16xf32>
    %493 = vector.shape_cast %492 : vector<16xf32> to vector<16x1xf32>
    %cst_170 = arith.constant 3.200000e+01 : f32
    %494 = vector.broadcast %cst_170 : f32 to vector<16x1xf32>
    %495 = arith.divf %493, %494 : vector<16x1xf32>
    %496 = vector.broadcast %488 : vector<16x1xf32> to vector<16x32xf32>
    %497 = arith.subf %482, %496 : vector<16x32xf32>
    %cst_171 = arith.constant 9.99999974E-6 : f32
    %498 = vector.broadcast %cst_171 : f32 to vector<16x1xf32>
    %499 = arith.addf %495, %498 : vector<16x1xf32>
    %500 = math.rsqrt %499 : vector<16x1xf32>
    %501 = vector.broadcast %500 : vector<16x1xf32> to vector<16x32xf32>
    %502 = arith.mulf %497, %501 : vector<16x32xf32>
    %503 = vector.broadcast %483 : vector<1x32xf32> to vector<16x32xf32>
    %504 = arith.mulf %502, %503 : vector<16x32xf32>
    %505 = vector.broadcast %484 : vector<1x32xf32> to vector<16x32xf32>
    %506 = arith.addf %504, %505 : vector<16x32xf32>
    %507 = arith.truncf %506 : vector<16x32xf32> to vector<16x32xbf16>
    %c0_172 = arith.constant 0 : index
    %c0_173 = arith.constant 0 : index
    %508 = vector.load %arg25[%c0_172, %c0_173] : memref<16x32xbf16, #tpu.memory_space<vmem>>, vector<16x32xbf16>
    tpu.vector_store %arg25[%c0_172, %c0_173], %507 {strides = array<i32>} : memref<16x32xbf16, #tpu.memory_space<vmem>>, vector<16x32xbf16>,
    return
  }
}

</mosaic_0001>

<llo_original>
// kernel: a_call__.9
$region0: #{a_call__.9}
  #allocation0 [shape = 'u32[]', space=smem, size = 0x4, offset = 0x4, fixed_abs, tag = 'smem constant byte address 0x4 - core index']
  #allocation1 [shape = 'u32[72,128]{1,0:T(1,128)}', space=vmem, size = 0x9000, scoped, tag = 'internal scratch']
  %s0 = inlined_call_operand.vmem [shape: bf16[16,32], index: 0, kind: input, shape index: {}]
  %s1 = inlined_call_operand.vmem [shape: f32[1,32], index: 1, kind: input, shape index: {}]
  %s2 = inlined_call_operand.vmem [shape: f32[1,32], index: 2, kind: input, shape index: {}]
  %s3 = inlined_call_operand.vmem [shape: bf16[32,128], index: 3, kind: input, shape index: {}]
  %s4 = inlined_call_operand.vmem [shape: f32[1,128], index: 4, kind: input, shape index: {}]
  %s5 = inlined_call_operand.vmem [shape: f32[16,128], index: 5, kind: output, shape index: {}]
  %s6 = sld [smem:[#allocation0]]
  $region30: #{a_call__.9} parent=0
    _
  %s8 = ssub.s32 1, %s6
  %s9 = scalar_select 0, %s8, %s6
  // Predicated region
  $region2: #{a_call__.9} parent=0 // pred_check
    _
  $region3: #{a_call__.9} parent=0 // pred_check_branch
    %11 = sbr.rel (0) target = $region5
  $region4: #{a_call__.9} parent=0 // pred_region
    _
  $region5: #{a_call__.9} parent=0 // pred_fallthru
    _
  // Predicated region
  $region6: #{a_call__.9} parent=0 // pred_check
    _
  $region7: #{a_call__.9} parent=0 // pred_check_branch
    %13 = sbr.rel (0) target = $region9
  $region8: #{a_call__.9} parent=0 // pred_region
    _
  $region9: #{a_call__.9} parent=0 // pred_fallthru
    _
  // Predicated region
  $region10: #{a_call__.9} parent=0 // pred_check
    _
  $region11: #{a_call__.9} parent=0 // pred_check_branch
    %15 = sbr.rel (0) target = $region13
  $region12: #{a_call__.9} parent=0 // pred_region
    _
  $region13: #{a_call__.9} parent=0 // pred_fallthru
    _
  // Predicated region
  $region14: #{a_call__.9} parent=0 // pred_check
    _
  $region15: #{a_call__.9} parent=0 // pred_check_branch
    %17 = sbr.rel (0) target = $region17
  $region16: #{a_call__.9} parent=0 // pred_region
    _
  $region17: #{a_call__.9} parent=0 // pred_fallthru
    _
  // Predicated region
  $region18: #{a_call__.9} parent=0 // pred_check
    _
  $region19: #{a_call__.9} parent=0 // pred_check_branch
    %19 = sbr.rel (0) target = $region21
  $region20: #{a_call__.9} parent=0 // pred_region
    _
  $region21: #{a_call__.9} parent=0 // pred_fallthru
    _
  %v21 = vld [vmem:[%s0] sm:$0xf]
  %v22 = vld [vmem:[%s0 + $0x4] sm:$0xf]
  %v23 = vunpack.c.l.bf16 %v21
  %v24 = vunpack.c.l.bf16 %v22
  %v25 = vld [vmem:[%s1] sm:$0x1]
  %v26 = vld [vmem:[%s2] sm:$0x1]
  %vm27 = vcmask 261120
  %v28 = vsel %vm27, %v23, 0.0
  %29 = vadd.xlane.f32.xlu0 %v28
  %v30 = vpop.xlane.xlu0 %29
  %v31 = vsel %vm27, %v24, 0.0
  %32 = vadd.xlane.f32.xlu0 %v31
  %v33 = vpop.xlane.xlu0 %32
  %v34 = vrcp.pop 32.0
  %v35 = vmul.f32 32.0, %v34
  %v36 = vsub.f32 1.0, %v35
  %v37 = vmul.f32 %v34, %v36
  %v38 = vadd.f32 %v34, %v37
  %vm39 = vweird.f32 %v34
  %v40 = vsel %vm39, %v34, %v38
  %v41 = vmul.f32 %v30, %v40
  %v42 = vmul.f32 %v33, %v40
  %v43 = vsub.f32 %v23, %v41
  %v44 = vsub.f32 %v24, %v42
  %v45 = vmul.f32 %v43, %v43
  %v46 = vmul.f32 %v44, %v44
  %v47 = vsel %vm27, %v45, 0.0
  %48 = vadd.xlane.f32.xlu0 %v47
  %v49 = vpop.xlane.xlu0 %48
  %v50 = vsel %vm27, %v46, 0.0
  %51 = vadd.xlane.f32.xlu0 %v50
  %v52 = vpop.xlane.xlu0 %51
  %v53 = vmul.f32 %v49, %v40
  %v54 = vmul.f32 %v52, %v40
  %v55 = vadd.f32 %v53, 1e-05
  %v56 = vadd.f32 %v54, 1e-05
  %v57 = vrsqrt.pop %v55
  %v58 = vmul.f32 %v57, %v55
  %v59 = vmul.f32 %v58, %v57
  %v60 = vmul.f32 0.5, %v59
  %v61 = vsub.f32 1.5, %v60
  %v62 = vmul.f32 %v57, %v61
  %vm63 = vweird.f32 %v55
  %vm64 = vweird.f32 %v57
  %vm65 = vmor %vm63, %vm64
  %v66 = vsel %vm65, %v57, %v62
  %v67 = vrsqrt.pop %v56
  %v68 = vmul.f32 %v67, %v56
  %v69 = vmul.f32 %v68, %v67
  %v70 = vmul.f32 0.5, %v69
  %v71 = vsub.f32 1.5, %v70
  %v72 = vmul.f32 %v67, %v71
  %vm73 = vweird.f32 %v56
  %vm74 = vweird.f32 %v67
  %vm75 = vmor %vm73, %vm74
  %v76 = vsel %vm75, %v67, %v72
  %v77 = vmul.f32 %v43, %v66
  %v78 = vmul.f32 %v44, %v76
  %v80 = vperm.slane %v25, 0
  %v82 = vmul.f32 %v77, %v80
  %v83 = vmul.f32 %v78, %v80
  %v85 = vperm.slane %v26, 0
  %v87 = vadd.f32 %v82, %v85
  %v88 = vadd.f32 %v83, %v85
  %v89 = vld [vmem:[%s3] sm:$0xf]
  %v90 = vld [vmem:[%s3 + $0x4] sm:$0xf]
  %v91 = vld [vmem:[%s3 + $0x8] sm:$0xf]
  %v92 = vld [vmem:[%s3 + $0xc] sm:$0xf]
  %v93 = vpack.c.bf16 %v88, %v87
  %v94 = vld [vmem:[%s4] sm:$0x1]
  %v96 = vperm.slane %v94, 0
  %v102 = vunpack.c.l.b16 %v89
  %v103 = vunpack.c.l.b16 %v90
  %v104 = vunpack.c.l.b16 %v91
  %v105 = vunpack.c.l.b16 %v92
  %v106 = vpack.c.b16 %v103, %v102
  %v107 = vpack.c.b16 %v105, %v104
  %v111 = vsel %vm27, %v93, 0
  %113 = vmatpush.bf16.msra.mxu0 0
  %114 = vmatpush.bf16.msra.mxu0 0
  %115 = vmatpush.bf16.msra.mxu0 0
  %116 = vmatpush.bf16.msra.mxu0 0
  %117 = vmatpush.bf16.msra.mxu0 0
  %118 = vmatpush.bf16.msra.mxu0 0
  %119 = vmatpush.bf16.msra.mxu0 %v107
  %120 = vmatpush.bf16.msra.mxu0 %v106
  %121 = vmatmul.bf16.gmra.mxu0 %v111
  %v122 = vpop.f32.mrf.mxu0
  %v123 = vadd.f32 %v96, %v122
  %v124 = vpop.f32.mrf.mxu0
  %v125 = vadd.f32 %v96, %v124
  %126 = vdwg.mxu0
  %v127 = vlaneseq
  %v128 = vand.u32 %v127, 127
  %vm129 = vcmp.lt.s32.totalorder %v128, 41
  %v130 = vsel %vm129, %v123, -1e+30
  %v131 = vsel %vm129, %v125, -1e+30
  %132 = vmax.xlane.f32.xlu0 %v130
  %v133 = vpop.xlane.xlu0 %132
  %134 = vmax.xlane.f32.xlu0 %v131
  %v135 = vpop.xlane.xlu0 %134
  %v136 = vsub.f32 %v130, %v133
  %v137 = vsub.f32 %v131, %v135
  %v138 = vmul.f32 %v136, 1.442695
  %v139 = vpow.pop %v138
  %v140 = vmul.f32 %v137, 1.442695
  %v141 = vpow.pop %v140
  %142 = vadd.xlane.f32.xlu0 %v139
  %v143 = vpop.xlane.xlu0 %142
  %144 = vadd.xlane.f32.xlu0 %v141
  %v145 = vpop.xlane.xlu0 %144
  %v146 = vrcp.pop %v143
  %v147 = vmul.f32 %v143, %v146
  %v148 = vsub.f32 1.0, %v147
  %v149 = vmul.f32 %v146, %v148
  %v150 = vadd.f32 %v146, %v149
  %vm151 = vweird.f32 %v143
  %vm152 = vweird.f32 %v146
  %vm153 = vmor %vm151, %vm152
  %v154 = vsel %vm153, %v146, %v150
  %v155 = vand.u32 2147483647, %v143
  %vm156 = vcmp.eq.f32.partialorder %v155, 8.507059e+37
  %v157 = vand.u32 %v143, 2147483648
  %v158 = vor.u32 1.1754944e-38, %v157
  %v159 = vsel %vm156, %v158, %v154
  %v160 = vmul.f32 %v139, %v159
  %v161 = vrcp.pop %v145
  %v162 = vmul.f32 %v145, %v161
  %v163 = vsub.f32 1.0, %v162
  %v164 = vmul.f32 %v161, %v163
  %v165 = vadd.f32 %v161, %v164
  %vm166 = vweird.f32 %v145
  %vm167 = vweird.f32 %v161
  %vm168 = vmor %vm166, %vm167
  %v169 = vsel %vm168, %v161, %v165
  %v170 = vand.u32 2147483647, %v145
  %vm171 = vcmp.eq.f32.partialorder %v170, 8.507059e+37
  %v172 = vand.u32 %v145, 2147483648
  %v173 = vor.u32 1.1754944e-38, %v172
  %v174 = vsel %vm171, %v173, %v169
  %v175 = vmul.f32 %v141, %v174
  %176 = vst [vmem:[%s5] sm:$0xff] %v160
  %177 = vst [vmem:[%s5 + $0x8] sm:$0xff] %v175
  // Predicated region
  $region22: #{a_call__.9} parent=0 // pred_check
    _
  $region23: #{a_call__.9} parent=0 // pred_check_branch
    %179 = sbr.rel (0) target = $region25
  $region24: #{a_call__.9} parent=0 // pred_region
    _
  $region25: #{a_call__.9} parent=0 // pred_fallthru
    _
  // Predicated region
  $region26: #{a_call__.9} parent=0 // pred_check
    _
  $region27: #{a_call__.9} parent=0 // pred_check_branch
    %181 = sbr.rel (0) target = $region29
  $region28: #{a_call__.9} parent=0 // pred_region
    _
  $region29: #{a_call__.9} parent=0 // pred_fallthru
    _

// kernel: a_call__.6
$region0: #{a_call__.6}
  #allocation0 [shape = 'u32[]', space=smem, size = 0x4, offset = 0x4, fixed_abs, tag = 'smem constant byte address 0x4 - core index']
  #allocation1 [shape = 'u32[72,128]{1,0:T(1,128)}', space=vmem, size = 0x9000, scoped, tag = 'internal scratch']
  %s0 = inlined_call_operand.vmem [shape: bf16[16,32], index: 0, kind: input, shape index: {}]
  %s1 = inlined_call_operand.vmem [shape: f32[2,1,8], index: 1, kind: input, shape index: {}]
  %s2 = inlined_call_operand.vmem [shape: bf16[32,96], index: 2, kind: input, shape index: {}]
  %s3 = inlined_call_operand.vmem [shape: f32[1,96], index: 3, kind: input, shape index: {}]
  %s4 = inlined_call_operand.hbm [shape: bf16[32,32], index: 4, kind: input, shape index: {}]
  %s5 = inlined_call_operand.vmem [shape: f32[1,32], index: 5, kind: input, shape index: {}, may-alias: {5,9,11,13,15}]
  %s6 = inlined_call_operand.hbm [shape: bf16[32,64], index: 6, kind: input, shape index: {}]
  %s7 = inlined_call_operand.vmem [shape: f32[1,64], index: 7, kind: input, shape index: {}]
  %s8 = inlined_call_operand.vmem [shape: bf16[64,32], index: 8, kind: input, shape index: {}]
  %s9 = inlined_call_operand.vmem [shape: f32[1,32], index: 9, kind: input, shape index: {}, may-alias: {5,9,11,13,15}]
  %s10 = inlined_call_operand.vmem [shape: f32[1,32], index: 10, kind: input, shape index: {}, may-alias: {10,12,14}]
  %s11 = inlined_call_operand.vmem [shape: f32[1,32], index: 11, kind: input, shape index: {}, may-alias: {5,9,11,13,15}]
  %s12 = inlined_call_operand.vmem [shape: f32[1,32], index: 12, kind: input, shape index: {}, may-alias: {10,12,14}]
  %s13 = inlined_call_operand.vmem [shape: f32[1,32], index: 13, kind: input, shape index: {}, may-alias: {5,9,11,13,15}]
  %s14 = inlined_call_operand.vmem [shape: f32[1,32], index: 14, kind: input, shape index: {}, may-alias: {10,12,14}]
  %s15 = inlined_call_operand.vmem [shape: f32[1,32], index: 15, kind: input, shape index: {}, may-alias: {5,9,11,13,15}]
  %s16 = inlined_call_operand.vmem [shape: bf16[16,32], index: 16, kind: output, shape index: {}]
  %s17 = sld [smem:[#allocation0]]
  $region82: #{a_call__.6} parent=0
    _
  %s19 = ssub.s32 1, %s17
  %s20 = scalar_select 0, %s19, %s17
  $region1: #{a_call__.6} parent=0
    #allocation2 [shape = 'u8[8192]{0}', space=vmem, size = 0x2000, scoped, tag = 'input window, operand 4, single buffered']
    #allocation3 [shape = 's32[1]{0}', space=sflag, size = 0x4, scoped, tag = 'scoped memory for a_call__.6']
    #allocation4 [shape = 'u8[8192]{0}', space=vmem, size = 0x2000, scoped, tag = 'input window, operand 6, single buffered']
    #allocation5 [shape = 's32[1]{0}', space=sflag, size = 0x4, scoped, tag = 'scoped memory for a_call__.6']
    %21 = vsyncpa [#allocation3], 0
    %22 = vsyncpa [#allocation5], 0
    // Predicated region
    $region2: #{a_call__.6} parent=1 // pred_check
      _
    $region3: #{a_call__.6} parent=1 // pred_check_branch
      %24 = sbr.rel (0) target = $region5
    $region4: #{a_call__.6} parent=1 // pred_region
      _
    $region5: #{a_call__.6} parent=1 // pred_fallthru
      _
    // Predicated region
    $region6: #{a_call__.6} parent=1 // pred_check
      _
    $region7: #{a_call__.6} parent=1 // pred_check_branch
      %26 = sbr.rel (0) target = $region9
    $region8: #{a_call__.6} parent=1 // pred_region
      _
    $region9: #{a_call__.6} parent=1 // pred_fallthru
      _
    // Predicated region
    $region10: #{a_call__.6} parent=1 // pred_check
      _
    $region11: #{a_call__.6} parent=1 // pred_check_branch
      %28 = sbr.rel (0) target = $region13
    $region12: #{a_call__.6} parent=1 // pred_region
      _
    $region13: #{a_call__.6} parent=1 // pred_fallthru
      _
    // Predicated region
    $region14: #{a_call__.6} parent=1 // pred_check
      _
    $region15: #{a_call__.6} parent=1 // pred_check_branch
      %30 = sbr.rel (0) target = $region17
    $region16: #{a_call__.6} parent=1 // pred_region
      _
    $region17: #{a_call__.6} parent=1 // pred_fallthru
      _
    // Predicated region
    $region18: #{a_call__.6} parent=1 // pred_check
      _
    $region19: #{a_call__.6} parent=1 // pred_check_branch
      %32 = sbr.rel (0) target = $region21
    $region20: #{a_call__.6} parent=1 // pred_region
      %34 = vsyncadd [#allocation3], 0
      %s35 = sshll.u32 %s4, 4
      %s36 = int_to_ptr.hbm [resolvable:$true] %s35
      %s37 = sshll.u32 [#allocation2], 4
      %s38 = int_to_ptr.vmem [resolvable:$true] %s37
      %43 = dma.hbm_to_vmem [thread:$0]  %s36, 256, %s38, [#allocation3], 64, 64, 4
    $region21: #{a_call__.6} parent=1 // pred_fallthru
      _
    // Predicated region
    $region22: #{a_call__.6} parent=1 // pred_check
      _
    $region23: #{a_call__.6} parent=1 // pred_check_branch
      %45 = sbr.rel (0) target = $region25
    $region24: #{a_call__.6} parent=1 // pred_region
      _
    $region25: #{a_call__.6} parent=1 // pred_fallthru
      _
    // Predicated region
    $region26: #{a_call__.6} parent=1 // pred_check
      _
    $region27: #{a_call__.6} parent=1 // pred_check_branch
      %47 = sbr.rel (0) target = $region29
    $region28: #{a_call__.6} parent=1 // pred_region
      %49 = vsyncadd [#allocation5], 0
      %s50 = sshll.u32 %s6, 4
      %s51 = int_to_ptr.hbm [resolvable:$true] %s50
      %s52 = sshll.u32 [#allocation4], 4
      %s53 = int_to_ptr.vmem [resolvable:$true] %s52
      %58 = dma.hbm_to_vmem [thread:$0]  %s51, 256, %s53, [#allocation5], 64, 64, 4
    $region29: #{a_call__.6} parent=1 // pred_fallthru
      _
    // Predicated region
    $region30: #{a_call__.6} parent=1 // pred_check
      _
    $region31: #{a_call__.6} parent=1 // pred_check_branch
      %60 = sbr.rel (0) target = $region33
    $region32: #{a_call__.6} parent=1 // pred_region
      _
    $region33: #{a_call__.6} parent=1 // pred_fallthru
      _
    // Predicated region
    $region34: #{a_call__.6} parent=1 // pred_check
      _
    $region35: #{a_call__.6} parent=1 // pred_check_branch
      %62 = sbr.rel (0) target = $region37
    $region36: #{a_call__.6} parent=1 // pred_region
      _
    $region37: #{a_call__.6} parent=1 // pred_fallthru
      _
    // Predicated region
    $region38: #{a_call__.6} parent=1 // pred_check
      _
    $region39: #{a_call__.6} parent=1 // pred_check_branch
      %64 = sbr.rel (0) target = $region41
    $region40: #{a_call__.6} parent=1 // pred_region
      _
    $region41: #{a_call__.6} parent=1 // pred_fallthru
      _
    // Predicated region
    $region42: #{a_call__.6} parent=1 // pred_check
      _
    $region43: #{a_call__.6} parent=1 // pred_check_branch
      %66 = sbr.rel (0) target = $region45
    $region44: #{a_call__.6} parent=1 // pred_region
      _
    $region45: #{a_call__.6} parent=1 // pred_fallthru
      _
    // Predicated region
    $region46: #{a_call__.6} parent=1 // pred_check
      _
    $region47: #{a_call__.6} parent=1 // pred_check_branch
      %68 = sbr.rel (0) target = $region49
    $region48: #{a_call__.6} parent=1 // pred_region
      _
    $region49: #{a_call__.6} parent=1 // pred_fallthru
      _
    // Predicated region
    $region50: #{a_call__.6} parent=1 // pred_check
      _
    $region51: #{a_call__.6} parent=1 // pred_check_branch
      %70 = sbr.rel (0) target = $region53
    $region52: #{a_call__.6} parent=1 // pred_region
      _
    $region53: #{a_call__.6} parent=1 // pred_fallthru
      _
    // Predicated region
    $region54: #{a_call__.6} parent=1 // pred_check
      _
    $region55: #{a_call__.6} parent=1 // pred_check_branch
      %72 = sbr.rel (0) target = $region57
    $region56: #{a_call__.6} parent=1 // pred_region
      _
    $region57: #{a_call__.6} parent=1 // pred_fallthru
      _
    // Predicated region
    $region58: #{a_call__.6} parent=1 // pred_check
      _
    $region59: #{a_call__.6} parent=1 // pred_check_branch
      %74 = sbr.rel (0) target = $region61
    $region60: #{a_call__.6} parent=1 // pred_region
      _
    $region61: #{a_call__.6} parent=1 // pred_fallthru
      _
    // Predicated region
    $region62: #{a_call__.6} parent=1 // pred_check
      _
    $region63: #{a_call__.6} parent=1 // pred_check_branch
      %76 = sbr.rel (0) target = $region65
    $region64: #{a_call__.6} parent=1 // pred_region
      _
    $region65: #{a_call__.6} parent=1 // pred_fallthru
      _
    // Predicated region
    $region66: #{a_call__.6} parent=1 // pred_check
      _
    $region67: #{a_call__.6} parent=1 // pred_check_branch
      %78 = sbr.rel (0) target = $region69
    $region68: #{a_call__.6} parent=1 // pred_region
      %80 = dma.done [#allocation3], 256
    $region69: #{a_call__.6} parent=1 // pred_fallthru
      _
    // Predicated region
    $region70: #{a_call__.6} parent=1 // pred_check
      _
    $region71: #{a_call__.6} parent=1 // pred_check_branch
      %82 = sbr.rel (0) target = $region73
    $region72: #{a_call__.6} parent=1 // pred_region
      %84 = dma.done [#allocation5], 256
    $region73: #{a_call__.6} parent=1 // pred_fallthru
      _
    %v86 = vld [vmem:[%s0] sm:$0xf]
    %v87 = vld [vmem:[%s0 + $0x4] sm:$0xf]
    %v88 = vunpack.c.l.bf16 %v86
    %v89 = vunpack.c.l.bf16 %v87
    %v90 = vld [vmem:[%s2] sm:$0xf]
    %v91 = vld [vmem:[%s2 + $0x4] sm:$0xf]
    %v92 = vld [vmem:[%s2 + $0x8] sm:$0xf]
    %v93 = vld [vmem:[%s2 + $0xc] sm:$0xf]
    %v94 = vld [vmem:[%s3] sm:$0x1]
    %v96 = vperm.slane %v94, 0
    %v100 = vunpack.c.l.b16 %v86
    %v101 = vunpack.c.l.b16 %v87
    %v102 = vpack.c.b16 %v101, %v100
    %v107 = vunpack.c.l.b16 %v90
    %v108 = vunpack.c.l.b16 %v91
    %v109 = vunpack.c.l.b16 %v92
    %v110 = vunpack.c.l.b16 %v93
    %v111 = vpack.c.b16 %v108, %v107
    %v112 = vpack.c.b16 %v110, %v109
    %vm115 = vcmask 261120
    %v117 = vsel %vm115, %v102, 0
    %119 = vmatpush.bf16.msra.mxu0 0
    %120 = vmatpush.bf16.msra.mxu0 0
    %121 = vmatpush.bf16.msra.mxu0 0
    %122 = vmatpush.bf16.msra.mxu0 0
    %123 = vmatpush.bf16.msra.mxu0 0
    %124 = vmatpush.bf16.msra.mxu0 0
    %125 = vmatpush.bf16.msra.mxu0 %v112
    %126 = vmatpush.bf16.msra.mxu0 %v111
    %127 = vmatmul.bf16.gmra.mxu0 %v117
    %v128 = vpop.f32.mrf.mxu0
    %v129 = vadd.f32 %v96, %v128
    %v130 = vpop.f32.mrf.mxu0
    %v131 = vadd.f32 %v96, %v130
    %132 = vdwg.mxu0
    %v133 = vld [vmem:[#allocation2] sm:$0xf]
    %v134 = vld [vmem:[#allocation2 + $0x4] sm:$0xf]
    %v135 = vld [vmem:[#allocation2 + $0x8] sm:$0xf]
    %v136 = vld [vmem:[#allocation2 + $0xc] sm:$0xf]
    %v137 = vld [vmem:[%s1] sm:$0x1]
    %139 = vrot.lane.b32.xlu0 %v129, 96
    %v140 = vpop.permute.xlu0 %139
    %vm141 = vcmask 64512
    %v142 = vsel %vm141, %v129, 0
    %v144 = vsel %vm141, %v140, 0
    %146 = vmatpush.xpose.msra.mxu0 0.0
    %147 = vmatpush.xpose.msra.mxu0 0.0
    %148 = vmatpush.xpose.msra.mxu0 0.0
    %149 = vmatpush.xpose.msra.mxu0 0.0
    %150 = vmatpush.xpose.msra.mxu0 0.0
    %151 = vmatpush.xpose.msra.mxu0 0.0
    %152 = vmatpush.xpose.msra.mxu0 0.0
    %153 = vmatpush.xpose.msra.mxu0 0.0
    %154 = vmatpush.xpose.msra.mxu0 0.0
    %155 = vmatpush.xpose.msra.mxu0 0.0
    %156 = vmatpush.xpose.msra.mxu0 0.0
    %157 = vmatpush.xpose.msra.mxu0 0.0
    %158 = vmatpush.xpose.msra.mxu0 0.0
    %159 = vmatpush.xpose.msra.mxu0 0.0
    %160 = vmatpush.xpose.msra.mxu0 0.0
    %161 = vmatpush.xpose.msra.mxu0 %v144
    %162 = vmatmul.f32.gmra.mxu0 %v142
    %v163 = vpop.f32.mrf.mxu0
    %v164 = vadd.f32 0.0, %v163
    %165 = vdwg.mxu0
    %v166 = vmul.f32 %v164, 0.35355338
    %v168 = vperm.slane %v137, 0
    %v170 = vadd.f32 %v166, %v168
    %v171 = vsel %vm141, %v170, -inf
    %172 = vmax.xlane.f32.xlu0 %v171
    %v173 = vpop.xlane.xlu0 %172
    %v174 = vsub.f32 %v170, %v173
    %v175 = vmul.f32 %v174, 1.442695
    %v176 = vpow.pop %v175
    %v177 = vsel %vm141, %v176, 0.0
    %178 = vadd.xlane.f32.xlu0 %v177
    %v179 = vpop.xlane.xlu0 %178
    %v180 = vrcp.pop %v179
    %v181 = vmul.f32 %v176, %v180
    %182 = vrot.lane.b32.xlu0 %v129, 64
    %v183 = vpop.permute.xlu0 %182
    %v186 = vsel %vm141, %v181, 0
    %188 = vmatpush.msra.mxu0 0.0
    %189 = vmatpush.msra.mxu0 0.0
    %190 = vmatpush.msra.mxu0 0.0
    %191 = vmatpush.msra.mxu0 0.0
    %192 = vmatpush.msra.mxu0 0.0
    %193 = vmatpush.msra.mxu0 0.0
    %194 = vmatpush.msra.mxu0 0.0
    %195 = vmatpush.msra.mxu0 0.0
    %196 = vmatpush.msra.mxu0 0.0
    %197 = vmatpush.msra.mxu0 0.0
    %198 = vmatpush.msra.mxu0 0.0
    %199 = vmatpush.msra.mxu0 0.0
    %200 = vmatpush.msra.mxu0 0.0
    %201 = vmatpush.msra.mxu0 0.0
    %202 = vmatpush.msra.mxu0 0.0
    %203 = vmatpush.msra.mxu0 %v183
    %204 = vmatmul.f32.gmra.mxu0 %v186
    %v205 = vpop.f32.mrf.mxu0
    %v206 = vadd.f32 0.0, %v205
    %207 = vdwg.mxu0
    %v208 = vpack.c.bf16 %v206, %v206
    %209 = vrot.lane.b32.xlu0 %v129, 120
    %v210 = vpop.permute.xlu0 %209
    %211 = vrot.lane.b32.xlu0 %v129, 88
    %v212 = vpop.permute.xlu0 %211
    %v213 = vsel %vm141, %v210, 0
    %v215 = vsel %vm141, %v212, 0
    %217 = vmatpush.xpose.msra.mxu0 0.0
    %218 = vmatpush.xpose.msra.mxu0 0.0
    %219 = vmatpush.xpose.msra.mxu0 0.0
    %220 = vmatpush.xpose.msra.mxu0 0.0
    %221 = vmatpush.xpose.msra.mxu0 0.0
    %222 = vmatpush.xpose.msra.mxu0 0.0
    %223 = vmatpush.xpose.msra.mxu0 0.0
    %224 = vmatpush.xpose.msra.mxu0 0.0
    %225 = vmatpush.xpose.msra.mxu0 0.0
    %226 = vmatpush.xpose.msra.mxu0 0.0
    %227 = vmatpush.xpose.msra.mxu0 0.0
    %228 = vmatpush.xpose.msra.mxu0 0.0
    %229 = vmatpush.xpose.msra.mxu0 0.0
    %230 = vmatpush.xpose.msra.mxu0 0.0
    %231 = vmatpush.xpose.msra.mxu0 0.0
    %232 = vmatpush.xpose.msra.mxu0 %v215
    %233 = vmatmul.f32.gmra.mxu0 %v213
    %v234 = vpop.f32.mrf.mxu0
    %v235 = vadd.f32 0.0, %v234
    %236 = vdwg.mxu0
    %v237 = vmul.f32 %v235, 0.35355338
    %v238 = vadd.f32 %v237, %v168
    %v239 = vsel %vm141, %v238, -inf
    %240 = vmax.xlane.f32.xlu0 %v239
    %v241 = vpop.xlane.xlu0 %240
    %v242 = vsub.f32 %v238, %v241
    %v243 = vmul.f32 %v242, 1.442695
    %v244 = vpow.pop %v243
    %v245 = vsel %vm141, %v244, 0.0
    %246 = vadd.xlane.f32.xlu0 %v245
    %v247 = vpop.xlane.xlu0 %246
    %v248 = vrcp.pop %v247
    %v249 = vmul.f32 %v244, %v248
    %250 = vrot.lane.b32.xlu0 %v129, 56
    %v251 = vpop.permute.xlu0 %250
    %v254 = vsel %vm141, %v249, 0
    %256 = vmatpush.msra.mxu0 0.0
    %257 = vmatpush.msra.mxu0 0.0
    %258 = vmatpush.msra.mxu0 0.0
    %259 = vmatpush.msra.mxu0 0.0
    %260 = vmatpush.msra.mxu0 0.0
    %261 = vmatpush.msra.mxu0 0.0
    %262 = vmatpush.msra.mxu0 0.0
    %263 = vmatpush.msra.mxu0 0.0
    %264 = vmatpush.msra.mxu0 0.0
    %265 = vmatpush.msra.mxu0 0.0
    %266 = vmatpush.msra.mxu0 0.0
    %267 = vmatpush.msra.mxu0 0.0
    %268 = vmatpush.msra.mxu0 0.0
    %269 = vmatpush.msra.mxu0 0.0
    %270 = vmatpush.msra.mxu0 0.0
    %271 = vmatpush.msra.mxu0 %v251
    %272 = vmatmul.f32.gmra.mxu0 %v254
    %v273 = vpop.f32.mrf.mxu0
    %v274 = vadd.f32 0.0, %v273
    %275 = vdwg.mxu0
    %v276 = vpack.c.bf16 %v274, %v274
    %v278 = vsel %vm141, %v276, 0
    %vm280 = vcmask 1043456
    %v282 = vsel %vm280, %v134, 0
    %284 = vmatpush.bf16.msra.mxu0 0
    %285 = vmatpush.bf16.msra.mxu0 0
    %286 = vmatpush.bf16.msra.mxu0 0
    %287 = vmatpush.bf16.msra.mxu0 0
    %288 = vmatpush.bf16.msra.mxu0 0
    %289 = vmatpush.bf16.msra.mxu0 0
    %290 = vmatpush.bf16.msra.mxu0 0
    %291 = vmatpush.bf16.msra.mxu0 %v282
    %292 = vmatmul.bf16.gmra.mxu0 %v278
    %v293 = vpop.f32.mrf.mxu0
    %v294 = vadd.f32 0.0, %v293
    %v295 = vpop.f32.mrf.mxu0
    %296 = vdwg.mxu0
    %v298 = vsel %vm141, %v208, 0
    %v301 = vsel %vm280, %v133, 0
    %303 = vmatpush.bf16.msra.mxu0 0
    %304 = vmatpush.bf16.msra.mxu0 0
    %305 = vmatpush.bf16.msra.mxu0 0
    %306 = vmatpush.bf16.msra.mxu0 0
    %307 = vmatpush.bf16.msra.mxu0 0
    %308 = vmatpush.bf16.msra.mxu0 0
    %309 = vmatpush.bf16.msra.mxu0 0
    %310 = vmatpush.bf16.msra.mxu0 %v301
    %311 = vmatmul.bf16.gmra.mxu0 %v298
    %v312 = vpop.f32.mrf.mxu0
    %v313 = vadd.f32 %v294, %v312
    %v314 = vpop.f32.mrf.mxu0
    %315 = vdwg.mxu0
    %316 = vrot.lane.b32.xlu0 %v129, 112
    %v317 = vpop.permute.xlu0 %316
    %318 = vrot.lane.b32.xlu0 %v129, 80
    %v319 = vpop.permute.xlu0 %318
    %v320 = vsel %vm141, %v317, 0
    %v322 = vsel %vm141, %v319, 0
    %324 = vmatpush.xpose.msra.mxu0 0.0
    %325 = vmatpush.xpose.msra.mxu0 0.0
    %326 = vmatpush.xpose.msra.mxu0 0.0
    %327 = vmatpush.xpose.msra.mxu0 0.0
    %328 = vmatpush.xpose.msra.mxu0 0.0
    %329 = vmatpush.xpose.msra.mxu0 0.0
    %330 = vmatpush.xpose.msra.mxu0 0.0
    %331 = vmatpush.xpose.msra.mxu0 0.0
    %332 = vmatpush.xpose.msra.mxu0 0.0
    %333 = vmatpush.xpose.msra.mxu0 0.0
    %334 = vmatpush.xpose.msra.mxu0 0.0
    %335 = vmatpush.xpose.msra.mxu0 0.0
    %336 = vmatpush.xpose.msra.mxu0 0.0
    %337 = vmatpush.xpose.msra.mxu0 0.0
    %338 = vmatpush.xpose.msra.mxu0 0.0
    %339 = vmatpush.xpose.msra.mxu0 %v322
    %340 = vmatmul.f32.gmra.mxu0 %v320
    %v341 = vpop.f32.mrf.mxu0
    %v342 = vadd.f32 0.0, %v341
    %343 = vdwg.mxu0
    %v344 = vmul.f32 %v342, 0.35355338
    %v345 = vadd.f32 %v344, %v168
    %v346 = vsel %vm141, %v345, -inf
    %347 = vmax.xlane.f32.xlu0 %v346
    %v348 = vpop.xlane.xlu0 %347
    %v349 = vsub.f32 %v345, %v348
    %v350 = vmul.f32 %v349, 1.442695
    %v351 = vpow.pop %v350
    %v352 = vsel %vm141, %v351, 0.0
    %353 = vadd.xlane.f32.xlu0 %v352
    %v354 = vpop.xlane.xlu0 %353
    %v355 = vrcp.pop %v354
    %v356 = vmul.f32 %v351, %v355
    %357 = vrot.lane.b32.xlu0 %v129, 48
    %v358 = vpop.permute.xlu0 %357
    %v361 = vsel %vm141, %v356, 0
    %363 = vmatpush.msra.mxu0 0.0
    %364 = vmatpush.msra.mxu0 0.0
    %365 = vmatpush.msra.mxu0 0.0
    %366 = vmatpush.msra.mxu0 0.0
    %367 = vmatpush.msra.mxu0 0.0
    %368 = vmatpush.msra.mxu0 0.0
    %369 = vmatpush.msra.mxu0 0.0
    %370 = vmatpush.msra.mxu0 0.0
    %371 = vmatpush.msra.mxu0 0.0
    %372 = vmatpush.msra.mxu0 0.0
    %373 = vmatpush.msra.mxu0 0.0
    %374 = vmatpush.msra.mxu0 0.0
    %375 = vmatpush.msra.mxu0 0.0
    %376 = vmatpush.msra.mxu0 0.0
    %377 = vmatpush.msra.mxu0 0.0
    %378 = vmatpush.msra.mxu0 %v358
    %379 = vmatmul.f32.gmra.mxu0 %v361
    %v380 = vpop.f32.mrf.mxu0
    %v381 = vadd.f32 0.0, %v380
    %382 = vdwg.mxu0
    %v383 = vpack.c.bf16 %v381, %v381
    %v385 = vsel %vm141, %v383, 0
    %v388 = vsel %vm280, %v135, 0
    %390 = vmatpush.bf16.msra.mxu0 0
    %391 = vmatpush.bf16.msra.mxu0 0
    %392 = vmatpush.bf16.msra.mxu0 0
    %393 = vmatpush.bf16.msra.mxu0 0
    %394 = vmatpush.bf16.msra.mxu0 0
    %395 = vmatpush.bf16.msra.mxu0 0
    %396 = vmatpush.bf16.msra.mxu0 0
    %397 = vmatpush.bf16.msra.mxu0 %v388
    %398 = vmatmul.bf16.gmra.mxu0 %v385
    %v399 = vpop.f32.mrf.mxu0
    %v400 = vadd.f32 0.0, %v399
    %v401 = vpop.f32.mrf.mxu0
    %402 = vdwg.mxu0
    %v403 = vadd.f32 %v313, %v400
    %404 = vrot.lane.b32.xlu0 %v129, 104
    %v405 = vpop.permute.xlu0 %404
    %406 = vrot.lane.b32.xlu0 %v129, 72
    %v407 = vpop.permute.xlu0 %406
    %v408 = vsel %vm141, %v405, 0
    %v410 = vsel %vm141, %v407, 0
    %412 = vmatpush.xpose.msra.mxu0 0.0
    %413 = vmatpush.xpose.msra.mxu0 0.0
    %414 = vmatpush.xpose.msra.mxu0 0.0
    %415 = vmatpush.xpose.msra.mxu0 0.0
    %416 = vmatpush.xpose.msra.mxu0 0.0
    %417 = vmatpush.xpose.msra.mxu0 0.0
    %418 = vmatpush.xpose.msra.mxu0 0.0
    %419 = vmatpush.xpose.msra.mxu0 0.0
    %420 = vmatpush.xpose.msra.mxu0 0.0
    %421 = vmatpush.xpose.msra.mxu0 0.0
    %422 = vmatpush.xpose.msra.mxu0 0.0
    %423 = vmatpush.xpose.msra.mxu0 0.0
    %424 = vmatpush.xpose.msra.mxu0 0.0
    %425 = vmatpush.xpose.msra.mxu0 0.0
    %426 = vmatpush.xpose.msra.mxu0 0.0
    %427 = vmatpush.xpose.msra.mxu0 %v410
    %428 = vmatmul.f32.gmra.mxu0 %v408
    %v429 = vpop.f32.mrf.mxu0
    %v430 = vadd.f32 0.0, %v429
    %431 = vdwg.mxu0
    %v432 = vmul.f32 %v430, 0.35355338
    %v433 = vadd.f32 %v432, %v168
    %v434 = vsel %vm141, %v433, -inf
    %435 = vmax.xlane.f32.xlu0 %v434
    %v436 = vpop.xlane.xlu0 %435
    %v437 = vsub.f32 %v433, %v436
    %v438 = vmul.f32 %v437, 1.442695
    %v439 = vpow.pop %v438
    %v440 = vsel %vm141, %v439, 0.0
    %441 = vadd.xlane.f32.xlu0 %v440
    %v442 = vpop.xlane.xlu0 %441
    %v443 = vrcp.pop %v442
    %v444 = vmul.f32 %v439, %v443
    %445 = vrot.lane.b32.xlu0 %v129, 40
    %v446 = vpop.permute.xlu0 %445
    %v449 = vsel %vm141, %v444, 0
    %451 = vmatpush.msra.mxu0 0.0
    %452 = vmatpush.msra.mxu0 0.0
    %453 = vmatpush.msra.mxu0 0.0
    %454 = vmatpush.msra.mxu0 0.0
    %455 = vmatpush.msra.mxu0 0.0
    %456 = vmatpush.msra.mxu0 0.0
    %457 = vmatpush.msra.mxu0 0.0
    %458 = vmatpush.msra.mxu0 0.0
    %459 = vmatpush.msra.mxu0 0.0
    %460 = vmatpush.msra.mxu0 0.0
    %461 = vmatpush.msra.mxu0 0.0
    %462 = vmatpush.msra.mxu0 0.0
    %463 = vmatpush.msra.mxu0 0.0
    %464 = vmatpush.msra.mxu0 0.0
    %465 = vmatpush.msra.mxu0 0.0
    %466 = vmatpush.msra.mxu0 %v446
    %467 = vmatmul.f32.gmra.mxu0 %v449
    %v468 = vpop.f32.mrf.mxu0
    %v469 = vadd.f32 0.0, %v468
    %470 = vdwg.mxu0
    %v471 = vpack.c.bf16 %v469, %v469
    %v473 = vsel %vm141, %v471, 0
    %v476 = vsel %vm280, %v136, 0
    %478 = vmatpush.bf16.msra.mxu0 0
    %479 = vmatpush.bf16.msra.mxu0 0
    %480 = vmatpush.bf16.msra.mxu0 0
    %481 = vmatpush.bf16.msra.mxu0 0
    %482 = vmatpush.bf16.msra.mxu0 0
    %483 = vmatpush.bf16.msra.mxu0 0
    %484 = vmatpush.bf16.msra.mxu0 0
    %485 = vmatpush.bf16.msra.mxu0 %v476
    %486 = vmatmul.bf16.gmra.mxu0 %v473
    %v487 = vpop.f32.mrf.mxu0
    %v488 = vadd.f32 0.0, %v487
    %v489 = vpop.f32.mrf.mxu0
    %490 = vdwg.mxu0
    %v491 = vadd.f32 %v403, %v488
    %s492 = scalar_lea.vmem %s1, 1
    %v493 = vld [vmem:[%s492] sm:$0x1]
    %495 = vrot.lane.b32.xlu0 %v131, 96
    %v496 = vpop.permute.xlu0 %495
    %v497 = vsel %vm141, %v131, 0
    %v499 = vsel %vm141, %v496, 0
    %501 = vmatpush.xpose.msra.mxu0 0.0
    %502 = vmatpush.xpose.msra.mxu0 0.0
    %503 = vmatpush.xpose.msra.mxu0 0.0
    %504 = vmatpush.xpose.msra.mxu0 0.0
    %505 = vmatpush.xpose.msra.mxu0 0.0
    %506 = vmatpush.xpose.msra.mxu0 0.0
    %507 = vmatpush.xpose.msra.mxu0 0.0
    %508 = vmatpush.xpose.msra.mxu0 0.0
    %509 = vmatpush.xpose.msra.mxu0 0.0
    %510 = vmatpush.xpose.msra.mxu0 0.0
    %511 = vmatpush.xpose.msra.mxu0 0.0
    %512 = vmatpush.xpose.msra.mxu0 0.0
    %513 = vmatpush.xpose.msra.mxu0 0.0
    %514 = vmatpush.xpose.msra.mxu0 0.0
    %515 = vmatpush.xpose.msra.mxu0 0.0
    %516 = vmatpush.xpose.msra.mxu0 %v499
    %517 = vmatmul.f32.gmra.mxu0 %v497
    %v518 = vpop.f32.mrf.mxu0
    %v519 = vadd.f32 0.0, %v518
    %520 = vdwg.mxu0
    %v521 = vmul.f32 %v519, 0.35355338
    %v523 = vperm.slane %v493, 0
    %v525 = vadd.f32 %v521, %v523
    %v526 = vsel %vm141, %v525, -inf
    %527 = vmax.xlane.f32.xlu0 %v526
    %v528 = vpop.xlane.xlu0 %527
    %v529 = vsub.f32 %v525, %v528
    %v530 = vmul.f32 %v529, 1.442695
    %v531 = vpow.pop %v530
    %v532 = vsel %vm141, %v531, 0.0
    %533 = vadd.xlane.f32.xlu0 %v532
    %v534 = vpop.xlane.xlu0 %533
    %v535 = vrcp.pop %v534
    %v536 = vmul.f32 %v531, %v535
    %537 = vrot.lane.b32.xlu0 %v131, 64
    %v538 = vpop.permute.xlu0 %537
    %v541 = vsel %vm141, %v536, 0
    %543 = vmatpush.msra.mxu0 0.0
    %544 = vmatpush.msra.mxu0 0.0
    %545 = vmatpush.msra.mxu0 0.0
    %546 = vmatpush.msra.mxu0 0.0
    %547 = vmatpush.msra.mxu0 0.0
    %548 = vmatpush.msra.mxu0 0.0
    %549 = vmatpush.msra.mxu0 0.0
    %550 = vmatpush.msra.mxu0 0.0
    %551 = vmatpush.msra.mxu0 0.0
    %552 = vmatpush.msra.mxu0 0.0
    %553 = vmatpush.msra.mxu0 0.0
    %554 = vmatpush.msra.mxu0 0.0
    %555 = vmatpush.msra.mxu0 0.0
    %556 = vmatpush.msra.mxu0 0.0
    %557 = vmatpush.msra.mxu0 0.0
    %558 = vmatpush.msra.mxu0 %v538
    %559 = vmatmul.f32.gmra.mxu0 %v541
    %v560 = vpop.f32.mrf.mxu0
    %v561 = vadd.f32 0.0, %v560
    %562 = vdwg.mxu0
    %v563 = vpack.c.bf16 %v561, %v561
    %564 = vrot.lane.b32.xlu0 %v131, 120
    %v565 = vpop.permute.xlu0 %564
    %566 = vrot.lane.b32.xlu0 %v131, 88
    %v567 = vpop.permute.xlu0 %566
    %v568 = vsel %vm141, %v565, 0
    %v570 = vsel %vm141, %v567, 0
    %572 = vmatpush.xpose.msra.mxu0 0.0
    %573 = vmatpush.xpose.msra.mxu0 0.0
    %574 = vmatpush.xpose.msra.mxu0 0.0
    %575 = vmatpush.xpose.msra.mxu0 0.0
    %576 = vmatpush.xpose.msra.mxu0 0.0
    %577 = vmatpush.xpose.msra.mxu0 0.0
    %578 = vmatpush.xpose.msra.mxu0 0.0
    %579 = vmatpush.xpose.msra.mxu0 0.0
    %580 = vmatpush.xpose.msra.mxu0 0.0
    %581 = vmatpush.xpose.msra.mxu0 0.0
    %582 = vmatpush.xpose.msra.mxu0 0.0
    %583 = vmatpush.xpose.msra.mxu0 0.0
    %584 = vmatpush.xpose.msra.mxu0 0.0
    %585 = vmatpush.xpose.msra.mxu0 0.0
    %586 = vmatpush.xpose.msra.mxu0 0.0
    %587 = vmatpush.xpose.msra.mxu0 %v570
    %588 = vmatmul.f32.gmra.mxu0 %v568
    %v589 = vpop.f32.mrf.mxu0
    %v590 = vadd.f32 0.0, %v589
    %591 = vdwg.mxu0
    %v592 = vmul.f32 %v590, 0.35355338
    %v593 = vadd.f32 %v592, %v523
    %v594 = vsel %vm141, %v593, -inf
    %595 = vmax.xlane.f32.xlu0 %v594
    %v596 = vpop.xlane.xlu0 %595
    %v597 = vsub.f32 %v593, %v596
    %v598 = vmul.f32 %v597, 1.442695
    %v599 = vpow.pop %v598
    %v600 = vsel %vm141, %v599, 0.0
    %601 = vadd.xlane.f32.xlu0 %v600
    %v602 = vpop.xlane.xlu0 %601
    %v603 = vrcp.pop %v602
    %v604 = vmul.f32 %v599, %v603
    %605 = vrot.lane.b32.xlu0 %v131, 56
    %v606 = vpop.permute.xlu0 %605
    %v609 = vsel %vm141, %v604, 0
    %611 = vmatpush.msra.mxu0 0.0
    %612 = vmatpush.msra.mxu0 0.0
    %613 = vmatpush.msra.mxu0 0.0
    %614 = vmatpush.msra.mxu0 0.0
    %615 = vmatpush.msra.mxu0 0.0
    %616 = vmatpush.msra.mxu0 0.0
    %617 = vmatpush.msra.mxu0 0.0
    %618 = vmatpush.msra.mxu0 0.0
    %619 = vmatpush.msra.mxu0 0.0
    %620 = vmatpush.msra.mxu0 0.0
    %621 = vmatpush.msra.mxu0 0.0
    %622 = vmatpush.msra.mxu0 0.0
    %623 = vmatpush.msra.mxu0 0.0
    %624 = vmatpush.msra.mxu0 0.0
    %625 = vmatpush.msra.mxu0 0.0
    %626 = vmatpush.msra.mxu0 %v606
    %627 = vmatmul.f32.gmra.mxu0 %v609
    %v628 = vpop.f32.mrf.mxu0
    %v629 = vadd.f32 0.0, %v628
    %630 = vdwg.mxu0
    %v631 = vpack.c.bf16 %v629, %v629
    %v633 = vsel %vm141, %v631, 0
    %635 = vmatpush.bf16.msra.mxu0 0
    %636 = vmatpush.bf16.msra.mxu0 0
    %637 = vmatpush.bf16.msra.mxu0 0
    %638 = vmatpush.bf16.msra.mxu0 0
    %639 = vmatpush.bf16.msra.mxu0 0
    %640 = vmatpush.bf16.msra.mxu0 0
    %641 = vmatpush.bf16.msra.mxu0 0
    %642 = vmatpush.bf16.msra.mxu0 %v282
    %643 = vmatmul.bf16.gmra.mxu0 %v633
    %v644 = vpop.f32.mrf.mxu0
    %v645 = vadd.f32 0.0, %v644
    %v646 = vpop.f32.mrf.mxu0
    %647 = vdwg.mxu0
    %v649 = vsel %vm141, %v563, 0
    %651 = vmatpush.bf16.msra.mxu0 0
    %652 = vmatpush.bf16.msra.mxu0 0
    %653 = vmatpush.bf16.msra.mxu0 0
    %654 = vmatpush.bf16.msra.mxu0 0
    %655 = vmatpush.bf16.msra.mxu0 0
    %656 = vmatpush.bf16.msra.mxu0 0
    %657 = vmatpush.bf16.msra.mxu0 0
    %658 = vmatpush.bf16.msra.mxu0 %v301
    %659 = vmatmul.bf16.gmra.mxu0 %v649
    %v660 = vpop.f32.mrf.mxu0
    %v661 = vadd.f32 %v645, %v660
    %v662 = vpop.f32.mrf.mxu0
    %663 = vdwg.mxu0
    %664 = vrot.lane.b32.xlu0 %v131, 112
    %v665 = vpop.permute.xlu0 %664
    %666 = vrot.lane.b32.xlu0 %v131, 80
    %v667 = vpop.permute.xlu0 %666
    %v668 = vsel %vm141, %v665, 0
    %v670 = vsel %vm141, %v667, 0
    %672 = vmatpush.xpose.msra.mxu0 0.0
    %673 = vmatpush.xpose.msra.mxu0 0.0
    %674 = vmatpush.xpose.msra.mxu0 0.0
    %675 = vmatpush.xpose.msra.mxu0 0.0
    %676 = vmatpush.xpose.msra.mxu0 0.0
    %677 = vmatpush.xpose.msra.mxu0 0.0
    %678 = vmatpush.xpose.msra.mxu0 0.0
    %679 = vmatpush.xpose.msra.mxu0 0.0
    %680 = vmatpush.xpose.msra.mxu0 0.0
    %681 = vmatpush.xpose.msra.mxu0 0.0
    %682 = vmatpush.xpose.msra.mxu0 0.0
    %683 = vmatpush.xpose.msra.mxu0 0.0
    %684 = vmatpush.xpose.msra.mxu0 0.0
    %685 = vmatpush.xpose.msra.mxu0 0.0
    %686 = vmatpush.xpose.msra.mxu0 0.0
    %687 = vmatpush.xpose.msra.mxu0 %v670
    %688 = vmatmul.f32.gmra.mxu0 %v668
    %v689 = vpop.f32.mrf.mxu0
    %v690 = vadd.f32 0.0, %v689
    %691 = vdwg.mxu0
    %v692 = vmul.f32 %v690, 0.35355338
    %v693 = vadd.f32 %v692, %v523
    %v694 = vsel %vm141, %v693, -inf
    %695 = vmax.xlane.f32.xlu0 %v694
    %v696 = vpop.xlane.xlu0 %695
    %v697 = vsub.f32 %v693, %v696
    %v698 = vmul.f32 %v697, 1.442695
    %v699 = vpow.pop %v698
    %v700 = vsel %vm141, %v699, 0.0
    %701 = vadd.xlane.f32.xlu0 %v700
    %v702 = vpop.xlane.xlu0 %701
    %v703 = vrcp.pop %v702
    %v704 = vmul.f32 %v699, %v703
    %705 = vrot.lane.b32.xlu0 %v131, 48
    %v706 = vpop.permute.xlu0 %705
    %v709 = vsel %vm141, %v704, 0
    %711 = vmatpush.msra.mxu0 0.0
    %712 = vmatpush.msra.mxu0 0.0
    %713 = vmatpush.msra.mxu0 0.0
    %714 = vmatpush.msra.mxu0 0.0
    %715 = vmatpush.msra.mxu0 0.0
    %716 = vmatpush.msra.mxu0 0.0
    %717 = vmatpush.msra.mxu0 0.0
    %718 = vmatpush.msra.mxu0 0.0
    %719 = vmatpush.msra.mxu0 0.0
    %720 = vmatpush.msra.mxu0 0.0
    %721 = vmatpush.msra.mxu0 0.0
    %722 = vmatpush.msra.mxu0 0.0
    %723 = vmatpush.msra.mxu0 0.0
    %724 = vmatpush.msra.mxu0 0.0
    %725 = vmatpush.msra.mxu0 0.0
    %726 = vmatpush.msra.mxu0 %v706
    %727 = vmatmul.f32.gmra.mxu0 %v709
    %v728 = vpop.f32.mrf.mxu0
    %v729 = vadd.f32 0.0, %v728
    %730 = vdwg.mxu0
    %v731 = vpack.c.bf16 %v729, %v729
    %v733 = vsel %vm141, %v731, 0
    %735 = vmatpush.bf16.msra.mxu0 0
    %736 = vmatpush.bf16.msra.mxu0 0
    %737 = vmatpush.bf16.msra.mxu0 0
    %738 = vmatpush.bf16.msra.mxu0 0
    %739 = vmatpush.bf16.msra.mxu0 0
    %740 = vmatpush.bf16.msra.mxu0 0
    %741 = vmatpush.bf16.msra.mxu0 0
    %742 = vmatpush.bf16.msra.mxu0 %v388
    %743 = vmatmul.bf16.gmra.mxu0 %v733
    %v744 = vpop.f32.mrf.mxu0
    %v745 = vadd.f32 0.0, %v744
    %v746 = vpop.f32.mrf.mxu0
    %747 = vdwg.mxu0
    %v748 = vadd.f32 %v661, %v745
    %749 = vrot.lane.b32.xlu0 %v131, 104
    %v750 = vpop.permute.xlu0 %749
    %751 = vrot.lane.b32.xlu0 %v131, 72
    %v752 = vpop.permute.xlu0 %751
    %v753 = vsel %vm141, %v750, 0
    %v755 = vsel %vm141, %v752, 0
    %757 = vmatpush.xpose.msra.mxu0 0.0
    %758 = vmatpush.xpose.msra.mxu0 0.0
    %759 = vmatpush.xpose.msra.mxu0 0.0
    %760 = vmatpush.xpose.msra.mxu0 0.0
    %761 = vmatpush.xpose.msra.mxu0 0.0
    %762 = vmatpush.xpose.msra.mxu0 0.0
    %763 = vmatpush.xpose.msra.mxu0 0.0
    %764 = vmatpush.xpose.msra.mxu0 0.0
    %765 = vmatpush.xpose.msra.mxu0 0.0
    %766 = vmatpush.xpose.msra.mxu0 0.0
    %767 = vmatpush.xpose.msra.mxu0 0.0
    %768 = vmatpush.xpose.msra.mxu0 0.0
    %769 = vmatpush.xpose.msra.mxu0 0.0
    %770 = vmatpush.xpose.msra.mxu0 0.0
    %771 = vmatpush.xpose.msra.mxu0 0.0
    %772 = vmatpush.xpose.msra.mxu0 %v755
    %773 = vmatmul.f32.gmra.mxu0 %v753
    %v774 = vpop.f32.mrf.mxu0
    %v775 = vadd.f32 0.0, %v774
    %776 = vdwg.mxu0
    %v777 = vmul.f32 %v775, 0.35355338
    %v778 = vadd.f32 %v777, %v523
    %v779 = vsel %vm141, %v778, -inf
    %780 = vmax.xlane.f32.xlu0 %v779
    %v781 = vpop.xlane.xlu0 %780
    %v782 = vsub.f32 %v778, %v781
    %v783 = vmul.f32 %v782, 1.442695
    %v784 = vpow.pop %v783
    %v785 = vsel %vm141, %v784, 0.0
    %786 = vadd.xlane.f32.xlu0 %v785
    %v787 = vpop.xlane.xlu0 %786
    %v788 = vrcp.pop %v787
    %v789 = vmul.f32 %v784, %v788
    %790 = vrot.lane.b32.xlu0 %v131, 40
    %v791 = vpop.permute.xlu0 %790
    %v794 = vsel %vm141, %v789, 0
    %796 = vmatpush.msra.mxu0 0.0
    %797 = vmatpush.msra.mxu0 0.0
    %798 = vmatpush.msra.mxu0 0.0
    %799 = vmatpush.msra.mxu0 0.0
    %800 = vmatpush.msra.mxu0 0.0
    %801 = vmatpush.msra.mxu0 0.0
    %802 = vmatpush.msra.mxu0 0.0
    %803 = vmatpush.msra.mxu0 0.0
    %804 = vmatpush.msra.mxu0 0.0
    %805 = vmatpush.msra.mxu0 0.0
    %806 = vmatpush.msra.mxu0 0.0
    %807 = vmatpush.msra.mxu0 0.0
    %808 = vmatpush.msra.mxu0 0.0
    %809 = vmatpush.msra.mxu0 0.0
    %810 = vmatpush.msra.mxu0 0.0
    %811 = vmatpush.msra.mxu0 %v791
    %812 = vmatmul.f32.gmra.mxu0 %v794
    %v813 = vpop.f32.mrf.mxu0
    %v814 = vadd.f32 0.0, %v813
    %815 = vdwg.mxu0
    %v816 = vpack.c.bf16 %v814, %v814
    %v818 = vsel %vm141, %v816, 0
    %820 = vmatpush.bf16.msra.mxu0 0
    %821 = vmatpush.bf16.msra.mxu0 0
    %822 = vmatpush.bf16.msra.mxu0 0
    %823 = vmatpush.bf16.msra.mxu0 0
    %824 = vmatpush.bf16.msra.mxu0 0
    %825 = vmatpush.bf16.msra.mxu0 0
    %826 = vmatpush.bf16.msra.mxu0 0
    %827 = vmatpush.bf16.msra.mxu0 %v476
    %828 = vmatmul.bf16.gmra.mxu0 %v818
    %v829 = vpop.f32.mrf.mxu0
    %v830 = vadd.f32 0.0, %v829
    %v831 = vpop.f32.mrf.mxu0
    %832 = vdwg.mxu0
    %v833 = vadd.f32 %v748, %v830
    %v834 = vld [vmem:[%s5] sm:$0x1]
    %v836 = vperm.slane %v834, 0
    %v838 = vadd.f32 %v491, %v836
    %v839 = vadd.f32 %v833, %v836
    %v840 = vadd.f32 %v88, %v838
    %v841 = vadd.f32 %v89, %v839
    %v842 = vld [vmem:[%s10] sm:$0x1]
    %v843 = vld [vmem:[%s11] sm:$0x1]
    %v844 = vsel %vm115, %v840, 0.0
    %845 = vadd.xlane.f32.xlu0 %v844
    %v846 = vpop.xlane.xlu0 %845
    %v847 = vsel %vm115, %v841, 0.0
    %848 = vadd.xlane.f32.xlu0 %v847
    %v849 = vpop.xlane.xlu0 %848
    %v850 = vrcp.pop 32.0
    %v851 = vmul.f32 32.0, %v850
    %v852 = vsub.f32 1.0, %v851
    %v853 = vmul.f32 %v850, %v852
    %v854 = vadd.f32 %v850, %v853
    %vm855 = vweird.f32 %v850
    %v856 = vsel %vm855, %v850, %v854
    %v857 = vmul.f32 %v846, %v856
    %v858 = vmul.f32 %v849, %v856
    %v859 = vsub.f32 %v840, %v857
    %v860 = vsub.f32 %v841, %v858
    %v861 = vmul.f32 %v859, %v859
    %v862 = vmul.f32 %v860, %v860
    %v863 = vsel %vm115, %v861, 0.0
    %864 = vadd.xlane.f32.xlu0 %v863
    %v865 = vpop.xlane.xlu0 %864
    %v866 = vsel %vm115, %v862, 0.0
    %867 = vadd.xlane.f32.xlu0 %v866
    %v868 = vpop.xlane.xlu0 %867
    %v869 = vmul.f32 %v865, %v856
    %v870 = vmul.f32 %v868, %v856
    %v871 = vadd.f32 %v869, 1e-05
    %v872 = vadd.f32 %v870, 1e-05
    %v873 = vrsqrt.pop %v871
    %v874 = vmul.f32 %v873, %v871
    %v875 = vmul.f32 %v874, %v873
    %v876 = vmul.f32 0.5, %v875
    %v877 = vsub.f32 1.5, %v876
    %v878 = vmul.f32 %v873, %v877
    %vm879 = vweird.f32 %v871
    %vm880 = vweird.f32 %v873
    %vm881 = vmor %vm879, %vm880
    %v882 = vsel %vm881, %v873, %v878
    %v883 = vrsqrt.pop %v872
    %v884 = vmul.f32 %v883, %v872
    %v885 = vmul.f32 %v884, %v883
    %v886 = vmul.f32 0.5, %v885
    %v887 = vsub.f32 1.5, %v886
    %v888 = vmul.f32 %v883, %v887
    %vm889 = vweird.f32 %v872
    %vm890 = vweird.f32 %v883
    %vm891 = vmor %vm889, %vm890
    %v892 = vsel %vm891, %v883, %v888
    %v893 = vmul.f32 %v859, %v882
    %v894 = vmul.f32 %v860, %v892
    %v896 = vperm.slane %v842, 0
    %v898 = vmul.f32 %v893, %v896
    %v899 = vmul.f32 %v894, %v896
    %v901 = vperm.slane %v843, 0
    %v903 = vadd.f32 %v898, %v901
    %v904 = vadd.f32 %v899, %v901
    %v905 = vld [vmem:[#allocation4] sm:$0xf]
    %v906 = vld [vmem:[#allocation4 + $0x4] sm:$0xf]
    %v907 = vld [vmem:[#allocation4 + $0x8] sm:$0xf]
    %v908 = vld [vmem:[#allocation4 + $0xc] sm:$0xf]
    %v909 = vpack.c.bf16 %v904, %v903
    %v910 = vld [vmem:[%s7] sm:$0x1]
    %v912 = vperm.slane %v910, 0
    %v918 = vunpack.c.l.b16 %v905
    %v919 = vunpack.c.l.b16 %v906
    %v920 = vunpack.c.l.b16 %v907
    %v921 = vunpack.c.l.b16 %v908
    %v922 = vpack.c.b16 %v919, %v918
    %v923 = vpack.c.b16 %v921, %v920
    %v927 = vsel %vm115, %v909, 0
    %929 = vmatpush.bf16.msra.mxu0 0
    %930 = vmatpush.bf16.msra.mxu0 0
    %931 = vmatpush.bf16.msra.mxu0 0
    %932 = vmatpush.bf16.msra.mxu0 0
    %933 = vmatpush.bf16.msra.mxu0 0
    %934 = vmatpush.bf16.msra.mxu0 0
    %935 = vmatpush.bf16.msra.mxu0 %v923
    %936 = vmatpush.bf16.msra.mxu0 %v922
    %937 = vmatmul.bf16.gmra.mxu0 %v927
    %v938 = vpop.f32.mrf.mxu0
    %v939 = vadd.f32 %v912, %v938
    %v940 = vpop.f32.mrf.mxu0
    %v941 = vadd.f32 %v912, %v940
    %942 = vdwg.mxu0
    %v943 = vmax.f32 %v939, 0.0
    %v944 = vmax.f32 %v941, 0.0
    %v945 = vld [vmem:[%s8] sm:$0xf]
    %v946 = vld [vmem:[%s8 + $0x4] sm:$0xf]
    %v947 = vld [vmem:[%s8 + $0x8] sm:$0xf]
    %v948 = vld [vmem:[%s8 + $0xc] sm:$0xf]
    %v949 = vld [vmem:[%s8 + $0x10] sm:$0xf]
    %v950 = vld [vmem:[%s8 + $0x14] sm:$0xf]
    %v951 = vld [vmem:[%s8 + $0x18] sm:$0xf]
    %v952 = vld [vmem:[%s8 + $0x1c] sm:$0xf]
    %v953 = vpack.c.bf16 %v944, %v943
    %v954 = vld [vmem:[%s9] sm:$0x1]
    %v956 = vperm.slane %v954, 0
    %v966 = vunpack.c.l.b16 %v945
    %v967 = vunpack.c.l.b16 %v946
    %v968 = vunpack.c.l.b16 %v947
    %v969 = vunpack.c.l.b16 %v948
    %v970 = vunpack.c.l.b16 %v949
    %v971 = vunpack.c.l.b16 %v950
    %v972 = vunpack.c.l.b16 %v951
    %v973 = vunpack.c.l.b16 %v952
    %v974 = vpack.c.b16 %v967, %v966
    %v975 = vpack.c.b16 %v969, %v968
    %v976 = vpack.c.b16 %v971, %v970
    %v977 = vpack.c.b16 %v973, %v972
    %vm982 = vcmask 523264
    %v984 = vsel %vm982, %v953, 0
    %986 = vmatpush.bf16.msra.mxu0 0
    %987 = vmatpush.bf16.msra.mxu0 0
    %988 = vmatpush.bf16.msra.mxu0 0
    %989 = vmatpush.bf16.msra.mxu0 0
    %990 = vmatpush.bf16.msra.mxu0 %v977
    %991 = vmatpush.bf16.msra.mxu0 %v976
    %992 = vmatpush.bf16.msra.mxu0 %v975
    %993 = vmatpush.bf16.msra.mxu0 %v974
    %994 = vmatmul.bf16.gmra.mxu0 %v984
    %v995 = vpop.f32.mrf.mxu0
    %v996 = vadd.f32 %v956, %v995
    %v997 = vpop.f32.mrf.mxu0
    %v998 = vadd.f32 %v956, %v997
    %999 = vdwg.mxu0
    %v1000 = vadd.f32 %v903, %v996
    %v1001 = vadd.f32 %v904, %v998
    %v1002 = vld [vmem:[%s12] sm:$0x1]
    %v1003 = vld [vmem:[%s13] sm:$0x1]
    %v1004 = vsel %vm115, %v1000, 0.0
    %1005 = vadd.xlane.f32.xlu0 %v1004
    %v1006 = vpop.xlane.xlu0 %1005
    %v1007 = vsel %vm115, %v1001, 0.0
    %1008 = vadd.xlane.f32.xlu0 %v1007
    %v1009 = vpop.xlane.xlu0 %1008
    %v1010 = vmul.f32 %v1006, %v856
    %v1011 = vmul.f32 %v1009, %v856
    %v1012 = vsub.f32 %v1000, %v1010
    %v1013 = vsub.f32 %v1001, %v1011
    %v1014 = vmul.f32 %v1012, %v1012
    %v1015 = vmul.f32 %v1013, %v1013
    %v1016 = vsel %vm115, %v1014, 0.0
    %1017 = vadd.xlane.f32.xlu0 %v1016
    %v1018 = vpop.xlane.xlu0 %1017
    %v1019 = vsel %vm115, %v1015, 0.0
    %1020 = vadd.xlane.f32.xlu0 %v1019
    %v1021 = vpop.xlane.xlu0 %1020
    %v1022 = vmul.f32 %v1018, %v856
    %v1023 = vmul.f32 %v1021, %v856
    %v1024 = vadd.f32 %v1022, 1e-05
    %v1025 = vadd.f32 %v1023, 1e-05
    %v1026 = vrsqrt.pop %v1024
    %v1027 = vmul.f32 %v1026, %v1024
    %v1028 = vmul.f32 %v1027, %v1026
    %v1029 = vmul.f32 0.5, %v1028
    %v1030 = vsub.f32 1.5, %v1029
    %v1031 = vmul.f32 %v1026, %v1030
    %vm1032 = vweird.f32 %v1024
    %vm1033 = vweird.f32 %v1026
    %vm1034 = vmor %vm1032, %vm1033
    %v1035 = vsel %vm1034, %v1026, %v1031
    %v1036 = vrsqrt.pop %v1025
    %v1037 = vmul.f32 %v1036, %v1025
    %v1038 = vmul.f32 %v1037, %v1036
    %v1039 = vmul.f32 0.5, %v1038
    %v1040 = vsub.f32 1.5, %v1039
    %v1041 = vmul.f32 %v1036, %v1040
    %vm1042 = vweird.f32 %v1025
    %vm1043 = vweird.f32 %v1036
    %vm1044 = vmor %vm1042, %vm1043
    %v1045 = vsel %vm1044, %v1036, %v1041
    %v1046 = vmul.f32 %v1012, %v1035
    %v1047 = vmul.f32 %v1013, %v1045
    %v1049 = vperm.slane %v1002, 0
    %v1051 = vmul.f32 %v1046, %v1049
    %v1052 = vmul.f32 %v1047, %v1049
    %v1054 = vperm.slane %v1003, 0
    %v1056 = vadd.f32 %v1051, %v1054
    %v1057 = vadd.f32 %v1052, %v1054
    %v1058 = vld [vmem:[%s14] sm:$0x1]
    %v1059 = vld [vmem:[%s15] sm:$0x1]
    %v1060 = vsel %vm115, %v1056, 0.0
    %1061 = vadd.xlane.f32.xlu0 %v1060
    %v1062 = vpop.xlane.xlu0 %1061
    %v1063 = vsel %vm115, %v1057, 0.0
    %1064 = vadd.xlane.f32.xlu0 %v1063
    %v1065 = vpop.xlane.xlu0 %1064
    %v1066 = vmul.f32 %v1062, %v856
    %v1067 = vmul.f32 %v1065, %v856
    %v1068 = vsub.f32 %v1056, %v1066
    %v1069 = vsub.f32 %v1057, %v1067
    %v1070 = vmul.f32 %v1068, %v1068
    %v1071 = vmul.f32 %v1069, %v1069
    %v1072 = vsel %vm115, %v1070, 0.0
    %1073 = vadd.xlane.f32.xlu0 %v1072
    %v1074 = vpop.xlane.xlu0 %1073
    %v1075 = vsel %vm115, %v1071, 0.0
    %1076 = vadd.xlane.f32.xlu0 %v1075
    %v1077 = vpop.xlane.xlu0 %1076
    %v1078 = vmul.f32 %v1074, %v856
    %v1079 = vmul.f32 %v1077, %v856
    %v1080 = vadd.f32 %v1078, 1e-05
    %v1081 = vadd.f32 %v1079, 1e-05
    %v1082 = vrsqrt.pop %v1080
    %v1083 = vmul.f32 %v1082, %v1080
    %v1084 = vmul.f32 %v1083, %v1082
    %v1085 = vmul.f32 0.5, %v1084
    %v1086 = vsub.f32 1.5, %v1085
    %v1087 = vmul.f32 %v1082, %v1086
    %vm1088 = vweird.f32 %v1080
    %vm1089 = vweird.f32 %v1082
    %vm1090 = vmor %vm1088, %vm1089
    %v1091 = vsel %vm1090, %v1082, %v1087
    %v1092 = vrsqrt.pop %v1081
    %v1093 = vmul.f32 %v1092, %v1081
    %v1094 = vmul.f32 %v1093, %v1092
    %v1095 = vmul.f32 0.5, %v1094
    %v1096 = vsub.f32 1.5, %v1095
    %v1097 = vmul.f32 %v1092, %v1096
    %vm1098 = vweird.f32 %v1081
    %vm1099 = vweird.f32 %v1092
    %vm1100 = vmor %vm1098, %vm1099
    %v1101 = vsel %vm1100, %v1092, %v1097
    %v1102 = vmul.f32 %v1068, %v1091
    %v1103 = vmul.f32 %v1069, %v1101
    %v1105 = vperm.slane %v1058, 0
    %v1107 = vmul.f32 %v1102, %v1105
    %v1108 = vmul.f32 %v1103, %v1105
    %v1110 = vperm.slane %v1059, 0
    %v1112 = vadd.f32 %v1107, %v1110
    %v1113 = vadd.f32 %v1108, %v1110
    %v1114 = vpack.c.bf16 %v1112, %v1112
    %v1115 = vpack.c.bf16 %v1113, %v1113
    %vm1116 = vcmask 257024
    %1117 = vst.msk [vmem:[%s16] sm:$0xf] %vm1116, %v1114
    %1118 = vst.msk [vmem:[%s16 + $0x4] sm:$0xf] %vm1116, %v1115
    // Predicated region
    $region74: #{a_call__.6} parent=1 // pred_check
      _
    $region75: #{a_call__.6} parent=1 // pred_check_branch
      %1120 = sbr.rel (0) target = $region77
    $region76: #{a_call__.6} parent=1 // pred_region
      _
    $region77: #{a_call__.6} parent=1 // pred_fallthru
      _
    // Predicated region
    $region78: #{a_call__.6} parent=1 // pred_check
      _
    $region79: #{a_call__.6} parent=1 // pred_check_branch
      %1122 = sbr.rel (0) target = $region81
    $region80: #{a_call__.6} parent=1 // pred_region
      _
    $region81: #{a_call__.6} parent=1 // pred_fallthru
      _
    %1123 = vsyncpa [#allocation3], 1
    %1124 = vsyncpa [#allocation5], 1

// kernel: a_call__.5
$region0: #{a_call__.5}
  #allocation0 [shape = 'u32[]', space=smem, size = 0x4, offset = 0x4, fixed_abs, tag = 'smem constant byte address 0x4 - core index']
  #allocation1 [shape = 'u32[72,128]{1,0:T(1,128)}', space=vmem, size = 0x9000, scoped, tag = 'internal scratch']
  %s0 = inlined_call_operand.vmem [shape: bf16[16,32], index: 0, kind: input, shape index: {}]
  %s1 = inlined_call_operand.vmem [shape: f32[2,1,8], index: 1, kind: input, shape index: {}]
  %s2 = inlined_call_operand.vmem [shape: bf16[32,96], index: 2, kind: input, shape index: {}]
  %s3 = inlined_call_operand.vmem [shape: f32[1,96], index: 3, kind: input, shape index: {}]
  %s4 = inlined_call_operand.hbm [shape: bf16[32,32], index: 4, kind: input, shape index: {}]
  %s5 = inlined_call_operand.vmem [shape: f32[1,32], index: 5, kind: input, shape index: {}, may-alias: {5,9,11,13,15}]
  %s6 = inlined_call_operand.hbm [shape: bf16[32,64], index: 6, kind: input, shape index: {}]
  %s7 = inlined_call_operand.vmem [shape: f32[1,64], index: 7, kind: input, shape index: {}]
  %s8 = inlined_call_operand.vmem [shape: bf16[64,32], index: 8, kind: input, shape index: {}]
  %s9 = inlined_call_operand.vmem [shape: f32[1,32], index: 9, kind: input, shape index: {}, may-alias: {5,9,11,13,15}]
  %s10 = inlined_call_operand.vmem [shape: f32[1,32], index: 10, kind: input, shape index: {}, may-alias: {10,12,14}]
  %s11 = inlined_call_operand.vmem [shape: f32[1,32], index: 11, kind: input, shape index: {}, may-alias: {5,9,11,13,15}]
  %s12 = inlined_call_operand.vmem [shape: f32[1,32], index: 12, kind: input, shape index: {}, may-alias: {10,12,14}]
  %s13 = inlined_call_operand.vmem [shape: f32[1,32], index: 13, kind: input, shape index: {}, may-alias: {5,9,11,13,15}]
  %s14 = inlined_call_operand.vmem [shape: f32[1,32], index: 14, kind: input, shape index: {}, may-alias: {10,12,14}]
  %s15 = inlined_call_operand.vmem [shape: f32[1,32], index: 15, kind: input, shape index: {}, may-alias: {5,9,11,13,15}]
  %s16 = inlined_call_operand.vmem [shape: bf16[16,32], index: 16, kind: output, shape index: {}]
  %s17 = sld [smem:[#allocation0]]
  $region82: #{a_call__.5} parent=0
    _
  %s19 = ssub.s32 1, %s17
  %s20 = scalar_select 0, %s19, %s17
  $region1: #{a_call__.5} parent=0
    #allocation2 [shape = 'u8[8192]{0}', space=vmem, size = 0x2000, scoped, tag = 'input window, operand 4, single buffered']
    #allocation3 [shape = 's32[1]{0}', space=sflag, size = 0x4, scoped, tag = 'scoped memory for a_call__.5']
    #allocation4 [shape = 'u8[8192]{0}', space=vmem, size = 0x2000, scoped, tag = 'input window, operand 6, single buffered']
    #allocation5 [shape = 's32[1]{0}', space=sflag, size = 0x4, scoped, tag = 'scoped memory for a_call__.5']
    %21 = vsyncpa [#allocation3], 0
    %22 = vsyncpa [#allocation5], 0
    // Predicated region
    $region2: #{a_call__.5} parent=1 // pred_check
      _
    $region3: #{a_call__.5} parent=1 // pred_check_branch
      %24 = sbr.rel (0) target = $region5
    $region4: #{a_call__.5} parent=1 // pred_region
      _
    $region5: #{a_call__.5} parent=1 // pred_fallthru
      _
    // Predicated region
    $region6: #{a_call__.5} parent=1 // pred_check
      _
    $region7: #{a_call__.5} parent=1 // pred_check_branch
      %26 = sbr.rel (0) target = $region9
    $region8: #{a_call__.5} parent=1 // pred_region
      _
    $region9: #{a_call__.5} parent=1 // pred_fallthru
      _
    // Predicated region
    $region10: #{a_call__.5} parent=1 // pred_check
      _
    $region11: #{a_call__.5} parent=1 // pred_check_branch
      %28 = sbr.rel (0) target = $region13
    $region12: #{a_call__.5} parent=1 // pred_region
      _
    $region13: #{a_call__.5} parent=1 // pred_fallthru
      _
    // Predicated region
    $region14: #{a_call__.5} parent=1 // pred_check
      _
    $region15: #{a_call__.5} parent=1 // pred_check_branch
      %30 = sbr.rel (0) target = $region17
    $region16: #{a_call__.5} parent=1 // pred_region
      _
    $region17: #{a_call__.5} parent=1 // pred_fallthru
      _
    // Predicated region
    $region18: #{a_call__.5} parent=1 // pred_check
      _
    $region19: #{a_call__.5} parent=1 // pred_check_branch
      %32 = sbr.rel (0) target = $region21
    $region20: #{a_call__.5} parent=1 // pred_region
      %34 = vsyncadd [#allocation3], 0
      %s35 = sshll.u32 %s4, 4
      %s36 = int_to_ptr.hbm [resolvable:$true] %s35
      %s37 = sshll.u32 [#allocation2], 4
      %s38 = int_to_ptr.vmem [resolvable:$true] %s37
      %43 = dma.hbm_to_vmem [thread:$0]  %s36, 256, %s38, [#allocation3], 64, 64, 4
    $region21: #{a_call__.5} parent=1 // pred_fallthru
      _
    // Predicated region
    $region22: #{a_call__.5} parent=1 // pred_check
      _
    $region23: #{a_call__.5} parent=1 // pred_check_branch
      %45 = sbr.rel (0) target = $region25
    $region24: #{a_call__.5} parent=1 // pred_region
      _
    $region25: #{a_call__.5} parent=1 // pred_fallthru
      _
    // Predicated region
    $region26: #{a_call__.5} parent=1 // pred_check
      _
    $region27: #{a_call__.5} parent=1 // pred_check_branch
      %47 = sbr.rel (0) target = $region29
    $region28: #{a_call__.5} parent=1 // pred_region
      %49 = vsyncadd [#allocation5], 0
      %s50 = sshll.u32 %s6, 4
      %s51 = int_to_ptr.hbm [resolvable:$true] %s50
      %s52 = sshll.u32 [#allocation4], 4
      %s53 = int_to_ptr.vmem [resolvable:$true] %s52
      %58 = dma.hbm_to_vmem [thread:$0]  %s51, 256, %s53, [#allocation5], 64, 64, 4
    $region29: #{a_call__.5} parent=1 // pred_fallthru
      _
    // Predicated region
    $region30: #{a_call__.5} parent=1 // pred_check
      _
    $region31: #{a_call__.5} parent=1 // pred_check_branch
      %60 = sbr.rel (0) target = $region33
    $region32: #{a_call__.5} parent=1 // pred_region
      _
    $region33: #{a_call__.5} parent=1 // pred_fallthru
      _
    // Predicated region
    $region34: #{a_call__.5} parent=1 // pred_check
      _
    $region35: #{a_call__.5} parent=1 // pred_check_branch
      %62 = sbr.rel (0) target = $region37
    $region36: #{a_call__.5} parent=1 // pred_region
      _
    $region37: #{a_call__.5} parent=1 // pred_fallthru
      _
    // Predicated region
    $region38: #{a_call__.5} parent=1 // pred_check
      _
    $region39: #{a_call__.5} parent=1 // pred_check_branch
      %64 = sbr.rel (0) target = $region41
    $region40: #{a_call__.5} parent=1 // pred_region
      _
    $region41: #{a_call__.5} parent=1 // pred_fallthru
      _
    // Predicated region
    $region42: #{a_call__.5} parent=1 // pred_check
      _
    $region43: #{a_call__.5} parent=1 // pred_check_branch
      %66 = sbr.rel (0) target = $region45
    $region44: #{a_call__.5} parent=1 // pred_region
      _
    $region45: #{a_call__.5} parent=1 // pred_fallthru
      _
    // Predicated region
    $region46: #{a_call__.5} parent=1 // pred_check
      _
    $region47: #{a_call__.5} parent=1 // pred_check_branch
      %68 = sbr.rel (0) target = $region49
    $region48: #{a_call__.5} parent=1 // pred_region
      _
    $region49: #{a_call__.5} parent=1 // pred_fallthru
      _
    // Predicated region
    $region50: #{a_call__.5} parent=1 // pred_check
      _
    $region51: #{a_call__.5} parent=1 // pred_check_branch
      %70 = sbr.rel (0) target = $region53
    $region52: #{a_call__.5} parent=1 // pred_region
      _
    $region53: #{a_call__.5} parent=1 // pred_fallthru
      _
    // Predicated region
    $region54: #{a_call__.5} parent=1 // pred_check
      _
    $region55: #{a_call__.5} parent=1 // pred_check_branch
      %72 = sbr.rel (0) target = $region57
    $region56: #{a_call__.5} parent=1 // pred_region
      _
    $region57: #{a_call__.5} parent=1 // pred_fallthru
      _
    // Predicated region
    $region58: #{a_call__.5} parent=1 // pred_check
      _
    $region59: #{a_call__.5} parent=1 // pred_check_branch
      %74 = sbr.rel (0) target = $region61
    $region60: #{a_call__.5} parent=1 // pred_region
      _
    $region61: #{a_call__.5} parent=1 // pred_fallthru
      _
    // Predicated region
    $region62: #{a_call__.5} parent=1 // pred_check
      _
    $region63: #{a_call__.5} parent=1 // pred_check_branch
      %76 = sbr.rel (0) target = $region65
    $region64: #{a_call__.5} parent=1 // pred_region
      _
    $region65: #{a_call__.5} parent=1 // pred_fallthru
      _
    // Predicated region
    $region66: #{a_call__.5} parent=1 // pred_check
      _
    $region67: #{a_call__.5} parent=1 // pred_check_branch
      %78 = sbr.rel (0) target = $region69
    $region68: #{a_call__.5} parent=1 // pred_region
      %80 = dma.done [#allocation3], 256
    $region69: #{a_call__.5} parent=1 // pred_fallthru
      _
    // Predicated region
    $region70: #{a_call__.5} parent=1 // pred_check
      _
    $region71: #{a_call__.5} parent=1 // pred_check_branch
      %82 = sbr.rel (0) target = $region73
    $region72: #{a_call__.5} parent=1 // pred_region
      %84 = dma.done [#allocation5], 256
    $region73: #{a_call__.5} parent=1 // pred_fallthru
      _
    %v86 = vld [vmem:[%s0] sm:$0xf]
    %v87 = vld [vmem:[%s0 + $0x4] sm:$0xf]
    %v88 = vunpack.c.l.bf16 %v86
    %v89 = vunpack.c.l.bf16 %v87
    %v90 = vld [vmem:[%s2] sm:$0xf]
    %v91 = vld [vmem:[%s2 + $0x4] sm:$0xf]
    %v92 = vld [vmem:[%s2 + $0x8] sm:$0xf]
    %v93 = vld [vmem:[%s2 + $0xc] sm:$0xf]
    %v94 = vld [vmem:[%s3] sm:$0x1]
    %v96 = vperm.slane %v94, 0
    %v100 = vunpack.c.l.b16 %v86
    %v101 = vunpack.c.l.b16 %v87
    %v102 = vpack.c.b16 %v101, %v100
    %v107 = vunpack.c.l.b16 %v90
    %v108 = vunpack.c.l.b16 %v91
    %v109 = vunpack.c.l.b16 %v92
    %v110 = vunpack.c.l.b16 %v93
    %v111 = vpack.c.b16 %v108, %v107
    %v112 = vpack.c.b16 %v110, %v109
    %vm115 = vcmask 261120
    %v117 = vsel %vm115, %v102, 0
    %119 = vmatpush.bf16.msra.mxu0 0
    %120 = vmatpush.bf16.msra.mxu0 0
    %121 = vmatpush.bf16.msra.mxu0 0
    %122 = vmatpush.bf16.msra.mxu0 0
    %123 = vmatpush.bf16.msra.mxu0 0
    %124 = vmatpush.bf16.msra.mxu0 0
    %125 = vmatpush.bf16.msra.mxu0 %v112
    %126 = vmatpush.bf16.msra.mxu0 %v111
    %127 = vmatmul.bf16.gmra.mxu0 %v117
    %v128 = vpop.f32.mrf.mxu0
    %v129 = vadd.f32 %v96, %v128
    %v130 = vpop.f32.mrf.mxu0
    %v131 = vadd.f32 %v96, %v130
    %132 = vdwg.mxu0
    %v133 = vld [vmem:[#allocation2] sm:$0xf]
    %v134 = vld [vmem:[#allocation2 + $0x4] sm:$0xf]
    %v135 = vld [vmem:[#allocation2 + $0x8] sm:$0xf]
    %v136 = vld [vmem:[#allocation2 + $0xc] sm:$0xf]
    %v137 = vld [vmem:[%s1] sm:$0x1]
    %139 = vrot.lane.b32.xlu0 %v129, 96
    %v140 = vpop.permute.xlu0 %139
    %vm141 = vcmask 64512
    %v142 = vsel %vm141, %v129, 0
    %v144 = vsel %vm141, %v140, 0
    %146 = vmatpush.xpose.msra.mxu0 0.0
    %147 = vmatpush.xpose.msra.mxu0 0.0
    %148 = vmatpush.xpose.msra.mxu0 0.0
    %149 = vmatpush.xpose.msra.mxu0 0.0
    %150 = vmatpush.xpose.msra.mxu0 0.0
    %151 = vmatpush.xpose.msra.mxu0 0.0
    %152 = vmatpush.xpose.msra.mxu0 0.0
    %153 = vmatpush.xpose.msra.mxu0 0.0
    %154 = vmatpush.xpose.msra.mxu0 0.0
    %155 = vmatpush.xpose.msra.mxu0 0.0
    %156 = vmatpush.xpose.msra.mxu0 0.0
    %157 = vmatpush.xpose.msra.mxu0 0.0
    %158 = vmatpush.xpose.msra.mxu0 0.0
    %159 = vmatpush.xpose.msra.mxu0 0.0
    %160 = vmatpush.xpose.msra.mxu0 0.0
    %161 = vmatpush.xpose.msra.mxu0 %v144
    %162 = vmatmul.f32.gmra.mxu0 %v142
    %v163 = vpop.f32.mrf.mxu0
    %v164 = vadd.f32 0.0, %v163
    %165 = vdwg.mxu0
    %v166 = vmul.f32 %v164, 0.35355338
    %v168 = vperm.slane %v137, 0
    %v170 = vadd.f32 %v166, %v168
    %v171 = vsel %vm141, %v170, -inf
    %172 = vmax.xlane.f32.xlu0 %v171
    %v173 = vpop.xlane.xlu0 %172
    %v174 = vsub.f32 %v170, %v173
    %v175 = vmul.f32 %v174, 1.442695
    %v176 = vpow.pop %v175
    %v177 = vsel %vm141, %v176, 0.0
    %178 = vadd.xlane.f32.xlu0 %v177
    %v179 = vpop.xlane.xlu0 %178
    %v180 = vrcp.pop %v179
    %v181 = vmul.f32 %v176, %v180
    %182 = vrot.lane.b32.xlu0 %v129, 64
    %v183 = vpop.permute.xlu0 %182
    %v186 = vsel %vm141, %v181, 0
    %188 = vmatpush.msra.mxu0 0.0
    %189 = vmatpush.msra.mxu0 0.0
    %190 = vmatpush.msra.mxu0 0.0
    %191 = vmatpush.msra.mxu0 0.0
    %192 = vmatpush.msra.mxu0 0.0
    %193 = vmatpush.msra.mxu0 0.0
    %194 = vmatpush.msra.mxu0 0.0
    %195 = vmatpush.msra.mxu0 0.0
    %196 = vmatpush.msra.mxu0 0.0
    %197 = vmatpush.msra.mxu0 0.0
    %198 = vmatpush.msra.mxu0 0.0
    %199 = vmatpush.msra.mxu0 0.0
    %200 = vmatpush.msra.mxu0 0.0
    %201 = vmatpush.msra.mxu0 0.0
    %202 = vmatpush.msra.mxu0 0.0
    %203 = vmatpush.msra.mxu0 %v183
    %204 = vmatmul.f32.gmra.mxu0 %v186
    %v205 = vpop.f32.mrf.mxu0
    %v206 = vadd.f32 0.0, %v205
    %207 = vdwg.mxu0
    %v208 = vpack.c.bf16 %v206, %v206
    %209 = vrot.lane.b32.xlu0 %v129, 120
    %v210 = vpop.permute.xlu0 %209
    %211 = vrot.lane.b32.xlu0 %v129, 88
    %v212 = vpop.permute.xlu0 %211
    %v213 = vsel %vm141, %v210, 0
    %v215 = vsel %vm141, %v212, 0
    %217 = vmatpush.xpose.msra.mxu0 0.0
    %218 = vmatpush.xpose.msra.mxu0 0.0
    %219 = vmatpush.xpose.msra.mxu0 0.0
    %220 = vmatpush.xpose.msra.mxu0 0.0
    %221 = vmatpush.xpose.msra.mxu0 0.0
    %222 = vmatpush.xpose.msra.mxu0 0.0
    %223 = vmatpush.xpose.msra.mxu0 0.0
    %224 = vmatpush.xpose.msra.mxu0 0.0
    %225 = vmatpush.xpose.msra.mxu0 0.0
    %226 = vmatpush.xpose.msra.mxu0 0.0
    %227 = vmatpush.xpose.msra.mxu0 0.0
    %228 = vmatpush.xpose.msra.mxu0 0.0
    %229 = vmatpush.xpose.msra.mxu0 0.0
    %230 = vmatpush.xpose.msra.mxu0 0.0
    %231 = vmatpush.xpose.msra.mxu0 0.0
    %232 = vmatpush.xpose.msra.mxu0 %v215
    %233 = vmatmul.f32.gmra.mxu0 %v213
    %v234 = vpop.f32.mrf.mxu0
    %v235 = vadd.f32 0.0, %v234
    %236 = vdwg.mxu0
    %v237 = vmul.f32 %v235, 0.35355338
    %v238 = vadd.f32 %v237, %v168
    %v239 = vsel %vm141, %v238, -inf
    %240 = vmax.xlane.f32.xlu0 %v239
    %v241 = vpop.xlane.xlu0 %240
    %v242 = vsub.f32 %v238, %v241
    %v243 = vmul.f32 %v242, 1.442695
    %v244 = vpow.pop %v243
    %v245 = vsel %vm141, %v244, 0.0
    %246 = vadd.xlane.f32.xlu0 %v245
    %v247 = vpop.xlane.xlu0 %246
    %v248 = vrcp.pop %v247
    %v249 = vmul.f32 %v244, %v248
    %250 = vrot.lane.b32.xlu0 %v129, 56
    %v251 = vpop.permute.xlu0 %250
    %v254 = vsel %vm141, %v249, 0
    %256 = vmatpush.msra.mxu0 0.0
    %257 = vmatpush.msra.mxu0 0.0
    %258 = vmatpush.msra.mxu0 0.0
    %259 = vmatpush.msra.mxu0 0.0
    %260 = vmatpush.msra.mxu0 0.0
    %261 = vmatpush.msra.mxu0 0.0
    %262 = vmatpush.msra.mxu0 0.0
    %263 = vmatpush.msra.mxu0 0.0
    %264 = vmatpush.msra.mxu0 0.0
    %265 = vmatpush.msra.mxu0 0.0
    %266 = vmatpush.msra.mxu0 0.0
    %267 = vmatpush.msra.mxu0 0.0
    %268 = vmatpush.msra.mxu0 0.0
    %269 = vmatpush.msra.mxu0 0.0
    %270 = vmatpush.msra.mxu0 0.0
    %271 = vmatpush.msra.mxu0 %v251
    %272 = vmatmul.f32.gmra.mxu0 %v254
    %v273 = vpop.f32.mrf.mxu0
    %v274 = vadd.f32 0.0, %v273
    %275 = vdwg.mxu0
    %v276 = vpack.c.bf16 %v274, %v274
    %v278 = vsel %vm141, %v276, 0
    %vm280 = vcmask 1043456
    %v282 = vsel %vm280, %v134, 0
    %284 = vmatpush.bf16.msra.mxu0 0
    %285 = vmatpush.bf16.msra.mxu0 0
    %286 = vmatpush.bf16.msra.mxu0 0
    %287 = vmatpush.bf16.msra.mxu0 0
    %288 = vmatpush.bf16.msra.mxu0 0
    %289 = vmatpush.bf16.msra.mxu0 0
    %290 = vmatpush.bf16.msra.mxu0 0
    %291 = vmatpush.bf16.msra.mxu0 %v282
    %292 = vmatmul.bf16.gmra.mxu0 %v278
    %v293 = vpop.f32.mrf.mxu0
    %v294 = vadd.f32 0.0, %v293
    %v295 = vpop.f32.mrf.mxu0
    %296 = vdwg.mxu0
    %v298 = vsel %vm141, %v208, 0
    %v301 = vsel %vm280, %v133, 0
    %303 = vmatpush.bf16.msra.mxu0 0
    %304 = vmatpush.bf16.msra.mxu0 0
    %305 = vmatpush.bf16.msra.mxu0 0
    %306 = vmatpush.bf16.msra.mxu0 0
    %307 = vmatpush.bf16.msra.mxu0 0
    %308 = vmatpush.bf16.msra.mxu0 0
    %309 = vmatpush.bf16.msra.mxu0 0
    %310 = vmatpush.bf16.msra.mxu0 %v301
    %311 = vmatmul.bf16.gmra.mxu0 %v298
    %v312 = vpop.f32.mrf.mxu0
    %v313 = vadd.f32 %v294, %v312
    %v314 = vpop.f32.mrf.mxu0
    %315 = vdwg.mxu0
    %316 = vrot.lane.b32.xlu0 %v129, 112
    %v317 = vpop.permute.xlu0 %316
    %318 = vrot.lane.b32.xlu0 %v129, 80
    %v319 = vpop.permute.xlu0 %318
    %v320 = vsel %vm141, %v317, 0
    %v322 = vsel %vm141, %v319, 0
    %324 = vmatpush.xpose.msra.mxu0 0.0
    %325 = vmatpush.xpose.msra.mxu0 0.0
    %326 = vmatpush.xpose.msra.mxu0 0.0
    %327 = vmatpush.xpose.msra.mxu0 0.0
    %328 = vmatpush.xpose.msra.mxu0 0.0
    %329 = vmatpush.xpose.msra.mxu0 0.0
    %330 = vmatpush.xpose.msra.mxu0 0.0
    %331 = vmatpush.xpose.msra.mxu0 0.0
    %332 = vmatpush.xpose.msra.mxu0 0.0
    %333 = vmatpush.xpose.msra.mxu0 0.0
    %334 = vmatpush.xpose.msra.mxu0 0.0
    %335 = vmatpush.xpose.msra.mxu0 0.0
    %336 = vmatpush.xpose.msra.mxu0 0.0
    %337 = vmatpush.xpose.msra.mxu0 0.0
    %338 = vmatpush.xpose.msra.mxu0 0.0
    %339 = vmatpush.xpose.msra.mxu0 %v322
    %340 = vmatmul.f32.gmra.mxu0 %v320
    %v341 = vpop.f32.mrf.mxu0
    %v342 = vadd.f32 0.0, %v341
    %343 = vdwg.mxu0
    %v344 = vmul.f32 %v342, 0.35355338
    %v345 = vadd.f32 %v344, %v168
    %v346 = vsel %vm141, %v345, -inf
    %347 = vmax.xlane.f32.xlu0 %v346
    %v348 = vpop.xlane.xlu0 %347
    %v349 = vsub.f32 %v345, %v348
    %v350 = vmul.f32 %v349, 1.442695
    %v351 = vpow.pop %v350
    %v352 = vsel %vm141, %v351, 0.0
    %353 = vadd.xlane.f32.xlu0 %v352
    %v354 = vpop.xlane.xlu0 %353
    %v355 = vrcp.pop %v354
    %v356 = vmul.f32 %v351, %v355
    %357 = vrot.lane.b32.xlu0 %v129, 48
    %v358 = vpop.permute.xlu0 %357
    %v361 = vsel %vm141, %v356, 0
    %363 = vmatpush.msra.mxu0 0.0
    %364 = vmatpush.msra.mxu0 0.0
    %365 = vmatpush.msra.mxu0 0.0
    %366 = vmatpush.msra.mxu0 0.0
    %367 = vmatpush.msra.mxu0 0.0
    %368 = vmatpush.msra.mxu0 0.0
    %369 = vmatpush.msra.mxu0 0.0
    %370 = vmatpush.msra.mxu0 0.0
    %371 = vmatpush.msra.mxu0 0.0
    %372 = vmatpush.msra.mxu0 0.0
    %373 = vmatpush.msra.mxu0 0.0
    %374 = vmatpush.msra.mxu0 0.0
    %375 = vmatpush.msra.mxu0 0.0
    %376 = vmatpush.msra.mxu0 0.0
    %377 = vmatpush.msra.mxu0 0.0
    %378 = vmatpush.msra.mxu0 %v358
    %379 = vmatmul.f32.gmra.mxu0 %v361
    %v380 = vpop.f32.mrf.mxu0
    %v381 = vadd.f32 0.0, %v380
    %382 = vdwg.mxu0
    %v383 = vpack.c.bf16 %v381, %v381
    %v385 = vsel %vm141, %v383, 0
    %v388 = vsel %vm280, %v135, 0
    %390 = vmatpush.bf16.msra.mxu0 0
    %391 = vmatpush.bf16.msra.mxu0 0
    %392 = vmatpush.bf16.msra.mxu0 0
    %393 = vmatpush.bf16.msra.mxu0 0
    %394 = vmatpush.bf16.msra.mxu0 0
    %395 = vmatpush.bf16.msra.mxu0 0
    %396 = vmatpush.bf16.msra.mxu0 0
    %397 = vmatpush.bf16.msra.mxu0 %v388
    %398 = vmatmul.bf16.gmra.mxu0 %v385
    %v399 = vpop.f32.mrf.mxu0
    %v400 = vadd.f32 0.0, %v399
    %v401 = vpop.f32.mrf.mxu0
    %402 = vdwg.mxu0
    %v403 = vadd.f32 %v313, %v400
    %404 = vrot.lane.b32.xlu0 %v129, 104
    %v405 = vpop.permute.xlu0 %404
    %406 = vrot.lane.b32.xlu0 %v129, 72
    %v407 = vpop.permute.xlu0 %406
    %v408 = vsel %vm141, %v405, 0
    %v410 = vsel %vm141, %v407, 0
    %412 = vmatpush.xpose.msra.mxu0 0.0
    %413 = vmatpush.xpose.msra.mxu0 0.0
    %414 = vmatpush.xpose.msra.mxu0 0.0
    %415 = vmatpush.xpose.msra.mxu0 0.0
    %416 = vmatpush.xpose.msra.mxu0 0.0
    %417 = vmatpush.xpose.msra.mxu0 0.0
    %418 = vmatpush.xpose.msra.mxu0 0.0
    %419 = vmatpush.xpose.msra.mxu0 0.0
    %420 = vmatpush.xpose.msra.mxu0 0.0
    %421 = vmatpush.xpose.msra.mxu0 0.0
    %422 = vmatpush.xpose.msra.mxu0 0.0
    %423 = vmatpush.xpose.msra.mxu0 0.0
    %424 = vmatpush.xpose.msra.mxu0 0.0
    %425 = vmatpush.xpose.msra.mxu0 0.0
    %426 = vmatpush.xpose.msra.mxu0 0.0
    %427 = vmatpush.xpose.msra.mxu0 %v410
    %428 = vmatmul.f32.gmra.mxu0 %v408
    %v429 = vpop.f32.mrf.mxu0
    %v430 = vadd.f32 0.0, %v429
    %431 = vdwg.mxu0
    %v432 = vmul.f32 %v430, 0.35355338
    %v433 = vadd.f32 %v432, %v168
    %v434 = vsel %vm141, %v433, -inf
    %435 = vmax.xlane.f32.xlu0 %v434
    %v436 = vpop.xlane.xlu0 %435
    %v437 = vsub.f32 %v433, %v436
    %v438 = vmul.f32 %v437, 1.442695
    %v439 = vpow.pop %v438
    %v440 = vsel %vm141, %v439, 0.0
    %441 = vadd.xlane.f32.xlu0 %v440
    %v442 = vpop.xlane.xlu0 %441
    %v443 = vrcp.pop %v442
    %v444 = vmul.f32 %v439, %v443
    %445 = vrot.lane.b32.xlu0 %v129, 40
    %v446 = vpop.permute.xlu0 %445
    %v449 = vsel %vm141, %v444, 0
    %451 = vmatpush.msra.mxu0 0.0
    %452 = vmatpush.msra.mxu0 0.0
    %453 = vmatpush.msra.mxu0 0.0
    %454 = vmatpush.msra.mxu0 0.0
    %455 = vmatpush.msra.mxu0 0.0
    %456 = vmatpush.msra.mxu0 0.0
    %457 = vmatpush.msra.mxu0 0.0
    %458 = vmatpush.msra.mxu0 0.0
    %459 = vmatpush.msra.mxu0 0.0
    %460 = vmatpush.msra.mxu0 0.0
    %461 = vmatpush.msra.mxu0 0.0
    %462 = vmatpush.msra.mxu0 0.0
    %463 = vmatpush.msra.mxu0 0.0
    %464 = vmatpush.msra.mxu0 0.0
    %465 = vmatpush.msra.mxu0 0.0
    %466 = vmatpush.msra.mxu0 %v446
    %467 = vmatmul.f32.gmra.mxu0 %v449
    %v468 = vpop.f32.mrf.mxu0
    %v469 = vadd.f32 0.0, %v468
    %470 = vdwg.mxu0
    %v471 = vpack.c.bf16 %v469, %v469
    %v473 = vsel %vm141, %v471, 0
    %v476 = vsel %vm280, %v136, 0
    %478 = vmatpush.bf16.msra.mxu0 0
    %479 = vmatpush.bf16.msra.mxu0 0
    %480 = vmatpush.bf16.msra.mxu0 0
    %481 = vmatpush.bf16.msra.mxu0 0
    %482 = vmatpush.bf16.msra.mxu0 0
    %483 = vmatpush.bf16.msra.mxu0 0
    %484 = vmatpush.bf16.msra.mxu0 0
    %485 = vmatpush.bf16.msra.mxu0 %v476
    %486 = vmatmul.bf16.gmra.mxu0 %v473
    %v487 = vpop.f32.mrf.mxu0
    %v488 = vadd.f32 0.0, %v487
    %v489 = vpop.f32.mrf.mxu0
    %490 = vdwg.mxu0
    %v491 = vadd.f32 %v403, %v488
    %s492 = scalar_lea.vmem %s1, 1
    %v493 = vld [vmem:[%s492] sm:$0x1]
    %495 = vrot.lane.b32.xlu0 %v131, 96
    %v496 = vpop.permute.xlu0 %495
    %v497 = vsel %vm141, %v131, 0
    %v499 = vsel %vm141, %v496, 0
    %501 = vmatpush.xpose.msra.mxu0 0.0
    %502 = vmatpush.xpose.msra.mxu0 0.0
    %503 = vmatpush.xpose.msra.mxu0 0.0
    %504 = vmatpush.xpose.msra.mxu0 0.0
    %505 = vmatpush.xpose.msra.mxu0 0.0
    %506 = vmatpush.xpose.msra.mxu0 0.0
    %507 = vmatpush.xpose.msra.mxu0 0.0
    %508 = vmatpush.xpose.msra.mxu0 0.0
    %509 = vmatpush.xpose.msra.mxu0 0.0
    %510 = vmatpush.xpose.msra.mxu0 0.0
    %511 = vmatpush.xpose.msra.mxu0 0.0
    %512 = vmatpush.xpose.msra.mxu0 0.0
    %513 = vmatpush.xpose.msra.mxu0 0.0
    %514 = vmatpush.xpose.msra.mxu0 0.0
    %515 = vmatpush.xpose.msra.mxu0 0.0
    %516 = vmatpush.xpose.msra.mxu0 %v499
    %517 = vmatmul.f32.gmra.mxu0 %v497
    %v518 = vpop.f32.mrf.mxu0
    %v519 = vadd.f32 0.0, %v518
    %520 = vdwg.mxu0
    %v521 = vmul.f32 %v519, 0.35355338
    %v523 = vperm.slane %v493, 0
    %v525 = vadd.f32 %v521, %v523
    %v526 = vsel %vm141, %v525, -inf
    %527 = vmax.xlane.f32.xlu0 %v526
    %v528 = vpop.xlane.xlu0 %527
    %v529 = vsub.f32 %v525, %v528
    %v530 = vmul.f32 %v529, 1.442695
    %v531 = vpow.pop %v530
    %v532 = vsel %vm141, %v531, 0.0
    %533 = vadd.xlane.f32.xlu0 %v532
    %v534 = vpop.xlane.xlu0 %533
    %v535 = vrcp.pop %v534
    %v536 = vmul.f32 %v531, %v535
    %537 = vrot.lane.b32.xlu0 %v131, 64
    %v538 = vpop.permute.xlu0 %537
    %v541 = vsel %vm141, %v536, 0
    %543 = vmatpush.msra.mxu0 0.0
    %544 = vmatpush.msra.mxu0 0.0
    %545 = vmatpush.msra.mxu0 0.0
    %546 = vmatpush.msra.mxu0 0.0
    %547 = vmatpush.msra.mxu0 0.0
    %548 = vmatpush.msra.mxu0 0.0
    %549 = vmatpush.msra.mxu0 0.0
    %550 = vmatpush.msra.mxu0 0.0
    %551 = vmatpush.msra.mxu0 0.0
    %552 = vmatpush.msra.mxu0 0.0
    %553 = vmatpush.msra.mxu0 0.0
    %554 = vmatpush.msra.mxu0 0.0
    %555 = vmatpush.msra.mxu0 0.0
    %556 = vmatpush.msra.mxu0 0.0
    %557 = vmatpush.msra.mxu0 0.0
    %558 = vmatpush.msra.mxu0 %v538
    %559 = vmatmul.f32.gmra.mxu0 %v541
    %v560 = vpop.f32.mrf.mxu0
    %v561 = vadd.f32 0.0, %v560
    %562 = vdwg.mxu0
    %v563 = vpack.c.bf16 %v561, %v561
    %564 = vrot.lane.b32.xlu0 %v131, 120
    %v565 = vpop.permute.xlu0 %564
    %566 = vrot.lane.b32.xlu0 %v131, 88
    %v567 = vpop.permute.xlu0 %566
    %v568 = vsel %vm141, %v565, 0
    %v570 = vsel %vm141, %v567, 0
    %572 = vmatpush.xpose.msra.mxu0 0.0
    %573 = vmatpush.xpose.msra.mxu0 0.0
    %574 = vmatpush.xpose.msra.mxu0 0.0
    %575 = vmatpush.xpose.msra.mxu0 0.0
    %576 = vmatpush.xpose.msra.mxu0 0.0
    %577 = vmatpush.xpose.msra.mxu0 0.0
    %578 = vmatpush.xpose.msra.mxu0 0.0
    %579 = vmatpush.xpose.msra.mxu0 0.0
    %580 = vmatpush.xpose.msra.mxu0 0.0
    %581 = vmatpush.xpose.msra.mxu0 0.0
    %582 = vmatpush.xpose.msra.mxu0 0.0
    %583 = vmatpush.xpose.msra.mxu0 0.0
    %584 = vmatpush.xpose.msra.mxu0 0.0
    %585 = vmatpush.xpose.msra.mxu0 0.0
    %586 = vmatpush.xpose.msra.mxu0 0.0
    %587 = vmatpush.xpose.msra.mxu0 %v570
    %588 = vmatmul.f32.gmra.mxu0 %v568
    %v589 = vpop.f32.mrf.mxu0
    %v590 = vadd.f32 0.0, %v589
    %591 = vdwg.mxu0
    %v592 = vmul.f32 %v590, 0.35355338
    %v593 = vadd.f32 %v592, %v523
    %v594 = vsel %vm141, %v593, -inf
    %595 = vmax.xlane.f32.xlu0 %v594
    %v596 = vpop.xlane.xlu0 %595
    %v597 = vsub.f32 %v593, %v596
    %v598 = vmul.f32 %v597, 1.442695
    %v599 = vpow.pop %v598
    %v600 = vsel %vm141, %v599, 0.0
    %601 = vadd.xlane.f32.xlu0 %v600
    %v602 = vpop.xlane.xlu0 %601
    %v603 = vrcp.pop %v602
    %v604 = vmul.f32 %v599, %v603
    %605 = vrot.lane.b32.xlu0 %v131, 56
    %v606 = vpop.permute.xlu0 %605
    %v609 = vsel %vm141, %v604, 0
    %611 = vmatpush.msra.mxu0 0.0
    %612 = vmatpush.msra.mxu0 0.0
    %613 = vmatpush.msra.mxu0 0.0
    %614 = vmatpush.msra.mxu0 0.0
    %615 = vmatpush.msra.mxu0 0.0
    %616 = vmatpush.msra.mxu0 0.0
    %617 = vmatpush.msra.mxu0 0.0
    %618 = vmatpush.msra.mxu0 0.0
    %619 = vmatpush.msra.mxu0 0.0
    %620 = vmatpush.msra.mxu0 0.0
    %621 = vmatpush.msra.mxu0 0.0
    %622 = vmatpush.msra.mxu0 0.0
    %623 = vmatpush.msra.mxu0 0.0
    %624 = vmatpush.msra.mxu0 0.0
    %625 = vmatpush.msra.mxu0 0.0
    %626 = vmatpush.msra.mxu0 %v606
    %627 = vmatmul.f32.gmra.mxu0 %v609
    %v628 = vpop.f32.mrf.mxu0
    %v629 = vadd.f32 0.0, %v628
    %630 = vdwg.mxu0
    %v631 = vpack.c.bf16 %v629, %v629
    %v633 = vsel %vm141, %v631, 0
    %635 = vmatpush.bf16.msra.mxu0 0
    %636 = vmatpush.bf16.msra.mxu0 0
    %637 = vmatpush.bf16.msra.mxu0 0
    %638 = vmatpush.bf16.msra.mxu0 0
    %639 = vmatpush.bf16.msra.mxu0 0
    %640 = vmatpush.bf16.msra.mxu0 0
    %641 = vmatpush.bf16.msra.mxu0 0
    %642 = vmatpush.bf16.msra.mxu0 %v282
    %643 = vmatmul.bf16.gmra.mxu0 %v633
    %v644 = vpop.f32.mrf.mxu0
    %v645 = vadd.f32 0.0, %v644
    %v646 = vpop.f32.mrf.mxu0
    %647 = vdwg.mxu0
    %v649 = vsel %vm141, %v563, 0
    %651 = vmatpush.bf16.msra.mxu0 0
    %652 = vmatpush.bf16.msra.mxu0 0
    %653 = vmatpush.bf16.msra.mxu0 0
    %654 = vmatpush.bf16.msra.mxu0 0
    %655 = vmatpush.bf16.msra.mxu0 0
    %656 = vmatpush.bf16.msra.mxu0 0
    %657 = vmatpush.bf16.msra.mxu0 0
    %658 = vmatpush.bf16.msra.mxu0 %v301
    %659 = vmatmul.bf16.gmra.mxu0 %v649
    %v660 = vpop.f32.mrf.mxu0
    %v661 = vadd.f32 %v645, %v660
    %v662 = vpop.f32.mrf.mxu0
    %663 = vdwg.mxu0
    %664 = vrot.lane.b32.xlu0 %v131, 112
    %v665 = vpop.permute.xlu0 %664
    %666 = vrot.lane.b32.xlu0 %v131, 80
    %v667 = vpop.permute.xlu0 %666
    %v668 = vsel %vm141, %v665, 0
    %v670 = vsel %vm141, %v667, 0
    %672 = vmatpush.xpose.msra.mxu0 0.0
    %673 = vmatpush.xpose.msra.mxu0 0.0
    %674 = vmatpush.xpose.msra.mxu0 0.0
    %675 = vmatpush.xpose.msra.mxu0 0.0
    %676 = vmatpush.xpose.msra.mxu0 0.0
    %677 = vmatpush.xpose.msra.mxu0 0.0
    %678 = vmatpush.xpose.msra.mxu0 0.0
    %679 = vmatpush.xpose.msra.mxu0 0.0
    %680 = vmatpush.xpose.msra.mxu0 0.0
    %681 = vmatpush.xpose.msra.mxu0 0.0
    %682 = vmatpush.xpose.msra.mxu0 0.0
    %683 = vmatpush.xpose.msra.mxu0 0.0
    %684 = vmatpush.xpose.msra.mxu0 0.0
    %685 = vmatpush.xpose.msra.mxu0 0.0
    %686 = vmatpush.xpose.msra.mxu0 0.0
    %687 = vmatpush.xpose.msra.mxu0 %v670
    %688 = vmatmul.f32.gmra.mxu0 %v668
    %v689 = vpop.f32.mrf.mxu0
    %v690 = vadd.f32 0.0, %v689
    %691 = vdwg.mxu0
    %v692 = vmul.f32 %v690, 0.35355338
    %v693 = vadd.f32 %v692, %v523
    %v694 = vsel %vm141, %v693, -inf
    %695 = vmax.xlane.f32.xlu0 %v694
    %v696 = vpop.xlane.xlu0 %695
    %v697 = vsub.f32 %v693, %v696
    %v698 = vmul.f32 %v697, 1.442695
    %v699 = vpow.pop %v698
    %v700 = vsel %vm141, %v699, 0.0
    %701 = vadd.xlane.f32.xlu0 %v700
    %v702 = vpop.xlane.xlu0 %701
    %v703 = vrcp.pop %v702
    %v704 = vmul.f32 %v699, %v703
    %705 = vrot.lane.b32.xlu0 %v131, 48
    %v706 = vpop.permute.xlu0 %705
    %v709 = vsel %vm141, %v704, 0
    %711 = vmatpush.msra.mxu0 0.0
    %712 = vmatpush.msra.mxu0 0.0
    %713 = vmatpush.msra.mxu0 0.0
    %714 = vmatpush.msra.mxu0 0.0
    %715 = vmatpush.msra.mxu0 0.0
    %716 = vmatpush.msra.mxu0 0.0
    %717 = vmatpush.msra.mxu0 0.0
    %718 = vmatpush.msra.mxu0 0.0
    %719 = vmatpush.msra.mxu0 0.0
    %720 = vmatpush.msra.mxu0 0.0
    %721 = vmatpush.msra.mxu0 0.0
    %722 = vmatpush.msra.mxu0 0.0
    %723 = vmatpush.msra.mxu0 0.0
    %724 = vmatpush.msra.mxu0 0.0
    %725 = vmatpush.msra.mxu0 0.0
    %726 = vmatpush.msra.mxu0 %v706
    %727 = vmatmul.f32.gmra.mxu0 %v709
    %v728 = vpop.f32.mrf.mxu0
    %v729 = vadd.f32 0.0, %v728
    %730 = vdwg.mxu0
    %v731 = vpack.c.bf16 %v729, %v729
    %v733 = vsel %vm141, %v731, 0
    %735 = vmatpush.bf16.msra.mxu0 0
    %736 = vmatpush.bf16.msra.mxu0 0
    %737 = vmatpush.bf16.msra.mxu0 0
    %738 = vmatpush.bf16.msra.mxu0 0
    %739 = vmatpush.bf16.msra.mxu0 0
    %740 = vmatpush.bf16.msra.mxu0 0
    %741 = vmatpush.bf16.msra.mxu0 0
    %742 = vmatpush.bf16.msra.mxu0 %v388
    %743 = vmatmul.bf16.gmra.mxu0 %v733
    %v744 = vpop.f32.mrf.mxu0
    %v745 = vadd.f32 0.0, %v744
    %v746 = vpop.f32.mrf.mxu0
    %747 = vdwg.mxu0
    %v748 = vadd.f32 %v661, %v745
    %749 = vrot.lane.b32.xlu0 %v131, 104
    %v750 = vpop.permute.xlu0 %749
    %751 = vrot.lane.b32.xlu0 %v131, 72
    %v752 = vpop.permute.xlu0 %751
    %v753 = vsel %vm141, %v750, 0
    %v755 = vsel %vm141, %v752, 0
    %757 = vmatpush.xpose.msra.mxu0 0.0
    %758 = vmatpush.xpose.msra.mxu0 0.0
    %759 = vmatpush.xpose.msra.mxu0 0.0
    %760 = vmatpush.xpose.msra.mxu0 0.0
    %761 = vmatpush.xpose.msra.mxu0 0.0
    %762 = vmatpush.xpose.msra.mxu0 0.0
    %763 = vmatpush.xpose.msra.mxu0 0.0
    %764 = vmatpush.xpose.msra.mxu0 0.0
    %765 = vmatpush.xpose.msra.mxu0 0.0
    %766 = vmatpush.xpose.msra.mxu0 0.0
    %767 = vmatpush.xpose.msra.mxu0 0.0
    %768 = vmatpush.xpose.msra.mxu0 0.0
    %769 = vmatpush.xpose.msra.mxu0 0.0
    %770 = vmatpush.xpose.msra.mxu0 0.0
    %771 = vmatpush.xpose.msra.mxu0 0.0
    %772 = vmatpush.xpose.msra.mxu0 %v755
    %773 = vmatmul.f32.gmra.mxu0 %v753
    %v774 = vpop.f32.mrf.mxu0
    %v775 = vadd.f32 0.0, %v774
    %776 = vdwg.mxu0
    %v777 = vmul.f32 %v775, 0.35355338
    %v778 = vadd.f32 %v777, %v523
    %v779 = vsel %vm141, %v778, -inf
    %780 = vmax.xlane.f32.xlu0 %v779
    %v781 = vpop.xlane.xlu0 %780
    %v782 = vsub.f32 %v778, %v781
    %v783 = vmul.f32 %v782, 1.442695
    %v784 = vpow.pop %v783
    %v785 = vsel %vm141, %v784, 0.0
    %786 = vadd.xlane.f32.xlu0 %v785
    %v787 = vpop.xlane.xlu0 %786
    %v788 = vrcp.pop %v787
    %v789 = vmul.f32 %v784, %v788
    %790 = vrot.lane.b32.xlu0 %v131, 40
    %v791 = vpop.permute.xlu0 %790
    %v794 = vsel %vm141, %v789, 0
    %796 = vmatpush.msra.mxu0 0.0
    %797 = vmatpush.msra.mxu0 0.0
    %798 = vmatpush.msra.mxu0 0.0
    %799 = vmatpush.msra.mxu0 0.0
    %800 = vmatpush.msra.mxu0 0.0
    %801 = vmatpush.msra.mxu0 0.0
    %802 = vmatpush.msra.mxu0 0.0
    %803 = vmatpush.msra.mxu0 0.0
    %804 = vmatpush.msra.mxu0 0.0
    %805 = vmatpush.msra.mxu0 0.0
    %806 = vmatpush.msra.mxu0 0.0
    %807 = vmatpush.msra.mxu0 0.0
    %808 = vmatpush.msra.mxu0 0.0
    %809 = vmatpush.msra.mxu0 0.0
    %810 = vmatpush.msra.mxu0 0.0
    %811 = vmatpush.msra.mxu0 %v791
    %812 = vmatmul.f32.gmra.mxu0 %v794
    %v813 = vpop.f32.mrf.mxu0
    %v814 = vadd.f32 0.0, %v813
    %815 = vdwg.mxu0
    %v816 = vpack.c.bf16 %v814, %v814
    %v818 = vsel %vm141, %v816, 0
    %820 = vmatpush.bf16.msra.mxu0 0
    %821 = vmatpush.bf16.msra.mxu0 0
    %822 = vmatpush.bf16.msra.mxu0 0
    %823 = vmatpush.bf16.msra.mxu0 0
    %824 = vmatpush.bf16.msra.mxu0 0
    %825 = vmatpush.bf16.msra.mxu0 0
    %826 = vmatpush.bf16.msra.mxu0 0
    %827 = vmatpush.bf16.msra.mxu0 %v476
    %828 = vmatmul.bf16.gmra.mxu0 %v818
    %v829 = vpop.f32.mrf.mxu0
    %v830 = vadd.f32 0.0, %v829
    %v831 = vpop.f32.mrf.mxu0
    %832 = vdwg.mxu0
    %v833 = vadd.f32 %v748, %v830
    %v834 = vld [vmem:[%s5] sm:$0x1]
    %v836 = vperm.slane %v834, 0
    %v838 = vadd.f32 %v491, %v836
    %v839 = vadd.f32 %v833, %v836
    %v840 = vadd.f32 %v88, %v838
    %v841 = vadd.f32 %v89, %v839
    %v842 = vld [vmem:[%s10] sm:$0x1]
    %v843 = vld [vmem:[%s11] sm:$0x1]
    %v844 = vsel %vm115, %v840, 0.0
    %845 = vadd.xlane.f32.xlu0 %v844
    %v846 = vpop.xlane.xlu0 %845
    %v847 = vsel %vm115, %v841, 0.0
    %848 = vadd.xlane.f32.xlu0 %v847
    %v849 = vpop.xlane.xlu0 %848
    %v850 = vrcp.pop 32.0
    %v851 = vmul.f32 32.0, %v850
    %v852 = vsub.f32 1.0, %v851
    %v853 = vmul.f32 %v850, %v852
    %v854 = vadd.f32 %v850, %v853
    %vm855 = vweird.f32 %v850
    %v856 = vsel %vm855, %v850, %v854
    %v857 = vmul.f32 %v846, %v856
    %v858 = vmul.f32 %v849, %v856
    %v859 = vsub.f32 %v840, %v857
    %v860 = vsub.f32 %v841, %v858
    %v861 = vmul.f32 %v859, %v859
    %v862 = vmul.f32 %v860, %v860
    %v863 = vsel %vm115, %v861, 0.0
    %864 = vadd.xlane.f32.xlu0 %v863
    %v865 = vpop.xlane.xlu0 %864
    %v866 = vsel %vm115, %v862, 0.0
    %867 = vadd.xlane.f32.xlu0 %v866
    %v868 = vpop.xlane.xlu0 %867
    %v869 = vmul.f32 %v865, %v856
    %v870 = vmul.f32 %v868, %v856
    %v871 = vadd.f32 %v869, 1e-05
    %v872 = vadd.f32 %v870, 1e-05
    %v873 = vrsqrt.pop %v871
    %v874 = vmul.f32 %v873, %v871
    %v875 = vmul.f32 %v874, %v873
    %v876 = vmul.f32 0.5, %v875
    %v877 = vsub.f32 1.5, %v876
    %v878 = vmul.f32 %v873, %v877
    %vm879 = vweird.f32 %v871
    %vm880 = vweird.f32 %v873
    %vm881 = vmor %vm879, %vm880
    %v882 = vsel %vm881, %v873, %v878
    %v883 = vrsqrt.pop %v872
    %v884 = vmul.f32 %v883, %v872
    %v885 = vmul.f32 %v884, %v883
    %v886 = vmul.f32 0.5, %v885
    %v887 = vsub.f32 1.5, %v886
    %v888 = vmul.f32 %v883, %v887
    %vm889 = vweird.f32 %v872
    %vm890 = vweird.f32 %v883
    %vm891 = vmor %vm889, %vm890
    %v892 = vsel %vm891, %v883, %v888
    %v893 = vmul.f32 %v859, %v882
    %v894 = vmul.f32 %v860, %v892
    %v896 = vperm.slane %v842, 0
    %v898 = vmul.f32 %v893, %v896
    %v899 = vmul.f32 %v894, %v896
    %v901 = vperm.slane %v843, 0
    %v903 = vadd.f32 %v898, %v901
    %v904 = vadd.f32 %v899, %v901
    %v905 = vld [vmem:[#allocation4] sm:$0xf]
    %v906 = vld [vmem:[#allocation4 + $0x4] sm:$0xf]
    %v907 = vld [vmem:[#allocation4 + $0x8] sm:$0xf]
    %v908 = vld [vmem:[#allocation4 + $0xc] sm:$0xf]
    %v909 = vpack.c.bf16 %v904, %v903
    %v910 = vld [vmem:[%s7] sm:$0x1]
    %v912 = vperm.slane %v910, 0
    %v918 = vunpack.c.l.b16 %v905
    %v919 = vunpack.c.l.b16 %v906
    %v920 = vunpack.c.l.b16 %v907
    %v921 = vunpack.c.l.b16 %v908
    %v922 = vpack.c.b16 %v919, %v918
    %v923 = vpack.c.b16 %v921, %v920
    %v927 = vsel %vm115, %v909, 0
    %929 = vmatpush.bf16.msra.mxu0 0
    %930 = vmatpush.bf16.msra.mxu0 0
    %931 = vmatpush.bf16.msra.mxu0 0
    %932 = vmatpush.bf16.msra.mxu0 0
    %933 = vmatpush.bf16.msra.mxu0 0
    %934 = vmatpush.bf16.msra.mxu0 0
    %935 = vmatpush.bf16.msra.mxu0 %v923
    %936 = vmatpush.bf16.msra.mxu0 %v922
    %937 = vmatmul.bf16.gmra.mxu0 %v927
    %v938 = vpop.f32.mrf.mxu0
    %v939 = vadd.f32 %v912, %v938
    %v940 = vpop.f32.mrf.mxu0
    %v941 = vadd.f32 %v912, %v940
    %942 = vdwg.mxu0
    %v943 = vmax.f32 %v939, 0.0
    %v944 = vmax.f32 %v941, 0.0
    %v945 = vld [vmem:[%s8] sm:$0xf]
    %v946 = vld [vmem:[%s8 + $0x4] sm:$0xf]
    %v947 = vld [vmem:[%s8 + $0x8] sm:$0xf]
    %v948 = vld [vmem:[%s8 + $0xc] sm:$0xf]
    %v949 = vld [vmem:[%s8 + $0x10] sm:$0xf]
    %v950 = vld [vmem:[%s8 + $0x14] sm:$0xf]
    %v951 = vld [vmem:[%s8 + $0x18] sm:$0xf]
    %v952 = vld [vmem:[%s8 + $0x1c] sm:$0xf]
    %v953 = vpack.c.bf16 %v944, %v943
    %v954 = vld [vmem:[%s9] sm:$0x1]
    %v956 = vperm.slane %v954, 0
    %v966 = vunpack.c.l.b16 %v945
    %v967 = vunpack.c.l.b16 %v946
    %v968 = vunpack.c.l.b16 %v947
    %v969 = vunpack.c.l.b16 %v948
    %v970 = vunpack.c.l.b16 %v949
    %v971 = vunpack.c.l.b16 %v950
    %v972 = vunpack.c.l.b16 %v951
    %v973 = vunpack.c.l.b16 %v952
    %v974 = vpack.c.b16 %v967, %v966
    %v975 = vpack.c.b16 %v969, %v968
    %v976 = vpack.c.b16 %v971, %v970
    %v977 = vpack.c.b16 %v973, %v972
    %vm982 = vcmask 523264
    %v984 = vsel %vm982, %v953, 0
    %986 = vmatpush.bf16.msra.mxu0 0
    %987 = vmatpush.bf16.msra.mxu0 0
    %988 = vmatpush.bf16.msra.mxu0 0
    %989 = vmatpush.bf16.msra.mxu0 0
    %990 = vmatpush.bf16.msra.mxu0 %v977
    %991 = vmatpush.bf16.msra.mxu0 %v976
    %992 = vmatpush.bf16.msra.mxu0 %v975
    %993 = vmatpush.bf16.msra.mxu0 %v974
    %994 = vmatmul.bf16.gmra.mxu0 %v984
    %v995 = vpop.f32.mrf.mxu0
    %v996 = vadd.f32 %v956, %v995
    %v997 = vpop.f32.mrf.mxu0
    %v998 = vadd.f32 %v956, %v997
    %999 = vdwg.mxu0
    %v1000 = vadd.f32 %v903, %v996
    %v1001 = vadd.f32 %v904, %v998
    %v1002 = vld [vmem:[%s12] sm:$0x1]
    %v1003 = vld [vmem:[%s13] sm:$0x1]
    %v1004 = vsel %vm115, %v1000, 0.0
    %1005 = vadd.xlane.f32.xlu0 %v1004
    %v1006 = vpop.xlane.xlu0 %1005
    %v1007 = vsel %vm115, %v1001, 0.0
    %1008 = vadd.xlane.f32.xlu0 %v1007
    %v1009 = vpop.xlane.xlu0 %1008
    %v1010 = vmul.f32 %v1006, %v856
    %v1011 = vmul.f32 %v1009, %v856
    %v1012 = vsub.f32 %v1000, %v1010
    %v1013 = vsub.f32 %v1001, %v1011
    %v1014 = vmul.f32 %v1012, %v1012
    %v1015 = vmul.f32 %v1013, %v1013
    %v1016 = vsel %vm115, %v1014, 0.0
    %1017 = vadd.xlane.f32.xlu0 %v1016
    %v1018 = vpop.xlane.xlu0 %1017
    %v1019 = vsel %vm115, %v1015, 0.0
    %1020 = vadd.xlane.f32.xlu0 %v1019
    %v1021 = vpop.xlane.xlu0 %1020
    %v1022 = vmul.f32 %v1018, %v856
    %v1023 = vmul.f32 %v1021, %v856
    %v1024 = vadd.f32 %v1022, 1e-05
    %v1025 = vadd.f32 %v1023, 1e-05
    %v1026 = vrsqrt.pop %v1024
    %v1027 = vmul.f32 %v1026, %v1024
    %v1028 = vmul.f32 %v1027, %v1026
    %v1029 = vmul.f32 0.5, %v1028
    %v1030 = vsub.f32 1.5, %v1029
    %v1031 = vmul.f32 %v1026, %v1030
    %vm1032 = vweird.f32 %v1024
    %vm1033 = vweird.f32 %v1026
    %vm1034 = vmor %vm1032, %vm1033
    %v1035 = vsel %vm1034, %v1026, %v1031
    %v1036 = vrsqrt.pop %v1025
    %v1037 = vmul.f32 %v1036, %v1025
    %v1038 = vmul.f32 %v1037, %v1036
    %v1039 = vmul.f32 0.5, %v1038
    %v1040 = vsub.f32 1.5, %v1039
    %v1041 = vmul.f32 %v1036, %v1040
    %vm1042 = vweird.f32 %v1025
    %vm1043 = vweird.f32 %v1036
    %vm1044 = vmor %vm1042, %vm1043
    %v1045 = vsel %vm1044, %v1036, %v1041
    %v1046 = vmul.f32 %v1012, %v1035
    %v1047 = vmul.f32 %v1013, %v1045
    %v1049 = vperm.slane %v1002, 0
    %v1051 = vmul.f32 %v1046, %v1049
    %v1052 = vmul.f32 %v1047, %v1049
    %v1054 = vperm.slane %v1003, 0
    %v1056 = vadd.f32 %v1051, %v1054
    %v1057 = vadd.f32 %v1052, %v1054
    %v1058 = vpack.c.bf16 %v1056, %v1056
    %v1059 = vpack.c.bf16 %v1057, %v1057
    %vm1060 = vcmask 257024
    %1061 = vst.msk [vmem:[%s16] sm:$0xf] %vm1060, %v1058
    %1062 = vst.msk [vmem:[%s16 + $0x4] sm:$0xf] %vm1060, %v1059
    // Predicated region
    $region74: #{a_call__.5} parent=1 // pred_check
      _
    $region75: #{a_call__.5} parent=1 // pred_check_branch
      %1064 = sbr.rel (0) target = $region77
    $region76: #{a_call__.5} parent=1 // pred_region
      _
    $region77: #{a_call__.5} parent=1 // pred_fallthru
      _
    // Predicated region
    $region78: #{a_call__.5} parent=1 // pred_check
      _
    $region79: #{a_call__.5} parent=1 // pred_check_branch
      %1066 = sbr.rel (0) target = $region81
    $region80: #{a_call__.5} parent=1 // pred_region
      _
    $region81: #{a_call__.5} parent=1 // pred_fallthru
      _
    %1067 = vsyncpa [#allocation3], 1
    %1068 = vsyncpa [#allocation5], 1

// kernel: a_call__.7
$region0: #{a_call__.7}
  #allocation0 [shape = 'u32[]', space=smem, size = 0x4, offset = 0x4, fixed_abs, tag = 'smem constant byte address 0x4 - core index']
  #allocation1 [shape = 'u32[72,128]{1,0:T(1,128)}', space=vmem, size = 0x9000, scoped, tag = 'internal scratch']
  %s0 = inlined_call_operand.vmem [shape: bf16[16,32], index: 0, kind: input, shape index: {}]
  %s1 = inlined_call_operand.vmem [shape: bf16[16,32], index: 1, kind: input, shape index: {}]
  %s2 = inlined_call_operand.vmem [shape: f32[2,1,8], index: 2, kind: input, shape index: {}]
  %s3 = inlined_call_operand.vmem [shape: f32[2,1,8], index: 3, kind: input, shape index: {}]
  %s4 = inlined_call_operand.vmem [shape: f32[8,8], index: 4, kind: input, shape index: {}]
  %s5 = inlined_call_operand.vmem [shape: bf16[32,96], index: 5, kind: input, shape index: {}]
  %s6 = inlined_call_operand.vmem [shape: f32[1,96], index: 6, kind: input, shape index: {}]
  %s7 = inlined_call_operand.vmem [shape: bf16[32,32], index: 7, kind: input, shape index: {}]
  %s8 = inlined_call_operand.vmem [shape: f32[1,32], index: 8, kind: input, shape index: {}, may-alias: {8,10,14,18,20,22,24}]
  %s9 = inlined_call_operand.vmem [shape: bf16[32,32], index: 9, kind: input, shape index: {}]
  %s10 = inlined_call_operand.vmem [shape: f32[1,32], index: 10, kind: input, shape index: {}, may-alias: {8,10,14,18,20,22,24}]
  %s11 = inlined_call_operand.vmem [shape: bf16[32,64], index: 11, kind: input, shape index: {}]
  %s12 = inlined_call_operand.vmem [shape: f32[1,64], index: 12, kind: input, shape index: {}, may-alias: {12,16}]
  %s13 = inlined_call_operand.vmem [shape: bf16[32,32], index: 13, kind: input, shape index: {}]
  %s14 = inlined_call_operand.vmem [shape: f32[1,32], index: 14, kind: input, shape index: {}, may-alias: {8,10,14,18,20,22,24}]
  %s15 = inlined_call_operand.vmem [shape: bf16[32,64], index: 15, kind: input, shape index: {}]
  %s16 = inlined_call_operand.vmem [shape: f32[1,64], index: 16, kind: input, shape index: {}, may-alias: {12,16}]
  %s17 = inlined_call_operand.vmem [shape: bf16[64,32], index: 17, kind: input, shape index: {}]
  %s18 = inlined_call_operand.vmem [shape: f32[1,32], index: 18, kind: input, shape index: {}, may-alias: {8,10,14,18,20,22,24}]
  %s19 = inlined_call_operand.vmem [shape: f32[1,32], index: 19, kind: input, shape index: {}, may-alias: {19,21,23}]
  %s20 = inlined_call_operand.vmem [shape: f32[1,32], index: 20, kind: input, shape index: {}, may-alias: {8,10,14,18,20,22,24}]
  %s21 = inlined_call_operand.vmem [shape: f32[1,32], index: 21, kind: input, shape index: {}, may-alias: {19,21,23}]
  %s22 = inlined_call_operand.vmem [shape: f32[1,32], index: 22, kind: input, shape index: {}, may-alias: {8,10,14,18,20,22,24}]
  %s23 = inlined_call_operand.vmem [shape: f32[1,32], index: 23, kind: input, shape index: {}, may-alias: {19,21,23}]
  %s24 = inlined_call_operand.vmem [shape: f32[1,32], index: 24, kind: input, shape index: {}, may-alias: {8,10,14,18,20,22,24}]
  %s25 = inlined_call_operand.vmem [shape: bf16[16,32], index: 25, kind: output, shape index: {}]
  %s26 = sld [smem:[#allocation0]]
  $region110: #{a_call__.7} parent=0
    _
  %s28 = ssub.s32 1, %s26
  %s29 = scalar_select 0, %s28, %s26
  // Predicated region
  $region2: #{a_call__.7} parent=0 // pred_check
    _
  $region3: #{a_call__.7} parent=0 // pred_check_branch
    %31 = sbr.rel (0) target = $region5
  $region4: #{a_call__.7} parent=0 // pred_region
    _
  $region5: #{a_call__.7} parent=0 // pred_fallthru
    _
  // Predicated region
  $region6: #{a_call__.7} parent=0 // pred_check
    _
  $region7: #{a_call__.7} parent=0 // pred_check_branch
    %33 = sbr.rel (0) target = $region9
  $region8: #{a_call__.7} parent=0 // pred_region
    _
  $region9: #{a_call__.7} parent=0 // pred_fallthru
    _
  // Predicated region
  $region10: #{a_call__.7} parent=0 // pred_check
    _
  $region11: #{a_call__.7} parent=0 // pred_check_branch
    %35 = sbr.rel (0) target = $region13
  $region12: #{a_call__.7} parent=0 // pred_region
    _
  $region13: #{a_call__.7} parent=0 // pred_fallthru
    _
  // Predicated region
  $region14: #{a_call__.7} parent=0 // pred_check
    _
  $region15: #{a_call__.7} parent=0 // pred_check_branch
    %37 = sbr.rel (0) target = $region17
  $region16: #{a_call__.7} parent=0 // pred_region
    _
  $region17: #{a_call__.7} parent=0 // pred_fallthru
    _
  // Predicated region
  $region18: #{a_call__.7} parent=0 // pred_check
    _
  $region19: #{a_call__.7} parent=0 // pred_check_branch
    %39 = sbr.rel (0) target = $region21
  $region20: #{a_call__.7} parent=0 // pred_region
    _
  $region21: #{a_call__.7} parent=0 // pred_fallthru
    _
  // Predicated region
  $region22: #{a_call__.7} parent=0 // pred_check
    _
  $region23: #{a_call__.7} parent=0 // pred_check_branch
    %41 = sbr.rel (0) target = $region25
  $region24: #{a_call__.7} parent=0 // pred_region
    _
  $region25: #{a_call__.7} parent=0 // pred_fallthru
    _
  // Predicated region
  $region26: #{a_call__.7} parent=0 // pred_check
    _
  $region27: #{a_call__.7} parent=0 // pred_check_branch
    %43 = sbr.rel (0) target = $region29
  $region28: #{a_call__.7} parent=0 // pred_region
    _
  $region29: #{a_call__.7} parent=0 // pred_fallthru
    _
  // Predicated region
  $region30: #{a_call__.7} parent=0 // pred_check
    _
  $region31: #{a_call__.7} parent=0 // pred_check_branch
    %45 = sbr.rel (0) target = $region33
  $region32: #{a_call__.7} parent=0 // pred_region
    _
  $region33: #{a_call__.7} parent=0 // pred_fallthru
    _
  // Predicated region
  $region34: #{a_call__.7} parent=0 // pred_check
    _
  $region35: #{a_call__.7} parent=0 // pred_check_branch
    %47 = sbr.rel (0) target = $region37
  $region36: #{a_call__.7} parent=0 // pred_region
    _
  $region37: #{a_call__.7} parent=0 // pred_fallthru
    _
  // Predicated region
  $region38: #{a_call__.7} parent=0 // pred_check
    _
  $region39: #{a_call__.7} parent=0 // pred_check_branch
    %49 = sbr.rel (0) target = $region41
  $region40: #{a_call__.7} parent=0 // pred_region
    _
  $region41: #{a_call__.7} parent=0 // pred_fallthru
    _
  // Predicated region
  $region42: #{a_call__.7} parent=0 // pred_check
    _
  $region43: #{a_call__.7} parent=0 // pred_check_branch
    %51 = sbr.rel (0) target = $region45
  $region44: #{a_call__.7} parent=0 // pred_region
    _
  $region45: #{a_call__.7} parent=0 // pred_fallthru
    _
  // Predicated region
  $region46: #{a_call__.7} parent=0 // pred_check
    _
  $region47: #{a_call__.7} parent=0 // pred_check_branch
    %53 = sbr.rel (0) target = $region49
  $region48: #{a_call__.7} parent=0 // pred_region
    _
  $region49: #{a_call__.7} parent=0 // pred_fallthru
    _
  // Predicated region
  $region50: #{a_call__.7} parent=0 // pred_check
    _
  $region51: #{a_call__.7} parent=0 // pred_check_branch
    %55 = sbr.rel (0) target = $region53
  $region52: #{a_call__.7} parent=0 // pred_region
    _
  $region53: #{a_call__.7} parent=0 // pred_fallthru
    _
  // Predicated region
  $region54: #{a_call__.7} parent=0 // pred_check
    _
  $region55: #{a_call__.7} parent=0 // pred_check_branch
    %57 = sbr.rel (0) target = $region57
  $region56: #{a_call__.7} parent=0 // pred_region
    _
  $region57: #{a_call__.7} parent=0 // pred_fallthru
    _
  // Predicated region
  $region58: #{a_call__.7} parent=0 // pred_check
    _
  $region59: #{a_call__.7} parent=0 // pred_check_branch
    %59 = sbr.rel (0) target = $region61
  $region60: #{a_call__.7} parent=0 // pred_region
    _
  $region61: #{a_call__.7} parent=0 // pred_fallthru
    _
  // Predicated region
  $region62: #{a_call__.7} parent=0 // pred_check
    _
  $region63: #{a_call__.7} parent=0 // pred_check_branch
    %61 = sbr.rel (0) target = $region65
  $region64: #{a_call__.7} parent=0 // pred_region
    _
  $region65: #{a_call__.7} parent=0 // pred_fallthru
    _
  // Predicated region
  $region66: #{a_call__.7} parent=0 // pred_check
    _
  $region67: #{a_call__.7} parent=0 // pred_check_branch
    %63 = sbr.rel (0) target = $region69
  $region68: #{a_call__.7} parent=0 // pred_region
    _
  $region69: #{a_call__.7} parent=0 // pred_fallthru
    _
  // Predicated region
  $region70: #{a_call__.7} parent=0 // pred_check
    _
  $region71: #{a_call__.7} parent=0 // pred_check_branch
    %65 = sbr.rel (0) target = $region73
  $region72: #{a_call__.7} parent=0 // pred_region
    _
  $region73: #{a_call__.7} parent=0 // pred_fallthru
    _
  // Predicated region
  $region74: #{a_call__.7} parent=0 // pred_check
    _
  $region75: #{a_call__.7} parent=0 // pred_check_branch
    %67 = sbr.rel (0) target = $region77
  $region76: #{a_call__.7} parent=0 // pred_region
    _
  $region77: #{a_call__.7} parent=0 // pred_fallthru
    _
  // Predicated region
  $region78: #{a_call__.7} parent=0 // pred_check
    _
  $region79: #{a_call__.7} parent=0 // pred_check_branch
    %69 = sbr.rel (0) target = $region81
  $region80: #{a_call__.7} parent=0 // pred_region
    _
  $region81: #{a_call__.7} parent=0 // pred_fallthru
    _
  // Predicated region
  $region82: #{a_call__.7} parent=0 // pred_check
    _
  $region83: #{a_call__.7} parent=0 // pred_check_branch
    %71 = sbr.rel (0) target = $region85
  $region84: #{a_call__.7} parent=0 // pred_region
    _
  $region85: #{a_call__.7} parent=0 // pred_fallthru
    _
  // Predicated region
  $region86: #{a_call__.7} parent=0 // pred_check
    _
  $region87: #{a_call__.7} parent=0 // pred_check_branch
    %73 = sbr.rel (0) target = $region89
  $region88: #{a_call__.7} parent=0 // pred_region
    _
  $region89: #{a_call__.7} parent=0 // pred_fallthru
    _
  // Predicated region
  $region90: #{a_call__.7} parent=0 // pred_check
    _
  $region91: #{a_call__.7} parent=0 // pred_check_branch
    %75 = sbr.rel (0) target = $region93
  $region92: #{a_call__.7} parent=0 // pred_region
    _
  $region93: #{a_call__.7} parent=0 // pred_fallthru
    _
  // Predicated region
  $region94: #{a_call__.7} parent=0 // pred_check
    _
  $region95: #{a_call__.7} parent=0 // pred_check_branch
    %77 = sbr.rel (0) target = $region97
  $region96: #{a_call__.7} parent=0 // pred_region
    _
  $region97: #{a_call__.7} parent=0 // pred_fallthru
    _
  // Predicated region
  $region98: #{a_call__.7} parent=0 // pred_check
    _
  $region99: #{a_call__.7} parent=0 // pred_check_branch
    %79 = sbr.rel (0) target = $region101
  $region100: #{a_call__.7} parent=0 // pred_region
    _
  $region101: #{a_call__.7} parent=0 // pred_fallthru
    _
  %v81 = vld [vmem:[%s0] sm:$0xf]
  %v82 = vld [vmem:[%s0 + $0x4] sm:$0xf]
  %v83 = vunpack.c.l.bf16 %v81
  %v84 = vunpack.c.l.bf16 %v82
  %v85 = vld [vmem:[%s1] sm:$0xf]
  %v86 = vld [vmem:[%s1 + $0x4] sm:$0xf]
  %v87 = vld [vmem:[%s4] sm:$0xff]
  %v88 = vld [vmem:[%s5] sm:$0xf]
  %v89 = vld [vmem:[%s5 + $0x4] sm:$0xf]
  %v90 = vld [vmem:[%s5 + $0x8] sm:$0xf]
  %v91 = vld [vmem:[%s5 + $0xc] sm:$0xf]
  %v92 = vld [vmem:[%s6] sm:$0x1]
  %v94 = vperm.slane %v92, 0
  %v98 = vunpack.c.l.b16 %v81
  %v99 = vunpack.c.l.b16 %v82
  %v100 = vpack.c.b16 %v99, %v98
  %v105 = vunpack.c.l.b16 %v88
  %v106 = vunpack.c.l.b16 %v89
  %v107 = vunpack.c.l.b16 %v90
  %v108 = vunpack.c.l.b16 %v91
  %v109 = vpack.c.b16 %v106, %v105
  %v110 = vpack.c.b16 %v108, %v107
  %vm113 = vcmask 261120
  %v115 = vsel %vm113, %v100, 0
  %117 = vmatpush.bf16.msra.mxu0 0
  %118 = vmatpush.bf16.msra.mxu0 0
  %119 = vmatpush.bf16.msra.mxu0 0
  %120 = vmatpush.bf16.msra.mxu0 0
  %121 = vmatpush.bf16.msra.mxu0 0
  %122 = vmatpush.bf16.msra.mxu0 0
  %123 = vmatpush.bf16.msra.mxu0 %v110
  %124 = vmatpush.bf16.msra.mxu0 %v109
  %125 = vmatmul.bf16.gmra.mxu0 %v115
  %v126 = vpop.f32.mrf.mxu0
  %v127 = vadd.f32 %v94, %v126
  %v128 = vpop.f32.mrf.mxu0
  %v129 = vadd.f32 %v94, %v128
  %130 = vdwg.mxu0
  %v131 = vld [vmem:[%s7] sm:$0xf]
  %v132 = vld [vmem:[%s7 + $0x4] sm:$0xf]
  %v133 = vld [vmem:[%s7 + $0x8] sm:$0xf]
  %v134 = vld [vmem:[%s7 + $0xc] sm:$0xf]
  %v135 = vld [vmem:[%s2] sm:$0x1]
  %v137 = vperm.slane %v135, 0
  %v139 = vadd.f32 %v87, %v137
  %141 = vrot.lane.b32.xlu0 %v127, 96
  %v142 = vpop.permute.xlu0 %141
  %vm143 = vcmask 64512
  %v144 = vsel %vm143, %v127, 0
  %v146 = vsel %vm143, %v142, 0
  %148 = vmatpush.xpose.msra.mxu0 0.0
  %149 = vmatpush.xpose.msra.mxu0 0.0
  %150 = vmatpush.xpose.msra.mxu0 0.0
  %151 = vmatpush.xpose.msra.mxu0 0.0
  %152 = vmatpush.xpose.msra.mxu0 0.0
  %153 = vmatpush.xpose.msra.mxu0 0.0
  %154 = vmatpush.xpose.msra.mxu0 0.0
  %155 = vmatpush.xpose.msra.mxu0 0.0
  %156 = vmatpush.xpose.msra.mxu0 0.0
  %157 = vmatpush.xpose.msra.mxu0 0.0
  %158 = vmatpush.xpose.msra.mxu0 0.0
  %159 = vmatpush.xpose.msra.mxu0 0.0
  %160 = vmatpush.xpose.msra.mxu0 0.0
  %161 = vmatpush.xpose.msra.mxu0 0.0
  %162 = vmatpush.xpose.msra.mxu0 0.0
  %163 = vmatpush.xpose.msra.mxu0 %v146
  %164 = vmatmul.f32.gmra.mxu0 %v144
  %v165 = vpop.f32.mrf.mxu0
  %v166 = vadd.f32 0.0, %v165
  %167 = vdwg.mxu0
  %v168 = vmul.f32 %v166, 0.35355338
  %v169 = vadd.f32 %v168, %v139
  %v170 = vsel %vm143, %v169, -inf
  %171 = vmax.xlane.f32.xlu0 %v170
  %v172 = vpop.xlane.xlu0 %171
  %v173 = vsub.f32 %v169, %v172
  %v174 = vmul.f32 %v173, 1.442695
  %v175 = vpow.pop %v174
  %v176 = vsel %vm143, %v175, 0.0
  %177 = vadd.xlane.f32.xlu0 %v176
  %v178 = vpop.xlane.xlu0 %177
  %v179 = vrcp.pop %v178
  %v180 = vmul.f32 %v175, %v179
  %181 = vrot.lane.b32.xlu0 %v127, 64
  %v182 = vpop.permute.xlu0 %181
  %v185 = vsel %vm143, %v180, 0
  %187 = vmatpush.msra.mxu0 0.0
  %188 = vmatpush.msra.mxu0 0.0
  %189 = vmatpush.msra.mxu0 0.0
  %190 = vmatpush.msra.mxu0 0.0
  %191 = vmatpush.msra.mxu0 0.0
  %192 = vmatpush.msra.mxu0 0.0
  %193 = vmatpush.msra.mxu0 0.0
  %194 = vmatpush.msra.mxu0 0.0
  %195 = vmatpush.msra.mxu0 0.0
  %196 = vmatpush.msra.mxu0 0.0
  %197 = vmatpush.msra.mxu0 0.0
  %198 = vmatpush.msra.mxu0 0.0
  %199 = vmatpush.msra.mxu0 0.0
  %200 = vmatpush.msra.mxu0 0.0
  %201 = vmatpush.msra.mxu0 0.0
  %202 = vmatpush.msra.mxu0 %v182
  %203 = vmatmul.f32.gmra.mxu0 %v185
  %v204 = vpop.f32.mrf.mxu0
  %v205 = vadd.f32 0.0, %v204
  %206 = vdwg.mxu0
  %v207 = vpack.c.bf16 %v205, %v205
  %208 = vrot.lane.b32.xlu0 %v127, 120
  %v209 = vpop.permute.xlu0 %208
  %210 = vrot.lane.b32.xlu0 %v127, 88
  %v211 = vpop.permute.xlu0 %210
  %v212 = vsel %vm143, %v209, 0
  %v214 = vsel %vm143, %v211, 0
  %216 = vmatpush.xpose.msra.mxu0 0.0
  %217 = vmatpush.xpose.msra.mxu0 0.0
  %218 = vmatpush.xpose.msra.mxu0 0.0
  %219 = vmatpush.xpose.msra.mxu0 0.0
  %220 = vmatpush.xpose.msra.mxu0 0.0
  %221 = vmatpush.xpose.msra.mxu0 0.0
  %222 = vmatpush.xpose.msra.mxu0 0.0
  %223 = vmatpush.xpose.msra.mxu0 0.0
  %224 = vmatpush.xpose.msra.mxu0 0.0
  %225 = vmatpush.xpose.msra.mxu0 0.0
  %226 = vmatpush.xpose.msra.mxu0 0.0
  %227 = vmatpush.xpose.msra.mxu0 0.0
  %228 = vmatpush.xpose.msra.mxu0 0.0
  %229 = vmatpush.xpose.msra.mxu0 0.0
  %230 = vmatpush.xpose.msra.mxu0 0.0
  %231 = vmatpush.xpose.msra.mxu0 %v214
  %232 = vmatmul.f32.gmra.mxu0 %v212
  %v233 = vpop.f32.mrf.mxu0
  %v234 = vadd.f32 0.0, %v233
  %235 = vdwg.mxu0
  %v236 = vmul.f32 %v234, 0.35355338
  %v237 = vadd.f32 %v236, %v139
  %v238 = vsel %vm143, %v237, -inf
  %239 = vmax.xlane.f32.xlu0 %v238
  %v240 = vpop.xlane.xlu0 %239
  %v241 = vsub.f32 %v237, %v240
  %v242 = vmul.f32 %v241, 1.442695
  %v243 = vpow.pop %v242
  %v244 = vsel %vm143, %v243, 0.0
  %245 = vadd.xlane.f32.xlu0 %v244
  %v246 = vpop.xlane.xlu0 %245
  %v247 = vrcp.pop %v246
  %v248 = vmul.f32 %v243, %v247
  %249 = vrot.lane.b32.xlu0 %v127, 56
  %v250 = vpop.permute.xlu0 %249
  %v253 = vsel %vm143, %v248, 0
  %255 = vmatpush.msra.mxu0 0.0
  %256 = vmatpush.msra.mxu0 0.0
  %257 = vmatpush.msra.mxu0 0.0
  %258 = vmatpush.msra.mxu0 0.0
  %259 = vmatpush.msra.mxu0 0.0
  %260 = vmatpush.msra.mxu0 0.0
  %261 = vmatpush.msra.mxu0 0.0
  %262 = vmatpush.msra.mxu0 0.0
  %263 = vmatpush.msra.mxu0 0.0
  %264 = vmatpush.msra.mxu0 0.0
  %265 = vmatpush.msra.mxu0 0.0
  %266 = vmatpush.msra.mxu0 0.0
  %267 = vmatpush.msra.mxu0 0.0
  %268 = vmatpush.msra.mxu0 0.0
  %269 = vmatpush.msra.mxu0 0.0
  %270 = vmatpush.msra.mxu0 %v250
  %271 = vmatmul.f32.gmra.mxu0 %v253
  %v272 = vpop.f32.mrf.mxu0
  %v273 = vadd.f32 0.0, %v272
  %274 = vdwg.mxu0
  %v275 = vpack.c.bf16 %v273, %v273
  %v277 = vsel %vm143, %v275, 0
  %vm279 = vcmask 1043456
  %v281 = vsel %vm279, %v132, 0
  %283 = vmatpush.bf16.msra.mxu0 0
  %284 = vmatpush.bf16.msra.mxu0 0
  %285 = vmatpush.bf16.msra.mxu0 0
  %286 = vmatpush.bf16.msra.mxu0 0
  %287 = vmatpush.bf16.msra.mxu0 0
  %288 = vmatpush.bf16.msra.mxu0 0
  %289 = vmatpush.bf16.msra.mxu0 0
  %290 = vmatpush.bf16.msra.mxu0 %v281
  %291 = vmatmul.bf16.gmra.mxu0 %v277
  %v292 = vpop.f32.mrf.mxu0
  %v293 = vadd.f32 0.0, %v292
  %v294 = vpop.f32.mrf.mxu0
  %295 = vdwg.mxu0
  %v297 = vsel %vm143, %v207, 0
  %v300 = vsel %vm279, %v131, 0
  %302 = vmatpush.bf16.msra.mxu0 0
  %303 = vmatpush.bf16.msra.mxu0 0
  %304 = vmatpush.bf16.msra.mxu0 0
  %305 = vmatpush.bf16.msra.mxu0 0
  %306 = vmatpush.bf16.msra.mxu0 0
  %307 = vmatpush.bf16.msra.mxu0 0
  %308 = vmatpush.bf16.msra.mxu0 0
  %309 = vmatpush.bf16.msra.mxu0 %v300
  %310 = vmatmul.bf16.gmra.mxu0 %v297
  %v311 = vpop.f32.mrf.mxu0
  %v312 = vadd.f32 %v293, %v311
  %v313 = vpop.f32.mrf.mxu0
  %314 = vdwg.mxu0
  %315 = vrot.lane.b32.xlu0 %v127, 112
  %v316 = vpop.permute.xlu0 %315
  %317 = vrot.lane.b32.xlu0 %v127, 80
  %v318 = vpop.permute.xlu0 %317
  %v319 = vsel %vm143, %v316, 0
  %v321 = vsel %vm143, %v318, 0
  %323 = vmatpush.xpose.msra.mxu0 0.0
  %324 = vmatpush.xpose.msra.mxu0 0.0
  %325 = vmatpush.xpose.msra.mxu0 0.0
  %326 = vmatpush.xpose.msra.mxu0 0.0
  %327 = vmatpush.xpose.msra.mxu0 0.0
  %328 = vmatpush.xpose.msra.mxu0 0.0
  %329 = vmatpush.xpose.msra.mxu0 0.0
  %330 = vmatpush.xpose.msra.mxu0 0.0
  %331 = vmatpush.xpose.msra.mxu0 0.0
  %332 = vmatpush.xpose.msra.mxu0 0.0
  %333 = vmatpush.xpose.msra.mxu0 0.0
  %334 = vmatpush.xpose.msra.mxu0 0.0
  %335 = vmatpush.xpose.msra.mxu0 0.0
  %336 = vmatpush.xpose.msra.mxu0 0.0
  %337 = vmatpush.xpose.msra.mxu0 0.0
  %338 = vmatpush.xpose.msra.mxu0 %v321
  %339 = vmatmul.f32.gmra.mxu0 %v319
  %v340 = vpop.f32.mrf.mxu0
  %v341 = vadd.f32 0.0, %v340
  %342 = vdwg.mxu0
  %v343 = vmul.f32 %v341, 0.35355338
  %v344 = vadd.f32 %v343, %v139
  %v345 = vsel %vm143, %v344, -inf
  %346 = vmax.xlane.f32.xlu0 %v345
  %v347 = vpop.xlane.xlu0 %346
  %v348 = vsub.f32 %v344, %v347
  %v349 = vmul.f32 %v348, 1.442695
  %v350 = vpow.pop %v349
  %v351 = vsel %vm143, %v350, 0.0
  %352 = vadd.xlane.f32.xlu0 %v351
  %v353 = vpop.xlane.xlu0 %352
  %v354 = vrcp.pop %v353
  %v355 = vmul.f32 %v350, %v354
  %356 = vrot.lane.b32.xlu0 %v127, 48
  %v357 = vpop.permute.xlu0 %356
  %v360 = vsel %vm143, %v355, 0
  %362 = vmatpush.msra.mxu0 0.0
  %363 = vmatpush.msra.mxu0 0.0
  %364 = vmatpush.msra.mxu0 0.0
  %365 = vmatpush.msra.mxu0 0.0
  %366 = vmatpush.msra.mxu0 0.0
  %367 = vmatpush.msra.mxu0 0.0
  %368 = vmatpush.msra.mxu0 0.0
  %369 = vmatpush.msra.mxu0 0.0
  %370 = vmatpush.msra.mxu0 0.0
  %371 = vmatpush.msra.mxu0 0.0
  %372 = vmatpush.msra.mxu0 0.0
  %373 = vmatpush.msra.mxu0 0.0
  %374 = vmatpush.msra.mxu0 0.0
  %375 = vmatpush.msra.mxu0 0.0
  %376 = vmatpush.msra.mxu0 0.0
  %377 = vmatpush.msra.mxu0 %v357
  %378 = vmatmul.f32.gmra.mxu0 %v360
  %v379 = vpop.f32.mrf.mxu0
  %v380 = vadd.f32 0.0, %v379
  %381 = vdwg.mxu0
  %v382 = vpack.c.bf16 %v380, %v380
  %v384 = vsel %vm143, %v382, 0
  %v387 = vsel %vm279, %v133, 0
  %389 = vmatpush.bf16.msra.mxu0 0
  %390 = vmatpush.bf16.msra.mxu0 0
  %391 = vmatpush.bf16.msra.mxu0 0
  %392 = vmatpush.bf16.msra.mxu0 0
  %393 = vmatpush.bf16.msra.mxu0 0
  %394 = vmatpush.bf16.msra.mxu0 0
  %395 = vmatpush.bf16.msra.mxu0 0
  %396 = vmatpush.bf16.msra.mxu0 %v387
  %397 = vmatmul.bf16.gmra.mxu0 %v384
  %v398 = vpop.f32.mrf.mxu0
  %v399 = vadd.f32 0.0, %v398
  %v400 = vpop.f32.mrf.mxu0
  %401 = vdwg.mxu0
  %v402 = vadd.f32 %v312, %v399
  %403 = vrot.lane.b32.xlu0 %v127, 104
  %v404 = vpop.permute.xlu0 %403
  %405 = vrot.lane.b32.xlu0 %v127, 72
  %v406 = vpop.permute.xlu0 %405
  %v407 = vsel %vm143, %v404, 0
  %v409 = vsel %vm143, %v406, 0
  %411 = vmatpush.xpose.msra.mxu0 0.0
  %412 = vmatpush.xpose.msra.mxu0 0.0
  %413 = vmatpush.xpose.msra.mxu0 0.0
  %414 = vmatpush.xpose.msra.mxu0 0.0
  %415 = vmatpush.xpose.msra.mxu0 0.0
  %416 = vmatpush.xpose.msra.mxu0 0.0
  %417 = vmatpush.xpose.msra.mxu0 0.0
  %418 = vmatpush.xpose.msra.mxu0 0.0
  %419 = vmatpush.xpose.msra.mxu0 0.0
  %420 = vmatpush.xpose.msra.mxu0 0.0
  %421 = vmatpush.xpose.msra.mxu0 0.0
  %422 = vmatpush.xpose.msra.mxu0 0.0
  %423 = vmatpush.xpose.msra.mxu0 0.0
  %424 = vmatpush.xpose.msra.mxu0 0.0
  %425 = vmatpush.xpose.msra.mxu0 0.0
  %426 = vmatpush.xpose.msra.mxu0 %v409
  %427 = vmatmul.f32.gmra.mxu0 %v407
  %v428 = vpop.f32.mrf.mxu0
  %v429 = vadd.f32 0.0, %v428
  %430 = vdwg.mxu0
  %v431 = vmul.f32 %v429, 0.35355338
  %v432 = vadd.f32 %v431, %v139
  %v433 = vsel %vm143, %v432, -inf
  %434 = vmax.xlane.f32.xlu0 %v433
  %v435 = vpop.xlane.xlu0 %434
  %v436 = vsub.f32 %v432, %v435
  %v437 = vmul.f32 %v436, 1.442695
  %v438 = vpow.pop %v437
  %v439 = vsel %vm143, %v438, 0.0
  %440 = vadd.xlane.f32.xlu0 %v439
  %v441 = vpop.xlane.xlu0 %440
  %v442 = vrcp.pop %v441
  %v443 = vmul.f32 %v438, %v442
  %444 = vrot.lane.b32.xlu0 %v127, 40
  %v445 = vpop.permute.xlu0 %444
  %v448 = vsel %vm143, %v443, 0
  %450 = vmatpush.msra.mxu0 0.0
  %451 = vmatpush.msra.mxu0 0.0
  %452 = vmatpush.msra.mxu0 0.0
  %453 = vmatpush.msra.mxu0 0.0
  %454 = vmatpush.msra.mxu0 0.0
  %455 = vmatpush.msra.mxu0 0.0
  %456 = vmatpush.msra.mxu0 0.0
  %457 = vmatpush.msra.mxu0 0.0
  %458 = vmatpush.msra.mxu0 0.0
  %459 = vmatpush.msra.mxu0 0.0
  %460 = vmatpush.msra.mxu0 0.0
  %461 = vmatpush.msra.mxu0 0.0
  %462 = vmatpush.msra.mxu0 0.0
  %463 = vmatpush.msra.mxu0 0.0
  %464 = vmatpush.msra.mxu0 0.0
  %465 = vmatpush.msra.mxu0 %v445
  %466 = vmatmul.f32.gmra.mxu0 %v448
  %v467 = vpop.f32.mrf.mxu0
  %v468 = vadd.f32 0.0, %v467
  %469 = vdwg.mxu0
  %v470 = vpack.c.bf16 %v468, %v468
  %v472 = vsel %vm143, %v470, 0
  %v475 = vsel %vm279, %v134, 0
  %477 = vmatpush.bf16.msra.mxu0 0
  %478 = vmatpush.bf16.msra.mxu0 0
  %479 = vmatpush.bf16.msra.mxu0 0
  %480 = vmatpush.bf16.msra.mxu0 0
  %481 = vmatpush.bf16.msra.mxu0 0
  %482 = vmatpush.bf16.msra.mxu0 0
  %483 = vmatpush.bf16.msra.mxu0 0
  %484 = vmatpush.bf16.msra.mxu0 %v475
  %485 = vmatmul.bf16.gmra.mxu0 %v472
  %v486 = vpop.f32.mrf.mxu0
  %v487 = vadd.f32 0.0, %v486
  %v488 = vpop.f32.mrf.mxu0
  %489 = vdwg.mxu0
  %v490 = vadd.f32 %v402, %v487
  %s491 = scalar_lea.vmem %s2, 1
  %v492 = vld [vmem:[%s491] sm:$0x1]
  %v494 = vperm.slane %v492, 0
  %v496 = vadd.f32 %v87, %v494
  %498 = vrot.lane.b32.xlu0 %v129, 96
  %v499 = vpop.permute.xlu0 %498
  %v500 = vsel %vm143, %v129, 0
  %v502 = vsel %vm143, %v499, 0
  %504 = vmatpush.xpose.msra.mxu0 0.0
  %505 = vmatpush.xpose.msra.mxu0 0.0
  %506 = vmatpush.xpose.msra.mxu0 0.0
  %507 = vmatpush.xpose.msra.mxu0 0.0
  %508 = vmatpush.xpose.msra.mxu0 0.0
  %509 = vmatpush.xpose.msra.mxu0 0.0
  %510 = vmatpush.xpose.msra.mxu0 0.0
  %511 = vmatpush.xpose.msra.mxu0 0.0
  %512 = vmatpush.xpose.msra.mxu0 0.0
  %513 = vmatpush.xpose.msra.mxu0 0.0
  %514 = vmatpush.xpose.msra.mxu0 0.0
  %515 = vmatpush.xpose.msra.mxu0 0.0
  %516 = vmatpush.xpose.msra.mxu0 0.0
  %517 = vmatpush.xpose.msra.mxu0 0.0
  %518 = vmatpush.xpose.msra.mxu0 0.0
  %519 = vmatpush.xpose.msra.mxu0 %v502
  %520 = vmatmul.f32.gmra.mxu0 %v500
  %v521 = vpop.f32.mrf.mxu0
  %v522 = vadd.f32 0.0, %v521
  %523 = vdwg.mxu0
  %v524 = vmul.f32 %v522, 0.35355338
  %v525 = vadd.f32 %v524, %v496
  %v526 = vsel %vm143, %v525, -inf
  %527 = vmax.xlane.f32.xlu0 %v526
  %v528 = vpop.xlane.xlu0 %527
  %v529 = vsub.f32 %v525, %v528
  %v530 = vmul.f32 %v529, 1.442695
  %v531 = vpow.pop %v530
  %v532 = vsel %vm143, %v531, 0.0
  %533 = vadd.xlane.f32.xlu0 %v532
  %v534 = vpop.xlane.xlu0 %533
  %v535 = vrcp.pop %v534
  %v536 = vmul.f32 %v531, %v535
  %537 = vrot.lane.b32.xlu0 %v129, 64
  %v538 = vpop.permute.xlu0 %537
  %v541 = vsel %vm143, %v536, 0
  %543 = vmatpush.msra.mxu0 0.0
  %544 = vmatpush.msra.mxu0 0.0
  %545 = vmatpush.msra.mxu0 0.0
  %546 = vmatpush.msra.mxu0 0.0
  %547 = vmatpush.msra.mxu0 0.0
  %548 = vmatpush.msra.mxu0 0.0
  %549 = vmatpush.msra.mxu0 0.0
  %550 = vmatpush.msra.mxu0 0.0
  %551 = vmatpush.msra.mxu0 0.0
  %552 = vmatpush.msra.mxu0 0.0
  %553 = vmatpush.msra.mxu0 0.0
  %554 = vmatpush.msra.mxu0 0.0
  %555 = vmatpush.msra.mxu0 0.0
  %556 = vmatpush.msra.mxu0 0.0
  %557 = vmatpush.msra.mxu0 0.0
  %558 = vmatpush.msra.mxu0 %v538
  %559 = vmatmul.f32.gmra.mxu0 %v541
  %v560 = vpop.f32.mrf.mxu0
  %v561 = vadd.f32 0.0, %v560
  %562 = vdwg.mxu0
  %v563 = vpack.c.bf16 %v561, %v561
  %564 = vrot.lane.b32.xlu0 %v129, 120
  %v565 = vpop.permute.xlu0 %564
  %566 = vrot.lane.b32.xlu0 %v129, 88
  %v567 = vpop.permute.xlu0 %566
  %v568 = vsel %vm143, %v565, 0
  %v570 = vsel %vm143, %v567, 0
  %572 = vmatpush.xpose.msra.mxu0 0.0
  %573 = vmatpush.xpose.msra.mxu0 0.0
  %574 = vmatpush.xpose.msra.mxu0 0.0
  %575 = vmatpush.xpose.msra.mxu0 0.0
  %576 = vmatpush.xpose.msra.mxu0 0.0
  %577 = vmatpush.xpose.msra.mxu0 0.0
  %578 = vmatpush.xpose.msra.mxu0 0.0
  %579 = vmatpush.xpose.msra.mxu0 0.0
  %580 = vmatpush.xpose.msra.mxu0 0.0
  %581 = vmatpush.xpose.msra.mxu0 0.0
  %582 = vmatpush.xpose.msra.mxu0 0.0
  %583 = vmatpush.xpose.msra.mxu0 0.0
  %584 = vmatpush.xpose.msra.mxu0 0.0
  %585 = vmatpush.xpose.msra.mxu0 0.0
  %586 = vmatpush.xpose.msra.mxu0 0.0
  %587 = vmatpush.xpose.msra.mxu0 %v570
  %588 = vmatmul.f32.gmra.mxu0 %v568
  %v589 = vpop.f32.mrf.mxu0
  %v590 = vadd.f32 0.0, %v589
  %591 = vdwg.mxu0
  %v592 = vmul.f32 %v590, 0.35355338
  %v593 = vadd.f32 %v592, %v496
  %v594 = vsel %vm143, %v593, -inf
  %595 = vmax.xlane.f32.xlu0 %v594
  %v596 = vpop.xlane.xlu0 %595
  %v597 = vsub.f32 %v593, %v596
  %v598 = vmul.f32 %v597, 1.442695
  %v599 = vpow.pop %v598
  %v600 = vsel %vm143, %v599, 0.0
  %601 = vadd.xlane.f32.xlu0 %v600
  %v602 = vpop.xlane.xlu0 %601
  %v603 = vrcp.pop %v602
  %v604 = vmul.f32 %v599, %v603
  %605 = vrot.lane.b32.xlu0 %v129, 56
  %v606 = vpop.permute.xlu0 %605
  %v609 = vsel %vm143, %v604, 0
  %611 = vmatpush.msra.mxu0 0.0
  %612 = vmatpush.msra.mxu0 0.0
  %613 = vmatpush.msra.mxu0 0.0
  %614 = vmatpush.msra.mxu0 0.0
  %615 = vmatpush.msra.mxu0 0.0
  %616 = vmatpush.msra.mxu0 0.0
  %617 = vmatpush.msra.mxu0 0.0
  %618 = vmatpush.msra.mxu0 0.0
  %619 = vmatpush.msra.mxu0 0.0
  %620 = vmatpush.msra.mxu0 0.0
  %621 = vmatpush.msra.mxu0 0.0
  %622 = vmatpush.msra.mxu0 0.0
  %623 = vmatpush.msra.mxu0 0.0
  %624 = vmatpush.msra.mxu0 0.0
  %625 = vmatpush.msra.mxu0 0.0
  %626 = vmatpush.msra.mxu0 %v606
  %627 = vmatmul.f32.gmra.mxu0 %v609
  %v628 = vpop.f32.mrf.mxu0
  %v629 = vadd.f32 0.0, %v628
  %630 = vdwg.mxu0
  %v631 = vpack.c.bf16 %v629, %v629
  %v633 = vsel %vm143, %v631, 0
  %635 = vmatpush.bf16.msra.mxu0 0
  %636 = vmatpush.bf16.msra.mxu0 0
  %637 = vmatpush.bf16.msra.mxu0 0
  %638 = vmatpush.bf16.msra.mxu0 0
  %639 = vmatpush.bf16.msra.mxu0 0
  %640 = vmatpush.bf16.msra.mxu0 0
  %641 = vmatpush.bf16.msra.mxu0 0
  %642 = vmatpush.bf16.msra.mxu0 %v281
  %643 = vmatmul.bf16.gmra.mxu0 %v633
  %v644 = vpop.f32.mrf.mxu0
  %v645 = vadd.f32 0.0, %v644
  %v646 = vpop.f32.mrf.mxu0
  %647 = vdwg.mxu0
  %v649 = vsel %vm143, %v563, 0
  %651 = vmatpush.bf16.msra.mxu0 0
  %652 = vmatpush.bf16.msra.mxu0 0
  %653 = vmatpush.bf16.msra.mxu0 0
  %654 = vmatpush.bf16.msra.mxu0 0
  %655 = vmatpush.bf16.msra.mxu0 0
  %656 = vmatpush.bf16.msra.mxu0 0
  %657 = vmatpush.bf16.msra.mxu0 0
  %658 = vmatpush.bf16.msra.mxu0 %v300
  %659 = vmatmul.bf16.gmra.mxu0 %v649
  %v660 = vpop.f32.mrf.mxu0
  %v661 = vadd.f32 %v645, %v660
  %v662 = vpop.f32.mrf.mxu0
  %663 = vdwg.mxu0
  %664 = vrot.lane.b32.xlu0 %v129, 112
  %v665 = vpop.permute.xlu0 %664
  %666 = vrot.lane.b32.xlu0 %v129, 80
  %v667 = vpop.permute.xlu0 %666
  %v668 = vsel %vm143, %v665, 0
  %v670 = vsel %vm143, %v667, 0
  %672 = vmatpush.xpose.msra.mxu0 0.0
  %673 = vmatpush.xpose.msra.mxu0 0.0
  %674 = vmatpush.xpose.msra.mxu0 0.0
  %675 = vmatpush.xpose.msra.mxu0 0.0
  %676 = vmatpush.xpose.msra.mxu0 0.0
  %677 = vmatpush.xpose.msra.mxu0 0.0
  %678 = vmatpush.xpose.msra.mxu0 0.0
  %679 = vmatpush.xpose.msra.mxu0 0.0
  %680 = vmatpush.xpose.msra.mxu0 0.0
  %681 = vmatpush.xpose.msra.mxu0 0.0
  %682 = vmatpush.xpose.msra.mxu0 0.0
  %683 = vmatpush.xpose.msra.mxu0 0.0
  %684 = vmatpush.xpose.msra.mxu0 0.0
  %685 = vmatpush.xpose.msra.mxu0 0.0
  %686 = vmatpush.xpose.msra.mxu0 0.0
  %687 = vmatpush.xpose.msra.mxu0 %v670
  %688 = vmatmul.f32.gmra.mxu0 %v668
  %v689 = vpop.f32.mrf.mxu0
  %v690 = vadd.f32 0.0, %v689
  %691 = vdwg.mxu0
  %v692 = vmul.f32 %v690, 0.35355338
  %v693 = vadd.f32 %v692, %v496
  %v694 = vsel %vm143, %v693, -inf
  %695 = vmax.xlane.f32.xlu0 %v694
  %v696 = vpop.xlane.xlu0 %695
  %v697 = vsub.f32 %v693, %v696
  %v698 = vmul.f32 %v697, 1.442695
  %v699 = vpow.pop %v698
  %v700 = vsel %vm143, %v699, 0.0
  %701 = vadd.xlane.f32.xlu0 %v700
  %v702 = vpop.xlane.xlu0 %701
  %v703 = vrcp.pop %v702
  %v704 = vmul.f32 %v699, %v703
  %705 = vrot.lane.b32.xlu0 %v129, 48
  %v706 = vpop.permute.xlu0 %705
  %v709 = vsel %vm143, %v704, 0
  %711 = vmatpush.msra.mxu0 0.0
  %712 = vmatpush.msra.mxu0 0.0
  %713 = vmatpush.msra.mxu0 0.0
  %714 = vmatpush.msra.mxu0 0.0
  %715 = vmatpush.msra.mxu0 0.0
  %716 = vmatpush.msra.mxu0 0.0
  %717 = vmatpush.msra.mxu0 0.0
  %718 = vmatpush.msra.mxu0 0.0
  %719 = vmatpush.msra.mxu0 0.0
  %720 = vmatpush.msra.mxu0 0.0
  %721 = vmatpush.msra.mxu0 0.0
  %722 = vmatpush.msra.mxu0 0.0
  %723 = vmatpush.msra.mxu0 0.0
  %724 = vmatpush.msra.mxu0 0.0
  %725 = vmatpush.msra.mxu0 0.0
  %726 = vmatpush.msra.mxu0 %v706
  %727 = vmatmul.f32.gmra.mxu0 %v709
  %v728 = vpop.f32.mrf.mxu0
  %v729 = vadd.f32 0.0, %v728
  %730 = vdwg.mxu0
  %v731 = vpack.c.bf16 %v729, %v729
  %v733 = vsel %vm143, %v731, 0
  %735 = vmatpush.bf16.msra.mxu0 0
  %736 = vmatpush.bf16.msra.mxu0 0
  %737 = vmatpush.bf16.msra.mxu0 0
  %738 = vmatpush.bf16.msra.mxu0 0
  %739 = vmatpush.bf16.msra.mxu0 0
  %740 = vmatpush.bf16.msra.mxu0 0
  %741 = vmatpush.bf16.msra.mxu0 0
  %742 = vmatpush.bf16.msra.mxu0 %v387
  %743 = vmatmul.bf16.gmra.mxu0 %v733
  %v744 = vpop.f32.mrf.mxu0
  %v745 = vadd.f32 0.0, %v744
  %v746 = vpop.f32.mrf.mxu0
  %747 = vdwg.mxu0
  %v748 = vadd.f32 %v661, %v745
  %749 = vrot.lane.b32.xlu0 %v129, 104
  %v750 = vpop.permute.xlu0 %749
  %751 = vrot.lane.b32.xlu0 %v129, 72
  %v752 = vpop.permute.xlu0 %751
  %v753 = vsel %vm143, %v750, 0
  %v755 = vsel %vm143, %v752, 0
  %757 = vmatpush.xpose.msra.mxu0 0.0
  %758 = vmatpush.xpose.msra.mxu0 0.0
  %759 = vmatpush.xpose.msra.mxu0 0.0
  %760 = vmatpush.xpose.msra.mxu0 0.0
  %761 = vmatpush.xpose.msra.mxu0 0.0
  %762 = vmatpush.xpose.msra.mxu0 0.0
  %763 = vmatpush.xpose.msra.mxu0 0.0
  %764 = vmatpush.xpose.msra.mxu0 0.0
  %765 = vmatpush.xpose.msra.mxu0 0.0
  %766 = vmatpush.xpose.msra.mxu0 0.0
  %767 = vmatpush.xpose.msra.mxu0 0.0
  %768 = vmatpush.xpose.msra.mxu0 0.0
  %769 = vmatpush.xpose.msra.mxu0 0.0
  %770 = vmatpush.xpose.msra.mxu0 0.0
  %771 = vmatpush.xpose.msra.mxu0 0.0
  %772 = vmatpush.xpose.msra.mxu0 %v755
  %773 = vmatmul.f32.gmra.mxu0 %v753
  %v774 = vpop.f32.mrf.mxu0
  %v775 = vadd.f32 0.0, %v774
  %776 = vdwg.mxu0
  %v777 = vmul.f32 %v775, 0.35355338
  %v778 = vadd.f32 %v777, %v496
  %v779 = vsel %vm143, %v778, -inf
  %780 = vmax.xlane.f32.xlu0 %v779
  %v781 = vpop.xlane.xlu0 %780
  %v782 = vsub.f32 %v778, %v781
  %v783 = vmul.f32 %v782, 1.442695
  %v784 = vpow.pop %v783
  %v785 = vsel %vm143, %v784, 0.0
  %786 = vadd.xlane.f32.xlu0 %v785
  %v787 = vpop.xlane.xlu0 %786
  %v788 = vrcp.pop %v787
  %v789 = vmul.f32 %v784, %v788
  %790 = vrot.lane.b32.xlu0 %v129, 40
  %v791 = vpop.permute.xlu0 %790
  %v794 = vsel %vm143, %v789, 0
  %796 = vmatpush.msra.mxu0 0.0
  %797 = vmatpush.msra.mxu0 0.0
  %798 = vmatpush.msra.mxu0 0.0
  %799 = vmatpush.msra.mxu0 0.0
  %800 = vmatpush.msra.mxu0 0.0
  %801 = vmatpush.msra.mxu0 0.0
  %802 = vmatpush.msra.mxu0 0.0
  %803 = vmatpush.msra.mxu0 0.0
  %804 = vmatpush.msra.mxu0 0.0
  %805 = vmatpush.msra.mxu0 0.0
  %806 = vmatpush.msra.mxu0 0.0
  %807 = vmatpush.msra.mxu0 0.0
  %808 = vmatpush.msra.mxu0 0.0
  %809 = vmatpush.msra.mxu0 0.0
  %810 = vmatpush.msra.mxu0 0.0
  %811 = vmatpush.msra.mxu0 %v791
  %812 = vmatmul.f32.gmra.mxu0 %v794
  %v813 = vpop.f32.mrf.mxu0
  %v814 = vadd.f32 0.0, %v813
  %815 = vdwg.mxu0
  %v816 = vpack.c.bf16 %v814, %v814
  %v818 = vsel %vm143, %v816, 0
  %820 = vmatpush.bf16.msra.mxu0 0
  %821 = vmatpush.bf16.msra.mxu0 0
  %822 = vmatpush.bf16.msra.mxu0 0
  %823 = vmatpush.bf16.msra.mxu0 0
  %824 = vmatpush.bf16.msra.mxu0 0
  %825 = vmatpush.bf16.msra.mxu0 0
  %826 = vmatpush.bf16.msra.mxu0 0
  %827 = vmatpush.bf16.msra.mxu0 %v475
  %828 = vmatmul.bf16.gmra.mxu0 %v818
  %v829 = vpop.f32.mrf.mxu0
  %v830 = vadd.f32 0.0, %v829
  %v831 = vpop.f32.mrf.mxu0
  %832 = vdwg.mxu0
  %v833 = vadd.f32 %v748, %v830
  %v834 = vld [vmem:[%s8] sm:$0x1]
  %v836 = vperm.slane %v834, 0
  %v838 = vadd.f32 %v490, %v836
  %v839 = vadd.f32 %v833, %v836
  %v840 = vadd.f32 %v83, %v838
  %v841 = vadd.f32 %v84, %v839
  %v842 = vld [vmem:[%s19] sm:$0x1]
  %v843 = vld [vmem:[%s20] sm:$0x1]
  %v844 = vsel %vm113, %v840, 0.0
  %845 = vadd.xlane.f32.xlu0 %v844
  %v846 = vpop.xlane.xlu0 %845
  %v847 = vsel %vm113, %v841, 0.0
  %848 = vadd.xlane.f32.xlu0 %v847
  %v849 = vpop.xlane.xlu0 %848
  %v850 = vrcp.pop 32.0
  %v851 = vmul.f32 32.0, %v850
  %v852 = vsub.f32 1.0, %v851
  %v853 = vmul.f32 %v850, %v852
  %v854 = vadd.f32 %v850, %v853
  %vm855 = vweird.f32 %v850
  %v856 = vsel %vm855, %v850, %v854
  %v857 = vmul.f32 %v846, %v856
  %v858 = vmul.f32 %v849, %v856
  %v859 = vsub.f32 %v840, %v857
  %v860 = vsub.f32 %v841, %v858
  %v861 = vmul.f32 %v859, %v859
  %v862 = vmul.f32 %v860, %v860
  %v863 = vsel %vm113, %v861, 0.0
  %864 = vadd.xlane.f32.xlu0 %v863
  %v865 = vpop.xlane.xlu0 %864
  %v866 = vsel %vm113, %v862, 0.0
  %867 = vadd.xlane.f32.xlu0 %v866
  %v868 = vpop.xlane.xlu0 %867
  %v869 = vmul.f32 %v865, %v856
  %v870 = vmul.f32 %v868, %v856
  %v871 = vadd.f32 %v869, 1e-05
  %v872 = vadd.f32 %v870, 1e-05
  %v873 = vrsqrt.pop %v871
  %v874 = vmul.f32 %v873, %v871
  %v875 = vmul.f32 %v874, %v873
  %v876 = vmul.f32 0.5, %v875
  %v877 = vsub.f32 1.5, %v876
  %v878 = vmul.f32 %v873, %v877
  %vm879 = vweird.f32 %v871
  %vm880 = vweird.f32 %v873
  %vm881 = vmor %vm879, %vm880
  %v882 = vsel %vm881, %v873, %v878
  %v883 = vrsqrt.pop %v872
  %v884 = vmul.f32 %v883, %v872
  %v885 = vmul.f32 %v884, %v883
  %v886 = vmul.f32 0.5, %v885
  %v887 = vsub.f32 1.5, %v886
  %v888 = vmul.f32 %v883, %v887
  %vm889 = vweird.f32 %v872
  %vm890 = vweird.f32 %v883
  %vm891 = vmor %vm889, %vm890
  %v892 = vsel %vm891, %v883, %v888
  %v893 = vmul.f32 %v859, %v882
  %v894 = vmul.f32 %v860, %v892
  %v896 = vperm.slane %v842, 0
  %v898 = vmul.f32 %v893, %v896
  %v899 = vmul.f32 %v894, %v896
  %v901 = vperm.slane %v843, 0
  %v903 = vadd.f32 %v898, %v901
  %v904 = vadd.f32 %v899, %v901
  %v905 = vld [vmem:[%s9] sm:$0xf]
  %v906 = vld [vmem:[%s9 + $0x4] sm:$0xf]
  %v907 = vld [vmem:[%s9 + $0x8] sm:$0xf]
  %v908 = vld [vmem:[%s9 + $0xc] sm:$0xf]
  %v909 = vpack.c.bf16 %v904, %v903
  %v910 = vld [vmem:[%s10] sm:$0x1]
  %v912 = vperm.slane %v910, 0
  %v918 = vunpack.c.l.b16 %v905
  %v919 = vunpack.c.l.b16 %v906
  %v920 = vunpack.c.l.b16 %v907
  %v921 = vunpack.c.l.b16 %v908
  %v922 = vpack.c.b16 %v919, %v918
  %v923 = vpack.c.b16 %v921, %v920
  %v927 = vsel %vm113, %v909, 0
  %929 = vmatpush.bf16.msra.mxu0 0
  %930 = vmatpush.bf16.msra.mxu0 0
  %931 = vmatpush.bf16.msra.mxu0 0
  %932 = vmatpush.bf16.msra.mxu0 0
  %933 = vmatpush.bf16.msra.mxu0 0
  %934 = vmatpush.bf16.msra.mxu0 0
  %935 = vmatpush.bf16.msra.mxu0 %v923
  %936 = vmatpush.bf16.msra.mxu0 %v922
  %937 = vmatmul.bf16.gmra.mxu0 %v927
  %v938 = vpop.f32.mrf.mxu0
  %v939 = vadd.f32 %v912, %v938
  %v940 = vpop.f32.mrf.mxu0
  %v941 = vadd.f32 %v912, %v940
  %942 = vdwg.mxu0
  %v943 = vld [vmem:[%s11] sm:$0xf]
  %v944 = vld [vmem:[%s11 + $0x4] sm:$0xf]
  %v945 = vld [vmem:[%s11 + $0x8] sm:$0xf]
  %v946 = vld [vmem:[%s11 + $0xc] sm:$0xf]
  %v947 = vld [vmem:[%s12] sm:$0x1]
  %v949 = vperm.slane %v947, 0
  %v953 = vunpack.c.l.b16 %v85
  %v954 = vunpack.c.l.b16 %v86
  %v955 = vpack.c.b16 %v954, %v953
  %v960 = vunpack.c.l.b16 %v943
  %v961 = vunpack.c.l.b16 %v944
  %v962 = vunpack.c.l.b16 %v945
  %v963 = vunpack.c.l.b16 %v946
  %v964 = vpack.c.b16 %v961, %v960
  %v965 = vpack.c.b16 %v963, %v962
  %v969 = vsel %vm113, %v955, 0
  %971 = vmatpush.bf16.msra.mxu0 0
  %972 = vmatpush.bf16.msra.mxu0 0
  %973 = vmatpush.bf16.msra.mxu0 0
  %974 = vmatpush.bf16.msra.mxu0 0
  %975 = vmatpush.bf16.msra.mxu0 0
  %976 = vmatpush.bf16.msra.mxu0 0
  %977 = vmatpush.bf16.msra.mxu0 %v965
  %978 = vmatpush.bf16.msra.mxu0 %v964
  %979 = vmatmul.bf16.gmra.mxu0 %v969
  %v980 = vpop.f32.mrf.mxu0
  %v981 = vadd.f32 %v949, %v980
  %v982 = vpop.f32.mrf.mxu0
  %v983 = vadd.f32 %v949, %v982
  %984 = vdwg.mxu0
  %v985 = vld [vmem:[%s13] sm:$0xf]
  %v986 = vld [vmem:[%s13 + $0x4] sm:$0xf]
  %v987 = vld [vmem:[%s13 + $0x8] sm:$0xf]
  %v988 = vld [vmem:[%s13 + $0xc] sm:$0xf]
  %v989 = vld [vmem:[%s3] sm:$0x1]
  %v991 = vsel %vm143, %v939, 0
  %v994 = vsel %vm143, %v981, 0
  %996 = vmatpush.xpose.msra.mxu0 0.0
  %997 = vmatpush.xpose.msra.mxu0 0.0
  %998 = vmatpush.xpose.msra.mxu0 0.0
  %999 = vmatpush.xpose.msra.mxu0 0.0
  %1000 = vmatpush.xpose.msra.mxu0 0.0
  %1001 = vmatpush.xpose.msra.mxu0 0.0
  %1002 = vmatpush.xpose.msra.mxu0 0.0
  %1003 = vmatpush.xpose.msra.mxu0 0.0
  %1004 = vmatpush.xpose.msra.mxu0 0.0
  %1005 = vmatpush.xpose.msra.mxu0 0.0
  %1006 = vmatpush.xpose.msra.mxu0 0.0
  %1007 = vmatpush.xpose.msra.mxu0 0.0
  %1008 = vmatpush.xpose.msra.mxu0 0.0
  %1009 = vmatpush.xpose.msra.mxu0 0.0
  %1010 = vmatpush.xpose.msra.mxu0 0.0
  %1011 = vmatpush.xpose.msra.mxu0 %v994
  %1012 = vmatmul.f32.gmra.mxu0 %v991
  %v1013 = vpop.f32.mrf.mxu0
  %v1014 = vadd.f32 0.0, %v1013
  %1015 = vdwg.mxu0
  %v1016 = vmul.f32 %v1014, 0.35355338
  %v1018 = vperm.slane %v989, 0
  %v1020 = vadd.f32 %v1016, %v1018
  %v1021 = vsel %vm143, %v1020, -inf
  %1022 = vmax.xlane.f32.xlu0 %v1021
  %v1023 = vpop.xlane.xlu0 %1022
  %v1024 = vsub.f32 %v1020, %v1023
  %v1025 = vmul.f32 %v1024, 1.442695
  %v1026 = vpow.pop %v1025
  %v1027 = vsel %vm143, %v1026, 0.0
  %1028 = vadd.xlane.f32.xlu0 %v1027
  %v1029 = vpop.xlane.xlu0 %1028
  %v1030 = vrcp.pop %v1029
  %v1031 = vmul.f32 %v1026, %v1030
  %1032 = vrot.lane.b32.xlu0 %v981, 96
  %v1033 = vpop.permute.xlu0 %1032
  %v1036 = vsel %vm143, %v1031, 0
  %1038 = vmatpush.msra.mxu0 0.0
  %1039 = vmatpush.msra.mxu0 0.0
  %1040 = vmatpush.msra.mxu0 0.0
  %1041 = vmatpush.msra.mxu0 0.0
  %1042 = vmatpush.msra.mxu0 0.0
  %1043 = vmatpush.msra.mxu0 0.0
  %1044 = vmatpush.msra.mxu0 0.0
  %1045 = vmatpush.msra.mxu0 0.0
  %1046 = vmatpush.msra.mxu0 0.0
  %1047 = vmatpush.msra.mxu0 0.0
  %1048 = vmatpush.msra.mxu0 0.0
  %1049 = vmatpush.msra.mxu0 0.0
  %1050 = vmatpush.msra.mxu0 0.0
  %1051 = vmatpush.msra.mxu0 0.0
  %1052 = vmatpush.msra.mxu0 0.0
  %1053 = vmatpush.msra.mxu0 %v1033
  %1054 = vmatmul.f32.gmra.mxu0 %v1036
  %v1055 = vpop.f32.mrf.mxu0
  %v1056 = vadd.f32 0.0, %v1055
  %1057 = vdwg.mxu0
  %v1058 = vpack.c.bf16 %v1056, %v1056
  %1059 = vrot.lane.b32.xlu0 %v939, 120
  %v1060 = vpop.permute.xlu0 %1059
  %1061 = vrot.lane.b32.xlu0 %v981, 120
  %v1062 = vpop.permute.xlu0 %1061
  %v1063 = vsel %vm143, %v1060, 0
  %v1065 = vsel %vm143, %v1062, 0
  %1067 = vmatpush.xpose.msra.mxu0 0.0
  %1068 = vmatpush.xpose.msra.mxu0 0.0
  %1069 = vmatpush.xpose.msra.mxu0 0.0
  %1070 = vmatpush.xpose.msra.mxu0 0.0
  %1071 = vmatpush.xpose.msra.mxu0 0.0
  %1072 = vmatpush.xpose.msra.mxu0 0.0
  %1073 = vmatpush.xpose.msra.mxu0 0.0
  %1074 = vmatpush.xpose.msra.mxu0 0.0
  %1075 = vmatpush.xpose.msra.mxu0 0.0
  %1076 = vmatpush.xpose.msra.mxu0 0.0
  %1077 = vmatpush.xpose.msra.mxu0 0.0
  %1078 = vmatpush.xpose.msra.mxu0 0.0
  %1079 = vmatpush.xpose.msra.mxu0 0.0
  %1080 = vmatpush.xpose.msra.mxu0 0.0
  %1081 = vmatpush.xpose.msra.mxu0 0.0
  %1082 = vmatpush.xpose.msra.mxu0 %v1065
  %1083 = vmatmul.f32.gmra.mxu0 %v1063
  %v1084 = vpop.f32.mrf.mxu0
  %v1085 = vadd.f32 0.0, %v1084
  %1086 = vdwg.mxu0
  %v1087 = vmul.f32 %v1085, 0.35355338
  %v1088 = vadd.f32 %v1087, %v1018
  %v1089 = vsel %vm143, %v1088, -inf
  %1090 = vmax.xlane.f32.xlu0 %v1089
  %v1091 = vpop.xlane.xlu0 %1090
  %v1092 = vsub.f32 %v1088, %v1091
  %v1093 = vmul.f32 %v1092, 1.442695
  %v1094 = vpow.pop %v1093
  %v1095 = vsel %vm143, %v1094, 0.0
  %1096 = vadd.xlane.f32.xlu0 %v1095
  %v1097 = vpop.xlane.xlu0 %1096
  %v1098 = vrcp.pop %v1097
  %v1099 = vmul.f32 %v1094, %v1098
  %1100 = vrot.lane.b32.xlu0 %v981, 88
  %v1101 = vpop.permute.xlu0 %1100
  %v1104 = vsel %vm143, %v1099, 0
  %1106 = vmatpush.msra.mxu0 0.0
  %1107 = vmatpush.msra.mxu0 0.0
  %1108 = vmatpush.msra.mxu0 0.0
  %1109 = vmatpush.msra.mxu0 0.0
  %1110 = vmatpush.msra.mxu0 0.0
  %1111 = vmatpush.msra.mxu0 0.0
  %1112 = vmatpush.msra.mxu0 0.0
  %1113 = vmatpush.msra.mxu0 0.0
  %1114 = vmatpush.msra.mxu0 0.0
  %1115 = vmatpush.msra.mxu0 0.0
  %1116 = vmatpush.msra.mxu0 0.0
  %1117 = vmatpush.msra.mxu0 0.0
  %1118 = vmatpush.msra.mxu0 0.0
  %1119 = vmatpush.msra.mxu0 0.0
  %1120 = vmatpush.msra.mxu0 0.0
  %1121 = vmatpush.msra.mxu0 %v1101
  %1122 = vmatmul.f32.gmra.mxu0 %v1104
  %v1123 = vpop.f32.mrf.mxu0
  %v1124 = vadd.f32 0.0, %v1123
  %1125 = vdwg.mxu0
  %v1126 = vpack.c.bf16 %v1124, %v1124
  %v1128 = vsel %vm143, %v1126, 0
  %v1131 = vsel %vm279, %v986, 0
  %1133 = vmatpush.bf16.msra.mxu0 0
  %1134 = vmatpush.bf16.msra.mxu0 0
  %1135 = vmatpush.bf16.msra.mxu0 0
  %1136 = vmatpush.bf16.msra.mxu0 0
  %1137 = vmatpush.bf16.msra.mxu0 0
  %1138 = vmatpush.bf16.msra.mxu0 0
  %1139 = vmatpush.bf16.msra.mxu0 0
  %1140 = vmatpush.bf16.msra.mxu0 %v1131
  %1141 = vmatmul.bf16.gmra.mxu0 %v1128
  %v1142 = vpop.f32.mrf.mxu0
  %v1143 = vadd.f32 0.0, %v1142
  %v1144 = vpop.f32.mrf.mxu0
  %1145 = vdwg.mxu0
  %v1147 = vsel %vm143, %v1058, 0
  %v1150 = vsel %vm279, %v985, 0
  %1152 = vmatpush.bf16.msra.mxu0 0
  %1153 = vmatpush.bf16.msra.mxu0 0
  %1154 = vmatpush.bf16.msra.mxu0 0
  %1155 = vmatpush.bf16.msra.mxu0 0
  %1156 = vmatpush.bf16.msra.mxu0 0
  %1157 = vmatpush.bf16.msra.mxu0 0
  %1158 = vmatpush.bf16.msra.mxu0 0
  %1159 = vmatpush.bf16.msra.mxu0 %v1150
  %1160 = vmatmul.bf16.gmra.mxu0 %v1147
  %v1161 = vpop.f32.mrf.mxu0
  %v1162 = vadd.f32 %v1143, %v1161
  %v1163 = vpop.f32.mrf.mxu0
  %1164 = vdwg.mxu0
  %1165 = vrot.lane.b32.xlu0 %v939, 112
  %v1166 = vpop.permute.xlu0 %1165
  %1167 = vrot.lane.b32.xlu0 %v981, 112
  %v1168 = vpop.permute.xlu0 %1167
  %v1169 = vsel %vm143, %v1166, 0
  %v1171 = vsel %vm143, %v1168, 0
  %1173 = vmatpush.xpose.msra.mxu0 0.0
  %1174 = vmatpush.xpose.msra.mxu0 0.0
  %1175 = vmatpush.xpose.msra.mxu0 0.0
  %1176 = vmatpush.xpose.msra.mxu0 0.0
  %1177 = vmatpush.xpose.msra.mxu0 0.0
  %1178 = vmatpush.xpose.msra.mxu0 0.0
  %1179 = vmatpush.xpose.msra.mxu0 0.0
  %1180 = vmatpush.xpose.msra.mxu0 0.0
  %1181 = vmatpush.xpose.msra.mxu0 0.0
  %1182 = vmatpush.xpose.msra.mxu0 0.0
  %1183 = vmatpush.xpose.msra.mxu0 0.0
  %1184 = vmatpush.xpose.msra.mxu0 0.0
  %1185 = vmatpush.xpose.msra.mxu0 0.0
  %1186 = vmatpush.xpose.msra.mxu0 0.0
  %1187 = vmatpush.xpose.msra.mxu0 0.0
  %1188 = vmatpush.xpose.msra.mxu0 %v1171
  %1189 = vmatmul.f32.gmra.mxu0 %v1169
  %v1190 = vpop.f32.mrf.mxu0
  %v1191 = vadd.f32 0.0, %v1190
  %1192 = vdwg.mxu0
  %v1193 = vmul.f32 %v1191, 0.35355338
  %v1194 = vadd.f32 %v1193, %v1018
  %v1195 = vsel %vm143, %v1194, -inf
  %1196 = vmax.xlane.f32.xlu0 %v1195
  %v1197 = vpop.xlane.xlu0 %1196
  %v1198 = vsub.f32 %v1194, %v1197
  %v1199 = vmul.f32 %v1198, 1.442695
  %v1200 = vpow.pop %v1199
  %v1201 = vsel %vm143, %v1200, 0.0
  %1202 = vadd.xlane.f32.xlu0 %v1201
  %v1203 = vpop.xlane.xlu0 %1202
  %v1204 = vrcp.pop %v1203
  %v1205 = vmul.f32 %v1200, %v1204
  %1206 = vrot.lane.b32.xlu0 %v981, 80
  %v1207 = vpop.permute.xlu0 %1206
  %v1210 = vsel %vm143, %v1205, 0
  %1212 = vmatpush.msra.mxu0 0.0
  %1213 = vmatpush.msra.mxu0 0.0
  %1214 = vmatpush.msra.mxu0 0.0
  %1215 = vmatpush.msra.mxu0 0.0
  %1216 = vmatpush.msra.mxu0 0.0
  %1217 = vmatpush.msra.mxu0 0.0
  %1218 = vmatpush.msra.mxu0 0.0
  %1219 = vmatpush.msra.mxu0 0.0
  %1220 = vmatpush.msra.mxu0 0.0
  %1221 = vmatpush.msra.mxu0 0.0
  %1222 = vmatpush.msra.mxu0 0.0
  %1223 = vmatpush.msra.mxu0 0.0
  %1224 = vmatpush.msra.mxu0 0.0
  %1225 = vmatpush.msra.mxu0 0.0
  %1226 = vmatpush.msra.mxu0 0.0
  %1227 = vmatpush.msra.mxu0 %v1207
  %1228 = vmatmul.f32.gmra.mxu0 %v1210
  %v1229 = vpop.f32.mrf.mxu0
  %v1230 = vadd.f32 0.0, %v1229
  %1231 = vdwg.mxu0
  %v1232 = vpack.c.bf16 %v1230, %v1230
  %v1234 = vsel %vm143, %v1232, 0
  %v1237 = vsel %vm279, %v987, 0
  %1239 = vmatpush.bf16.msra.mxu0 0
  %1240 = vmatpush.bf16.msra.mxu0 0
  %1241 = vmatpush.bf16.msra.mxu0 0
  %1242 = vmatpush.bf16.msra.mxu0 0
  %1243 = vmatpush.bf16.msra.mxu0 0
  %1244 = vmatpush.bf16.msra.mxu0 0
  %1245 = vmatpush.bf16.msra.mxu0 0
  %1246 = vmatpush.bf16.msra.mxu0 %v1237
  %1247 = vmatmul.bf16.gmra.mxu0 %v1234
  %v1248 = vpop.f32.mrf.mxu0
  %v1249 = vadd.f32 0.0, %v1248
  %v1250 = vpop.f32.mrf.mxu0
  %1251 = vdwg.mxu0
  %v1252 = vadd.f32 %v1162, %v1249
  %1253 = vrot.lane.b32.xlu0 %v939, 104
  %v1254 = vpop.permute.xlu0 %1253
  %1255 = vrot.lane.b32.xlu0 %v981, 104
  %v1256 = vpop.permute.xlu0 %1255
  %v1257 = vsel %vm143, %v1254, 0
  %v1259 = vsel %vm143, %v1256, 0
  %1261 = vmatpush.xpose.msra.mxu0 0.0
  %1262 = vmatpush.xpose.msra.mxu0 0.0
  %1263 = vmatpush.xpose.msra.mxu0 0.0
  %1264 = vmatpush.xpose.msra.mxu0 0.0
  %1265 = vmatpush.xpose.msra.mxu0 0.0
  %1266 = vmatpush.xpose.msra.mxu0 0.0
  %1267 = vmatpush.xpose.msra.mxu0 0.0
  %1268 = vmatpush.xpose.msra.mxu0 0.0
  %1269 = vmatpush.xpose.msra.mxu0 0.0
  %1270 = vmatpush.xpose.msra.mxu0 0.0
  %1271 = vmatpush.xpose.msra.mxu0 0.0
  %1272 = vmatpush.xpose.msra.mxu0 0.0
  %1273 = vmatpush.xpose.msra.mxu0 0.0
  %1274 = vmatpush.xpose.msra.mxu0 0.0
  %1275 = vmatpush.xpose.msra.mxu0 0.0
  %1276 = vmatpush.xpose.msra.mxu0 %v1259
  %1277 = vmatmul.f32.gmra.mxu0 %v1257
  %v1278 = vpop.f32.mrf.mxu0
  %v1279 = vadd.f32 0.0, %v1278
  %1280 = vdwg.mxu0
  %v1281 = vmul.f32 %v1279, 0.35355338
  %v1282 = vadd.f32 %v1281, %v1018
  %v1283 = vsel %vm143, %v1282, -inf
  %1284 = vmax.xlane.f32.xlu0 %v1283
  %v1285 = vpop.xlane.xlu0 %1284
  %v1286 = vsub.f32 %v1282, %v1285
  %v1287 = vmul.f32 %v1286, 1.442695
  %v1288 = vpow.pop %v1287
  %v1289 = vsel %vm143, %v1288, 0.0
  %1290 = vadd.xlane.f32.xlu0 %v1289
  %v1291 = vpop.xlane.xlu0 %1290
  %v1292 = vrcp.pop %v1291
  %v1293 = vmul.f32 %v1288, %v1292
  %1294 = vrot.lane.b32.xlu0 %v981, 72
  %v1295 = vpop.permute.xlu0 %1294
  %v1298 = vsel %vm143, %v1293, 0
  %1300 = vmatpush.msra.mxu0 0.0
  %1301 = vmatpush.msra.mxu0 0.0
  %1302 = vmatpush.msra.mxu0 0.0
  %1303 = vmatpush.msra.mxu0 0.0
  %1304 = vmatpush.msra.mxu0 0.0
  %1305 = vmatpush.msra.mxu0 0.0
  %1306 = vmatpush.msra.mxu0 0.0
  %1307 = vmatpush.msra.mxu0 0.0
  %1308 = vmatpush.msra.mxu0 0.0
  %1309 = vmatpush.msra.mxu0 0.0
  %1310 = vmatpush.msra.mxu0 0.0
  %1311 = vmatpush.msra.mxu0 0.0
  %1312 = vmatpush.msra.mxu0 0.0
  %1313 = vmatpush.msra.mxu0 0.0
  %1314 = vmatpush.msra.mxu0 0.0
  %1315 = vmatpush.msra.mxu0 %v1295
  %1316 = vmatmul.f32.gmra.mxu0 %v1298
  %v1317 = vpop.f32.mrf.mxu0
  %v1318 = vadd.f32 0.0, %v1317
  %1319 = vdwg.mxu0
  %v1320 = vpack.c.bf16 %v1318, %v1318
  %v1322 = vsel %vm143, %v1320, 0
  %v1325 = vsel %vm279, %v988, 0
  %1327 = vmatpush.bf16.msra.mxu0 0
  %1328 = vmatpush.bf16.msra.mxu0 0
  %1329 = vmatpush.bf16.msra.mxu0 0
  %1330 = vmatpush.bf16.msra.mxu0 0
  %1331 = vmatpush.bf16.msra.mxu0 0
  %1332 = vmatpush.bf16.msra.mxu0 0
  %1333 = vmatpush.bf16.msra.mxu0 0
  %1334 = vmatpush.bf16.msra.mxu0 %v1325
  %1335 = vmatmul.bf16.gmra.mxu0 %v1322
  %v1336 = vpop.f32.mrf.mxu0
  %v1337 = vadd.f32 0.0, %v1336
  %v1338 = vpop.f32.mrf.mxu0
  %1339 = vdwg.mxu0
  %v1340 = vadd.f32 %v1252, %v1337
  %s1341 = scalar_lea.vmem %s3, 1
  %v1342 = vld [vmem:[%s1341] sm:$0x1]
  %v1344 = vsel %vm143, %v941, 0
  %v1347 = vsel %vm143, %v983, 0
  %1349 = vmatpush.xpose.msra.mxu0 0.0
  %1350 = vmatpush.xpose.msra.mxu0 0.0
  %1351 = vmatpush.xpose.msra.mxu0 0.0
  %1352 = vmatpush.xpose.msra.mxu0 0.0
  %1353 = vmatpush.xpose.msra.mxu0 0.0
  %1354 = vmatpush.xpose.msra.mxu0 0.0
  %1355 = vmatpush.xpose.msra.mxu0 0.0
  %1356 = vmatpush.xpose.msra.mxu0 0.0
  %1357 = vmatpush.xpose.msra.mxu0 0.0
  %1358 = vmatpush.xpose.msra.mxu0 0.0
  %1359 = vmatpush.xpose.msra.mxu0 0.0
  %1360 = vmatpush.xpose.msra.mxu0 0.0
  %1361 = vmatpush.xpose.msra.mxu0 0.0
  %1362 = vmatpush.xpose.msra.mxu0 0.0
  %1363 = vmatpush.xpose.msra.mxu0 0.0
  %1364 = vmatpush.xpose.msra.mxu0 %v1347
  %1365 = vmatmul.f32.gmra.mxu0 %v1344
  %v1366 = vpop.f32.mrf.mxu0
  %v1367 = vadd.f32 0.0, %v1366
  %1368 = vdwg.mxu0
  %v1369 = vmul.f32 %v1367, 0.35355338
  %v1371 = vperm.slane %v1342, 0
  %v1373 = vadd.f32 %v1369, %v1371
  %v1374 = vsel %vm143, %v1373, -inf
  %1375 = vmax.xlane.f32.xlu0 %v1374
  %v1376 = vpop.xlane.xlu0 %1375
  %v1377 = vsub.f32 %v1373, %v1376
  %v1378 = vmul.f32 %v1377, 1.442695
  %v1379 = vpow.pop %v1378
  %v1380 = vsel %vm143, %v1379, 0.0
  %1381 = vadd.xlane.f32.xlu0 %v1380
  %v1382 = vpop.xlane.xlu0 %1381
  %v1383 = vrcp.pop %v1382
  %v1384 = vmul.f32 %v1379, %v1383
  %1385 = vrot.lane.b32.xlu0 %v983, 96
  %v1386 = vpop.permute.xlu0 %1385
  %v1389 = vsel %vm143, %v1384, 0
  %1391 = vmatpush.msra.mxu0 0.0
  %1392 = vmatpush.msra.mxu0 0.0
  %1393 = vmatpush.msra.mxu0 0.0
  %1394 = vmatpush.msra.mxu0 0.0
  %1395 = vmatpush.msra.mxu0 0.0
  %1396 = vmatpush.msra.mxu0 0.0
  %1397 = vmatpush.msra.mxu0 0.0
  %1398 = vmatpush.msra.mxu0 0.0
  %1399 = vmatpush.msra.mxu0 0.0
  %1400 = vmatpush.msra.mxu0 0.0
  %1401 = vmatpush.msra.mxu0 0.0
  %1402 = vmatpush.msra.mxu0 0.0
  %1403 = vmatpush.msra.mxu0 0.0
  %1404 = vmatpush.msra.mxu0 0.0
  %1405 = vmatpush.msra.mxu0 0.0
  %1406 = vmatpush.msra.mxu0 %v1386
  %1407 = vmatmul.f32.gmra.mxu0 %v1389
  %v1408 = vpop.f32.mrf.mxu0
  %v1409 = vadd.f32 0.0, %v1408
  %1410 = vdwg.mxu0
  %v1411 = vpack.c.bf16 %v1409, %v1409
  %1412 = vrot.lane.b32.xlu0 %v941, 120
  %v1413 = vpop.permute.xlu0 %1412
  %1414 = vrot.lane.b32.xlu0 %v983, 120
  %v1415 = vpop.permute.xlu0 %1414
  %v1416 = vsel %vm143, %v1413, 0
  %v1418 = vsel %vm143, %v1415, 0
  %1420 = vmatpush.xpose.msra.mxu0 0.0
  %1421 = vmatpush.xpose.msra.mxu0 0.0
  %1422 = vmatpush.xpose.msra.mxu0 0.0
  %1423 = vmatpush.xpose.msra.mxu0 0.0
  %1424 = vmatpush.xpose.msra.mxu0 0.0
  %1425 = vmatpush.xpose.msra.mxu0 0.0
  %1426 = vmatpush.xpose.msra.mxu0 0.0
  %1427 = vmatpush.xpose.msra.mxu0 0.0
  %1428 = vmatpush.xpose.msra.mxu0 0.0
  %1429 = vmatpush.xpose.msra.mxu0 0.0
  %1430 = vmatpush.xpose.msra.mxu0 0.0
  %1431 = vmatpush.xpose.msra.mxu0 0.0
  %1432 = vmatpush.xpose.msra.mxu0 0.0
  %1433 = vmatpush.xpose.msra.mxu0 0.0
  %1434 = vmatpush.xpose.msra.mxu0 0.0
  %1435 = vmatpush.xpose.msra.mxu0 %v1418
  %1436 = vmatmul.f32.gmra.mxu0 %v1416
  %v1437 = vpop.f32.mrf.mxu0
  %v1438 = vadd.f32 0.0, %v1437
  %1439 = vdwg.mxu0
  %v1440 = vmul.f32 %v1438, 0.35355338
  %v1441 = vadd.f32 %v1440, %v1371
  %v1442 = vsel %vm143, %v1441, -inf
  %1443 = vmax.xlane.f32.xlu0 %v1442
  %v1444 = vpop.xlane.xlu0 %1443
  %v1445 = vsub.f32 %v1441, %v1444
  %v1446 = vmul.f32 %v1445, 1.442695
  %v1447 = vpow.pop %v1446
  %v1448 = vsel %vm143, %v1447, 0.0
  %1449 = vadd.xlane.f32.xlu0 %v1448
  %v1450 = vpop.xlane.xlu0 %1449
  %v1451 = vrcp.pop %v1450
  %v1452 = vmul.f32 %v1447, %v1451
  %1453 = vrot.lane.b32.xlu0 %v983, 88
  %v1454 = vpop.permute.xlu0 %1453
  %v1457 = vsel %vm143, %v1452, 0
  %1459 = vmatpush.msra.mxu0 0.0
  %1460 = vmatpush.msra.mxu0 0.0
  %1461 = vmatpush.msra.mxu0 0.0
  %1462 = vmatpush.msra.mxu0 0.0
  %1463 = vmatpush.msra.mxu0 0.0
  %1464 = vmatpush.msra.mxu0 0.0
  %1465 = vmatpush.msra.mxu0 0.0
  %1466 = vmatpush.msra.mxu0 0.0
  %1467 = vmatpush.msra.mxu0 0.0
  %1468 = vmatpush.msra.mxu0 0.0
  %1469 = vmatpush.msra.mxu0 0.0
  %1470 = vmatpush.msra.mxu0 0.0
  %1471 = vmatpush.msra.mxu0 0.0
  %1472 = vmatpush.msra.mxu0 0.0
  %1473 = vmatpush.msra.mxu0 0.0
  %1474 = vmatpush.msra.mxu0 %v1454
  %1475 = vmatmul.f32.gmra.mxu0 %v1457
  %v1476 = vpop.f32.mrf.mxu0
  %v1477 = vadd.f32 0.0, %v1476
  %1478 = vdwg.mxu0
  %v1479 = vpack.c.bf16 %v1477, %v1477
  %v1481 = vsel %vm143, %v1479, 0
  %1483 = vmatpush.bf16.msra.mxu0 0
  %1484 = vmatpush.bf16.msra.mxu0 0
  %1485 = vmatpush.bf16.msra.mxu0 0
  %1486 = vmatpush.bf16.msra.mxu0 0
  %1487 = vmatpush.bf16.msra.mxu0 0
  %1488 = vmatpush.bf16.msra.mxu0 0
  %1489 = vmatpush.bf16.msra.mxu0 0
  %1490 = vmatpush.bf16.msra.mxu0 %v1131
  %1491 = vmatmul.bf16.gmra.mxu0 %v1481
  %v1492 = vpop.f32.mrf.mxu0
  %v1493 = vadd.f32 0.0, %v1492
  %v1494 = vpop.f32.mrf.mxu0
  %1495 = vdwg.mxu0
  %v1497 = vsel %vm143, %v1411, 0
  %1499 = vmatpush.bf16.msra.mxu0 0
  %1500 = vmatpush.bf16.msra.mxu0 0
  %1501 = vmatpush.bf16.msra.mxu0 0
  %1502 = vmatpush.bf16.msra.mxu0 0
  %1503 = vmatpush.bf16.msra.mxu0 0
  %1504 = vmatpush.bf16.msra.mxu0 0
  %1505 = vmatpush.bf16.msra.mxu0 0
  %1506 = vmatpush.bf16.msra.mxu0 %v1150
  %1507 = vmatmul.bf16.gmra.mxu0 %v1497
  %v1508 = vpop.f32.mrf.mxu0
  %v1509 = vadd.f32 %v1493, %v1508
  %v1510 = vpop.f32.mrf.mxu0
  %1511 = vdwg.mxu0
  %1512 = vrot.lane.b32.xlu0 %v941, 112
  %v1513 = vpop.permute.xlu0 %1512
  %1514 = vrot.lane.b32.xlu0 %v983, 112
  %v1515 = vpop.permute.xlu0 %1514
  %v1516 = vsel %vm143, %v1513, 0
  %v1518 = vsel %vm143, %v1515, 0
  %1520 = vmatpush.xpose.msra.mxu0 0.0
  %1521 = vmatpush.xpose.msra.mxu0 0.0
  %1522 = vmatpush.xpose.msra.mxu0 0.0
  %1523 = vmatpush.xpose.msra.mxu0 0.0
  %1524 = vmatpush.xpose.msra.mxu0 0.0
  %1525 = vmatpush.xpose.msra.mxu0 0.0
  %1526 = vmatpush.xpose.msra.mxu0 0.0
  %1527 = vmatpush.xpose.msra.mxu0 0.0
  %1528 = vmatpush.xpose.msra.mxu0 0.0
  %1529 = vmatpush.xpose.msra.mxu0 0.0
  %1530 = vmatpush.xpose.msra.mxu0 0.0
  %1531 = vmatpush.xpose.msra.mxu0 0.0
  %1532 = vmatpush.xpose.msra.mxu0 0.0
  %1533 = vmatpush.xpose.msra.mxu0 0.0
  %1534 = vmatpush.xpose.msra.mxu0 0.0
  %1535 = vmatpush.xpose.msra.mxu0 %v1518
  %1536 = vmatmul.f32.gmra.mxu0 %v1516
  %v1537 = vpop.f32.mrf.mxu0
  %v1538 = vadd.f32 0.0, %v1537
  %1539 = vdwg.mxu0
  %v1540 = vmul.f32 %v1538, 0.35355338
  %v1541 = vadd.f32 %v1540, %v1371
  %v1542 = vsel %vm143, %v1541, -inf
  %1543 = vmax.xlane.f32.xlu0 %v1542
  %v1544 = vpop.xlane.xlu0 %1543
  %v1545 = vsub.f32 %v1541, %v1544
  %v1546 = vmul.f32 %v1545, 1.442695
  %v1547 = vpow.pop %v1546
  %v1548 = vsel %vm143, %v1547, 0.0
  %1549 = vadd.xlane.f32.xlu0 %v1548
  %v1550 = vpop.xlane.xlu0 %1549
  %v1551 = vrcp.pop %v1550
  %v1552 = vmul.f32 %v1547, %v1551
  %1553 = vrot.lane.b32.xlu0 %v983, 80
  %v1554 = vpop.permute.xlu0 %1553
  %v1557 = vsel %vm143, %v1552, 0
  %1559 = vmatpush.msra.mxu0 0.0
  %1560 = vmatpush.msra.mxu0 0.0
  %1561 = vmatpush.msra.mxu0 0.0
  %1562 = vmatpush.msra.mxu0 0.0
  %1563 = vmatpush.msra.mxu0 0.0
  %1564 = vmatpush.msra.mxu0 0.0
  %1565 = vmatpush.msra.mxu0 0.0
  %1566 = vmatpush.msra.mxu0 0.0
  %1567 = vmatpush.msra.mxu0 0.0
  %1568 = vmatpush.msra.mxu0 0.0
  %1569 = vmatpush.msra.mxu0 0.0
  %1570 = vmatpush.msra.mxu0 0.0
  %1571 = vmatpush.msra.mxu0 0.0
  %1572 = vmatpush.msra.mxu0 0.0
  %1573 = vmatpush.msra.mxu0 0.0
  %1574 = vmatpush.msra.mxu0 %v1554
  %1575 = vmatmul.f32.gmra.mxu0 %v1557
  %v1576 = vpop.f32.mrf.mxu0
  %v1577 = vadd.f32 0.0, %v1576
  %1578 = vdwg.mxu0
  %v1579 = vpack.c.bf16 %v1577, %v1577
  %v1581 = vsel %vm143, %v1579, 0
  %1583 = vmatpush.bf16.msra.mxu0 0
  %1584 = vmatpush.bf16.msra.mxu0 0
  %1585 = vmatpush.bf16.msra.mxu0 0
  %1586 = vmatpush.bf16.msra.mxu0 0
  %1587 = vmatpush.bf16.msra.mxu0 0
  %1588 = vmatpush.bf16.msra.mxu0 0
  %1589 = vmatpush.bf16.msra.mxu0 0
  %1590 = vmatpush.bf16.msra.mxu0 %v1237
  %1591 = vmatmul.bf16.gmra.mxu0 %v1581
  %v1592 = vpop.f32.mrf.mxu0
  %v1593 = vadd.f32 0.0, %v1592
  %v1594 = vpop.f32.mrf.mxu0
  %1595 = vdwg.mxu0
  %v1596 = vadd.f32 %v1509, %v1593
  %1597 = vrot.lane.b32.xlu0 %v941, 104
  %v1598 = vpop.permute.xlu0 %1597
  %1599 = vrot.lane.b32.xlu0 %v983, 104
  %v1600 = vpop.permute.xlu0 %1599
  %v1601 = vsel %vm143, %v1598, 0
  %v1603 = vsel %vm143, %v1600, 0
  %1605 = vmatpush.xpose.msra.mxu0 0.0
  %1606 = vmatpush.xpose.msra.mxu0 0.0
  %1607 = vmatpush.xpose.msra.mxu0 0.0
  %1608 = vmatpush.xpose.msra.mxu0 0.0
  %1609 = vmatpush.xpose.msra.mxu0 0.0
  %1610 = vmatpush.xpose.msra.mxu0 0.0
  %1611 = vmatpush.xpose.msra.mxu0 0.0
  %1612 = vmatpush.xpose.msra.mxu0 0.0
  %1613 = vmatpush.xpose.msra.mxu0 0.0
  %1614 = vmatpush.xpose.msra.mxu0 0.0
  %1615 = vmatpush.xpose.msra.mxu0 0.0
  %1616 = vmatpush.xpose.msra.mxu0 0.0
  %1617 = vmatpush.xpose.msra.mxu0 0.0
  %1618 = vmatpush.xpose.msra.mxu0 0.0
  %1619 = vmatpush.xpose.msra.mxu0 0.0
  %1620 = vmatpush.xpose.msra.mxu0 %v1603
  %1621 = vmatmul.f32.gmra.mxu0 %v1601
  %v1622 = vpop.f32.mrf.mxu0
  %v1623 = vadd.f32 0.0, %v1622
  %1624 = vdwg.mxu0
  %v1625 = vmul.f32 %v1623, 0.35355338
  %v1626 = vadd.f32 %v1625, %v1371
  %v1627 = vsel %vm143, %v1626, -inf
  %1628 = vmax.xlane.f32.xlu0 %v1627
  %v1629 = vpop.xlane.xlu0 %1628
  %v1630 = vsub.f32 %v1626, %v1629
  %v1631 = vmul.f32 %v1630, 1.442695
  %v1632 = vpow.pop %v1631
  %v1633 = vsel %vm143, %v1632, 0.0
  %1634 = vadd.xlane.f32.xlu0 %v1633
  %v1635 = vpop.xlane.xlu0 %1634
  %v1636 = vrcp.pop %v1635
  %v1637 = vmul.f32 %v1632, %v1636
  %1638 = vrot.lane.b32.xlu0 %v983, 72
  %v1639 = vpop.permute.xlu0 %1638
  %v1642 = vsel %vm143, %v1637, 0
  %1644 = vmatpush.msra.mxu0 0.0
  %1645 = vmatpush.msra.mxu0 0.0
  %1646 = vmatpush.msra.mxu0 0.0
  %1647 = vmatpush.msra.mxu0 0.0
  %1648 = vmatpush.msra.mxu0 0.0
  %1649 = vmatpush.msra.mxu0 0.0
  %1650 = vmatpush.msra.mxu0 0.0
  %1651 = vmatpush.msra.mxu0 0.0
  %1652 = vmatpush.msra.mxu0 0.0
  %1653 = vmatpush.msra.mxu0 0.0
  %1654 = vmatpush.msra.mxu0 0.0
  %1655 = vmatpush.msra.mxu0 0.0
  %1656 = vmatpush.msra.mxu0 0.0
  %1657 = vmatpush.msra.mxu0 0.0
  %1658 = vmatpush.msra.mxu0 0.0
  %1659 = vmatpush.msra.mxu0 %v1639
  %1660 = vmatmul.f32.gmra.mxu0 %v1642
  %v1661 = vpop.f32.mrf.mxu0
  %v1662 = vadd.f32 0.0, %v1661
  %1663 = vdwg.mxu0
  %v1664 = vpack.c.bf16 %v1662, %v1662
  %v1666 = vsel %vm143, %v1664, 0
  %1668 = vmatpush.bf16.msra.mxu0 0
  %1669 = vmatpush.bf16.msra.mxu0 0
  %1670 = vmatpush.bf16.msra.mxu0 0
  %1671 = vmatpush.bf16.msra.mxu0 0
  %1672 = vmatpush.bf16.msra.mxu0 0
  %1673 = vmatpush.bf16.msra.mxu0 0
  %1674 = vmatpush.bf16.msra.mxu0 0
  %1675 = vmatpush.bf16.msra.mxu0 %v1325
  %1676 = vmatmul.bf16.gmra.mxu0 %v1666
  %v1677 = vpop.f32.mrf.mxu0
  %v1678 = vadd.f32 0.0, %v1677
  %v1679 = vpop.f32.mrf.mxu0
  %1680 = vdwg.mxu0
  %v1681 = vadd.f32 %v1596, %v1678
  %v1682 = vld [vmem:[%s14] sm:$0x1]
  %v1684 = vperm.slane %v1682, 0
  %v1686 = vadd.f32 %v1340, %v1684
  %v1687 = vadd.f32 %v1681, %v1684
  %v1688 = vadd.f32 %v903, %v1686
  %v1689 = vadd.f32 %v904, %v1687
  %v1690 = vld [vmem:[%s21] sm:$0x1]
  %v1691 = vld [vmem:[%s22] sm:$0x1]
  %v1692 = vsel %vm113, %v1688, 0.0
  %1693 = vadd.xlane.f32.xlu0 %v1692
  %v1694 = vpop.xlane.xlu0 %1693
  %v1695 = vsel %vm113, %v1689, 0.0
  %1696 = vadd.xlane.f32.xlu0 %v1695
  %v1697 = vpop.xlane.xlu0 %1696
  %v1698 = vmul.f32 %v1694, %v856
  %v1699 = vmul.f32 %v1697, %v856
  %v1700 = vsub.f32 %v1688, %v1698
  %v1701 = vsub.f32 %v1689, %v1699
  %v1702 = vmul.f32 %v1700, %v1700
  %v1703 = vmul.f32 %v1701, %v1701
  %v1704 = vsel %vm113, %v1702, 0.0
  %1705 = vadd.xlane.f32.xlu0 %v1704
  %v1706 = vpop.xlane.xlu0 %1705
  %v1707 = vsel %vm113, %v1703, 0.0
  %1708 = vadd.xlane.f32.xlu0 %v1707
  %v1709 = vpop.xlane.xlu0 %1708
  %v1710 = vmul.f32 %v1706, %v856
  %v1711 = vmul.f32 %v1709, %v856
  %v1712 = vadd.f32 %v1710, 1e-05
  %v1713 = vadd.f32 %v1711, 1e-05
  %v1714 = vrsqrt.pop %v1712
  %v1715 = vmul.f32 %v1714, %v1712
  %v1716 = vmul.f32 %v1715, %v1714
  %v1717 = vmul.f32 0.5, %v1716
  %v1718 = vsub.f32 1.5, %v1717
  %v1719 = vmul.f32 %v1714, %v1718
  %vm1720 = vweird.f32 %v1712
  %vm1721 = vweird.f32 %v1714
  %vm1722 = vmor %vm1720, %vm1721
  %v1723 = vsel %vm1722, %v1714, %v1719
  %v1724 = vrsqrt.pop %v1713
  %v1725 = vmul.f32 %v1724, %v1713
  %v1726 = vmul.f32 %v1725, %v1724
  %v1727 = vmul.f32 0.5, %v1726
  %v1728 = vsub.f32 1.5, %v1727
  %v1729 = vmul.f32 %v1724, %v1728
  %vm1730 = vweird.f32 %v1713
  %vm1731 = vweird.f32 %v1724
  %vm1732 = vmor %vm1730, %vm1731
  %v1733 = vsel %vm1732, %v1724, %v1729
  %v1734 = vmul.f32 %v1700, %v1723
  %v1735 = vmul.f32 %v1701, %v1733
  %v1737 = vperm.slane %v1690, 0
  %v1739 = vmul.f32 %v1734, %v1737
  %v1740 = vmul.f32 %v1735, %v1737
  %v1742 = vperm.slane %v1691, 0
  %v1744 = vadd.f32 %v1739, %v1742
  %v1745 = vadd.f32 %v1740, %v1742
  %v1746 = vld [vmem:[%s15] sm:$0xf]
  %v1747 = vld [vmem:[%s15 + $0x4] sm:$0xf]
  %v1748 = vld [vmem:[%s15 + $0x8] sm:$0xf]
  %v1749 = vld [vmem:[%s15 + $0xc] sm:$0xf]
  %v1750 = vpack.c.bf16 %v1745, %v1744
  %v1751 = vld [vmem:[%s16] sm:$0x1]
  %v1753 = vperm.slane %v1751, 0
  %v1759 = vunpack.c.l.b16 %v1746
  %v1760 = vunpack.c.l.b16 %v1747
  %v1761 = vunpack.c.l.b16 %v1748
  %v1762 = vunpack.c.l.b16 %v1749
  %v1763 = vpack.c.b16 %v1760, %v1759
  %v1764 = vpack.c.b16 %v1762, %v1761
  %v1768 = vsel %vm113, %v1750, 0
  %1770 = vmatpush.bf16.msra.mxu0 0
  %1771 = vmatpush.bf16.msra.mxu0 0
  %1772 = vmatpush.bf16.msra.mxu0 0
  %1773 = vmatpush.bf16.msra.mxu0 0
  %1774 = vmatpush.bf16.msra.mxu0 0
  %1775 = vmatpush.bf16.msra.mxu0 0
  %1776 = vmatpush.bf16.msra.mxu0 %v1764
  %1777 = vmatpush.bf16.msra.mxu0 %v1763
  %1778 = vmatmul.bf16.gmra.mxu0 %v1768
  %v1779 = vpop.f32.mrf.mxu0
  %v1780 = vadd.f32 %v1753, %v1779
  %v1781 = vpop.f32.mrf.mxu0
  %v1782 = vadd.f32 %v1753, %v1781
  %1783 = vdwg.mxu0
  %v1784 = vmax.f32 %v1780, 0.0
  %v1785 = vmax.f32 %v1782, 0.0
  %v1786 = vld [vmem:[%s17] sm:$0xf]
  %v1787 = vld [vmem:[%s17 + $0x4] sm:$0xf]
  %v1788 = vld [vmem:[%s17 + $0x8] sm:$0xf]
  %v1789 = vld [vmem:[%s17 + $0xc] sm:$0xf]
  %v1790 = vld [vmem:[%s17 + $0x10] sm:$0xf]
  %v1791 = vld [vmem:[%s17 + $0x14] sm:$0xf]
  %v1792 = vld [vmem:[%s17 + $0x18] sm:$0xf]
  %v1793 = vld [vmem:[%s17 + $0x1c] sm:$0xf]
  %v1794 = vpack.c.bf16 %v1785, %v1784
  %v1795 = vld [vmem:[%s18] sm:$0x1]
  %v1797 = vperm.slane %v1795, 0
  %v1807 = vunpack.c.l.b16 %v1786
  %v1808 = vunpack.c.l.b16 %v1787
  %v1809 = vunpack.c.l.b16 %v1788
  %v1810 = vunpack.c.l.b16 %v1789
  %v1811 = vunpack.c.l.b16 %v1790
  %v1812 = vunpack.c.l.b16 %v1791
  %v1813 = vunpack.c.l.b16 %v1792
  %v1814 = vunpack.c.l.b16 %v1793
  %v1815 = vpack.c.b16 %v1808, %v1807
  %v1816 = vpack.c.b16 %v1810, %v1809
  %v1817 = vpack.c.b16 %v1812, %v1811
  %v1818 = vpack.c.b16 %v1814, %v1813
  %vm1823 = vcmask 523264
  %v1825 = vsel %vm1823, %v1794, 0
  %1827 = vmatpush.bf16.msra.mxu0 0
  %1828 = vmatpush.bf16.msra.mxu0 0
  %1829 = vmatpush.bf16.msra.mxu0 0
  %1830 = vmatpush.bf16.msra.mxu0 0
  %1831 = vmatpush.bf16.msra.mxu0 %v1818
  %1832 = vmatpush.bf16.msra.mxu0 %v1817
  %1833 = vmatpush.bf16.msra.mxu0 %v1816
  %1834 = vmatpush.bf16.msra.mxu0 %v1815
  %1835 = vmatmul.bf16.gmra.mxu0 %v1825
  %v1836 = vpop.f32.mrf.mxu0
  %v1837 = vadd.f32 %v1797, %v1836
  %v1838 = vpop.f32.mrf.mxu0
  %v1839 = vadd.f32 %v1797, %v1838
  %1840 = vdwg.mxu0
  %v1841 = vadd.f32 %v1744, %v1837
  %v1842 = vadd.f32 %v1745, %v1839
  %v1843 = vld [vmem:[%s23] sm:$0x1]
  %v1844 = vld [vmem:[%s24] sm:$0x1]
  %v1845 = vsel %vm113, %v1841, 0.0
  %1846 = vadd.xlane.f32.xlu0 %v1845
  %v1847 = vpop.xlane.xlu0 %1846
  %v1848 = vsel %vm113, %v1842, 0.0
  %1849 = vadd.xlane.f32.xlu0 %v1848
  %v1850 = vpop.xlane.xlu0 %1849
  %v1851 = vmul.f32 %v1847, %v856
  %v1852 = vmul.f32 %v1850, %v856
  %v1853 = vsub.f32 %v1841, %v1851
  %v1854 = vsub.f32 %v1842, %v1852
  %v1855 = vmul.f32 %v1853, %v1853
  %v1856 = vmul.f32 %v1854, %v1854
  %v1857 = vsel %vm113, %v1855, 0.0
  %1858 = vadd.xlane.f32.xlu0 %v1857
  %v1859 = vpop.xlane.xlu0 %1858
  %v1860 = vsel %vm113, %v1856, 0.0
  %1861 = vadd.xlane.f32.xlu0 %v1860
  %v1862 = vpop.xlane.xlu0 %1861
  %v1863 = vmul.f32 %v1859, %v856
  %v1864 = vmul.f32 %v1862, %v856
  %v1865 = vadd.f32 %v1863, 1e-05
  %v1866 = vadd.f32 %v1864, 1e-05
  %v1867 = vrsqrt.pop %v1865
  %v1868 = vmul.f32 %v1867, %v1865
  %v1869 = vmul.f32 %v1868, %v1867
  %v1870 = vmul.f32 0.5, %v1869
  %v1871 = vsub.f32 1.5, %v1870
  %v1872 = vmul.f32 %v1867, %v1871
  %vm1873 = vweird.f32 %v1865
  %vm1874 = vweird.f32 %v1867
  %vm1875 = vmor %vm1873, %vm1874
  %v1876 = vsel %vm1875, %v1867, %v1872
  %v1877 = vrsqrt.pop %v1866
  %v1878 = vmul.f32 %v1877, %v1866
  %v1879 = vmul.f32 %v1878, %v1877
  %v1880 = vmul.f32 0.5, %v1879
  %v1881 = vsub.f32 1.5, %v1880
  %v1882 = vmul.f32 %v1877, %v1881
  %vm1883 = vweird.f32 %v1866
  %vm1884 = vweird.f32 %v1877
  %vm1885 = vmor %vm1883, %vm1884
  %v1886 = vsel %vm1885, %v1877, %v1882
  %v1887 = vmul.f32 %v1853, %v1876
  %v1888 = vmul.f32 %v1854, %v1886
  %v1890 = vperm.slane %v1843, 0
  %v1892 = vmul.f32 %v1887, %v1890
  %v1893 = vmul.f32 %v1888, %v1890
  %v1895 = vperm.slane %v1844, 0
  %v1897 = vadd.f32 %v1892, %v1895
  %v1898 = vadd.f32 %v1893, %v1895
  %v1899 = vpack.c.bf16 %v1897, %v1897
  %v1900 = vpack.c.bf16 %v1898, %v1898
  %vm1901 = vcmask 257024
  %1902 = vst.msk [vmem:[%s25] sm:$0xf] %vm1901, %v1899
  %1903 = vst.msk [vmem:[%s25 + $0x4] sm:$0xf] %vm1901, %v1900
  // Predicated region
  $region102: #{a_call__.7} parent=0 // pred_check
    _
  $region103: #{a_call__.7} parent=0 // pred_check_branch
    %1905 = sbr.rel (0) target = $region105
  $region104: #{a_call__.7} parent=0 // pred_region
    _
  $region105: #{a_call__.7} parent=0 // pred_fallthru
    _
  // Predicated region
  $region106: #{a_call__.7} parent=0 // pred_check
    _
  $region107: #{a_call__.7} parent=0 // pred_check_branch
    %1907 = sbr.rel (0) target = $region109
  $region108: #{a_call__.7} parent=0 // pred_region
    _
  $region109: #{a_call__.7} parent=0 // pred_fallthru
    _

</llo_original>
